<compile_context>
chip_gen: v6e
topology: v6e:2x2x1
jax: 0.10.0
libtpu: 0.0.40
codegen_flags: <defaults>
</compile_context>

<pallas_src>
import functools

import jax
import jax.numpy as jnp
from jax.experimental import pallas as pl
from jax.experimental.pallas import tpu as pltpu

_LANE = 128
_SUBLANE = 8


def _round_up(n, m):
    return ((n + m - 1) // m) * m


# ----------------------------------------------------------------------------
# Fused kernel: layer-1 batched projection -> fused layer-1/layer-2 recurrence
#               -> FC head.  Everything stays in VMEM / vregs.
# ----------------------------------------------------------------------------
def _swing5_kernel(x_ref, wih1_ref, whh1_ref, b1_ref,
                   wih2_ref, whh2_ref, b2_ref,
                   wfc_ref, bfc_ref,
                   o_ref,
                   xp1_ref,
                   *, T, Bp):
    H1 = whh1_ref.shape[0]
    H2 = whh2_ref.shape[0]

    # ---- Layer 1: batched input projection (one large bf16 MXU matmul) ----
    xp1_ref[...] = (
        jnp.dot(x_ref[...], wih1_ref[...], preferred_element_type=jnp.float32)
        + b1_ref[...]
    )

    # Hoist weight / bias loads out of the loop (vreg / VMEM resident).
    whh1 = whh1_ref[...]            # (H1, 4H1) bf16
    wih2 = wih2_ref[...]            # (H1, 4H2) bf16
    whh2 = whh2_ref[...]            # (H2, 4H2) bf16
    b2 = b2_ref[...]                # (1, 4H2)  f32

    def lstm_cell(gates, c, H):
        """PyTorch gate order (i, f, g, o); all math in f32."""
        i_g = jax.nn.sigmoid(gates[:, 0 * H:1 * H])
        f_g = jax.nn.sigmoid(gates[:, 1 * H:2 * H])
        g_g = jnp.tanh(gates[:, 2 * H:3 * H])
        o_g = jax.nn.sigmoid(gates[:, 3 * H:4 * H])
        c_new = f_g * c + i_g * g_g
        h_new = o_g * jnp.tanh(c_new)
        return h_new, c_new

    def step(t, carry):
        h1, c1, h2, c2 = carry
        row = pl.multiple_of(t * Bp, Bp)           # sublane-aligned offset
        # Layer-1 recurrence step t (bf16 operands, f32 accumulate).
        gates1 = (
            xp1_ref[pl.ds(row, Bp), :]
            + jnp.dot(h1.astype(jnp.bfloat16), whh1,
                      preferred_element_type=jnp.float32)
        )                                          # (Bp, 4H1) f32
        h1_new, c1_new = lstm_cell(gates1, c1, H1)

        # dropout1 (p=0.3) is identity at inference time.

        # Layer-2 recurrence step t, consuming h1[t] straight from vregs.
        # Only depends on layer-1 step t and layer-2 step t-1, so under full
        # unroll the scheduler overlaps it with layer-1 step t+1.
        h1_bf = h1_new.astype(jnp.bfloat16)
        gates2 = (
            jnp.dot(h1_bf, wih2, preferred_element_type=jnp.float32)
            + jnp.dot(h2.astype(jnp.bfloat16), whh2,
                      preferred_element_type=jnp.float32)
            + b2
        )                                          # (Bp, 4H2) f32
        h2_new, c2_new = lstm_cell(gates2, c2, H2)
        return h1_new, c1_new, h2_new, c2_new

    z1 = jnp.zeros((Bp, H1), jnp.float32)
    z2 = jnp.zeros((Bp, H2), jnp.float32)
    _, _, h2_last, _ = jax.lax.fori_loop(
        0, T, step, (z1, z1, z2, z2),
        unroll=T if T <= 16 else 8)

    # ---- Fused FC head on the final hidden state (lane-dense padded store) ----
    o_ref[...] = (
        jnp.dot(h2_last.astype(jnp.bfloat16), wfc_ref[...],
                preferred_element_type=jnp.float32)
        + bfc_ref[...]
    )


# ----------------------------------------------------------------------------
# One-time parameter packing (hoisted out of the jitted hot path).
# ----------------------------------------------------------------------------
def pack_params(params):
    """Transpose / pad / fold biases / cast weights to bf16. Run once at init."""
    p1, p6, pf = params["lstm1"], params["lstm6"], params["fc"]
    I = p1["w_ih"].shape[1]
    H1 = p1["w_hh"].shape[1]
    H2 = p6["w_hh"].shape[1]
    O = pf["w"].shape[0]

    Ip = _round_up(I, _LANE)       # 100 -> 128
    Op = _round_up(O, _LANE)       # 10  -> 128 (lane-dense output store)

    packed = {
        # (Ip, 4H1) bf16 — zero-padded rows face zero-padded x features.
        "wih1": jnp.pad(jnp.transpose(p1["w_ih"]),
                        ((0, Ip - I), (0, 0))).astype(jnp.bfloat16),
        "whh1": jnp.transpose(p1["w_hh"]).astype(jnp.bfloat16),        # (H1, 4H1)
        "b1": (p1["b_ih"] + p1["b_hh"]).reshape(1, 4 * H1).astype(jnp.float32),
        "wih2": jnp.transpose(p6["w_ih"]).astype(jnp.bfloat16),        # (H1, 4H2)
        "whh2": jnp.transpose(p6["w_hh"]).astype(jnp.bfloat16),        # (H2, 4H2)
        "b2": (p6["b_ih"] + p6["b_hh"]).reshape(1, 4 * H2).astype(jnp.float32),
        "wfc": jnp.pad(jnp.transpose(pf["w"]),
                       ((0, 0), (0, Op - O))).astype(jnp.bfloat16),    # (H2, Op)
        "bfc": jnp.pad(pf["b"], (0, Op - O)).reshape(1, Op).astype(jnp.float32),
    }
    return jax.device_put(packed), O


# ----------------------------------------------------------------------------
# Jitted forward: pad x once, run the fused kernel, slice back.
# ----------------------------------------------------------------------------
@jax.jit
def _swing5_forward_packed(packed, x_bt):
    """x_bt: (B, T, 100) batch-first. Returns padded (Bp, Op) f32 logits."""
    B, T, I = x_bt.shape
    Ip = packed["wih1"].shape[0]
    H1 = packed["whh1"].shape[0]
    H2 = packed["whh2"].shape[0]
    Op = packed["wfc"].shape[1]
    Bp = _round_up(B, _SUBLANE)

    # Time-major, pad batch + features once, flatten time into sublane rows.
    x_tm = jnp.transpose(x_bt, (1, 0, 2)).astype(jnp.float32)      # (T, B, I)
    x_tm = jnp.pad(x_tm, ((0, 0), (0, Bp - B), (0, Ip - I)))        # (T, Bp, Ip)
    x_flat = x_tm.reshape(T * Bp, Ip).astype(jnp.bfloat16)          # (T*Bp, Ip)

    # Advisory cost estimate so XLA can overlap this short custom call.
    flops = 2 * T * Bp * (Ip * 4 * H1 + H1 * 4 * H1 + H1 * 4 * H2 + H2 * 4 * H2)
    flops += 2 * Bp * H2 * Op
    transcendentals = 6 * T * Bp * (H1 + H2)
    bytes_accessed = (
        T * Bp * Ip * 2
        + (Ip * 4 * H1 + H1 * 4 * H1 + H1 * 4 * H2 + H2 * 4 * H2 + H2 * Op) * 2
        + (4 * H1 + 4 * H2 + Op) * 4
        + Bp * Op * 4
    )

    kernel = functools.partial(_swing5_kernel, T=T, Bp=Bp)
    out_pad = pl.pallas_call(
        kernel,
        out_shape=jax.ShapeDtypeStruct((Bp, Op), jnp.float32),
        scratch_shapes=[
            pltpu.VMEM((T * Bp, 4 * H1), jnp.float32),   # layer-1 input projection
        ],
        cost_estimate=pl.CostEstimate(
            flops=flops,
            transcendentals=transcendentals,
            bytes_accessed=bytes_accessed,
        ),
    )(x_flat, packed["wih1"], packed["whh1"], packed["b1"],
      packed["wih2"], packed["whh2"], packed["b2"],
      packed["wfc"], packed["bfc"])
    return out_pad


def swing5_forward(packed, num_out, x_bt):
    B = x_bt.shape[0]
    return _swing5_forward_packed(packed, x_bt)[:B, :num_out]


# ----------------------------------------------------------------------------
# PyTorch-style parameter init
# ----------------------------------------------------------------------------
def init_params(key):
    """Deterministic PyTorch-style init: U(-1/sqrt(H), 1/sqrt(H))."""
    def uni(k, shape, bound):
        return jax.random.uniform(k, shape, jnp.float32, -bound, bound)

    keys = jax.random.split(key, 10)
    H1, H2, I, O = 256, 128, 100, 10
    b1 = 1.0 / jnp.sqrt(H1)
    b2 = 1.0 / jnp.sqrt(H2)
    bf = 1.0 / jnp.sqrt(H2)
    return {
        "lstm1": {
            "w_ih": uni(keys[0], (4 * H1, I), b1),
            "w_hh": uni(keys[1], (4 * H1, H1), b1),
            "b_ih": uni(keys[2], (4 * H1,), b1),
            "b_hh": uni(keys[3], (4 * H1,), b1),
        },
        "lstm6": {
            "w_ih": uni(keys[4], (4 * H2, H1), b2),
            "w_hh": uni(keys[5], (4 * H2, H2), b2),
            "b_ih": uni(keys[6], (4 * H2,), b2),
            "b_hh": uni(keys[7], (4 * H2,), b2),
        },
        "fc": {
            "w": uni(keys[8], (O, H2), bf),
            "b": uni(keys[9], (O,), bf),
        },
    }


# ----------------------------------------------------------------------------
# Pure-JAX f32 reference (lax.scan) for correctness check.
# ----------------------------------------------------------------------------
def _ref_lstm(x_tm, w_ih, w_hh, b_ih, b_hh):
    H = w_hh.shape[1]
    B = x_tm.shape[1]

    def step(carry, x_t):
        h, c = carry
        gates = x_t @ w_ih.T + h @ w_hh.T + b_ih + b_hh
        i = jax.nn.sigmoid(gates[:, 0 * H:1 * H])
        f = jax.nn.sigmoid(gates[:, 1 * H:2 * H])
        g = jnp.tanh(gates[:, 2 * H:3 * H])
        o = jax.nn.sigmoid(gates[:, 3 * H:4 * H])
        c = f * c + i * g
        h = o * jnp.tanh(c)
        return (h, c), h

    init = (jnp.zeros((B, H), jnp.float32), jnp.zeros((B, H), jnp.float32))
    _, ys = jax.lax.scan(step, init, x_tm)
    return ys


def _ref_forward(params, x_bt):
    x_tm = jnp.transpose(x_bt, (1, 0, 2))
    p1, p6, pf = params["lstm1"], params["lstm6"], params["fc"]
    h1 = _ref_lstm(x_tm, p1["w_ih"], p1["w_hh"], p1["b_ih"], p1["b_hh"])
    h2 = _ref_lstm(h1, p6["w_ih"], p6["w_hh"], p6["b_ih"], p6["b_hh"])
    return h2[-1] @ pf["w"].T + pf["b"]


if __name__ == "__main__":
    key = jax.random.PRNGKey(0)
    pkey, xkey = jax.random.split(key)
    params = init_params(pkey)
    packed, num_out = pack_params(params)     # one-time weight packing

    B, T, I = 2, 8, 100
    x = jax.random.normal(xkey, (B, T, I), jnp.float32)

    out = swing5_forward(packed, num_out, x)
    out = jax.block_until_ready(out)
    assert out.shape == (B, 10), out.shape

    # bf16 MXU operands vs. f32 reference -> relaxed (but meaningful) tolerance.
    ref = _ref_forward(params, x)
    max_err = float(jnp.max(jnp.abs(out - ref)))
    assert jnp.allclose(out, ref, rtol=2e-2, atol=2e-2), max_err

    print("KERNEL_OK")
</pallas_src>

<mosaic_0001>
module attributes {stable_mosaic.version = 11 : i64} {
  func.func @_swing5_kernel(%arg0: memref<64x128xbf16, #tpu.memory_space<vmem>>, %arg1: memref<128x1024xbf16, #tpu.memory_space<vmem>>, %arg2: memref<256x1024xbf16, #tpu.memory_space<vmem>>, %arg3: memref<1x1024xf32, #tpu.memory_space<vmem>>, %arg4: memref<256x512xbf16, #tpu.memory_space<vmem>>, %arg5: memref<128x512xbf16, #tpu.memory_space<vmem>>, %arg6: memref<1x512xf32, #tpu.memory_space<vmem>>, %arg7: memref<128x128xbf16, #tpu.memory_space<vmem>>, %arg8: memref<1x128xf32, #tpu.memory_space<vmem>>, %arg9: memref<8x128xf32, #tpu.memory_space<vmem>>, %arg10: memref<64x1024xf32, #tpu.memory_space<vmem>>) attributes {dimension_semantics = [], scalar_prefetch = 0 : i64, scratch_operands = 1 : i64, tpu.core_type = #tpu.core_type<tc>} {
    %c0 = arith.constant 0 : index
    %c0_0 = arith.constant 0 : index
    %0 = vector.load %arg0[%c0, %c0_0] : memref<64x128xbf16, #tpu.memory_space<vmem>>, vector<64x128xbf16>
    %c0_1 = arith.constant 0 : index
    %c0_2 = arith.constant 0 : index
    %1 = vector.load %arg1[%c0_1, %c0_2] : memref<128x1024xbf16, #tpu.memory_space<vmem>>, vector<128x1024xbf16>
    %cst = arith.constant dense<0.000000e+00> : vector<64x1024xf32>
    %2 = tpu.matmul %0, %1, %cst {dimension_numbers = #tpu.dot_dimension_numbers<[1], [0], [0], [1], [0, 0, 1, 1], [], []>} : vector<64x128xbf16>, vector<128x1024xbf16>, vector<64x1024xf32> -> vector<64x1024xf32>
    %c0_3 = arith.constant 0 : index
    %c0_4 = arith.constant 0 : index
    %3 = vector.load %arg3[%c0_3, %c0_4] : memref<1x1024xf32, #tpu.memory_space<vmem>>, vector<1x1024xf32>
    %4 = vector.broadcast %3 : vector<1x1024xf32> to vector<64x1024xf32>
    %5 = arith.addf %2, %4 : vector<64x1024xf32>
    %c0_5 = arith.constant 0 : index
    %c0_6 = arith.constant 0 : index
    %6 = vector.load %arg10[%c0_5, %c0_6] : memref<64x1024xf32, #tpu.memory_space<vmem>>, vector<64x1024xf32>
    tpu.vector_store %arg10[%c0_5, %c0_6], %5 {strides = array<i32>} : memref<64x1024xf32, #tpu.memory_space<vmem>>, vector<64x1024xf32>,
    %c0_7 = arith.constant 0 : index
    %c0_8 = arith.constant 0 : index
    %7 = vector.load %arg2[%c0_7, %c0_8] : memref<256x1024xbf16, #tpu.memory_space<vmem>>, vector<256x1024xbf16>
    %c0_9 = arith.constant 0 : index
    %c0_10 = arith.constant 0 : index
    %8 = vector.load %arg4[%c0_9, %c0_10] : memref<256x512xbf16, #tpu.memory_space<vmem>>, vector<256x512xbf16>
    %c0_11 = arith.constant 0 : index
    %c0_12 = arith.constant 0 : index
    %9 = vector.load %arg5[%c0_11, %c0_12] : memref<128x512xbf16, #tpu.memory_space<vmem>>, vector<128x512xbf16>
    %c0_13 = arith.constant 0 : index
    %c0_14 = arith.constant 0 : index
    %10 = vector.load %arg6[%c0_13, %c0_14] : memref<1x512xf32, #tpu.memory_space<vmem>>, vector<1x512xf32>
    %cst_15 = arith.constant 0.000000e+00 : f32
    %11 = vector.broadcast %cst_15 : f32 to vector<8x256xf32>
    %cst_16 = arith.constant 0.000000e+00 : f32
    %12 = vector.broadcast %cst_16 : f32 to vector<8x128xf32>
    %c0_i32 = arith.constant 0 : i32
    %c8_i32 = arith.constant 8 : i32
    %13 = arith.muli %c0_i32, %c8_i32 : i32
    %14 = tpu.assume_multiple %13, 8 : i32
    %15 = arith.index_cast %14 : i32 to index
    %c0_17 = arith.constant 0 : index
    %16 = vector.load %arg10[%15, %c0_17] : memref<64x1024xf32, #tpu.memory_space<vmem>>, vector<8x1024xf32>
    %17 = arith.truncf %11 : vector<8x256xf32> to vector<8x256xbf16>
    %cst_18 = arith.constant dense<0.000000e+00> : vector<8x1024xf32>
    %18 = tpu.matmul %17, %7, %cst_18 {dimension_numbers = #tpu.dot_dimension_numbers<[1], [0], [0], [1], [0, 0, 1, 1], [], []>} : vector<8x256xbf16>, vector<256x1024xbf16>, vector<8x1024xf32> -> vector<8x1024xf32>
    %19 = arith.addf %16, %18 : vector<8x1024xf32>
    %20 = vector.extract_strided_slice %19 {offsets = [0, 0], sizes = [8, 256], strides = [1, 1]} : vector<8x1024xf32> to vector<8x256xf32>
    %21 = arith.negf %20 : vector<8x256xf32>
    %22 = math.exp %21 : vector<8x256xf32>
    %cst_19 = arith.constant 1.000000e+00 : f32
    %23 = vector.broadcast %cst_19 : f32 to vector<8x256xf32>
    %24 = arith.addf %23, %22 : vector<8x256xf32>
    %25 = arith.divf %23, %24 : vector<8x256xf32>
    %26 = vector.extract_strided_slice %19 {offsets = [0, 256], sizes = [8, 256], strides = [1, 1]} : vector<8x1024xf32> to vector<8x256xf32>
    %27 = arith.negf %26 : vector<8x256xf32>
    %28 = math.exp %27 : vector<8x256xf32>
    %cst_20 = arith.constant 1.000000e+00 : f32
    %29 = vector.broadcast %cst_20 : f32 to vector<8x256xf32>
    %30 = arith.addf %29, %28 : vector<8x256xf32>
    %31 = arith.divf %29, %30 : vector<8x256xf32>
    %32 = vector.extract_strided_slice %19 {offsets = [0, 512], sizes = [8, 256], strides = [1, 1]} : vector<8x1024xf32> to vector<8x256xf32>
    %33 = math.tanh %32 : vector<8x256xf32>
    %34 = vector.extract_strided_slice %19 {offsets = [0, 768], sizes = [8, 256], strides = [1, 1]} : vector<8x1024xf32> to vector<8x256xf32>
    %35 = arith.negf %34 : vector<8x256xf32>
    %36 = math.exp %35 : vector<8x256xf32>
    %cst_21 = arith.constant 1.000000e+00 : f32
    %37 = vector.broadcast %cst_21 : f32 to vector<8x256xf32>
    %38 = arith.addf %37, %36 : vector<8x256xf32>
    %39 = arith.divf %37, %38 : vector<8x256xf32>
    %40 = arith.mulf %31, %11 : vector<8x256xf32>
    %41 = arith.mulf %25, %33 : vector<8x256xf32>
    %42 = arith.addf %40, %41 : vector<8x256xf32>
    %43 = math.tanh %42 : vector<8x256xf32>
    %44 = arith.mulf %39, %43 : vector<8x256xf32>
    %45 = arith.truncf %44 : vector<8x256xf32> to vector<8x256xbf16>
    %cst_22 = arith.constant dense<0.000000e+00> : vector<8x512xf32>
    %46 = tpu.matmul %45, %8, %cst_22 {dimension_numbers = #tpu.dot_dimension_numbers<[1], [0], [0], [1], [0, 0, 1, 1], [], []>} : vector<8x256xbf16>, vector<256x512xbf16>, vector<8x512xf32> -> vector<8x512xf32>
    %47 = arith.truncf %12 : vector<8x128xf32> to vector<8x128xbf16>
    %cst_23 = arith.constant dense<0.000000e+00> : vector<8x512xf32>
    %48 = tpu.matmul %47, %9, %cst_23 {dimension_numbers = #tpu.dot_dimension_numbers<[1], [0], [0], [1], [0, 0, 1, 1], [], []>} : vector<8x128xbf16>, vector<128x512xbf16>, vector<8x512xf32> -> vector<8x512xf32>
    %49 = arith.addf %46, %48 : vector<8x512xf32>
    %50 = vector.broadcast %10 : vector<1x512xf32> to vector<8x512xf32>
    %51 = arith.addf %49, %50 : vector<8x512xf32>
    %52 = vector.extract_strided_slice %51 {offsets = [0, 0], sizes = [8, 128], strides = [1, 1]} : vector<8x512xf32> to vector<8x128xf32>
    %53 = arith.negf %52 : vector<8x128xf32>
    %54 = math.exp %53 : vector<8x128xf32>
    %cst_24 = arith.constant 1.000000e+00 : f32
    %55 = vector.broadcast %cst_24 : f32 to vector<8x128xf32>
    %56 = arith.addf %55, %54 : vector<8x128xf32>
    %57 = arith.divf %55, %56 : vector<8x128xf32>
    %58 = vector.extract_strided_slice %51 {offsets = [0, 128], sizes = [8, 128], strides = [1, 1]} : vector<8x512xf32> to vector<8x128xf32>
    %59 = arith.negf %58 : vector<8x128xf32>
    %60 = math.exp %59 : vector<8x128xf32>
    %cst_25 = arith.constant 1.000000e+00 : f32
    %61 = vector.broadcast %cst_25 : f32 to vector<8x128xf32>
    %62 = arith.addf %61, %60 : vector<8x128xf32>
    %63 = arith.divf %61, %62 : vector<8x128xf32>
    %64 = vector.extract_strided_slice %51 {offsets = [0, 256], sizes = [8, 128], strides = [1, 1]} : vector<8x512xf32> to vector<8x128xf32>
    %65 = math.tanh %64 : vector<8x128xf32>
    %66 = vector.extract_strided_slice %51 {offsets = [0, 384], sizes = [8, 128], strides = [1, 1]} : vector<8x512xf32> to vector<8x128xf32>
    %67 = arith.negf %66 : vector<8x128xf32>
    %68 = math.exp %67 : vector<8x128xf32>
    %cst_26 = arith.constant 1.000000e+00 : f32
    %69 = vector.broadcast %cst_26 : f32 to vector<8x128xf32>
    %70 = arith.addf %69, %68 : vector<8x128xf32>
    %71 = arith.divf %69, %70 : vector<8x128xf32>
    %72 = arith.mulf %63, %12 : vector<8x128xf32>
    %73 = arith.mulf %57, %65 : vector<8x128xf32>
    %74 = arith.addf %72, %73 : vector<8x128xf32>
    %75 = math.tanh %74 : vector<8x128xf32>
    %76 = arith.mulf %71, %75 : vector<8x128xf32>
    %c1_i32 = arith.constant 1 : i32
    %c8_i32_27 = arith.constant 8 : i32
    %77 = arith.muli %c1_i32, %c8_i32_27 : i32
    %78 = tpu.assume_multiple %77, 8 : i32
    %79 = arith.index_cast %78 : i32 to index
    %c0_28 = arith.constant 0 : index
    %80 = vector.load %arg10[%79, %c0_28] : memref<64x1024xf32, #tpu.memory_space<vmem>>, vector<8x1024xf32>
    %81 = arith.truncf %44 : vector<8x256xf32> to vector<8x256xbf16>
    %cst_29 = arith.constant dense<0.000000e+00> : vector<8x1024xf32>
    %82 = tpu.matmul %81, %7, %cst_29 {dimension_numbers = #tpu.dot_dimension_numbers<[1], [0], [0], [1], [0, 0, 1, 1], [], []>} : vector<8x256xbf16>, vector<256x1024xbf16>, vector<8x1024xf32> -> vector<8x1024xf32>
    %83 = arith.addf %80, %82 : vector<8x1024xf32>
    %84 = vector.extract_strided_slice %83 {offsets = [0, 0], sizes = [8, 256], strides = [1, 1]} : vector<8x1024xf32> to vector<8x256xf32>
    %85 = arith.negf %84 : vector<8x256xf32>
    %86 = math.exp %85 : vector<8x256xf32>
    %cst_30 = arith.constant 1.000000e+00 : f32
    %87 = vector.broadcast %cst_30 : f32 to vector<8x256xf32>
    %88 = arith.addf %87, %86 : vector<8x256xf32>
    %89 = arith.divf %87, %88 : vector<8x256xf32>
    %90 = vector.extract_strided_slice %83 {offsets = [0, 256], sizes = [8, 256], strides = [1, 1]} : vector<8x1024xf32> to vector<8x256xf32>
    %91 = arith.negf %90 : vector<8x256xf32>
    %92 = math.exp %91 : vector<8x256xf32>
    %cst_31 = arith.constant 1.000000e+00 : f32
    %93 = vector.broadcast %cst_31 : f32 to vector<8x256xf32>
    %94 = arith.addf %93, %92 : vector<8x256xf32>
    %95 = arith.divf %93, %94 : vector<8x256xf32>
    %96 = vector.extract_strided_slice %83 {offsets = [0, 512], sizes = [8, 256], strides = [1, 1]} : vector<8x1024xf32> to vector<8x256xf32>
    %97 = math.tanh %96 : vector<8x256xf32>
    %98 = vector.extract_strided_slice %83 {offsets = [0, 768], sizes = [8, 256], strides = [1, 1]} : vector<8x1024xf32> to vector<8x256xf32>
    %99 = arith.negf %98 : vector<8x256xf32>
    %100 = math.exp %99 : vector<8x256xf32>
    %cst_32 = arith.constant 1.000000e+00 : f32
    %101 = vector.broadcast %cst_32 : f32 to vector<8x256xf32>
    %102 = arith.addf %101, %100 : vector<8x256xf32>
    %103 = arith.divf %101, %102 : vector<8x256xf32>
    %104 = arith.mulf %95, %42 : vector<8x256xf32>
    %105 = arith.mulf %89, %97 : vector<8x256xf32>
    %106 = arith.addf %104, %105 : vector<8x256xf32>
    %107 = math.tanh %106 : vector<8x256xf32>
    %108 = arith.mulf %103, %107 : vector<8x256xf32>
    %109 = arith.truncf %108 : vector<8x256xf32> to vector<8x256xbf16>
    %cst_33 = arith.constant dense<0.000000e+00> : vector<8x512xf32>
    %110 = tpu.matmul %109, %8, %cst_33 {dimension_numbers = #tpu.dot_dimension_numbers<[1], [0], [0], [1], [0, 0, 1, 1], [], []>} : vector<8x256xbf16>, vector<256x512xbf16>, vector<8x512xf32> -> vector<8x512xf32>
    %111 = arith.truncf %76 : vector<8x128xf32> to vector<8x128xbf16>
    %cst_34 = arith.constant dense<0.000000e+00> : vector<8x512xf32>
    %112 = tpu.matmul %111, %9, %cst_34 {dimension_numbers = #tpu.dot_dimension_numbers<[1], [0], [0], [1], [0, 0, 1, 1], [], []>} : vector<8x128xbf16>, vector<128x512xbf16>, vector<8x512xf32> -> vector<8x512xf32>
    %113 = arith.addf %110, %112 : vector<8x512xf32>
    %114 = vector.broadcast %10 : vector<1x512xf32> to vector<8x512xf32>
    %115 = arith.addf %113, %114 : vector<8x512xf32>
    %116 = vector.extract_strided_slice %115 {offsets = [0, 0], sizes = [8, 128], strides = [1, 1]} : vector<8x512xf32> to vector<8x128xf32>
    %117 = arith.negf %116 : vector<8x128xf32>
    %118 = math.exp %117 : vector<8x128xf32>
    %cst_35 = arith.constant 1.000000e+00 : f32
    %119 = vector.broadcast %cst_35 : f32 to vector<8x128xf32>
    %120 = arith.addf %119, %118 : vector<8x128xf32>
    %121 = arith.divf %119, %120 : vector<8x128xf32>
    %122 = vector.extract_strided_slice %115 {offsets = [0, 128], sizes = [8, 128], strides = [1, 1]} : vector<8x512xf32> to vector<8x128xf32>
    %123 = arith.negf %122 : vector<8x128xf32>
    %124 = math.exp %123 : vector<8x128xf32>
    %cst_36 = arith.constant 1.000000e+00 : f32
    %125 = vector.broadcast %cst_36 : f32 to vector<8x128xf32>
    %126 = arith.addf %125, %124 : vector<8x128xf32>
    %127 = arith.divf %125, %126 : vector<8x128xf32>
    %128 = vector.extract_strided_slice %115 {offsets = [0, 256], sizes = [8, 128], strides = [1, 1]} : vector<8x512xf32> to vector<8x128xf32>
    %129 = math.tanh %128 : vector<8x128xf32>
    %130 = vector.extract_strided_slice %115 {offsets = [0, 384], sizes = [8, 128], strides = [1, 1]} : vector<8x512xf32> to vector<8x128xf32>
    %131 = arith.negf %130 : vector<8x128xf32>
    %132 = math.exp %131 : vector<8x128xf32>
    %cst_37 = arith.constant 1.000000e+00 : f32
    %133 = vector.broadcast %cst_37 : f32 to vector<8x128xf32>
    %134 = arith.addf %133, %132 : vector<8x128xf32>
    %135 = arith.divf %133, %134 : vector<8x128xf32>
    %136 = arith.mulf %127, %74 : vector<8x128xf32>
    %137 = arith.mulf %121, %129 : vector<8x128xf32>
    %138 = arith.addf %136, %137 : vector<8x128xf32>
    %139 = math.tanh %138 : vector<8x128xf32>
    %140 = arith.mulf %135, %139 : vector<8x128xf32>
    %c2_i32 = arith.constant 2 : i32
    %c8_i32_38 = arith.constant 8 : i32
    %141 = arith.muli %c2_i32, %c8_i32_38 : i32
    %142 = tpu.assume_multiple %141, 8 : i32
    %143 = arith.index_cast %142 : i32 to index
    %c0_39 = arith.constant 0 : index
    %144 = vector.load %arg10[%143, %c0_39] : memref<64x1024xf32, #tpu.memory_space<vmem>>, vector<8x1024xf32>
    %145 = arith.truncf %108 : vector<8x256xf32> to vector<8x256xbf16>
    %cst_40 = arith.constant dense<0.000000e+00> : vector<8x1024xf32>
    %146 = tpu.matmul %145, %7, %cst_40 {dimension_numbers = #tpu.dot_dimension_numbers<[1], [0], [0], [1], [0, 0, 1, 1], [], []>} : vector<8x256xbf16>, vector<256x1024xbf16>, vector<8x1024xf32> -> vector<8x1024xf32>
    %147 = arith.addf %144, %146 : vector<8x1024xf32>
    %148 = vector.extract_strided_slice %147 {offsets = [0, 0], sizes = [8, 256], strides = [1, 1]} : vector<8x1024xf32> to vector<8x256xf32>
    %149 = arith.negf %148 : vector<8x256xf32>
    %150 = math.exp %149 : vector<8x256xf32>
    %cst_41 = arith.constant 1.000000e+00 : f32
    %151 = vector.broadcast %cst_41 : f32 to vector<8x256xf32>
    %152 = arith.addf %151, %150 : vector<8x256xf32>
    %153 = arith.divf %151, %152 : vector<8x256xf32>
    %154 = vector.extract_strided_slice %147 {offsets = [0, 256], sizes = [8, 256], strides = [1, 1]} : vector<8x1024xf32> to vector<8x256xf32>
    %155 = arith.negf %154 : vector<8x256xf32>
    %156 = math.exp %155 : vector<8x256xf32>
    %cst_42 = arith.constant 1.000000e+00 : f32
    %157 = vector.broadcast %cst_42 : f32 to vector<8x256xf32>
    %158 = arith.addf %157, %156 : vector<8x256xf32>
    %159 = arith.divf %157, %158 : vector<8x256xf32>
    %160 = vector.extract_strided_slice %147 {offsets = [0, 512], sizes = [8, 256], strides = [1, 1]} : vector<8x1024xf32> to vector<8x256xf32>
    %161 = math.tanh %160 : vector<8x256xf32>
    %162 = vector.extract_strided_slice %147 {offsets = [0, 768], sizes = [8, 256], strides = [1, 1]} : vector<8x1024xf32> to vector<8x256xf32>
    %163 = arith.negf %162 : vector<8x256xf32>
    %164 = math.exp %163 : vector<8x256xf32>
    %cst_43 = arith.constant 1.000000e+00 : f32
    %165 = vector.broadcast %cst_43 : f32 to vector<8x256xf32>
    %166 = arith.addf %165, %164 : vector<8x256xf32>
    %167 = arith.divf %165, %166 : vector<8x256xf32>
    %168 = arith.mulf %159, %106 : vector<8x256xf32>
    %169 = arith.mulf %153, %161 : vector<8x256xf32>
    %170 = arith.addf %168, %169 : vector<8x256xf32>
    %171 = math.tanh %170 : vector<8x256xf32>
    %172 = arith.mulf %167, %171 : vector<8x256xf32>
    %173 = arith.truncf %172 : vector<8x256xf32> to vector<8x256xbf16>
    %cst_44 = arith.constant dense<0.000000e+00> : vector<8x512xf32>
    %174 = tpu.matmul %173, %8, %cst_44 {dimension_numbers = #tpu.dot_dimension_numbers<[1], [0], [0], [1], [0, 0, 1, 1], [], []>} : vector<8x256xbf16>, vector<256x512xbf16>, vector<8x512xf32> -> vector<8x512xf32>
    %175 = arith.truncf %140 : vector<8x128xf32> to vector<8x128xbf16>
    %cst_45 = arith.constant dense<0.000000e+00> : vector<8x512xf32>
    %176 = tpu.matmul %175, %9, %cst_45 {dimension_numbers = #tpu.dot_dimension_numbers<[1], [0], [0], [1], [0, 0, 1, 1], [], []>} : vector<8x128xbf16>, vector<128x512xbf16>, vector<8x512xf32> -> vector<8x512xf32>
    %177 = arith.addf %174, %176 : vector<8x512xf32>
    %178 = vector.broadcast %10 : vector<1x512xf32> to vector<8x512xf32>
    %179 = arith.addf %177, %178 : vector<8x512xf32>
    %180 = vector.extract_strided_slice %179 {offsets = [0, 0], sizes = [8, 128], strides = [1, 1]} : vector<8x512xf32> to vector<8x128xf32>
    %181 = arith.negf %180 : vector<8x128xf32>
    %182 = math.exp %181 : vector<8x128xf32>
    %cst_46 = arith.constant 1.000000e+00 : f32
    %183 = vector.broadcast %cst_46 : f32 to vector<8x128xf32>
    %184 = arith.addf %183, %182 : vector<8x128xf32>
    %185 = arith.divf %183, %184 : vector<8x128xf32>
    %186 = vector.extract_strided_slice %179 {offsets = [0, 128], sizes = [8, 128], strides = [1, 1]} : vector<8x512xf32> to vector<8x128xf32>
    %187 = arith.negf %186 : vector<8x128xf32>
    %188 = math.exp %187 : vector<8x128xf32>
    %cst_47 = arith.constant 1.000000e+00 : f32
    %189 = vector.broadcast %cst_47 : f32 to vector<8x128xf32>
    %190 = arith.addf %189, %188 : vector<8x128xf32>
    %191 = arith.divf %189, %190 : vector<8x128xf32>
    %192 = vector.extract_strided_slice %179 {offsets = [0, 256], sizes = [8, 128], strides = [1, 1]} : vector<8x512xf32> to vector<8x128xf32>
    %193 = math.tanh %192 : vector<8x128xf32>
    %194 = vector.extract_strided_slice %179 {offsets = [0, 384], sizes = [8, 128], strides = [1, 1]} : vector<8x512xf32> to vector<8x128xf32>
    %195 = arith.negf %194 : vector<8x128xf32>
    %196 = math.exp %195 : vector<8x128xf32>
    %cst_48 = arith.constant 1.000000e+00 : f32
    %197 = vector.broadcast %cst_48 : f32 to vector<8x128xf32>
    %198 = arith.addf %197, %196 : vector<8x128xf32>
    %199 = arith.divf %197, %198 : vector<8x128xf32>
    %200 = arith.mulf %191, %138 : vector<8x128xf32>
    %201 = arith.mulf %185, %193 : vector<8x128xf32>
    %202 = arith.addf %200, %201 : vector<8x128xf32>
    %203 = math.tanh %202 : vector<8x128xf32>
    %204 = arith.mulf %199, %203 : vector<8x128xf32>
    %c3_i32 = arith.constant 3 : i32
    %c8_i32_49 = arith.constant 8 : i32
    %205 = arith.muli %c3_i32, %c8_i32_49 : i32
    %206 = tpu.assume_multiple %205, 8 : i32
    %207 = arith.index_cast %206 : i32 to index
    %c0_50 = arith.constant 0 : index
    %208 = vector.load %arg10[%207, %c0_50] : memref<64x1024xf32, #tpu.memory_space<vmem>>, vector<8x1024xf32>
    %209 = arith.truncf %172 : vector<8x256xf32> to vector<8x256xbf16>
    %cst_51 = arith.constant dense<0.000000e+00> : vector<8x1024xf32>
    %210 = tpu.matmul %209, %7, %cst_51 {dimension_numbers = #tpu.dot_dimension_numbers<[1], [0], [0], [1], [0, 0, 1, 1], [], []>} : vector<8x256xbf16>, vector<256x1024xbf16>, vector<8x1024xf32> -> vector<8x1024xf32>
    %211 = arith.addf %208, %210 : vector<8x1024xf32>
    %212 = vector.extract_strided_slice %211 {offsets = [0, 0], sizes = [8, 256], strides = [1, 1]} : vector<8x1024xf32> to vector<8x256xf32>
    %213 = arith.negf %212 : vector<8x256xf32>
    %214 = math.exp %213 : vector<8x256xf32>
    %cst_52 = arith.constant 1.000000e+00 : f32
    %215 = vector.broadcast %cst_52 : f32 to vector<8x256xf32>
    %216 = arith.addf %215, %214 : vector<8x256xf32>
    %217 = arith.divf %215, %216 : vector<8x256xf32>
    %218 = vector.extract_strided_slice %211 {offsets = [0, 256], sizes = [8, 256], strides = [1, 1]} : vector<8x1024xf32> to vector<8x256xf32>
    %219 = arith.negf %218 : vector<8x256xf32>
    %220 = math.exp %219 : vector<8x256xf32>
    %cst_53 = arith.constant 1.000000e+00 : f32
    %221 = vector.broadcast %cst_53 : f32 to vector<8x256xf32>
    %222 = arith.addf %221, %220 : vector<8x256xf32>
    %223 = arith.divf %221, %222 : vector<8x256xf32>
    %224 = vector.extract_strided_slice %211 {offsets = [0, 512], sizes = [8, 256], strides = [1, 1]} : vector<8x1024xf32> to vector<8x256xf32>
    %225 = math.tanh %224 : vector<8x256xf32>
    %226 = vector.extract_strided_slice %211 {offsets = [0, 768], sizes = [8, 256], strides = [1, 1]} : vector<8x1024xf32> to vector<8x256xf32>
    %227 = arith.negf %226 : vector<8x256xf32>
    %228 = math.exp %227 : vector<8x256xf32>
    %cst_54 = arith.constant 1.000000e+00 : f32
    %229 = vector.broadcast %cst_54 : f32 to vector<8x256xf32>
    %230 = arith.addf %229, %228 : vector<8x256xf32>
    %231 = arith.divf %229, %230 : vector<8x256xf32>
    %232 = arith.mulf %223, %170 : vector<8x256xf32>
    %233 = arith.mulf %217, %225 : vector<8x256xf32>
    %234 = arith.addf %232, %233 : vector<8x256xf32>
    %235 = math.tanh %234 : vector<8x256xf32>
    %236 = arith.mulf %231, %235 : vector<8x256xf32>
    %237 = arith.truncf %236 : vector<8x256xf32> to vector<8x256xbf16>
    %cst_55 = arith.constant dense<0.000000e+00> : vector<8x512xf32>
    %238 = tpu.matmul %237, %8, %cst_55 {dimension_numbers = #tpu.dot_dimension_numbers<[1], [0], [0], [1], [0, 0, 1, 1], [], []>} : vector<8x256xbf16>, vector<256x512xbf16>, vector<8x512xf32> -> vector<8x512xf32>
    %239 = arith.truncf %204 : vector<8x128xf32> to vector<8x128xbf16>
    %cst_56 = arith.constant dense<0.000000e+00> : vector<8x512xf32>
    %240 = tpu.matmul %239, %9, %cst_56 {dimension_numbers = #tpu.dot_dimension_numbers<[1], [0], [0], [1], [0, 0, 1, 1], [], []>} : vector<8x128xbf16>, vector<128x512xbf16>, vector<8x512xf32> -> vector<8x512xf32>
    %241 = arith.addf %238, %240 : vector<8x512xf32>
    %242 = vector.broadcast %10 : vector<1x512xf32> to vector<8x512xf32>
    %243 = arith.addf %241, %242 : vector<8x512xf32>
    %244 = vector.extract_strided_slice %243 {offsets = [0, 0], sizes = [8, 128], strides = [1, 1]} : vector<8x512xf32> to vector<8x128xf32>
    %245 = arith.negf %244 : vector<8x128xf32>
    %246 = math.exp %245 : vector<8x128xf32>
    %cst_57 = arith.constant 1.000000e+00 : f32
    %247 = vector.broadcast %cst_57 : f32 to vector<8x128xf32>
    %248 = arith.addf %247, %246 : vector<8x128xf32>
    %249 = arith.divf %247, %248 : vector<8x128xf32>
    %250 = vector.extract_strided_slice %243 {offsets = [0, 128], sizes = [8, 128], strides = [1, 1]} : vector<8x512xf32> to vector<8x128xf32>
    %251 = arith.negf %250 : vector<8x128xf32>
    %252 = math.exp %251 : vector<8x128xf32>
    %cst_58 = arith.constant 1.000000e+00 : f32
    %253 = vector.broadcast %cst_58 : f32 to vector<8x128xf32>
    %254 = arith.addf %253, %252 : vector<8x128xf32>
    %255 = arith.divf %253, %254 : vector<8x128xf32>
    %256 = vector.extract_strided_slice %243 {offsets = [0, 256], sizes = [8, 128], strides = [1, 1]} : vector<8x512xf32> to vector<8x128xf32>
    %257 = math.tanh %256 : vector<8x128xf32>
    %258 = vector.extract_strided_slice %243 {offsets = [0, 384], sizes = [8, 128], strides = [1, 1]} : vector<8x512xf32> to vector<8x128xf32>
    %259 = arith.negf %258 : vector<8x128xf32>
    %260 = math.exp %259 : vector<8x128xf32>
    %cst_59 = arith.constant 1.000000e+00 : f32
    %261 = vector.broadcast %cst_59 : f32 to vector<8x128xf32>
    %262 = arith.addf %261, %260 : vector<8x128xf32>
    %263 = arith.divf %261, %262 : vector<8x128xf32>
    %264 = arith.mulf %255, %202 : vector<8x128xf32>
    %265 = arith.mulf %249, %257 : vector<8x128xf32>
    %266 = arith.addf %264, %265 : vector<8x128xf32>
    %267 = math.tanh %266 : vector<8x128xf32>
    %268 = arith.mulf %263, %267 : vector<8x128xf32>
    %c4_i32 = arith.constant 4 : i32
    %c8_i32_60 = arith.constant 8 : i32
    %269 = arith.muli %c4_i32, %c8_i32_60 : i32
    %270 = tpu.assume_multiple %269, 8 : i32
    %271 = arith.index_cast %270 : i32 to index
    %c0_61 = arith.constant 0 : index
    %272 = vector.load %arg10[%271, %c0_61] : memref<64x1024xf32, #tpu.memory_space<vmem>>, vector<8x1024xf32>
    %273 = arith.truncf %236 : vector<8x256xf32> to vector<8x256xbf16>
    %cst_62 = arith.constant dense<0.000000e+00> : vector<8x1024xf32>
    %274 = tpu.matmul %273, %7, %cst_62 {dimension_numbers = #tpu.dot_dimension_numbers<[1], [0], [0], [1], [0, 0, 1, 1], [], []>} : vector<8x256xbf16>, vector<256x1024xbf16>, vector<8x1024xf32> -> vector<8x1024xf32>
    %275 = arith.addf %272, %274 : vector<8x1024xf32>
    %276 = vector.extract_strided_slice %275 {offsets = [0, 0], sizes = [8, 256], strides = [1, 1]} : vector<8x1024xf32> to vector<8x256xf32>
    %277 = arith.negf %276 : vector<8x256xf32>
    %278 = math.exp %277 : vector<8x256xf32>
    %cst_63 = arith.constant 1.000000e+00 : f32
    %279 = vector.broadcast %cst_63 : f32 to vector<8x256xf32>
    %280 = arith.addf %279, %278 : vector<8x256xf32>
    %281 = arith.divf %279, %280 : vector<8x256xf32>
    %282 = vector.extract_strided_slice %275 {offsets = [0, 256], sizes = [8, 256], strides = [1, 1]} : vector<8x1024xf32> to vector<8x256xf32>
    %283 = arith.negf %282 : vector<8x256xf32>
    %284 = math.exp %283 : vector<8x256xf32>
    %cst_64 = arith.constant 1.000000e+00 : f32
    %285 = vector.broadcast %cst_64 : f32 to vector<8x256xf32>
    %286 = arith.addf %285, %284 : vector<8x256xf32>
    %287 = arith.divf %285, %286 : vector<8x256xf32>
    %288 = vector.extract_strided_slice %275 {offsets = [0, 512], sizes = [8, 256], strides = [1, 1]} : vector<8x1024xf32> to vector<8x256xf32>
    %289 = math.tanh %288 : vector<8x256xf32>
    %290 = vector.extract_strided_slice %275 {offsets = [0, 768], sizes = [8, 256], strides = [1, 1]} : vector<8x1024xf32> to vector<8x256xf32>
    %291 = arith.negf %290 : vector<8x256xf32>
    %292 = math.exp %291 : vector<8x256xf32>
    %cst_65 = arith.constant 1.000000e+00 : f32
    %293 = vector.broadcast %cst_65 : f32 to vector<8x256xf32>
    %294 = arith.addf %293, %292 : vector<8x256xf32>
    %295 = arith.divf %293, %294 : vector<8x256xf32>
    %296 = arith.mulf %287, %234 : vector<8x256xf32>
    %297 = arith.mulf %281, %289 : vector<8x256xf32>
    %298 = arith.addf %296, %297 : vector<8x256xf32>
    %299 = math.tanh %298 : vector<8x256xf32>
    %300 = arith.mulf %295, %299 : vector<8x256xf32>
    %301 = arith.truncf %300 : vector<8x256xf32> to vector<8x256xbf16>
    %cst_66 = arith.constant dense<0.000000e+00> : vector<8x512xf32>
    %302 = tpu.matmul %301, %8, %cst_66 {dimension_numbers = #tpu.dot_dimension_numbers<[1], [0], [0], [1], [0, 0, 1, 1], [], []>} : vector<8x256xbf16>, vector<256x512xbf16>, vector<8x512xf32> -> vector<8x512xf32>
    %303 = arith.truncf %268 : vector<8x128xf32> to vector<8x128xbf16>
    %cst_67 = arith.constant dense<0.000000e+00> : vector<8x512xf32>
    %304 = tpu.matmul %303, %9, %cst_67 {dimension_numbers = #tpu.dot_dimension_numbers<[1], [0], [0], [1], [0, 0, 1, 1], [], []>} : vector<8x128xbf16>, vector<128x512xbf16>, vector<8x512xf32> -> vector<8x512xf32>
    %305 = arith.addf %302, %304 : vector<8x512xf32>
    %306 = vector.broadcast %10 : vector<1x512xf32> to vector<8x512xf32>
    %307 = arith.addf %305, %306 : vector<8x512xf32>
    %308 = vector.extract_strided_slice %307 {offsets = [0, 0], sizes = [8, 128], strides = [1, 1]} : vector<8x512xf32> to vector<8x128xf32>
    %309 = arith.negf %308 : vector<8x128xf32>
    %310 = math.exp %309 : vector<8x128xf32>
    %cst_68 = arith.constant 1.000000e+00 : f32
    %311 = vector.broadcast %cst_68 : f32 to vector<8x128xf32>
    %312 = arith.addf %311, %310 : vector<8x128xf32>
    %313 = arith.divf %311, %312 : vector<8x128xf32>
    %314 = vector.extract_strided_slice %307 {offsets = [0, 128], sizes = [8, 128], strides = [1, 1]} : vector<8x512xf32> to vector<8x128xf32>
    %315 = arith.negf %314 : vector<8x128xf32>
    %316 = math.exp %315 : vector<8x128xf32>
    %cst_69 = arith.constant 1.000000e+00 : f32
    %317 = vector.broadcast %cst_69 : f32 to vector<8x128xf32>
    %318 = arith.addf %317, %316 : vector<8x128xf32>
    %319 = arith.divf %317, %318 : vector<8x128xf32>
    %320 = vector.extract_strided_slice %307 {offsets = [0, 256], sizes = [8, 128], strides = [1, 1]} : vector<8x512xf32> to vector<8x128xf32>
    %321 = math.tanh %320 : vector<8x128xf32>
    %322 = vector.extract_strided_slice %307 {offsets = [0, 384], sizes = [8, 128], strides = [1, 1]} : vector<8x512xf32> to vector<8x128xf32>
    %323 = arith.negf %322 : vector<8x128xf32>
    %324 = math.exp %323 : vector<8x128xf32>
    %cst_70 = arith.constant 1.000000e+00 : f32
    %325 = vector.broadcast %cst_70 : f32 to vector<8x128xf32>
    %326 = arith.addf %325, %324 : vector<8x128xf32>
    %327 = arith.divf %325, %326 : vector<8x128xf32>
    %328 = arith.mulf %319, %266 : vector<8x128xf32>
    %329 = arith.mulf %313, %321 : vector<8x128xf32>
    %330 = arith.addf %328, %329 : vector<8x128xf32>
    %331 = math.tanh %330 : vector<8x128xf32>
    %332 = arith.mulf %327, %331 : vector<8x128xf32>
    %c5_i32 = arith.constant 5 : i32
    %c8_i32_71 = arith.constant 8 : i32
    %333 = arith.muli %c5_i32, %c8_i32_71 : i32
    %334 = tpu.assume_multiple %333, 8 : i32
    %335 = arith.index_cast %334 : i32 to index
    %c0_72 = arith.constant 0 : index
    %336 = vector.load %arg10[%335, %c0_72] : memref<64x1024xf32, #tpu.memory_space<vmem>>, vector<8x1024xf32>
    %337 = arith.truncf %300 : vector<8x256xf32> to vector<8x256xbf16>
    %cst_73 = arith.constant dense<0.000000e+00> : vector<8x1024xf32>
    %338 = tpu.matmul %337, %7, %cst_73 {dimension_numbers = #tpu.dot_dimension_numbers<[1], [0], [0], [1], [0, 0, 1, 1], [], []>} : vector<8x256xbf16>, vector<256x1024xbf16>, vector<8x1024xf32> -> vector<8x1024xf32>
    %339 = arith.addf %336, %338 : vector<8x1024xf32>
    %340 = vector.extract_strided_slice %339 {offsets = [0, 0], sizes = [8, 256], strides = [1, 1]} : vector<8x1024xf32> to vector<8x256xf32>
    %341 = arith.negf %340 : vector<8x256xf32>
    %342 = math.exp %341 : vector<8x256xf32>
    %cst_74 = arith.constant 1.000000e+00 : f32
    %343 = vector.broadcast %cst_74 : f32 to vector<8x256xf32>
    %344 = arith.addf %343, %342 : vector<8x256xf32>
    %345 = arith.divf %343, %344 : vector<8x256xf32>
    %346 = vector.extract_strided_slice %339 {offsets = [0, 256], sizes = [8, 256], strides = [1, 1]} : vector<8x1024xf32> to vector<8x256xf32>
    %347 = arith.negf %346 : vector<8x256xf32>
    %348 = math.exp %347 : vector<8x256xf32>
    %cst_75 = arith.constant 1.000000e+00 : f32
    %349 = vector.broadcast %cst_75 : f32 to vector<8x256xf32>
    %350 = arith.addf %349, %348 : vector<8x256xf32>
    %351 = arith.divf %349, %350 : vector<8x256xf32>
    %352 = vector.extract_strided_slice %339 {offsets = [0, 512], sizes = [8, 256], strides = [1, 1]} : vector<8x1024xf32> to vector<8x256xf32>
    %353 = math.tanh %352 : vector<8x256xf32>
    %354 = vector.extract_strided_slice %339 {offsets = [0, 768], sizes = [8, 256], strides = [1, 1]} : vector<8x1024xf32> to vector<8x256xf32>
    %355 = arith.negf %354 : vector<8x256xf32>
    %356 = math.exp %355 : vector<8x256xf32>
    %cst_76 = arith.constant 1.000000e+00 : f32
    %357 = vector.broadcast %cst_76 : f32 to vector<8x256xf32>
    %358 = arith.addf %357, %356 : vector<8x256xf32>
    %359 = arith.divf %357, %358 : vector<8x256xf32>
    %360 = arith.mulf %351, %298 : vector<8x256xf32>
    %361 = arith.mulf %345, %353 : vector<8x256xf32>
    %362 = arith.addf %360, %361 : vector<8x256xf32>
    %363 = math.tanh %362 : vector<8x256xf32>
    %364 = arith.mulf %359, %363 : vector<8x256xf32>
    %365 = arith.truncf %364 : vector<8x256xf32> to vector<8x256xbf16>
    %cst_77 = arith.constant dense<0.000000e+00> : vector<8x512xf32>
    %366 = tpu.matmul %365, %8, %cst_77 {dimension_numbers = #tpu.dot_dimension_numbers<[1], [0], [0], [1], [0, 0, 1, 1], [], []>} : vector<8x256xbf16>, vector<256x512xbf16>, vector<8x512xf32> -> vector<8x512xf32>
    %367 = arith.truncf %332 : vector<8x128xf32> to vector<8x128xbf16>
    %cst_78 = arith.constant dense<0.000000e+00> : vector<8x512xf32>
    %368 = tpu.matmul %367, %9, %cst_78 {dimension_numbers = #tpu.dot_dimension_numbers<[1], [0], [0], [1], [0, 0, 1, 1], [], []>} : vector<8x128xbf16>, vector<128x512xbf16>, vector<8x512xf32> -> vector<8x512xf32>
    %369 = arith.addf %366, %368 : vector<8x512xf32>
    %370 = vector.broadcast %10 : vector<1x512xf32> to vector<8x512xf32>
    %371 = arith.addf %369, %370 : vector<8x512xf32>
    %372 = vector.extract_strided_slice %371 {offsets = [0, 0], sizes = [8, 128], strides = [1, 1]} : vector<8x512xf32> to vector<8x128xf32>
    %373 = arith.negf %372 : vector<8x128xf32>
    %374 = math.exp %373 : vector<8x128xf32>
    %cst_79 = arith.constant 1.000000e+00 : f32
    %375 = vector.broadcast %cst_79 : f32 to vector<8x128xf32>
    %376 = arith.addf %375, %374 : vector<8x128xf32>
    %377 = arith.divf %375, %376 : vector<8x128xf32>
    %378 = vector.extract_strided_slice %371 {offsets = [0, 128], sizes = [8, 128], strides = [1, 1]} : vector<8x512xf32> to vector<8x128xf32>
    %379 = arith.negf %378 : vector<8x128xf32>
    %380 = math.exp %379 : vector<8x128xf32>
    %cst_80 = arith.constant 1.000000e+00 : f32
    %381 = vector.broadcast %cst_80 : f32 to vector<8x128xf32>
    %382 = arith.addf %381, %380 : vector<8x128xf32>
    %383 = arith.divf %381, %382 : vector<8x128xf32>
    %384 = vector.extract_strided_slice %371 {offsets = [0, 256], sizes = [8, 128], strides = [1, 1]} : vector<8x512xf32> to vector<8x128xf32>
    %385 = math.tanh %384 : vector<8x128xf32>
    %386 = vector.extract_strided_slice %371 {offsets = [0, 384], sizes = [8, 128], strides = [1, 1]} : vector<8x512xf32> to vector<8x128xf32>
    %387 = arith.negf %386 : vector<8x128xf32>
    %388 = math.exp %387 : vector<8x128xf32>
    %cst_81 = arith.constant 1.000000e+00 : f32
    %389 = vector.broadcast %cst_81 : f32 to vector<8x128xf32>
    %390 = arith.addf %389, %388 : vector<8x128xf32>
    %391 = arith.divf %389, %390 : vector<8x128xf32>
    %392 = arith.mulf %383, %330 : vector<8x128xf32>
    %393 = arith.mulf %377, %385 : vector<8x128xf32>
    %394 = arith.addf %392, %393 : vector<8x128xf32>
    %395 = math.tanh %394 : vector<8x128xf32>
    %396 = arith.mulf %391, %395 : vector<8x128xf32>
    %c6_i32 = arith.constant 6 : i32
    %c8_i32_82 = arith.constant 8 : i32
    %397 = arith.muli %c6_i32, %c8_i32_82 : i32
    %398 = tpu.assume_multiple %397, 8 : i32
    %399 = arith.index_cast %398 : i32 to index
    %c0_83 = arith.constant 0 : index
    %400 = vector.load %arg10[%399, %c0_83] : memref<64x1024xf32, #tpu.memory_space<vmem>>, vector<8x1024xf32>
    %401 = arith.truncf %364 : vector<8x256xf32> to vector<8x256xbf16>
    %cst_84 = arith.constant dense<0.000000e+00> : vector<8x1024xf32>
    %402 = tpu.matmul %401, %7, %cst_84 {dimension_numbers = #tpu.dot_dimension_numbers<[1], [0], [0], [1], [0, 0, 1, 1], [], []>} : vector<8x256xbf16>, vector<256x1024xbf16>, vector<8x1024xf32> -> vector<8x1024xf32>
    %403 = arith.addf %400, %402 : vector<8x1024xf32>
    %404 = vector.extract_strided_slice %403 {offsets = [0, 0], sizes = [8, 256], strides = [1, 1]} : vector<8x1024xf32> to vector<8x256xf32>
    %405 = arith.negf %404 : vector<8x256xf32>
    %406 = math.exp %405 : vector<8x256xf32>
    %cst_85 = arith.constant 1.000000e+00 : f32
    %407 = vector.broadcast %cst_85 : f32 to vector<8x256xf32>
    %408 = arith.addf %407, %406 : vector<8x256xf32>
    %409 = arith.divf %407, %408 : vector<8x256xf32>
    %410 = vector.extract_strided_slice %403 {offsets = [0, 256], sizes = [8, 256], strides = [1, 1]} : vector<8x1024xf32> to vector<8x256xf32>
    %411 = arith.negf %410 : vector<8x256xf32>
    %412 = math.exp %411 : vector<8x256xf32>
    %cst_86 = arith.constant 1.000000e+00 : f32
    %413 = vector.broadcast %cst_86 : f32 to vector<8x256xf32>
    %414 = arith.addf %413, %412 : vector<8x256xf32>
    %415 = arith.divf %413, %414 : vector<8x256xf32>
    %416 = vector.extract_strided_slice %403 {offsets = [0, 512], sizes = [8, 256], strides = [1, 1]} : vector<8x1024xf32> to vector<8x256xf32>
    %417 = math.tanh %416 : vector<8x256xf32>
    %418 = vector.extract_strided_slice %403 {offsets = [0, 768], sizes = [8, 256], strides = [1, 1]} : vector<8x1024xf32> to vector<8x256xf32>
    %419 = arith.negf %418 : vector<8x256xf32>
    %420 = math.exp %419 : vector<8x256xf32>
    %cst_87 = arith.constant 1.000000e+00 : f32
    %421 = vector.broadcast %cst_87 : f32 to vector<8x256xf32>
    %422 = arith.addf %421, %420 : vector<8x256xf32>
    %423 = arith.divf %421, %422 : vector<8x256xf32>
    %424 = arith.mulf %415, %362 : vector<8x256xf32>
    %425 = arith.mulf %409, %417 : vector<8x256xf32>
    %426 = arith.addf %424, %425 : vector<8x256xf32>
    %427 = math.tanh %426 : vector<8x256xf32>
    %428 = arith.mulf %423, %427 : vector<8x256xf32>
    %429 = arith.truncf %428 : vector<8x256xf32> to vector<8x256xbf16>
    %cst_88 = arith.constant dense<0.000000e+00> : vector<8x512xf32>
    %430 = tpu.matmul %429, %8, %cst_88 {dimension_numbers = #tpu.dot_dimension_numbers<[1], [0], [0], [1], [0, 0, 1, 1], [], []>} : vector<8x256xbf16>, vector<256x512xbf16>, vector<8x512xf32> -> vector<8x512xf32>
    %431 = arith.truncf %396 : vector<8x128xf32> to vector<8x128xbf16>
    %cst_89 = arith.constant dense<0.000000e+00> : vector<8x512xf32>
    %432 = tpu.matmul %431, %9, %cst_89 {dimension_numbers = #tpu.dot_dimension_numbers<[1], [0], [0], [1], [0, 0, 1, 1], [], []>} : vector<8x128xbf16>, vector<128x512xbf16>, vector<8x512xf32> -> vector<8x512xf32>
    %433 = arith.addf %430, %432 : vector<8x512xf32>
    %434 = vector.broadcast %10 : vector<1x512xf32> to vector<8x512xf32>
    %435 = arith.addf %433, %434 : vector<8x512xf32>
    %436 = vector.extract_strided_slice %435 {offsets = [0, 0], sizes = [8, 128], strides = [1, 1]} : vector<8x512xf32> to vector<8x128xf32>
    %437 = arith.negf %436 : vector<8x128xf32>
    %438 = math.exp %437 : vector<8x128xf32>
    %cst_90 = arith.constant 1.000000e+00 : f32
    %439 = vector.broadcast %cst_90 : f32 to vector<8x128xf32>
    %440 = arith.addf %439, %438 : vector<8x128xf32>
    %441 = arith.divf %439, %440 : vector<8x128xf32>
    %442 = vector.extract_strided_slice %435 {offsets = [0, 128], sizes = [8, 128], strides = [1, 1]} : vector<8x512xf32> to vector<8x128xf32>
    %443 = arith.negf %442 : vector<8x128xf32>
    %444 = math.exp %443 : vector<8x128xf32>
    %cst_91 = arith.constant 1.000000e+00 : f32
    %445 = vector.broadcast %cst_91 : f32 to vector<8x128xf32>
    %446 = arith.addf %445, %444 : vector<8x128xf32>
    %447 = arith.divf %445, %446 : vector<8x128xf32>
    %448 = vector.extract_strided_slice %435 {offsets = [0, 256], sizes = [8, 128], strides = [1, 1]} : vector<8x512xf32> to vector<8x128xf32>
    %449 = math.tanh %448 : vector<8x128xf32>
    %450 = vector.extract_strided_slice %435 {offsets = [0, 384], sizes = [8, 128], strides = [1, 1]} : vector<8x512xf32> to vector<8x128xf32>
    %451 = arith.negf %450 : vector<8x128xf32>
    %452 = math.exp %451 : vector<8x128xf32>
    %cst_92 = arith.constant 1.000000e+00 : f32
    %453 = vector.broadcast %cst_92 : f32 to vector<8x128xf32>
    %454 = arith.addf %453, %452 : vector<8x128xf32>
    %455 = arith.divf %453, %454 : vector<8x128xf32>
    %456 = arith.mulf %447, %394 : vector<8x128xf32>
    %457 = arith.mulf %441, %449 : vector<8x128xf32>
    %458 = arith.addf %456, %457 : vector<8x128xf32>
    %459 = math.tanh %458 : vector<8x128xf32>
    %460 = arith.mulf %455, %459 : vector<8x128xf32>
    %c7_i32 = arith.constant 7 : i32
    %c8_i32_93 = arith.constant 8 : i32
    %461 = arith.muli %c7_i32, %c8_i32_93 : i32
    %462 = tpu.assume_multiple %461, 8 : i32
    %463 = arith.index_cast %462 : i32 to index
    %c0_94 = arith.constant 0 : index
    %464 = vector.load %arg10[%463, %c0_94] : memref<64x1024xf32, #tpu.memory_space<vmem>>, vector<8x1024xf32>
    %465 = arith.truncf %428 : vector<8x256xf32> to vector<8x256xbf16>
    %cst_95 = arith.constant dense<0.000000e+00> : vector<8x1024xf32>
    %466 = tpu.matmul %465, %7, %cst_95 {dimension_numbers = #tpu.dot_dimension_numbers<[1], [0], [0], [1], [0, 0, 1, 1], [], []>} : vector<8x256xbf16>, vector<256x1024xbf16>, vector<8x1024xf32> -> vector<8x1024xf32>
    %467 = arith.addf %464, %466 : vector<8x1024xf32>
    %468 = vector.extract_strided_slice %467 {offsets = [0, 0], sizes = [8, 256], strides = [1, 1]} : vector<8x1024xf32> to vector<8x256xf32>
    %469 = arith.negf %468 : vector<8x256xf32>
    %470 = math.exp %469 : vector<8x256xf32>
    %cst_96 = arith.constant 1.000000e+00 : f32
    %471 = vector.broadcast %cst_96 : f32 to vector<8x256xf32>
    %472 = arith.addf %471, %470 : vector<8x256xf32>
    %473 = arith.divf %471, %472 : vector<8x256xf32>
    %474 = vector.extract_strided_slice %467 {offsets = [0, 256], sizes = [8, 256], strides = [1, 1]} : vector<8x1024xf32> to vector<8x256xf32>
    %475 = arith.negf %474 : vector<8x256xf32>
    %476 = math.exp %475 : vector<8x256xf32>
    %cst_97 = arith.constant 1.000000e+00 : f32
    %477 = vector.broadcast %cst_97 : f32 to vector<8x256xf32>
    %478 = arith.addf %477, %476 : vector<8x256xf32>
    %479 = arith.divf %477, %478 : vector<8x256xf32>
    %480 = vector.extract_strided_slice %467 {offsets = [0, 512], sizes = [8, 256], strides = [1, 1]} : vector<8x1024xf32> to vector<8x256xf32>
    %481 = math.tanh %480 : vector<8x256xf32>
    %482 = vector.extract_strided_slice %467 {offsets = [0, 768], sizes = [8, 256], strides = [1, 1]} : vector<8x1024xf32> to vector<8x256xf32>
    %483 = arith.negf %482 : vector<8x256xf32>
    %484 = math.exp %483 : vector<8x256xf32>
    %cst_98 = arith.constant 1.000000e+00 : f32
    %485 = vector.broadcast %cst_98 : f32 to vector<8x256xf32>
    %486 = arith.addf %485, %484 : vector<8x256xf32>
    %487 = arith.divf %485, %486 : vector<8x256xf32>
    %488 = arith.mulf %479, %426 : vector<8x256xf32>
    %489 = arith.mulf %473, %481 : vector<8x256xf32>
    %490 = arith.addf %488, %489 : vector<8x256xf32>
    %491 = math.tanh %490 : vector<8x256xf32>
    %492 = arith.mulf %487, %491 : vector<8x256xf32>
    %493 = arith.truncf %492 : vector<8x256xf32> to vector<8x256xbf16>
    %cst_99 = arith.constant dense<0.000000e+00> : vector<8x512xf32>
    %494 = tpu.matmul %493, %8, %cst_99 {dimension_numbers = #tpu.dot_dimension_numbers<[1], [0], [0], [1], [0, 0, 1, 1], [], []>} : vector<8x256xbf16>, vector<256x512xbf16>, vector<8x512xf32> -> vector<8x512xf32>
    %495 = arith.truncf %460 : vector<8x128xf32> to vector<8x128xbf16>
    %cst_100 = arith.constant dense<0.000000e+00> : vector<8x512xf32>
    %496 = tpu.matmul %495, %9, %cst_100 {dimension_numbers = #tpu.dot_dimension_numbers<[1], [0], [0], [1], [0, 0, 1, 1], [], []>} : vector<8x128xbf16>, vector<128x512xbf16>, vector<8x512xf32> -> vector<8x512xf32>
    %497 = arith.addf %494, %496 : vector<8x512xf32>
    %498 = vector.broadcast %10 : vector<1x512xf32> to vector<8x512xf32>
    %499 = arith.addf %497, %498 : vector<8x512xf32>
    %500 = vector.extract_strided_slice %499 {offsets = [0, 0], sizes = [8, 128], strides = [1, 1]} : vector<8x512xf32> to vector<8x128xf32>
    %501 = arith.negf %500 : vector<8x128xf32>
    %502 = math.exp %501 : vector<8x128xf32>
    %cst_101 = arith.constant 1.000000e+00 : f32
    %503 = vector.broadcast %cst_101 : f32 to vector<8x128xf32>
    %504 = arith.addf %503, %502 : vector<8x128xf32>
    %505 = arith.divf %503, %504 : vector<8x128xf32>
    %506 = vector.extract_strided_slice %499 {offsets = [0, 128], sizes = [8, 128], strides = [1, 1]} : vector<8x512xf32> to vector<8x128xf32>
    %507 = arith.negf %506 : vector<8x128xf32>
    %508 = math.exp %507 : vector<8x128xf32>
    %cst_102 = arith.constant 1.000000e+00 : f32
    %509 = vector.broadcast %cst_102 : f32 to vector<8x128xf32>
    %510 = arith.addf %509, %508 : vector<8x128xf32>
    %511 = arith.divf %509, %510 : vector<8x128xf32>
    %512 = vector.extract_strided_slice %499 {offsets = [0, 256], sizes = [8, 128], strides = [1, 1]} : vector<8x512xf32> to vector<8x128xf32>
    %513 = math.tanh %512 : vector<8x128xf32>
    %514 = vector.extract_strided_slice %499 {offsets = [0, 384], sizes = [8, 128], strides = [1, 1]} : vector<8x512xf32> to vector<8x128xf32>
    %515 = arith.negf %514 : vector<8x128xf32>
    %516 = math.exp %515 : vector<8x128xf32>
    %cst_103 = arith.constant 1.000000e+00 : f32
    %517 = vector.broadcast %cst_103 : f32 to vector<8x128xf32>
    %518 = arith.addf %517, %516 : vector<8x128xf32>
    %519 = arith.divf %517, %518 : vector<8x128xf32>
    %520 = arith.mulf %511, %458 : vector<8x128xf32>
    %521 = arith.mulf %505, %513 : vector<8x128xf32>
    %522 = arith.addf %520, %521 : vector<8x128xf32>
    %523 = math.tanh %522 : vector<8x128xf32>
    %524 = arith.mulf %519, %523 : vector<8x128xf32>
    %c8_i32_104 = arith.constant 8 : i32
    %525 = arith.truncf %524 : vector<8x128xf32> to vector<8x128xbf16>
    %c0_105 = arith.constant 0 : index
    %c0_106 = arith.constant 0 : index
    %526 = vector.load %arg7[%c0_105, %c0_106] : memref<128x128xbf16, #tpu.memory_space<vmem>>, vector<128x128xbf16>
    %cst_107 = arith.constant dense<0.000000e+00> : vector<8x128xf32>
    %527 = tpu.matmul %525, %526, %cst_107 {dimension_numbers = #tpu.dot_dimension_numbers<[1], [0], [0], [1], [0, 0, 1, 1], [], []>} : vector<8x128xbf16>, vector<128x128xbf16>, vector<8x128xf32> -> vector<8x128xf32>
    %c0_108 = arith.constant 0 : index
    %c0_109 = arith.constant 0 : index
    %528 = vector.load %arg8[%c0_108, %c0_109] : memref<1x128xf32, #tpu.memory_space<vmem>>, vector<1x128xf32>
    %529 = vector.broadcast %528 : vector<1x128xf32> to vector<8x128xf32>
    %530 = arith.addf %527, %529 : vector<8x128xf32>
    %c0_110 = arith.constant 0 : index
    %c0_111 = arith.constant 0 : index
    %531 = vector.load %arg9[%c0_110, %c0_111] : memref<8x128xf32, #tpu.memory_space<vmem>>, vector<8x128xf32>
    tpu.vector_store %arg9[%c0_110, %c0_111], %530 {strides = array<i32>} : memref<8x128xf32, #tpu.memory_space<vmem>>, vector<8x128xf32>,
    return
  }
}

</mosaic_0001>

<llo_original>
// kernel: _swing5_forward_packed.1
$region0: #{_swing5_forward_packed.1}
  #allocation0 [shape = 'u32[]', space=smem, size = 0x4, offset = 0x4, fixed_abs, tag = 'smem constant byte address 0x4 - core index']
  #allocation1 [shape = 'u32[144,128]{1,0:T(1,128)}', space=vmem, size = 0x12000, scoped, tag = 'internal scratch']
  #allocation2 [shape = 'f32[64,1024]{1,0:T(8,128)}', space=vmem, size = 0x40000, scoped, tag = 'scratch operand']
  %s0 = inlined_call_operand.vmem [shape: bf16[64,128], index: 0, kind: input, shape index: {}]
  %s1 = inlined_call_operand.hbm [shape: bf16[128,1024], index: 1, kind: input, shape index: {}]
  %s2 = inlined_call_operand.hbm [shape: bf16[256,1024], index: 2, kind: input, shape index: {}]
  %s3 = inlined_call_operand.vmem [shape: f32[1,1024], index: 3, kind: input, shape index: {}]
  %s4 = inlined_call_operand.hbm [shape: bf16[256,512], index: 4, kind: input, shape index: {}]
  %s5 = inlined_call_operand.hbm [shape: bf16[128,512], index: 5, kind: input, shape index: {}]
  %s6 = inlined_call_operand.vmem [shape: f32[1,512], index: 6, kind: input, shape index: {}]
  %s7 = inlined_call_operand.vmem [shape: bf16[128,128], index: 7, kind: input, shape index: {}]
  %s8 = inlined_call_operand.vmem [shape: f32[1,128], index: 8, kind: input, shape index: {}]
  %s9 = inlined_call_operand.hbm [shape: f32[8,128], index: 9, kind: output, shape index: {}]
  %s10 = sld [smem:[#allocation0]]
  $region62: #{_swing5_forward_packed.1} parent=0
    _
  %s12 = ssub.s32 1, %s10
  %s13 = scalar_select 0, %s12, %s10
  $region1: #{_swing5_forward_packed.1} parent=0
    #allocation3 [shape = 'u8[262144]{0}', space=vmem, size = 0x40000, scoped, tag = 'input window, operand 1, single buffered']
    #allocation4 [shape = 's32[1]{0}', space=sflag, size = 0x4, scoped, tag = 'scoped memory for _swing5_forward_packed.1']
    #allocation5 [shape = 's32[1]{0}', space=sflag, size = 0x4, scoped, tag = 'scoped memory for _swing5_forward_packed.1']
    #allocation6 [shape = 'u8[524288]{0}', space=vmem, size = 0x80000, scoped, tag = 'input window, operand 2, single buffered']
    #allocation7 [shape = 's32[1]{0}', space=sflag, size = 0x4, scoped, tag = 'scoped memory for _swing5_forward_packed.1']
    #allocation8 [shape = 'u8[262144]{0}', space=vmem, size = 0x40000, scoped, tag = 'input window, operand 4, single buffered']
    #allocation9 [shape = 'u8[131072]{0}', space=vmem, size = 0x20000, scoped, tag = 'input window, operand 5, single buffered']
    #allocation10 [shape = 's32[1]{0}', space=sflag, size = 0x4, scoped, tag = 'scoped memory for _swing5_forward_packed.1']
    #allocation11 [shape = 'u8[4096]{0}', space=vmem, size = 0x1000, scoped, tag = 'output window, operand 0, single buffered']
    %14 = vsyncpa [#allocation4], 0
    %15 = vsyncpa [#allocation7], 0
    %16 = vsyncpa [#allocation10], 0
    %17 = vsyncpa [#allocation5], 0
    // Predicated region
    $region2: #{_swing5_forward_packed.1} parent=1 // pred_check
      _
    $region3: #{_swing5_forward_packed.1} parent=1 // pred_check_branch
      %19 = sbr.rel (0) target = $region5
    $region4: #{_swing5_forward_packed.1} parent=1 // pred_region
      _
    $region5: #{_swing5_forward_packed.1} parent=1 // pred_fallthru
      _
    // Predicated region
    $region6: #{_swing5_forward_packed.1} parent=1 // pred_check
      _
    $region7: #{_swing5_forward_packed.1} parent=1 // pred_check_branch
      %21 = sbr.rel (0) target = $region9
    $region8: #{_swing5_forward_packed.1} parent=1 // pred_region
      %s23 = ssub.s32 8192, 8192
      %24 = vsyncadd [#allocation4], %s23
      %s25 = sshll.u32 [#allocation3], 4
      %s26 = int_to_ptr.vmem [resolvable:$true] %s25
      %31 = dma.hbm_to_vmem [thread:$0]  %s1, 8192, %s26, [#allocation4], 512, 512, 32
    $region9: #{_swing5_forward_packed.1} parent=1 // pred_fallthru
      _
    // Predicated region
    $region10: #{_swing5_forward_packed.1} parent=1 // pred_check
      _
    $region11: #{_swing5_forward_packed.1} parent=1 // pred_check_branch
      %33 = sbr.rel (0) target = $region13
    $region12: #{_swing5_forward_packed.1} parent=1 // pred_region
      %s35 = ssub.s32 16384, 16384
      %36 = vsyncadd [#allocation7], %s35
      %s37 = sshll.u32 [#allocation6], 4
      %s38 = int_to_ptr.vmem [resolvable:$true] %s37
      %43 = dma.hbm_to_vmem [thread:$0]  %s2, 16384, %s38, [#allocation7], 512, 512, 32
    $region13: #{_swing5_forward_packed.1} parent=1 // pred_fallthru
      _
    // Predicated region
    $region14: #{_swing5_forward_packed.1} parent=1 // pred_check
      _
    $region15: #{_swing5_forward_packed.1} parent=1 // pred_check_branch
      %45 = sbr.rel (0) target = $region17
    $region16: #{_swing5_forward_packed.1} parent=1 // pred_region
      _
    $region17: #{_swing5_forward_packed.1} parent=1 // pred_fallthru
      _
    // Predicated region
    $region18: #{_swing5_forward_packed.1} parent=1 // pred_check
      _
    $region19: #{_swing5_forward_packed.1} parent=1 // pred_check_branch
      %47 = sbr.rel (0) target = $region21
    $region20: #{_swing5_forward_packed.1} parent=1 // pred_region
      %s49 = ssub.s32 8192, 8192
      %50 = vsyncadd [#allocation7], %s49
      %s51 = sshll.u32 [#allocation8], 4
      %s52 = int_to_ptr.vmem [resolvable:$true] %s51
      %57 = dma.hbm_to_vmem [thread:$0]  %s4, 8192, %s52, [#allocation7], 256, 256, 16
    $region21: #{_swing5_forward_packed.1} parent=1 // pred_fallthru
      _
    // Predicated region
    $region22: #{_swing5_forward_packed.1} parent=1 // pred_check
      _
    $region23: #{_swing5_forward_packed.1} parent=1 // pred_check_branch
      %59 = sbr.rel (0) target = $region25
    $region24: #{_swing5_forward_packed.1} parent=1 // pred_region
      %s61 = ssub.s32 4096, 4096
      %62 = vsyncadd [#allocation10], %s61
      %s63 = sshll.u32 [#allocation9], 4
      %s64 = int_to_ptr.vmem [resolvable:$true] %s63
      %69 = dma.hbm_to_vmem [thread:$0]  %s5, 4096, %s64, [#allocation10], 256, 256, 16
    $region25: #{_swing5_forward_packed.1} parent=1 // pred_fallthru
      _
    // Predicated region
    $region26: #{_swing5_forward_packed.1} parent=1 // pred_check
      _
    $region27: #{_swing5_forward_packed.1} parent=1 // pred_check_branch
      %71 = sbr.rel (0) target = $region29
    $region28: #{_swing5_forward_packed.1} parent=1 // pred_region
      _
    $region29: #{_swing5_forward_packed.1} parent=1 // pred_fallthru
      _
    // Predicated region
    $region30: #{_swing5_forward_packed.1} parent=1 // pred_check
      _
    $region31: #{_swing5_forward_packed.1} parent=1 // pred_check_branch
      %73 = sbr.rel (0) target = $region33
    $region32: #{_swing5_forward_packed.1} parent=1 // pred_region
      _
    $region33: #{_swing5_forward_packed.1} parent=1 // pred_fallthru
      _
    // Predicated region
    $region34: #{_swing5_forward_packed.1} parent=1 // pred_check
      _
    $region35: #{_swing5_forward_packed.1} parent=1 // pred_check_branch
      %75 = sbr.rel (0) target = $region37
    $region36: #{_swing5_forward_packed.1} parent=1 // pred_region
      _
    $region37: #{_swing5_forward_packed.1} parent=1 // pred_fallthru
      _
    // Predicated region
    $region38: #{_swing5_forward_packed.1} parent=1 // pred_check
      _
    $region39: #{_swing5_forward_packed.1} parent=1 // pred_check_branch
      %77 = sbr.rel (0) target = $region41
    $region40: #{_swing5_forward_packed.1} parent=1 // pred_region
      %78 = dma.done [#allocation4], 8192
    $region41: #{_swing5_forward_packed.1} parent=1 // pred_fallthru
      _
    // Predicated region
    $region42: #{_swing5_forward_packed.1} parent=1 // pred_check
      _
    $region43: #{_swing5_forward_packed.1} parent=1 // pred_check_branch
      %80 = sbr.rel (0) target = $region45
    $region44: #{_swing5_forward_packed.1} parent=1 // pred_region
      %81 = dma.done [#allocation7], 16384
    $region45: #{_swing5_forward_packed.1} parent=1 // pred_fallthru
      _
    // Predicated region
    $region46: #{_swing5_forward_packed.1} parent=1 // pred_check
      _
    $region47: #{_swing5_forward_packed.1} parent=1 // pred_check_branch
      %83 = sbr.rel (0) target = $region49
    $region48: #{_swing5_forward_packed.1} parent=1 // pred_region
      %84 = dma.done [#allocation7], 8192
    $region49: #{_swing5_forward_packed.1} parent=1 // pred_fallthru
      _
    // Predicated region
    $region50: #{_swing5_forward_packed.1} parent=1 // pred_check
      _
    $region51: #{_swing5_forward_packed.1} parent=1 // pred_check_branch
      %86 = sbr.rel (0) target = $region53
    $region52: #{_swing5_forward_packed.1} parent=1 // pred_region
      %87 = dma.done [#allocation10], 4096
    $region53: #{_swing5_forward_packed.1} parent=1 // pred_fallthru
      _
    %v89 = vld [vmem:[%s0] sm:$0xf]
    %v90 = vld [vmem:[%s0 + $0x4] sm:$0xf]
    %v91 = vld [vmem:[%s0 + $0x8] sm:$0xf]
    %v92 = vld [vmem:[%s0 + $0xc] sm:$0xf]
    %v93 = vld [vmem:[%s0 + $0x10] sm:$0xf]
    %v94 = vld [vmem:[%s0 + $0x14] sm:$0xf]
    %v95 = vld [vmem:[%s0 + $0x18] sm:$0xf]
    %v96 = vld [vmem:[%s0 + $0x1c] sm:$0xf]
    %v97 = vld [vmem:[#allocation3] sm:$0xff]
    %v98 = vld [vmem:[#allocation3 + $0x8] sm:$0xff]
    %v99 = vld [vmem:[#allocation3 + $0x10] sm:$0xff]
    %v100 = vld [vmem:[#allocation3 + $0x18] sm:$0xff]
    %v101 = vld [vmem:[#allocation3 + $0x20] sm:$0xff]
    %v102 = vld [vmem:[#allocation3 + $0x28] sm:$0xff]
    %v103 = vld [vmem:[#allocation3 + $0x30] sm:$0xff]
    %v104 = vld [vmem:[#allocation3 + $0x38] sm:$0xff]
    %v105 = vld [vmem:[#allocation3 + $0x40] sm:$0xff]
    %v106 = vld [vmem:[#allocation3 + $0x48] sm:$0xff]
    %v107 = vld [vmem:[#allocation3 + $0x50] sm:$0xff]
    %v108 = vld [vmem:[#allocation3 + $0x58] sm:$0xff]
    %v109 = vld [vmem:[#allocation3 + $0x60] sm:$0xff]
    %v110 = vld [vmem:[#allocation3 + $0x68] sm:$0xff]
    %v111 = vld [vmem:[#allocation3 + $0x70] sm:$0xff]
    %v112 = vld [vmem:[#allocation3 + $0x78] sm:$0xff]
    %v113 = vld [vmem:[#allocation3 + $0x80] sm:$0xff]
    %v114 = vld [vmem:[#allocation3 + $0x88] sm:$0xff]
    %v115 = vld [vmem:[#allocation3 + $0x90] sm:$0xff]
    %v116 = vld [vmem:[#allocation3 + $0x98] sm:$0xff]
    %v117 = vld [vmem:[#allocation3 + $0xa0] sm:$0xff]
    %v118 = vld [vmem:[#allocation3 + $0xa8] sm:$0xff]
    %v119 = vld [vmem:[#allocation3 + $0xb0] sm:$0xff]
    %v120 = vld [vmem:[#allocation3 + $0xb8] sm:$0xff]
    %v121 = vld [vmem:[#allocation3 + $0xc0] sm:$0xff]
    %v122 = vld [vmem:[#allocation3 + $0xc8] sm:$0xff]
    %v123 = vld [vmem:[#allocation3 + $0xd0] sm:$0xff]
    %v124 = vld [vmem:[#allocation3 + $0xd8] sm:$0xff]
    %v125 = vld [vmem:[#allocation3 + $0xe0] sm:$0xff]
    %v126 = vld [vmem:[#allocation3 + $0xe8] sm:$0xff]
    %v127 = vld [vmem:[#allocation3 + $0xf0] sm:$0xff]
    %v128 = vld [vmem:[#allocation3 + $0xf8] sm:$0xff]
    %v129 = vld [vmem:[#allocation3 + $0x100] sm:$0xff]
    %v130 = vld [vmem:[#allocation3 + $0x108] sm:$0xff]
    %v131 = vld [vmem:[#allocation3 + $0x110] sm:$0xff]
    %v132 = vld [vmem:[#allocation3 + $0x118] sm:$0xff]
    %v133 = vld [vmem:[#allocation3 + $0x120] sm:$0xff]
    %v134 = vld [vmem:[#allocation3 + $0x128] sm:$0xff]
    %v135 = vld [vmem:[#allocation3 + $0x130] sm:$0xff]
    %v136 = vld [vmem:[#allocation3 + $0x138] sm:$0xff]
    %v137 = vld [vmem:[#allocation3 + $0x140] sm:$0xff]
    %v138 = vld [vmem:[#allocation3 + $0x148] sm:$0xff]
    %v139 = vld [vmem:[#allocation3 + $0x150] sm:$0xff]
    %v140 = vld [vmem:[#allocation3 + $0x158] sm:$0xff]
    %v141 = vld [vmem:[#allocation3 + $0x160] sm:$0xff]
    %v142 = vld [vmem:[#allocation3 + $0x168] sm:$0xff]
    %v143 = vld [vmem:[#allocation3 + $0x170] sm:$0xff]
    %v144 = vld [vmem:[#allocation3 + $0x178] sm:$0xff]
    %v145 = vld [vmem:[#allocation3 + $0x180] sm:$0xff]
    %v146 = vld [vmem:[#allocation3 + $0x188] sm:$0xff]
    %v147 = vld [vmem:[#allocation3 + $0x190] sm:$0xff]
    %v148 = vld [vmem:[#allocation3 + $0x198] sm:$0xff]
    %v149 = vld [vmem:[#allocation3 + $0x1a0] sm:$0xff]
    %v150 = vld [vmem:[#allocation3 + $0x1a8] sm:$0xff]
    %v151 = vld [vmem:[#allocation3 + $0x1b0] sm:$0xff]
    %v152 = vld [vmem:[#allocation3 + $0x1b8] sm:$0xff]
    %v153 = vld [vmem:[#allocation3 + $0x1c0] sm:$0xff]
    %v154 = vld [vmem:[#allocation3 + $0x1c8] sm:$0xff]
    %v155 = vld [vmem:[#allocation3 + $0x1d0] sm:$0xff]
    %v156 = vld [vmem:[#allocation3 + $0x1d8] sm:$0xff]
    %v157 = vld [vmem:[#allocation3 + $0x1e0] sm:$0xff]
    %v158 = vld [vmem:[#allocation3 + $0x1e8] sm:$0xff]
    %v159 = vld [vmem:[#allocation3 + $0x1f0] sm:$0xff]
    %v160 = vld [vmem:[#allocation3 + $0x1f8] sm:$0xff]
    %v161 = vld [vmem:[%s3] sm:$0xff]
    %v163 = vlaneseq
    %v164 = vshrl.u32 %v163, 7
    %v165 = vsub.s32 0, %v164
    %v166 = vrot.slane %v161, %v165
    %v167 = vlaneseq
    %v168 = vshrl.u32 %v167, 7
    %v169 = vsub.s32 1, %v168
    %v170 = vrot.slane %v161, %v169
    %v171 = vlaneseq
    %v172 = vshrl.u32 %v171, 7
    %v173 = vsub.s32 2, %v172
    %v174 = vrot.slane %v161, %v173
    %v175 = vlaneseq
    %v176 = vshrl.u32 %v175, 7
    %v177 = vsub.s32 3, %v176
    %v178 = vrot.slane %v161, %v177
    %v179 = vlaneseq
    %v180 = vshrl.u32 %v179, 7
    %v181 = vsub.s32 4, %v180
    %v182 = vrot.slane %v161, %v181
    %v183 = vlaneseq
    %v184 = vshrl.u32 %v183, 7
    %v185 = vsub.s32 5, %v184
    %v186 = vrot.slane %v161, %v185
    %v187 = vlaneseq
    %v188 = vshrl.u32 %v187, 7
    %v189 = vsub.s32 6, %v188
    %v190 = vrot.slane %v161, %v189
    %v191 = vlaneseq
    %v192 = vshrl.u32 %v191, 7
    %v193 = vsub.s32 7, %v192
    %v194 = vrot.slane %v161, %v193
    %v211 = vunpack.c.l.b16 %v89
    %v212 = vunpack.c.l.b16 %v90
    %v213 = vunpack.c.l.b16 %v91
    %v214 = vunpack.c.l.b16 %v92
    %v215 = vunpack.c.l.b16 %v93
    %v216 = vunpack.c.l.b16 %v94
    %v217 = vunpack.c.l.b16 %v95
    %v218 = vunpack.c.l.b16 %v96
    %v219 = vpack.c.b16 %v212, %v211
    %v220 = vpack.c.b16 %v214, %v213
    %v221 = vpack.c.b16 %v216, %v215
    %v222 = vpack.c.b16 %v218, %v217
    %v291 = vunpack.c.l.b16 %v97
    %v292 = vunpack.c.h.b16 %v97
    %v293 = vunpack.c.l.b16 %v98
    %v294 = vunpack.c.h.b16 %v98
    %v295 = vunpack.c.l.b16 %v99
    %v296 = vunpack.c.h.b16 %v99
    %v297 = vunpack.c.l.b16 %v100
    %v298 = vunpack.c.h.b16 %v100
    %v299 = vunpack.c.l.b16 %v101
    %v300 = vunpack.c.h.b16 %v101
    %v301 = vunpack.c.l.b16 %v102
    %v302 = vunpack.c.h.b16 %v102
    %v303 = vunpack.c.l.b16 %v103
    %v304 = vunpack.c.h.b16 %v103
    %v305 = vunpack.c.l.b16 %v104
    %v306 = vunpack.c.h.b16 %v104
    %v307 = vunpack.c.l.b16 %v105
    %v308 = vunpack.c.h.b16 %v105
    %v309 = vunpack.c.l.b16 %v106
    %v310 = vunpack.c.h.b16 %v106
    %v311 = vunpack.c.l.b16 %v107
    %v312 = vunpack.c.h.b16 %v107
    %v313 = vunpack.c.l.b16 %v108
    %v314 = vunpack.c.h.b16 %v108
    %v315 = vunpack.c.l.b16 %v109
    %v316 = vunpack.c.h.b16 %v109
    %v317 = vunpack.c.l.b16 %v110
    %v318 = vunpack.c.h.b16 %v110
    %v319 = vunpack.c.l.b16 %v111
    %v320 = vunpack.c.h.b16 %v111
    %v321 = vunpack.c.l.b16 %v112
    %v322 = vunpack.c.h.b16 %v112
    %v323 = vunpack.c.l.b16 %v113
    %v324 = vunpack.c.h.b16 %v113
    %v325 = vunpack.c.l.b16 %v114
    %v326 = vunpack.c.h.b16 %v114
    %v327 = vunpack.c.l.b16 %v115
    %v328 = vunpack.c.h.b16 %v115
    %v329 = vunpack.c.l.b16 %v116
    %v330 = vunpack.c.h.b16 %v116
    %v331 = vunpack.c.l.b16 %v117
    %v332 = vunpack.c.h.b16 %v117
    %v333 = vunpack.c.l.b16 %v118
    %v334 = vunpack.c.h.b16 %v118
    %v335 = vunpack.c.l.b16 %v119
    %v336 = vunpack.c.h.b16 %v119
    %v337 = vunpack.c.l.b16 %v120
    %v338 = vunpack.c.h.b16 %v120
    %v339 = vunpack.c.l.b16 %v121
    %v340 = vunpack.c.h.b16 %v121
    %v341 = vunpack.c.l.b16 %v122
    %v342 = vunpack.c.h.b16 %v122
    %v343 = vunpack.c.l.b16 %v123
    %v344 = vunpack.c.h.b16 %v123
    %v345 = vunpack.c.l.b16 %v124
    %v346 = vunpack.c.h.b16 %v124
    %v347 = vunpack.c.l.b16 %v125
    %v348 = vunpack.c.h.b16 %v125
    %v349 = vunpack.c.l.b16 %v126
    %v350 = vunpack.c.h.b16 %v126
    %v351 = vunpack.c.l.b16 %v127
    %v352 = vunpack.c.h.b16 %v127
    %v353 = vunpack.c.l.b16 %v128
    %v354 = vunpack.c.h.b16 %v128
    %v355 = vunpack.c.l.b16 %v129
    %v356 = vunpack.c.h.b16 %v129
    %v357 = vunpack.c.l.b16 %v130
    %v358 = vunpack.c.h.b16 %v130
    %v359 = vunpack.c.l.b16 %v131
    %v360 = vunpack.c.h.b16 %v131
    %v361 = vunpack.c.l.b16 %v132
    %v362 = vunpack.c.h.b16 %v132
    %v363 = vunpack.c.l.b16 %v133
    %v364 = vunpack.c.h.b16 %v133
    %v365 = vunpack.c.l.b16 %v134
    %v366 = vunpack.c.h.b16 %v134
    %v367 = vunpack.c.l.b16 %v135
    %v368 = vunpack.c.h.b16 %v135
    %v369 = vunpack.c.l.b16 %v136
    %v370 = vunpack.c.h.b16 %v136
    %v371 = vunpack.c.l.b16 %v137
    %v372 = vunpack.c.h.b16 %v137
    %v373 = vunpack.c.l.b16 %v138
    %v374 = vunpack.c.h.b16 %v138
    %v375 = vunpack.c.l.b16 %v139
    %v376 = vunpack.c.h.b16 %v139
    %v377 = vunpack.c.l.b16 %v140
    %v378 = vunpack.c.h.b16 %v140
    %v379 = vunpack.c.l.b16 %v141
    %v380 = vunpack.c.h.b16 %v141
    %v381 = vunpack.c.l.b16 %v142
    %v382 = vunpack.c.h.b16 %v142
    %v383 = vunpack.c.l.b16 %v143
    %v384 = vunpack.c.h.b16 %v143
    %v385 = vunpack.c.l.b16 %v144
    %v386 = vunpack.c.h.b16 %v144
    %v387 = vunpack.c.l.b16 %v145
    %v388 = vunpack.c.h.b16 %v145
    %v389 = vunpack.c.l.b16 %v146
    %v390 = vunpack.c.h.b16 %v146
    %v391 = vunpack.c.l.b16 %v147
    %v392 = vunpack.c.h.b16 %v147
    %v393 = vunpack.c.l.b16 %v148
    %v394 = vunpack.c.h.b16 %v148
    %v395 = vunpack.c.l.b16 %v149
    %v396 = vunpack.c.h.b16 %v149
    %v397 = vunpack.c.l.b16 %v150
    %v398 = vunpack.c.h.b16 %v150
    %v399 = vunpack.c.l.b16 %v151
    %v400 = vunpack.c.h.b16 %v151
    %v401 = vunpack.c.l.b16 %v152
    %v402 = vunpack.c.h.b16 %v152
    %v403 = vunpack.c.l.b16 %v153
    %v404 = vunpack.c.h.b16 %v153
    %v405 = vunpack.c.l.b16 %v154
    %v406 = vunpack.c.h.b16 %v154
    %v407 = vunpack.c.l.b16 %v155
    %v408 = vunpack.c.h.b16 %v155
    %v409 = vunpack.c.l.b16 %v156
    %v410 = vunpack.c.h.b16 %v156
    %v411 = vunpack.c.l.b16 %v157
    %v412 = vunpack.c.h.b16 %v157
    %v413 = vunpack.c.l.b16 %v158
    %v414 = vunpack.c.h.b16 %v158
    %v415 = vunpack.c.l.b16 %v159
    %v416 = vunpack.c.h.b16 %v159
    %v417 = vunpack.c.l.b16 %v160
    %v418 = vunpack.c.h.b16 %v160
    %v419 = vpack.c.b16 %v299, %v291
    %v420 = vpack.c.b16 %v300, %v292
    %v421 = vpack.c.b16 %v301, %v293
    %v422 = vpack.c.b16 %v302, %v294
    %v423 = vpack.c.b16 %v303, %v295
    %v424 = vpack.c.b16 %v304, %v296
    %v425 = vpack.c.b16 %v305, %v297
    %v426 = vpack.c.b16 %v306, %v298
    %v427 = vpack.c.b16 %v315, %v307
    %v428 = vpack.c.b16 %v316, %v308
    %v429 = vpack.c.b16 %v317, %v309
    %v430 = vpack.c.b16 %v318, %v310
    %v431 = vpack.c.b16 %v319, %v311
    %v432 = vpack.c.b16 %v320, %v312
    %v433 = vpack.c.b16 %v321, %v313
    %v434 = vpack.c.b16 %v322, %v314
    %v435 = vpack.c.b16 %v331, %v323
    %v436 = vpack.c.b16 %v332, %v324
    %v437 = vpack.c.b16 %v333, %v325
    %v438 = vpack.c.b16 %v334, %v326
    %v439 = vpack.c.b16 %v335, %v327
    %v440 = vpack.c.b16 %v336, %v328
    %v441 = vpack.c.b16 %v337, %v329
    %v442 = vpack.c.b16 %v338, %v330
    %v443 = vpack.c.b16 %v347, %v339
    %v444 = vpack.c.b16 %v348, %v340
    %v445 = vpack.c.b16 %v349, %v341
    %v446 = vpack.c.b16 %v350, %v342
    %v447 = vpack.c.b16 %v351, %v343
    %v448 = vpack.c.b16 %v352, %v344
    %v449 = vpack.c.b16 %v353, %v345
    %v450 = vpack.c.b16 %v354, %v346
    %v451 = vpack.c.b16 %v363, %v355
    %v452 = vpack.c.b16 %v364, %v356
    %v453 = vpack.c.b16 %v365, %v357
    %v454 = vpack.c.b16 %v366, %v358
    %v455 = vpack.c.b16 %v367, %v359
    %v456 = vpack.c.b16 %v368, %v360
    %v457 = vpack.c.b16 %v369, %v361
    %v458 = vpack.c.b16 %v370, %v362
    %v459 = vpack.c.b16 %v379, %v371
    %v460 = vpack.c.b16 %v380, %v372
    %v461 = vpack.c.b16 %v381, %v373
    %v462 = vpack.c.b16 %v382, %v374
    %v463 = vpack.c.b16 %v383, %v375
    %v464 = vpack.c.b16 %v384, %v376
    %v465 = vpack.c.b16 %v385, %v377
    %v466 = vpack.c.b16 %v386, %v378
    %v467 = vpack.c.b16 %v395, %v387
    %v468 = vpack.c.b16 %v396, %v388
    %v469 = vpack.c.b16 %v397, %v389
    %v470 = vpack.c.b16 %v398, %v390
    %v471 = vpack.c.b16 %v399, %v391
    %v472 = vpack.c.b16 %v400, %v392
    %v473 = vpack.c.b16 %v401, %v393
    %v474 = vpack.c.b16 %v402, %v394
    %v475 = vpack.c.b16 %v411, %v403
    %v476 = vpack.c.b16 %v412, %v404
    %v477 = vpack.c.b16 %v413, %v405
    %v478 = vpack.c.b16 %v414, %v406
    %v479 = vpack.c.b16 %v415, %v407
    %v480 = vpack.c.b16 %v416, %v408
    %v481 = vpack.c.b16 %v417, %v409
    %v482 = vpack.c.b16 %v418, %v410
    %547 = vmatprep.subr.bf16.mxu0 %v476
    %548 = vmatpush1.bf16.msra.mxu0 %v475
    %549 = vmatprep.subr.bf16.mxu0 %v468
    %550 = vmatpush1.bf16.msra.mxu0 %v467
    %551 = vmatprep.subr.bf16.mxu0 %v460
    %552 = vmatpush1.bf16.msra.mxu0 %v459
    %553 = vmatprep.subr.bf16.mxu0 %v452
    %554 = vmatpush1.bf16.msra.mxu0 %v451
    %555 = vmatprep.subr.bf16.mxu0 %v444
    %556 = vmatpush1.bf16.msra.mxu0 %v443
    %557 = vmatprep.subr.bf16.mxu0 %v436
    %558 = vmatpush1.bf16.msra.mxu0 %v435
    %559 = vmatprep.subr.bf16.mxu0 %v428
    %560 = vmatpush1.bf16.msra.mxu0 %v427
    %561 = vmatprep.subr.bf16.mxu0 %v420
    %562 = vmatpush1.bf16.msra.mxu0 %v419
    %563 = vmatprep.subr.bf16.mxu0 0
    %564 = vmatpush2.bf16.msra.mxu0 0
    %565 = vmatprep.subr.bf16.mxu0 0
    %566 = vmatpush2.bf16.msra.mxu0 0
    %567 = vmatprep.subr.bf16.mxu0 0
    %568 = vmatpush2.bf16.msra.mxu0 0
    %569 = vmatprep.subr.bf16.mxu0 0
    %570 = vmatpush2.bf16.msra.mxu0 0
    %571 = vmatprep.subr.bf16.mxu0 0
    %572 = vmatpush2.bf16.msra.mxu0 0
    %573 = vmatprep.subr.bf16.mxu0 0
    %574 = vmatpush2.bf16.msra.mxu0 0
    %575 = vmatprep.subr.bf16.mxu0 0
    %576 = vmatpush2.bf16.msra.mxu0 0
    %577 = vmatprep.subr.bf16.mxu0 0
    %578 = vmatpush2.bf16.msra.mxu0 0
    %579 = vmatprep.mubr.bf16.mxu0 0
    %580 = vmatmul.mubr.bf16.gmra.mxu0 %v219
    %v581 = vpop.f32.mrf.mxu0
    %v582 = vadd.f32 %v166, %v581
    %v583 = vpop.f32.mrf.mxu0
    %v584 = vadd.f32 %v170, %v583
    %v585 = vpop.f32.mrf.mxu0
    %v586 = vadd.f32 %v166, %v585
    %v587 = vpop.f32.mrf.mxu0
    %v588 = vadd.f32 %v170, %v587
    %589 = vmatprep.mubr.bf16.mxu0 0
    %590 = vmatmul.mubr.bf16.gmra.mxu0 %v220
    %v591 = vpop.f32.mrf.mxu0
    %v592 = vadd.f32 %v166, %v591
    %v593 = vpop.f32.mrf.mxu0
    %v594 = vadd.f32 %v170, %v593
    %v595 = vpop.f32.mrf.mxu0
    %v596 = vadd.f32 %v166, %v595
    %v597 = vpop.f32.mrf.mxu0
    %v598 = vadd.f32 %v170, %v597
    %599 = vmatprep.mubr.bf16.mxu0 0
    %600 = vmatmul.mubr.bf16.gmra.mxu0 %v221
    %v601 = vpop.f32.mrf.mxu0
    %v602 = vadd.f32 %v166, %v601
    %v603 = vpop.f32.mrf.mxu0
    %v604 = vadd.f32 %v170, %v603
    %v605 = vpop.f32.mrf.mxu0
    %v606 = vadd.f32 %v166, %v605
    %v607 = vpop.f32.mrf.mxu0
    %v608 = vadd.f32 %v170, %v607
    %609 = vmatprep.mubr.bf16.mxu0 0
    %610 = vmatmul.mubr.bf16.gmra.mxu0 %v222
    %v611 = vpop.f32.mrf.mxu0
    %v612 = vadd.f32 %v166, %v611
    %v613 = vpop.f32.mrf.mxu0
    %v614 = vadd.f32 %v170, %v613
    %v615 = vpop.f32.mrf.mxu0
    %v616 = vadd.f32 %v166, %v615
    %v617 = vpop.f32.mrf.mxu0
    %v618 = vadd.f32 %v170, %v617
    %619 = vdwg.mxu0
    %620 = vmatprep.subr.bf16.mxu0 %v478
    %621 = vmatpush1.bf16.msra.mxu0 %v477
    %622 = vmatprep.subr.bf16.mxu0 %v470
    %623 = vmatpush1.bf16.msra.mxu0 %v469
    %624 = vmatprep.subr.bf16.mxu0 %v462
    %625 = vmatpush1.bf16.msra.mxu0 %v461
    %626 = vmatprep.subr.bf16.mxu0 %v454
    %627 = vmatpush1.bf16.msra.mxu0 %v453
    %628 = vmatprep.subr.bf16.mxu0 %v446
    %629 = vmatpush1.bf16.msra.mxu0 %v445
    %630 = vmatprep.subr.bf16.mxu0 %v438
    %631 = vmatpush1.bf16.msra.mxu0 %v437
    %632 = vmatprep.subr.bf16.mxu0 %v430
    %633 = vmatpush1.bf16.msra.mxu0 %v429
    %634 = vmatprep.subr.bf16.mxu0 %v422
    %635 = vmatpush1.bf16.msra.mxu0 %v421
    %636 = vmatprep.subr.bf16.mxu0 0
    %637 = vmatpush2.bf16.msra.mxu0 0
    %638 = vmatprep.subr.bf16.mxu0 0
    %639 = vmatpush2.bf16.msra.mxu0 0
    %640 = vmatprep.subr.bf16.mxu0 0
    %641 = vmatpush2.bf16.msra.mxu0 0
    %642 = vmatprep.subr.bf16.mxu0 0
    %643 = vmatpush2.bf16.msra.mxu0 0
    %644 = vmatprep.subr.bf16.mxu0 0
    %645 = vmatpush2.bf16.msra.mxu0 0
    %646 = vmatprep.subr.bf16.mxu0 0
    %647 = vmatpush2.bf16.msra.mxu0 0
    %648 = vmatprep.subr.bf16.mxu0 0
    %649 = vmatpush2.bf16.msra.mxu0 0
    %650 = vmatprep.subr.bf16.mxu0 0
    %651 = vmatpush2.bf16.msra.mxu0 0
    %652 = vmatprep.mubr.bf16.mxu0 0
    %653 = vmatmul.mubr.bf16.gmra.mxu0 %v219
    %v654 = vpop.f32.mrf.mxu0
    %v655 = vadd.f32 %v174, %v654
    %v656 = vpop.f32.mrf.mxu0
    %v657 = vadd.f32 %v178, %v656
    %v658 = vpop.f32.mrf.mxu0
    %v659 = vadd.f32 %v174, %v658
    %v660 = vpop.f32.mrf.mxu0
    %v661 = vadd.f32 %v178, %v660
    %662 = vmatprep.mubr.bf16.mxu0 0
    %663 = vmatmul.mubr.bf16.gmra.mxu0 %v220
    %v664 = vpop.f32.mrf.mxu0
    %v665 = vadd.f32 %v174, %v664
    %v666 = vpop.f32.mrf.mxu0
    %v667 = vadd.f32 %v178, %v666
    %v668 = vpop.f32.mrf.mxu0
    %v669 = vadd.f32 %v174, %v668
    %v670 = vpop.f32.mrf.mxu0
    %v671 = vadd.f32 %v178, %v670
    %672 = vmatprep.mubr.bf16.mxu0 0
    %673 = vmatmul.mubr.bf16.gmra.mxu0 %v221
    %v674 = vpop.f32.mrf.mxu0
    %v675 = vadd.f32 %v174, %v674
    %v676 = vpop.f32.mrf.mxu0
    %v677 = vadd.f32 %v178, %v676
    %v678 = vpop.f32.mrf.mxu0
    %v679 = vadd.f32 %v174, %v678
    %v680 = vpop.f32.mrf.mxu0
    %v681 = vadd.f32 %v178, %v680
    %682 = vmatprep.mubr.bf16.mxu0 0
    %683 = vmatmul.mubr.bf16.gmra.mxu0 %v222
    %v684 = vpop.f32.mrf.mxu0
    %v685 = vadd.f32 %v174, %v684
    %v686 = vpop.f32.mrf.mxu0
    %v687 = vadd.f32 %v178, %v686
    %v688 = vpop.f32.mrf.mxu0
    %v689 = vadd.f32 %v174, %v688
    %v690 = vpop.f32.mrf.mxu0
    %v691 = vadd.f32 %v178, %v690
    %692 = vdwg.mxu0
    %693 = vmatprep.subr.bf16.mxu0 %v480
    %694 = vmatpush1.bf16.msra.mxu0 %v479
    %695 = vmatprep.subr.bf16.mxu0 %v472
    %696 = vmatpush1.bf16.msra.mxu0 %v471
    %697 = vmatprep.subr.bf16.mxu0 %v464
    %698 = vmatpush1.bf16.msra.mxu0 %v463
    %699 = vmatprep.subr.bf16.mxu0 %v456
    %700 = vmatpush1.bf16.msra.mxu0 %v455
    %701 = vmatprep.subr.bf16.mxu0 %v448
    %702 = vmatpush1.bf16.msra.mxu0 %v447
    %703 = vmatprep.subr.bf16.mxu0 %v440
    %704 = vmatpush1.bf16.msra.mxu0 %v439
    %705 = vmatprep.subr.bf16.mxu0 %v432
    %706 = vmatpush1.bf16.msra.mxu0 %v431
    %707 = vmatprep.subr.bf16.mxu0 %v424
    %708 = vmatpush1.bf16.msra.mxu0 %v423
    %709 = vmatprep.subr.bf16.mxu0 0
    %710 = vmatpush2.bf16.msra.mxu0 0
    %711 = vmatprep.subr.bf16.mxu0 0
    %712 = vmatpush2.bf16.msra.mxu0 0
    %713 = vmatprep.subr.bf16.mxu0 0
    %714 = vmatpush2.bf16.msra.mxu0 0
    %715 = vmatprep.subr.bf16.mxu0 0
    %716 = vmatpush2.bf16.msra.mxu0 0
    %717 = vmatprep.subr.bf16.mxu0 0
    %718 = vmatpush2.bf16.msra.mxu0 0
    %719 = vmatprep.subr.bf16.mxu0 0
    %720 = vmatpush2.bf16.msra.mxu0 0
    %721 = vmatprep.subr.bf16.mxu0 0
    %722 = vmatpush2.bf16.msra.mxu0 0
    %723 = vmatprep.subr.bf16.mxu0 0
    %724 = vmatpush2.bf16.msra.mxu0 0
    %725 = vmatprep.mubr.bf16.mxu0 0
    %726 = vmatmul.mubr.bf16.gmra.mxu0 %v219
    %v727 = vpop.f32.mrf.mxu0
    %v728 = vadd.f32 %v182, %v727
    %v729 = vpop.f32.mrf.mxu0
    %v730 = vadd.f32 %v186, %v729
    %v731 = vpop.f32.mrf.mxu0
    %v732 = vadd.f32 %v182, %v731
    %v733 = vpop.f32.mrf.mxu0
    %v734 = vadd.f32 %v186, %v733
    %735 = vmatprep.mubr.bf16.mxu0 0
    %736 = vmatmul.mubr.bf16.gmra.mxu0 %v220
    %v737 = vpop.f32.mrf.mxu0
    %v738 = vadd.f32 %v182, %v737
    %v739 = vpop.f32.mrf.mxu0
    %v740 = vadd.f32 %v186, %v739
    %v741 = vpop.f32.mrf.mxu0
    %v742 = vadd.f32 %v182, %v741
    %v743 = vpop.f32.mrf.mxu0
    %v744 = vadd.f32 %v186, %v743
    %745 = vmatprep.mubr.bf16.mxu0 0
    %746 = vmatmul.mubr.bf16.gmra.mxu0 %v221
    %v747 = vpop.f32.mrf.mxu0
    %v748 = vadd.f32 %v182, %v747
    %v749 = vpop.f32.mrf.mxu0
    %v750 = vadd.f32 %v186, %v749
    %v751 = vpop.f32.mrf.mxu0
    %v752 = vadd.f32 %v182, %v751
    %v753 = vpop.f32.mrf.mxu0
    %v754 = vadd.f32 %v186, %v753
    %755 = vmatprep.mubr.bf16.mxu0 0
    %756 = vmatmul.mubr.bf16.gmra.mxu0 %v222
    %v757 = vpop.f32.mrf.mxu0
    %v758 = vadd.f32 %v182, %v757
    %v759 = vpop.f32.mrf.mxu0
    %v760 = vadd.f32 %v186, %v759
    %v761 = vpop.f32.mrf.mxu0
    %v762 = vadd.f32 %v182, %v761
    %v763 = vpop.f32.mrf.mxu0
    %v764 = vadd.f32 %v186, %v763
    %765 = vdwg.mxu0
    %766 = vmatprep.subr.bf16.mxu0 %v482
    %767 = vmatpush1.bf16.msra.mxu0 %v481
    %768 = vmatprep.subr.bf16.mxu0 %v474
    %769 = vmatpush1.bf16.msra.mxu0 %v473
    %770 = vmatprep.subr.bf16.mxu0 %v466
    %771 = vmatpush1.bf16.msra.mxu0 %v465
    %772 = vmatprep.subr.bf16.mxu0 %v458
    %773 = vmatpush1.bf16.msra.mxu0 %v457
    %774 = vmatprep.subr.bf16.mxu0 %v450
    %775 = vmatpush1.bf16.msra.mxu0 %v449
    %776 = vmatprep.subr.bf16.mxu0 %v442
    %777 = vmatpush1.bf16.msra.mxu0 %v441
    %778 = vmatprep.subr.bf16.mxu0 %v434
    %779 = vmatpush1.bf16.msra.mxu0 %v433
    %780 = vmatprep.subr.bf16.mxu0 %v426
    %781 = vmatpush1.bf16.msra.mxu0 %v425
    %782 = vmatprep.subr.bf16.mxu0 0
    %783 = vmatpush2.bf16.msra.mxu0 0
    %784 = vmatprep.subr.bf16.mxu0 0
    %785 = vmatpush2.bf16.msra.mxu0 0
    %786 = vmatprep.subr.bf16.mxu0 0
    %787 = vmatpush2.bf16.msra.mxu0 0
    %788 = vmatprep.subr.bf16.mxu0 0
    %789 = vmatpush2.bf16.msra.mxu0 0
    %790 = vmatprep.subr.bf16.mxu0 0
    %791 = vmatpush2.bf16.msra.mxu0 0
    %792 = vmatprep.subr.bf16.mxu0 0
    %793 = vmatpush2.bf16.msra.mxu0 0
    %794 = vmatprep.subr.bf16.mxu0 0
    %795 = vmatpush2.bf16.msra.mxu0 0
    %796 = vmatprep.subr.bf16.mxu0 0
    %797 = vmatpush2.bf16.msra.mxu0 0
    %798 = vmatprep.mubr.bf16.mxu0 0
    %799 = vmatmul.mubr.bf16.gmra.mxu0 %v219
    %v800 = vpop.f32.mrf.mxu0
    %v801 = vadd.f32 %v190, %v800
    %v802 = vpop.f32.mrf.mxu0
    %v803 = vadd.f32 %v194, %v802
    %v804 = vpop.f32.mrf.mxu0
    %v805 = vadd.f32 %v190, %v804
    %v806 = vpop.f32.mrf.mxu0
    %v807 = vadd.f32 %v194, %v806
    %808 = vmatprep.mubr.bf16.mxu0 0
    %809 = vmatmul.mubr.bf16.gmra.mxu0 %v220
    %v810 = vpop.f32.mrf.mxu0
    %v811 = vadd.f32 %v190, %v810
    %v812 = vpop.f32.mrf.mxu0
    %v813 = vadd.f32 %v194, %v812
    %v814 = vpop.f32.mrf.mxu0
    %v815 = vadd.f32 %v190, %v814
    %v816 = vpop.f32.mrf.mxu0
    %v817 = vadd.f32 %v194, %v816
    %818 = vmatprep.mubr.bf16.mxu0 0
    %819 = vmatmul.mubr.bf16.gmra.mxu0 %v221
    %v820 = vpop.f32.mrf.mxu0
    %v821 = vadd.f32 %v190, %v820
    %v822 = vpop.f32.mrf.mxu0
    %v823 = vadd.f32 %v194, %v822
    %v824 = vpop.f32.mrf.mxu0
    %v825 = vadd.f32 %v190, %v824
    %v826 = vpop.f32.mrf.mxu0
    %v827 = vadd.f32 %v194, %v826
    %828 = vmatprep.mubr.bf16.mxu0 0
    %829 = vmatmul.mubr.bf16.gmra.mxu0 %v222
    %v830 = vpop.f32.mrf.mxu0
    %v831 = vadd.f32 %v190, %v830
    %v832 = vpop.f32.mrf.mxu0
    %v833 = vadd.f32 %v194, %v832
    %v834 = vpop.f32.mrf.mxu0
    %v835 = vadd.f32 %v190, %v834
    %v836 = vpop.f32.mrf.mxu0
    %v837 = vadd.f32 %v194, %v836
    %838 = vdwg.mxu0
    %839 = vst [vmem:[#allocation2] sm:$0xff] %v582
    %840 = vst [vmem:[#allocation2 + $0x8] sm:$0xff] %v584
    %841 = vst [vmem:[#allocation2 + $0x10] sm:$0xff] %v655
    %842 = vst [vmem:[#allocation2 + $0x18] sm:$0xff] %v657
    %843 = vst [vmem:[#allocation2 + $0x20] sm:$0xff] %v728
    %844 = vst [vmem:[#allocation2 + $0x28] sm:$0xff] %v730
    %845 = vst [vmem:[#allocation2 + $0x30] sm:$0xff] %v801
    %846 = vst [vmem:[#allocation2 + $0x38] sm:$0xff] %v803
    %847 = vst [vmem:[#allocation2 + $0x40] sm:$0xff] %v586
    %848 = vst [vmem:[#allocation2 + $0x48] sm:$0xff] %v588
    %849 = vst [vmem:[#allocation2 + $0x50] sm:$0xff] %v659
    %850 = vst [vmem:[#allocation2 + $0x58] sm:$0xff] %v661
    %851 = vst [vmem:[#allocation2 + $0x60] sm:$0xff] %v732
    %852 = vst [vmem:[#allocation2 + $0x68] sm:$0xff] %v734
    %853 = vst [vmem:[#allocation2 + $0x70] sm:$0xff] %v805
    %854 = vst [vmem:[#allocation2 + $0x78] sm:$0xff] %v807
    %855 = vst [vmem:[#allocation2 + $0x80] sm:$0xff] %v592
    %856 = vst [vmem:[#allocation2 + $0x88] sm:$0xff] %v594
    %857 = vst [vmem:[#allocation2 + $0x90] sm:$0xff] %v665
    %858 = vst [vmem:[#allocation2 + $0x98] sm:$0xff] %v667
    %859 = vst [vmem:[#allocation2 + $0xa0] sm:$0xff] %v738
    %860 = vst [vmem:[#allocation2 + $0xa8] sm:$0xff] %v740
    %861 = vst [vmem:[#allocation2 + $0xb0] sm:$0xff] %v811
    %862 = vst [vmem:[#allocation2 + $0xb8] sm:$0xff] %v813
    %863 = vst [vmem:[#allocation2 + $0xc0] sm:$0xff] %v596
    %864 = vst [vmem:[#allocation2 + $0xc8] sm:$0xff] %v598
    %865 = vst [vmem:[#allocation2 + $0xd0] sm:$0xff] %v669
    %866 = vst [vmem:[#allocation2 + $0xd8] sm:$0xff] %v671
    %867 = vst [vmem:[#allocation2 + $0xe0] sm:$0xff] %v742
    %868 = vst [vmem:[#allocation2 + $0xe8] sm:$0xff] %v744
    %869 = vst [vmem:[#allocation2 + $0xf0] sm:$0xff] %v815
    %870 = vst [vmem:[#allocation2 + $0xf8] sm:$0xff] %v817
    %871 = vst [vmem:[#allocation2 + $0x100] sm:$0xff] %v602
    %872 = vst [vmem:[#allocation2 + $0x108] sm:$0xff] %v604
    %873 = vst [vmem:[#allocation2 + $0x110] sm:$0xff] %v675
    %874 = vst [vmem:[#allocation2 + $0x118] sm:$0xff] %v677
    %875 = vst [vmem:[#allocation2 + $0x120] sm:$0xff] %v748
    %876 = vst [vmem:[#allocation2 + $0x128] sm:$0xff] %v750
    %877 = vst [vmem:[#allocation2 + $0x130] sm:$0xff] %v821
    %878 = vst [vmem:[#allocation2 + $0x138] sm:$0xff] %v823
    %879 = vst [vmem:[#allocation2 + $0x140] sm:$0xff] %v606
    %880 = vst [vmem:[#allocation2 + $0x148] sm:$0xff] %v608
    %881 = vst [vmem:[#allocation2 + $0x150] sm:$0xff] %v679
    %882 = vst [vmem:[#allocation2 + $0x158] sm:$0xff] %v681
    %883 = vst [vmem:[#allocation2 + $0x160] sm:$0xff] %v752
    %884 = vst [vmem:[#allocation2 + $0x168] sm:$0xff] %v754
    %885 = vst [vmem:[#allocation2 + $0x170] sm:$0xff] %v825
    %886 = vst [vmem:[#allocation2 + $0x178] sm:$0xff] %v827
    %887 = vst [vmem:[#allocation2 + $0x180] sm:$0xff] %v612
    %888 = vst [vmem:[#allocation2 + $0x188] sm:$0xff] %v614
    %889 = vst [vmem:[#allocation2 + $0x190] sm:$0xff] %v685
    %890 = vst [vmem:[#allocation2 + $0x198] sm:$0xff] %v687
    %891 = vst [vmem:[#allocation2 + $0x1a0] sm:$0xff] %v758
    %892 = vst [vmem:[#allocation2 + $0x1a8] sm:$0xff] %v760
    %893 = vst [vmem:[#allocation2 + $0x1b0] sm:$0xff] %v831
    %894 = vst [vmem:[#allocation2 + $0x1b8] sm:$0xff] %v833
    %895 = vst [vmem:[#allocation2 + $0x1c0] sm:$0xff] %v616
    %896 = vst [vmem:[#allocation2 + $0x1c8] sm:$0xff] %v618
    %897 = vst [vmem:[#allocation2 + $0x1d0] sm:$0xff] %v689
    %898 = vst [vmem:[#allocation2 + $0x1d8] sm:$0xff] %v691
    %899 = vst [vmem:[#allocation2 + $0x1e0] sm:$0xff] %v762
    %900 = vst [vmem:[#allocation2 + $0x1e8] sm:$0xff] %v764
    %901 = vst [vmem:[#allocation2 + $0x1f0] sm:$0xff] %v835
    %902 = vst [vmem:[#allocation2 + $0x1f8] sm:$0xff] %v837
    %v903 = vld [vmem:[#allocation6] sm:$0xff]
    %v904 = vld [vmem:[#allocation6 + $0x8] sm:$0xff]
    %v905 = vld [vmem:[#allocation6 + $0x10] sm:$0xff]
    %v906 = vld [vmem:[#allocation6 + $0x18] sm:$0xff]
    %v907 = vld [vmem:[#allocation6 + $0x20] sm:$0xff]
    %v908 = vld [vmem:[#allocation6 + $0x28] sm:$0xff]
    %v909 = vld [vmem:[#allocation6 + $0x30] sm:$0xff]
    %v910 = vld [vmem:[#allocation6 + $0x38] sm:$0xff]
    %v911 = vld [vmem:[#allocation6 + $0x40] sm:$0xff]
    %v912 = vld [vmem:[#allocation6 + $0x48] sm:$0xff]
    %v913 = vld [vmem:[#allocation6 + $0x50] sm:$0xff]
    %v914 = vld [vmem:[#allocation6 + $0x58] sm:$0xff]
    %v915 = vld [vmem:[#allocation6 + $0x60] sm:$0xff]
    %v916 = vld [vmem:[#allocation6 + $0x68] sm:$0xff]
    %v917 = vld [vmem:[#allocation6 + $0x70] sm:$0xff]
    %v918 = vld [vmem:[#allocation6 + $0x78] sm:$0xff]
    %v919 = vld [vmem:[#allocation6 + $0x80] sm:$0xff]
    %v920 = vld [vmem:[#allocation6 + $0x88] sm:$0xff]
    %v921 = vld [vmem:[#allocation6 + $0x90] sm:$0xff]
    %v922 = vld [vmem:[#allocation6 + $0x98] sm:$0xff]
    %v923 = vld [vmem:[#allocation6 + $0xa0] sm:$0xff]
    %v924 = vld [vmem:[#allocation6 + $0xa8] sm:$0xff]
    %v925 = vld [vmem:[#allocation6 + $0xb0] sm:$0xff]
    %v926 = vld [vmem:[#allocation6 + $0xb8] sm:$0xff]
    %v927 = vld [vmem:[#allocation6 + $0xc0] sm:$0xff]
    %v928 = vld [vmem:[#allocation6 + $0xc8] sm:$0xff]
    %v929 = vld [vmem:[#allocation6 + $0xd0] sm:$0xff]
    %v930 = vld [vmem:[#allocation6 + $0xd8] sm:$0xff]
    %v931 = vld [vmem:[#allocation6 + $0xe0] sm:$0xff]
    %v932 = vld [vmem:[#allocation6 + $0xe8] sm:$0xff]
    %v933 = vld [vmem:[#allocation6 + $0xf0] sm:$0xff]
    %v934 = vld [vmem:[#allocation6 + $0xf8] sm:$0xff]
    %v935 = vld [vmem:[#allocation6 + $0x100] sm:$0xff]
    %v936 = vld [vmem:[#allocation6 + $0x108] sm:$0xff]
    %v937 = vld [vmem:[#allocation6 + $0x110] sm:$0xff]
    %v938 = vld [vmem:[#allocation6 + $0x118] sm:$0xff]
    %v939 = vld [vmem:[#allocation6 + $0x120] sm:$0xff]
    %v940 = vld [vmem:[#allocation6 + $0x128] sm:$0xff]
    %v941 = vld [vmem:[#allocation6 + $0x130] sm:$0xff]
    %v942 = vld [vmem:[#allocation6 + $0x138] sm:$0xff]
    %v943 = vld [vmem:[#allocation6 + $0x140] sm:$0xff]
    %v944 = vld [vmem:[#allocation6 + $0x148] sm:$0xff]
    %v945 = vld [vmem:[#allocation6 + $0x150] sm:$0xff]
    %v946 = vld [vmem:[#allocation6 + $0x158] sm:$0xff]
    %v947 = vld [vmem:[#allocation6 + $0x160] sm:$0xff]
    %v948 = vld [vmem:[#allocation6 + $0x168] sm:$0xff]
    %v949 = vld [vmem:[#allocation6 + $0x170] sm:$0xff]
    %v950 = vld [vmem:[#allocation6 + $0x178] sm:$0xff]
    %v951 = vld [vmem:[#allocation6 + $0x180] sm:$0xff]
    %v952 = vld [vmem:[#allocation6 + $0x188] sm:$0xff]
    %v953 = vld [vmem:[#allocation6 + $0x190] sm:$0xff]
    %v954 = vld [vmem:[#allocation6 + $0x198] sm:$0xff]
    %v955 = vld [vmem:[#allocation6 + $0x1a0] sm:$0xff]
    %v956 = vld [vmem:[#allocation6 + $0x1a8] sm:$0xff]
    %v957 = vld [vmem:[#allocation6 + $0x1b0] sm:$0xff]
    %v958 = vld [vmem:[#allocation6 + $0x1b8] sm:$0xff]
    %v959 = vld [vmem:[#allocation6 + $0x1c0] sm:$0xff]
    %v960 = vld [vmem:[#allocation6 + $0x1c8] sm:$0xff]
    %v961 = vld [vmem:[#allocation6 + $0x1d0] sm:$0xff]
    %v962 = vld [vmem:[#allocation6 + $0x1d8] sm:$0xff]
    %v963 = vld [vmem:[#allocation6 + $0x1e0] sm:$0xff]
    %v964 = vld [vmem:[#allocation6 + $0x1e8] sm:$0xff]
    %v965 = vld [vmem:[#allocation6 + $0x1f0] sm:$0xff]
    %v966 = vld [vmem:[#allocation6 + $0x1f8] sm:$0xff]
    %v967 = vld [vmem:[#allocation6 + $0x200] sm:$0xff]
    %v968 = vld [vmem:[#allocation6 + $0x208] sm:$0xff]
    %v969 = vld [vmem:[#allocation6 + $0x210] sm:$0xff]
    %v970 = vld [vmem:[#allocation6 + $0x218] sm:$0xff]
    %v971 = vld [vmem:[#allocation6 + $0x220] sm:$0xff]
    %v972 = vld [vmem:[#allocation6 + $0x228] sm:$0xff]
    %v973 = vld [vmem:[#allocation6 + $0x230] sm:$0xff]
    %v974 = vld [vmem:[#allocation6 + $0x238] sm:$0xff]
    %v975 = vld [vmem:[#allocation6 + $0x240] sm:$0xff]
    %v976 = vld [vmem:[#allocation6 + $0x248] sm:$0xff]
    %v977 = vld [vmem:[#allocation6 + $0x250] sm:$0xff]
    %v978 = vld [vmem:[#allocation6 + $0x258] sm:$0xff]
    %v979 = vld [vmem:[#allocation6 + $0x260] sm:$0xff]
    %v980 = vld [vmem:[#allocation6 + $0x268] sm:$0xff]
    %v981 = vld [vmem:[#allocation6 + $0x270] sm:$0xff]
    %v982 = vld [vmem:[#allocation6 + $0x278] sm:$0xff]
    %v983 = vld [vmem:[#allocation6 + $0x280] sm:$0xff]
    %v984 = vld [vmem:[#allocation6 + $0x288] sm:$0xff]
    %v985 = vld [vmem:[#allocation6 + $0x290] sm:$0xff]
    %v986 = vld [vmem:[#allocation6 + $0x298] sm:$0xff]
    %v987 = vld [vmem:[#allocation6 + $0x2a0] sm:$0xff]
    %v988 = vld [vmem:[#allocation6 + $0x2a8] sm:$0xff]
    %v989 = vld [vmem:[#allocation6 + $0x2b0] sm:$0xff]
    %v990 = vld [vmem:[#allocation6 + $0x2b8] sm:$0xff]
    %v991 = vld [vmem:[#allocation6 + $0x2c0] sm:$0xff]
    %v992 = vld [vmem:[#allocation6 + $0x2c8] sm:$0xff]
    %v993 = vld [vmem:[#allocation6 + $0x2d0] sm:$0xff]
    %v994 = vld [vmem:[#allocation6 + $0x2d8] sm:$0xff]
    %v995 = vld [vmem:[#allocation6 + $0x2e0] sm:$0xff]
    %v996 = vld [vmem:[#allocation6 + $0x2e8] sm:$0xff]
    %v997 = vld [vmem:[#allocation6 + $0x2f0] sm:$0xff]
    %v998 = vld [vmem:[#allocation6 + $0x2f8] sm:$0xff]
    %v999 = vld [vmem:[#allocation6 + $0x300] sm:$0xff]
    %v1000 = vld [vmem:[#allocation6 + $0x308] sm:$0xff]
    %v1001 = vld [vmem:[#allocation6 + $0x310] sm:$0xff]
    %v1002 = vld [vmem:[#allocation6 + $0x318] sm:$0xff]
    %v1003 = vld [vmem:[#allocation6 + $0x320] sm:$0xff]
    %v1004 = vld [vmem:[#allocation6 + $0x328] sm:$0xff]
    %v1005 = vld [vmem:[#allocation6 + $0x330] sm:$0xff]
    %v1006 = vld [vmem:[#allocation6 + $0x338] sm:$0xff]
    %v1007 = vld [vmem:[#allocation6 + $0x340] sm:$0xff]
    %v1008 = vld [vmem:[#allocation6 + $0x348] sm:$0xff]
    %v1009 = vld [vmem:[#allocation6 + $0x350] sm:$0xff]
    %v1010 = vld [vmem:[#allocation6 + $0x358] sm:$0xff]
    %v1011 = vld [vmem:[#allocation6 + $0x360] sm:$0xff]
    %v1012 = vld [vmem:[#allocation6 + $0x368] sm:$0xff]
    %v1013 = vld [vmem:[#allocation6 + $0x370] sm:$0xff]
    %v1014 = vld [vmem:[#allocation6 + $0x378] sm:$0xff]
    %v1015 = vld [vmem:[#allocation6 + $0x380] sm:$0xff]
    %v1016 = vld [vmem:[#allocation6 + $0x388] sm:$0xff]
    %v1017 = vld [vmem:[#allocation6 + $0x390] sm:$0xff]
    %v1018 = vld [vmem:[#allocation6 + $0x398] sm:$0xff]
    %v1019 = vld [vmem:[#allocation6 + $0x3a0] sm:$0xff]
    %v1020 = vld [vmem:[#allocation6 + $0x3a8] sm:$0xff]
    %v1021 = vld [vmem:[#allocation6 + $0x3b0] sm:$0xff]
    %v1022 = vld [vmem:[#allocation6 + $0x3b8] sm:$0xff]
    %v1023 = vld [vmem:[#allocation6 + $0x3c0] sm:$0xff]
    %v1024 = vld [vmem:[#allocation6 + $0x3c8] sm:$0xff]
    %v1025 = vld [vmem:[#allocation6 + $0x3d0] sm:$0xff]
    %v1026 = vld [vmem:[#allocation6 + $0x3d8] sm:$0xff]
    %v1027 = vld [vmem:[#allocation6 + $0x3e0] sm:$0xff]
    %v1028 = vld [vmem:[#allocation6 + $0x3e8] sm:$0xff]
    %v1029 = vld [vmem:[#allocation6 + $0x3f0] sm:$0xff]
    %v1030 = vld [vmem:[#allocation6 + $0x3f8] sm:$0xff]
    %v1031 = vld [vmem:[#allocation8] sm:$0xff]
    %v1032 = vld [vmem:[#allocation8 + $0x8] sm:$0xff]
    %v1033 = vld [vmem:[#allocation8 + $0x10] sm:$0xff]
    %v1034 = vld [vmem:[#allocation8 + $0x18] sm:$0xff]
    %v1035 = vld [vmem:[#allocation8 + $0x20] sm:$0xff]
    %v1036 = vld [vmem:[#allocation8 + $0x28] sm:$0xff]
    %v1037 = vld [vmem:[#allocation8 + $0x30] sm:$0xff]
    %v1038 = vld [vmem:[#allocation8 + $0x38] sm:$0xff]
    %v1039 = vld [vmem:[#allocation8 + $0x40] sm:$0xff]
    %v1040 = vld [vmem:[#allocation8 + $0x48] sm:$0xff]
    %v1041 = vld [vmem:[#allocation8 + $0x50] sm:$0xff]
    %v1042 = vld [vmem:[#allocation8 + $0x58] sm:$0xff]
    %v1043 = vld [vmem:[#allocation8 + $0x60] sm:$0xff]
    %v1044 = vld [vmem:[#allocation8 + $0x68] sm:$0xff]
    %v1045 = vld [vmem:[#allocation8 + $0x70] sm:$0xff]
    %v1046 = vld [vmem:[#allocation8 + $0x78] sm:$0xff]
    %v1047 = vld [vmem:[#allocation8 + $0x80] sm:$0xff]
    %v1048 = vld [vmem:[#allocation8 + $0x88] sm:$0xff]
    %v1049 = vld [vmem:[#allocation8 + $0x90] sm:$0xff]
    %v1050 = vld [vmem:[#allocation8 + $0x98] sm:$0xff]
    %v1051 = vld [vmem:[#allocation8 + $0xa0] sm:$0xff]
    %v1052 = vld [vmem:[#allocation8 + $0xa8] sm:$0xff]
    %v1053 = vld [vmem:[#allocation8 + $0xb0] sm:$0xff]
    %v1054 = vld [vmem:[#allocation8 + $0xb8] sm:$0xff]
    %v1055 = vld [vmem:[#allocation8 + $0xc0] sm:$0xff]
    %v1056 = vld [vmem:[#allocation8 + $0xc8] sm:$0xff]
    %v1057 = vld [vmem:[#allocation8 + $0xd0] sm:$0xff]
    %v1058 = vld [vmem:[#allocation8 + $0xd8] sm:$0xff]
    %v1059 = vld [vmem:[#allocation8 + $0xe0] sm:$0xff]
    %v1060 = vld [vmem:[#allocation8 + $0xe8] sm:$0xff]
    %v1061 = vld [vmem:[#allocation8 + $0xf0] sm:$0xff]
    %v1062 = vld [vmem:[#allocation8 + $0xf8] sm:$0xff]
    %v1063 = vld [vmem:[#allocation8 + $0x100] sm:$0xff]
    %v1064 = vld [vmem:[#allocation8 + $0x108] sm:$0xff]
    %v1065 = vld [vmem:[#allocation8 + $0x110] sm:$0xff]
    %v1066 = vld [vmem:[#allocation8 + $0x118] sm:$0xff]
    %v1067 = vld [vmem:[#allocation8 + $0x120] sm:$0xff]
    %v1068 = vld [vmem:[#allocation8 + $0x128] sm:$0xff]
    %v1069 = vld [vmem:[#allocation8 + $0x130] sm:$0xff]
    %v1070 = vld [vmem:[#allocation8 + $0x138] sm:$0xff]
    %v1071 = vld [vmem:[#allocation8 + $0x140] sm:$0xff]
    %v1072 = vld [vmem:[#allocation8 + $0x148] sm:$0xff]
    %v1073 = vld [vmem:[#allocation8 + $0x150] sm:$0xff]
    %v1074 = vld [vmem:[#allocation8 + $0x158] sm:$0xff]
    %v1075 = vld [vmem:[#allocation8 + $0x160] sm:$0xff]
    %v1076 = vld [vmem:[#allocation8 + $0x168] sm:$0xff]
    %v1077 = vld [vmem:[#allocation8 + $0x170] sm:$0xff]
    %v1078 = vld [vmem:[#allocation8 + $0x178] sm:$0xff]
    %v1079 = vld [vmem:[#allocation8 + $0x180] sm:$0xff]
    %v1080 = vld [vmem:[#allocation8 + $0x188] sm:$0xff]
    %v1081 = vld [vmem:[#allocation8 + $0x190] sm:$0xff]
    %v1082 = vld [vmem:[#allocation8 + $0x198] sm:$0xff]
    %v1083 = vld [vmem:[#allocation8 + $0x1a0] sm:$0xff]
    %v1084 = vld [vmem:[#allocation8 + $0x1a8] sm:$0xff]
    %v1085 = vld [vmem:[#allocation8 + $0x1b0] sm:$0xff]
    %v1086 = vld [vmem:[#allocation8 + $0x1b8] sm:$0xff]
    %v1087 = vld [vmem:[#allocation8 + $0x1c0] sm:$0xff]
    %v1088 = vld [vmem:[#allocation8 + $0x1c8] sm:$0xff]
    %v1089 = vld [vmem:[#allocation8 + $0x1d0] sm:$0xff]
    %v1090 = vld [vmem:[#allocation8 + $0x1d8] sm:$0xff]
    %v1091 = vld [vmem:[#allocation8 + $0x1e0] sm:$0xff]
    %v1092 = vld [vmem:[#allocation8 + $0x1e8] sm:$0xff]
    %v1093 = vld [vmem:[#allocation8 + $0x1f0] sm:$0xff]
    %v1094 = vld [vmem:[#allocation8 + $0x1f8] sm:$0xff]
    %v1095 = vld [vmem:[#allocation9] sm:$0xff]
    %v1096 = vld [vmem:[#allocation9 + $0x8] sm:$0xff]
    %v1097 = vld [vmem:[#allocation9 + $0x10] sm:$0xff]
    %v1098 = vld [vmem:[#allocation9 + $0x18] sm:$0xff]
    %v1099 = vld [vmem:[#allocation9 + $0x20] sm:$0xff]
    %v1100 = vld [vmem:[#allocation9 + $0x28] sm:$0xff]
    %v1101 = vld [vmem:[#allocation9 + $0x30] sm:$0xff]
    %v1102 = vld [vmem:[#allocation9 + $0x38] sm:$0xff]
    %v1103 = vld [vmem:[#allocation9 + $0x40] sm:$0xff]
    %v1104 = vld [vmem:[#allocation9 + $0x48] sm:$0xff]
    %v1105 = vld [vmem:[#allocation9 + $0x50] sm:$0xff]
    %v1106 = vld [vmem:[#allocation9 + $0x58] sm:$0xff]
    %v1107 = vld [vmem:[#allocation9 + $0x60] sm:$0xff]
    %v1108 = vld [vmem:[#allocation9 + $0x68] sm:$0xff]
    %v1109 = vld [vmem:[#allocation9 + $0x70] sm:$0xff]
    %v1110 = vld [vmem:[#allocation9 + $0x78] sm:$0xff]
    %v1111 = vld [vmem:[#allocation9 + $0x80] sm:$0xff]
    %v1112 = vld [vmem:[#allocation9 + $0x88] sm:$0xff]
    %v1113 = vld [vmem:[#allocation9 + $0x90] sm:$0xff]
    %v1114 = vld [vmem:[#allocation9 + $0x98] sm:$0xff]
    %v1115 = vld [vmem:[#allocation9 + $0xa0] sm:$0xff]
    %v1116 = vld [vmem:[#allocation9 + $0xa8] sm:$0xff]
    %v1117 = vld [vmem:[#allocation9 + $0xb0] sm:$0xff]
    %v1118 = vld [vmem:[#allocation9 + $0xb8] sm:$0xff]
    %v1119 = vld [vmem:[#allocation9 + $0xc0] sm:$0xff]
    %v1120 = vld [vmem:[#allocation9 + $0xc8] sm:$0xff]
    %v1121 = vld [vmem:[#allocation9 + $0xd0] sm:$0xff]
    %v1122 = vld [vmem:[#allocation9 + $0xd8] sm:$0xff]
    %v1123 = vld [vmem:[#allocation9 + $0xe0] sm:$0xff]
    %v1124 = vld [vmem:[#allocation9 + $0xe8] sm:$0xff]
    %v1125 = vld [vmem:[#allocation9 + $0xf0] sm:$0xff]
    %v1126 = vld [vmem:[#allocation9 + $0xf8] sm:$0xff]
    %v1127 = vld [vmem:[%s6] sm:$0xf]
    %s1128 = smul.u32 0, 8
    %s1129 = smul.addr %s1128, 8
    %s1130 = scalar_lea.vmem [#allocation2], %s1129
    %v1131 = vld [vmem:[%s1130] sm:$0xff]
    %v1132 = vld [vmem:[%s1130 + $0x8] sm:$0xff]
    %v1133 = vld [vmem:[%s1130 + $0x10] sm:$0xff]
    %v1134 = vld [vmem:[%s1130 + $0x18] sm:$0xff]
    %v1135 = vld [vmem:[%s1130 + $0x20] sm:$0xff]
    %v1136 = vld [vmem:[%s1130 + $0x28] sm:$0xff]
    %v1137 = vld [vmem:[%s1130 + $0x30] sm:$0xff]
    %v1138 = vld [vmem:[%s1130 + $0x38] sm:$0xff]
    %v1267 = vunpack.c.l.b16 %v903
    %v1268 = vunpack.c.h.b16 %v903
    %v1269 = vunpack.c.l.b16 %v904
    %v1270 = vunpack.c.h.b16 %v904
    %v1271 = vunpack.c.l.b16 %v905
    %v1272 = vunpack.c.h.b16 %v905
    %v1273 = vunpack.c.l.b16 %v906
    %v1274 = vunpack.c.h.b16 %v906
    %v1275 = vunpack.c.l.b16 %v907
    %v1276 = vunpack.c.h.b16 %v907
    %v1277 = vunpack.c.l.b16 %v908
    %v1278 = vunpack.c.h.b16 %v908
    %v1279 = vunpack.c.l.b16 %v909
    %v1280 = vunpack.c.h.b16 %v909
    %v1281 = vunpack.c.l.b16 %v910
    %v1282 = vunpack.c.h.b16 %v910
    %v1283 = vunpack.c.l.b16 %v911
    %v1284 = vunpack.c.h.b16 %v911
    %v1285 = vunpack.c.l.b16 %v912
    %v1286 = vunpack.c.h.b16 %v912
    %v1287 = vunpack.c.l.b16 %v913
    %v1288 = vunpack.c.h.b16 %v913
    %v1289 = vunpack.c.l.b16 %v914
    %v1290 = vunpack.c.h.b16 %v914
    %v1291 = vunpack.c.l.b16 %v915
    %v1292 = vunpack.c.h.b16 %v915
    %v1293 = vunpack.c.l.b16 %v916
    %v1294 = vunpack.c.h.b16 %v916
    %v1295 = vunpack.c.l.b16 %v917
    %v1296 = vunpack.c.h.b16 %v917
    %v1297 = vunpack.c.l.b16 %v918
    %v1298 = vunpack.c.h.b16 %v918
    %v1299 = vunpack.c.l.b16 %v919
    %v1300 = vunpack.c.h.b16 %v919
    %v1301 = vunpack.c.l.b16 %v920
    %v1302 = vunpack.c.h.b16 %v920
    %v1303 = vunpack.c.l.b16 %v921
    %v1304 = vunpack.c.h.b16 %v921
    %v1305 = vunpack.c.l.b16 %v922
    %v1306 = vunpack.c.h.b16 %v922
    %v1307 = vunpack.c.l.b16 %v923
    %v1308 = vunpack.c.h.b16 %v923
    %v1309 = vunpack.c.l.b16 %v924
    %v1310 = vunpack.c.h.b16 %v924
    %v1311 = vunpack.c.l.b16 %v925
    %v1312 = vunpack.c.h.b16 %v925
    %v1313 = vunpack.c.l.b16 %v926
    %v1314 = vunpack.c.h.b16 %v926
    %v1315 = vunpack.c.l.b16 %v927
    %v1316 = vunpack.c.h.b16 %v927
    %v1317 = vunpack.c.l.b16 %v928
    %v1318 = vunpack.c.h.b16 %v928
    %v1319 = vunpack.c.l.b16 %v929
    %v1320 = vunpack.c.h.b16 %v929
    %v1321 = vunpack.c.l.b16 %v930
    %v1322 = vunpack.c.h.b16 %v930
    %v1323 = vunpack.c.l.b16 %v931
    %v1324 = vunpack.c.h.b16 %v931
    %v1325 = vunpack.c.l.b16 %v932
    %v1326 = vunpack.c.h.b16 %v932
    %v1327 = vunpack.c.l.b16 %v933
    %v1328 = vunpack.c.h.b16 %v933
    %v1329 = vunpack.c.l.b16 %v934
    %v1330 = vunpack.c.h.b16 %v934
    %v1331 = vunpack.c.l.b16 %v935
    %v1332 = vunpack.c.h.b16 %v935
    %v1333 = vunpack.c.l.b16 %v936
    %v1334 = vunpack.c.h.b16 %v936
    %v1335 = vunpack.c.l.b16 %v937
    %v1336 = vunpack.c.h.b16 %v937
    %v1337 = vunpack.c.l.b16 %v938
    %v1338 = vunpack.c.h.b16 %v938
    %v1339 = vunpack.c.l.b16 %v939
    %v1340 = vunpack.c.h.b16 %v939
    %v1341 = vunpack.c.l.b16 %v940
    %v1342 = vunpack.c.h.b16 %v940
    %v1343 = vunpack.c.l.b16 %v941
    %v1344 = vunpack.c.h.b16 %v941
    %v1345 = vunpack.c.l.b16 %v942
    %v1346 = vunpack.c.h.b16 %v942
    %v1347 = vunpack.c.l.b16 %v943
    %v1348 = vunpack.c.h.b16 %v943
    %v1349 = vunpack.c.l.b16 %v944
    %v1350 = vunpack.c.h.b16 %v944
    %v1351 = vunpack.c.l.b16 %v945
    %v1352 = vunpack.c.h.b16 %v945
    %v1353 = vunpack.c.l.b16 %v946
    %v1354 = vunpack.c.h.b16 %v946
    %v1355 = vunpack.c.l.b16 %v947
    %v1356 = vunpack.c.h.b16 %v947
    %v1357 = vunpack.c.l.b16 %v948
    %v1358 = vunpack.c.h.b16 %v948
    %v1359 = vunpack.c.l.b16 %v949
    %v1360 = vunpack.c.h.b16 %v949
    %v1361 = vunpack.c.l.b16 %v950
    %v1362 = vunpack.c.h.b16 %v950
    %v1363 = vunpack.c.l.b16 %v951
    %v1364 = vunpack.c.h.b16 %v951
    %v1365 = vunpack.c.l.b16 %v952
    %v1366 = vunpack.c.h.b16 %v952
    %v1367 = vunpack.c.l.b16 %v953
    %v1368 = vunpack.c.h.b16 %v953
    %v1369 = vunpack.c.l.b16 %v954
    %v1370 = vunpack.c.h.b16 %v954
    %v1371 = vunpack.c.l.b16 %v955
    %v1372 = vunpack.c.h.b16 %v955
    %v1373 = vunpack.c.l.b16 %v956
    %v1374 = vunpack.c.h.b16 %v956
    %v1375 = vunpack.c.l.b16 %v957
    %v1376 = vunpack.c.h.b16 %v957
    %v1377 = vunpack.c.l.b16 %v958
    %v1378 = vunpack.c.h.b16 %v958
    %v1379 = vunpack.c.l.b16 %v959
    %v1380 = vunpack.c.h.b16 %v959
    %v1381 = vunpack.c.l.b16 %v960
    %v1382 = vunpack.c.h.b16 %v960
    %v1383 = vunpack.c.l.b16 %v961
    %v1384 = vunpack.c.h.b16 %v961
    %v1385 = vunpack.c.l.b16 %v962
    %v1386 = vunpack.c.h.b16 %v962
    %v1387 = vunpack.c.l.b16 %v963
    %v1388 = vunpack.c.h.b16 %v963
    %v1389 = vunpack.c.l.b16 %v964
    %v1390 = vunpack.c.h.b16 %v964
    %v1391 = vunpack.c.l.b16 %v965
    %v1392 = vunpack.c.h.b16 %v965
    %v1393 = vunpack.c.l.b16 %v966
    %v1394 = vunpack.c.h.b16 %v966
    %v1395 = vunpack.c.l.b16 %v967
    %v1396 = vunpack.c.h.b16 %v967
    %v1397 = vunpack.c.l.b16 %v968
    %v1398 = vunpack.c.h.b16 %v968
    %v1399 = vunpack.c.l.b16 %v969
    %v1400 = vunpack.c.h.b16 %v969
    %v1401 = vunpack.c.l.b16 %v970
    %v1402 = vunpack.c.h.b16 %v970
    %v1403 = vunpack.c.l.b16 %v971
    %v1404 = vunpack.c.h.b16 %v971
    %v1405 = vunpack.c.l.b16 %v972
    %v1406 = vunpack.c.h.b16 %v972
    %v1407 = vunpack.c.l.b16 %v973
    %v1408 = vunpack.c.h.b16 %v973
    %v1409 = vunpack.c.l.b16 %v974
    %v1410 = vunpack.c.h.b16 %v974
    %v1411 = vunpack.c.l.b16 %v975
    %v1412 = vunpack.c.h.b16 %v975
    %v1413 = vunpack.c.l.b16 %v976
    %v1414 = vunpack.c.h.b16 %v976
    %v1415 = vunpack.c.l.b16 %v977
    %v1416 = vunpack.c.h.b16 %v977
    %v1417 = vunpack.c.l.b16 %v978
    %v1418 = vunpack.c.h.b16 %v978
    %v1419 = vunpack.c.l.b16 %v979
    %v1420 = vunpack.c.h.b16 %v979
    %v1421 = vunpack.c.l.b16 %v980
    %v1422 = vunpack.c.h.b16 %v980
    %v1423 = vunpack.c.l.b16 %v981
    %v1424 = vunpack.c.h.b16 %v981
    %v1425 = vunpack.c.l.b16 %v982
    %v1426 = vunpack.c.h.b16 %v982
    %v1427 = vunpack.c.l.b16 %v983
    %v1428 = vunpack.c.h.b16 %v983
    %v1429 = vunpack.c.l.b16 %v984
    %v1430 = vunpack.c.h.b16 %v984
    %v1431 = vunpack.c.l.b16 %v985
    %v1432 = vunpack.c.h.b16 %v985
    %v1433 = vunpack.c.l.b16 %v986
    %v1434 = vunpack.c.h.b16 %v986
    %v1435 = vunpack.c.l.b16 %v987
    %v1436 = vunpack.c.h.b16 %v987
    %v1437 = vunpack.c.l.b16 %v988
    %v1438 = vunpack.c.h.b16 %v988
    %v1439 = vunpack.c.l.b16 %v989
    %v1440 = vunpack.c.h.b16 %v989
    %v1441 = vunpack.c.l.b16 %v990
    %v1442 = vunpack.c.h.b16 %v990
    %v1443 = vunpack.c.l.b16 %v991
    %v1444 = vunpack.c.h.b16 %v991
    %v1445 = vunpack.c.l.b16 %v992
    %v1446 = vunpack.c.h.b16 %v992
    %v1447 = vunpack.c.l.b16 %v993
    %v1448 = vunpack.c.h.b16 %v993
    %v1449 = vunpack.c.l.b16 %v994
    %v1450 = vunpack.c.h.b16 %v994
    %v1451 = vunpack.c.l.b16 %v995
    %v1452 = vunpack.c.h.b16 %v995
    %v1453 = vunpack.c.l.b16 %v996
    %v1454 = vunpack.c.h.b16 %v996
    %v1455 = vunpack.c.l.b16 %v997
    %v1456 = vunpack.c.h.b16 %v997
    %v1457 = vunpack.c.l.b16 %v998
    %v1458 = vunpack.c.h.b16 %v998
    %v1459 = vunpack.c.l.b16 %v999
    %v1460 = vunpack.c.h.b16 %v999
    %v1461 = vunpack.c.l.b16 %v1000
    %v1462 = vunpack.c.h.b16 %v1000
    %v1463 = vunpack.c.l.b16 %v1001
    %v1464 = vunpack.c.h.b16 %v1001
    %v1465 = vunpack.c.l.b16 %v1002
    %v1466 = vunpack.c.h.b16 %v1002
    %v1467 = vunpack.c.l.b16 %v1003
    %v1468 = vunpack.c.h.b16 %v1003
    %v1469 = vunpack.c.l.b16 %v1004
    %v1470 = vunpack.c.h.b16 %v1004
    %v1471 = vunpack.c.l.b16 %v1005
    %v1472 = vunpack.c.h.b16 %v1005
    %v1473 = vunpack.c.l.b16 %v1006
    %v1474 = vunpack.c.h.b16 %v1006
    %v1475 = vunpack.c.l.b16 %v1007
    %v1476 = vunpack.c.h.b16 %v1007
    %v1477 = vunpack.c.l.b16 %v1008
    %v1478 = vunpack.c.h.b16 %v1008
    %v1479 = vunpack.c.l.b16 %v1009
    %v1480 = vunpack.c.h.b16 %v1009
    %v1481 = vunpack.c.l.b16 %v1010
    %v1482 = vunpack.c.h.b16 %v1010
    %v1483 = vunpack.c.l.b16 %v1011
    %v1484 = vunpack.c.h.b16 %v1011
    %v1485 = vunpack.c.l.b16 %v1012
    %v1486 = vunpack.c.h.b16 %v1012
    %v1487 = vunpack.c.l.b16 %v1013
    %v1488 = vunpack.c.h.b16 %v1013
    %v1489 = vunpack.c.l.b16 %v1014
    %v1490 = vunpack.c.h.b16 %v1014
    %v1491 = vunpack.c.l.b16 %v1015
    %v1492 = vunpack.c.h.b16 %v1015
    %v1493 = vunpack.c.l.b16 %v1016
    %v1494 = vunpack.c.h.b16 %v1016
    %v1495 = vunpack.c.l.b16 %v1017
    %v1496 = vunpack.c.h.b16 %v1017
    %v1497 = vunpack.c.l.b16 %v1018
    %v1498 = vunpack.c.h.b16 %v1018
    %v1499 = vunpack.c.l.b16 %v1019
    %v1500 = vunpack.c.h.b16 %v1019
    %v1501 = vunpack.c.l.b16 %v1020
    %v1502 = vunpack.c.h.b16 %v1020
    %v1503 = vunpack.c.l.b16 %v1021
    %v1504 = vunpack.c.h.b16 %v1021
    %v1505 = vunpack.c.l.b16 %v1022
    %v1506 = vunpack.c.h.b16 %v1022
    %v1507 = vunpack.c.l.b16 %v1023
    %v1508 = vunpack.c.h.b16 %v1023
    %v1509 = vunpack.c.l.b16 %v1024
    %v1510 = vunpack.c.h.b16 %v1024
    %v1511 = vunpack.c.l.b16 %v1025
    %v1512 = vunpack.c.h.b16 %v1025
    %v1513 = vunpack.c.l.b16 %v1026
    %v1514 = vunpack.c.h.b16 %v1026
    %v1515 = vunpack.c.l.b16 %v1027
    %v1516 = vunpack.c.h.b16 %v1027
    %v1517 = vunpack.c.l.b16 %v1028
    %v1518 = vunpack.c.h.b16 %v1028
    %v1519 = vunpack.c.l.b16 %v1029
    %v1520 = vunpack.c.h.b16 %v1029
    %v1521 = vunpack.c.l.b16 %v1030
    %v1522 = vunpack.c.h.b16 %v1030
    %v1523 = vpack.c.b16 %v1275, %v1267
    %v1524 = vpack.c.b16 %v1276, %v1268
    %v1525 = vpack.c.b16 %v1277, %v1269
    %v1526 = vpack.c.b16 %v1278, %v1270
    %v1527 = vpack.c.b16 %v1279, %v1271
    %v1528 = vpack.c.b16 %v1280, %v1272
    %v1529 = vpack.c.b16 %v1281, %v1273
    %v1530 = vpack.c.b16 %v1282, %v1274
    %v1531 = vpack.c.b16 %v1291, %v1283
    %v1532 = vpack.c.b16 %v1292, %v1284
    %v1533 = vpack.c.b16 %v1293, %v1285
    %v1534 = vpack.c.b16 %v1294, %v1286
    %v1535 = vpack.c.b16 %v1295, %v1287
    %v1536 = vpack.c.b16 %v1296, %v1288
    %v1537 = vpack.c.b16 %v1297, %v1289
    %v1538 = vpack.c.b16 %v1298, %v1290
    %v1539 = vpack.c.b16 %v1307, %v1299
    %v1540 = vpack.c.b16 %v1308, %v1300
    %v1541 = vpack.c.b16 %v1309, %v1301
    %v1542 = vpack.c.b16 %v1310, %v1302
    %v1543 = vpack.c.b16 %v1311, %v1303
    %v1544 = vpack.c.b16 %v1312, %v1304
    %v1545 = vpack.c.b16 %v1313, %v1305
    %v1546 = vpack.c.b16 %v1314, %v1306
    %v1547 = vpack.c.b16 %v1323, %v1315
    %v1548 = vpack.c.b16 %v1324, %v1316
    %v1549 = vpack.c.b16 %v1325, %v1317
    %v1550 = vpack.c.b16 %v1326, %v1318
    %v1551 = vpack.c.b16 %v1327, %v1319
    %v1552 = vpack.c.b16 %v1328, %v1320
    %v1553 = vpack.c.b16 %v1329, %v1321
    %v1554 = vpack.c.b16 %v1330, %v1322
    %v1555 = vpack.c.b16 %v1339, %v1331
    %v1556 = vpack.c.b16 %v1340, %v1332
    %v1557 = vpack.c.b16 %v1341, %v1333
    %v1558 = vpack.c.b16 %v1342, %v1334
    %v1559 = vpack.c.b16 %v1343, %v1335
    %v1560 = vpack.c.b16 %v1344, %v1336
    %v1561 = vpack.c.b16 %v1345, %v1337
    %v1562 = vpack.c.b16 %v1346, %v1338
    %v1563 = vpack.c.b16 %v1355, %v1347
    %v1564 = vpack.c.b16 %v1356, %v1348
    %v1565 = vpack.c.b16 %v1357, %v1349
    %v1566 = vpack.c.b16 %v1358, %v1350
    %v1567 = vpack.c.b16 %v1359, %v1351
    %v1568 = vpack.c.b16 %v1360, %v1352
    %v1569 = vpack.c.b16 %v1361, %v1353
    %v1570 = vpack.c.b16 %v1362, %v1354
    %v1571 = vpack.c.b16 %v1371, %v1363
    %v1572 = vpack.c.b16 %v1372, %v1364
    %v1573 = vpack.c.b16 %v1373, %v1365
    %v1574 = vpack.c.b16 %v1374, %v1366
    %v1575 = vpack.c.b16 %v1375, %v1367
    %v1576 = vpack.c.b16 %v1376, %v1368
    %v1577 = vpack.c.b16 %v1377, %v1369
    %v1578 = vpack.c.b16 %v1378, %v1370
    %v1579 = vpack.c.b16 %v1387, %v1379
    %v1580 = vpack.c.b16 %v1388, %v1380
    %v1581 = vpack.c.b16 %v1389, %v1381
    %v1582 = vpack.c.b16 %v1390, %v1382
    %v1583 = vpack.c.b16 %v1391, %v1383
    %v1584 = vpack.c.b16 %v1392, %v1384
    %v1585 = vpack.c.b16 %v1393, %v1385
    %v1586 = vpack.c.b16 %v1394, %v1386
    %v1587 = vpack.c.b16 %v1403, %v1395
    %v1588 = vpack.c.b16 %v1404, %v1396
    %v1589 = vpack.c.b16 %v1405, %v1397
    %v1590 = vpack.c.b16 %v1406, %v1398
    %v1591 = vpack.c.b16 %v1407, %v1399
    %v1592 = vpack.c.b16 %v1408, %v1400
    %v1593 = vpack.c.b16 %v1409, %v1401
    %v1594 = vpack.c.b16 %v1410, %v1402
    %v1595 = vpack.c.b16 %v1419, %v1411
    %v1596 = vpack.c.b16 %v1420, %v1412
    %v1597 = vpack.c.b16 %v1421, %v1413
    %v1598 = vpack.c.b16 %v1422, %v1414
    %v1599 = vpack.c.b16 %v1423, %v1415
    %v1600 = vpack.c.b16 %v1424, %v1416
    %v1601 = vpack.c.b16 %v1425, %v1417
    %v1602 = vpack.c.b16 %v1426, %v1418
    %v1603 = vpack.c.b16 %v1435, %v1427
    %v1604 = vpack.c.b16 %v1436, %v1428
    %v1605 = vpack.c.b16 %v1437, %v1429
    %v1606 = vpack.c.b16 %v1438, %v1430
    %v1607 = vpack.c.b16 %v1439, %v1431
    %v1608 = vpack.c.b16 %v1440, %v1432
    %v1609 = vpack.c.b16 %v1441, %v1433
    %v1610 = vpack.c.b16 %v1442, %v1434
    %v1611 = vpack.c.b16 %v1451, %v1443
    %v1612 = vpack.c.b16 %v1452, %v1444
    %v1613 = vpack.c.b16 %v1453, %v1445
    %v1614 = vpack.c.b16 %v1454, %v1446
    %v1615 = vpack.c.b16 %v1455, %v1447
    %v1616 = vpack.c.b16 %v1456, %v1448
    %v1617 = vpack.c.b16 %v1457, %v1449
    %v1618 = vpack.c.b16 %v1458, %v1450
    %v1619 = vpack.c.b16 %v1467, %v1459
    %v1620 = vpack.c.b16 %v1468, %v1460
    %v1621 = vpack.c.b16 %v1469, %v1461
    %v1622 = vpack.c.b16 %v1470, %v1462
    %v1623 = vpack.c.b16 %v1471, %v1463
    %v1624 = vpack.c.b16 %v1472, %v1464
    %v1625 = vpack.c.b16 %v1473, %v1465
    %v1626 = vpack.c.b16 %v1474, %v1466
    %v1627 = vpack.c.b16 %v1483, %v1475
    %v1628 = vpack.c.b16 %v1484, %v1476
    %v1629 = vpack.c.b16 %v1485, %v1477
    %v1630 = vpack.c.b16 %v1486, %v1478
    %v1631 = vpack.c.b16 %v1487, %v1479
    %v1632 = vpack.c.b16 %v1488, %v1480
    %v1633 = vpack.c.b16 %v1489, %v1481
    %v1634 = vpack.c.b16 %v1490, %v1482
    %v1635 = vpack.c.b16 %v1499, %v1491
    %v1636 = vpack.c.b16 %v1500, %v1492
    %v1637 = vpack.c.b16 %v1501, %v1493
    %v1638 = vpack.c.b16 %v1502, %v1494
    %v1639 = vpack.c.b16 %v1503, %v1495
    %v1640 = vpack.c.b16 %v1504, %v1496
    %v1641 = vpack.c.b16 %v1505, %v1497
    %v1642 = vpack.c.b16 %v1506, %v1498
    %v1643 = vpack.c.b16 %v1515, %v1507
    %v1644 = vpack.c.b16 %v1516, %v1508
    %v1645 = vpack.c.b16 %v1517, %v1509
    %v1646 = vpack.c.b16 %v1518, %v1510
    %v1647 = vpack.c.b16 %v1519, %v1511
    %v1648 = vpack.c.b16 %v1520, %v1512
    %v1649 = vpack.c.b16 %v1521, %v1513
    %v1650 = vpack.c.b16 %v1522, %v1514
    %1779 = vmatprep.subr.bf16.mxu0 %v1580
    %1780 = vmatpush1.bf16.msra.mxu0 %v1579
    %1781 = vmatprep.subr.bf16.mxu0 %v1572
    %1782 = vmatpush1.bf16.msra.mxu0 %v1571
    %1783 = vmatprep.subr.bf16.mxu0 %v1564
    %1784 = vmatpush1.bf16.msra.mxu0 %v1563
    %1785 = vmatprep.subr.bf16.mxu0 %v1556
    %1786 = vmatpush1.bf16.msra.mxu0 %v1555
    %1787 = vmatprep.subr.bf16.mxu0 %v1548
    %1788 = vmatpush1.bf16.msra.mxu0 %v1547
    %1789 = vmatprep.subr.bf16.mxu0 %v1540
    %1790 = vmatpush1.bf16.msra.mxu0 %v1539
    %1791 = vmatprep.subr.bf16.mxu0 %v1532
    %1792 = vmatpush1.bf16.msra.mxu0 %v1531
    %1793 = vmatprep.subr.bf16.mxu0 %v1524
    %1794 = vmatpush1.bf16.msra.mxu0 %v1523
    %1795 = vmatprep.subr.bf16.mxu0 %v1644
    %1796 = vmatpush2.bf16.msra.mxu0 %v1643
    %1797 = vmatprep.subr.bf16.mxu0 %v1636
    %1798 = vmatpush2.bf16.msra.mxu0 %v1635
    %1799 = vmatprep.subr.bf16.mxu0 %v1628
    %1800 = vmatpush2.bf16.msra.mxu0 %v1627
    %1801 = vmatprep.subr.bf16.mxu0 %v1620
    %1802 = vmatpush2.bf16.msra.mxu0 %v1619
    %1803 = vmatprep.subr.bf16.mxu0 %v1612
    %1804 = vmatpush2.bf16.msra.mxu0 %v1611
    %1805 = vmatprep.subr.bf16.mxu0 %v1604
    %1806 = vmatpush2.bf16.msra.mxu0 %v1603
    %1807 = vmatprep.subr.bf16.mxu0 %v1596
    %1808 = vmatpush2.bf16.msra.mxu0 %v1595
    %1809 = vmatprep.subr.bf16.mxu0 %v1588
    %1810 = vmatpush2.bf16.msra.mxu0 %v1587
    %1811 = vmatprep.mubr.bf16.mxu0 0
    %1812 = vmatmul.mubr.bf16.gmra.mxu0 0
    %v1813 = vpop.f32.mrf.mxu0
    %v1814 = vadd.f32 0.0, %v1813
    %v1815 = vpop.f32.mrf.mxu0
    %v1816 = vadd.f32 0.0, %v1815
    %v1817 = vpop.f32.mrf.mxu0
    %v1818 = vpop.f32.mrf.mxu0
    %1819 = vdwg.mxu0
    %1820 = vmatprep.subr.bf16.mxu0 %v1582
    %1821 = vmatpush1.bf16.msra.mxu0 %v1581
    %1822 = vmatprep.subr.bf16.mxu0 %v1574
    %1823 = vmatpush1.bf16.msra.mxu0 %v1573
    %1824 = vmatprep.subr.bf16.mxu0 %v1566
    %1825 = vmatpush1.bf16.msra.mxu0 %v1565
    %1826 = vmatprep.subr.bf16.mxu0 %v1558
    %1827 = vmatpush1.bf16.msra.mxu0 %v1557
    %1828 = vmatprep.subr.bf16.mxu0 %v1550
    %1829 = vmatpush1.bf16.msra.mxu0 %v1549
    %1830 = vmatprep.subr.bf16.mxu0 %v1542
    %1831 = vmatpush1.bf16.msra.mxu0 %v1541
    %1832 = vmatprep.subr.bf16.mxu0 %v1534
    %1833 = vmatpush1.bf16.msra.mxu0 %v1533
    %1834 = vmatprep.subr.bf16.mxu0 %v1526
    %1835 = vmatpush1.bf16.msra.mxu0 %v1525
    %1836 = vmatprep.subr.bf16.mxu0 %v1646
    %1837 = vmatpush2.bf16.msra.mxu0 %v1645
    %1838 = vmatprep.subr.bf16.mxu0 %v1638
    %1839 = vmatpush2.bf16.msra.mxu0 %v1637
    %1840 = vmatprep.subr.bf16.mxu0 %v1630
    %1841 = vmatpush2.bf16.msra.mxu0 %v1629
    %1842 = vmatprep.subr.bf16.mxu0 %v1622
    %1843 = vmatpush2.bf16.msra.mxu0 %v1621
    %1844 = vmatprep.subr.bf16.mxu0 %v1614
    %1845 = vmatpush2.bf16.msra.mxu0 %v1613
    %1846 = vmatprep.subr.bf16.mxu0 %v1606
    %1847 = vmatpush2.bf16.msra.mxu0 %v1605
    %1848 = vmatprep.subr.bf16.mxu0 %v1598
    %1849 = vmatpush2.bf16.msra.mxu0 %v1597
    %1850 = vmatprep.subr.bf16.mxu0 %v1590
    %1851 = vmatpush2.bf16.msra.mxu0 %v1589
    %1852 = vmatprep.mubr.bf16.mxu0 0
    %1853 = vmatmul.mubr.bf16.gmra.mxu0 0
    %v1854 = vpop.f32.mrf.mxu0
    %v1855 = vadd.f32 0.0, %v1854
    %v1856 = vpop.f32.mrf.mxu0
    %v1857 = vadd.f32 0.0, %v1856
    %v1858 = vpop.f32.mrf.mxu0
    %v1859 = vpop.f32.mrf.mxu0
    %1860 = vdwg.mxu0
    %1861 = vmatprep.subr.bf16.mxu0 %v1584
    %1862 = vmatpush1.bf16.msra.mxu0 %v1583
    %1863 = vmatprep.subr.bf16.mxu0 %v1576
    %1864 = vmatpush1.bf16.msra.mxu0 %v1575
    %1865 = vmatprep.subr.bf16.mxu0 %v1568
    %1866 = vmatpush1.bf16.msra.mxu0 %v1567
    %1867 = vmatprep.subr.bf16.mxu0 %v1560
    %1868 = vmatpush1.bf16.msra.mxu0 %v1559
    %1869 = vmatprep.subr.bf16.mxu0 %v1552
    %1870 = vmatpush1.bf16.msra.mxu0 %v1551
    %1871 = vmatprep.subr.bf16.mxu0 %v1544
    %1872 = vmatpush1.bf16.msra.mxu0 %v1543
    %1873 = vmatprep.subr.bf16.mxu0 %v1536
    %1874 = vmatpush1.bf16.msra.mxu0 %v1535
    %1875 = vmatprep.subr.bf16.mxu0 %v1528
    %1876 = vmatpush1.bf16.msra.mxu0 %v1527
    %1877 = vmatprep.subr.bf16.mxu0 %v1648
    %1878 = vmatpush2.bf16.msra.mxu0 %v1647
    %1879 = vmatprep.subr.bf16.mxu0 %v1640
    %1880 = vmatpush2.bf16.msra.mxu0 %v1639
    %1881 = vmatprep.subr.bf16.mxu0 %v1632
    %1882 = vmatpush2.bf16.msra.mxu0 %v1631
    %1883 = vmatprep.subr.bf16.mxu0 %v1624
    %1884 = vmatpush2.bf16.msra.mxu0 %v1623
    %1885 = vmatprep.subr.bf16.mxu0 %v1616
    %1886 = vmatpush2.bf16.msra.mxu0 %v1615
    %1887 = vmatprep.subr.bf16.mxu0 %v1608
    %1888 = vmatpush2.bf16.msra.mxu0 %v1607
    %1889 = vmatprep.subr.bf16.mxu0 %v1600
    %1890 = vmatpush2.bf16.msra.mxu0 %v1599
    %1891 = vmatprep.subr.bf16.mxu0 %v1592
    %1892 = vmatpush2.bf16.msra.mxu0 %v1591
    %1893 = vmatprep.mubr.bf16.mxu0 0
    %1894 = vmatmul.mubr.bf16.gmra.mxu0 0
    %v1895 = vpop.f32.mrf.mxu0
    %v1896 = vadd.f32 0.0, %v1895
    %v1897 = vpop.f32.mrf.mxu0
    %v1898 = vadd.f32 0.0, %v1897
    %v1899 = vpop.f32.mrf.mxu0
    %v1900 = vpop.f32.mrf.mxu0
    %1901 = vdwg.mxu0
    %1902 = vmatprep.subr.bf16.mxu0 %v1586
    %1903 = vmatpush1.bf16.msra.mxu0 %v1585
    %1904 = vmatprep.subr.bf16.mxu0 %v1578
    %1905 = vmatpush1.bf16.msra.mxu0 %v1577
    %1906 = vmatprep.subr.bf16.mxu0 %v1570
    %1907 = vmatpush1.bf16.msra.mxu0 %v1569
    %1908 = vmatprep.subr.bf16.mxu0 %v1562
    %1909 = vmatpush1.bf16.msra.mxu0 %v1561
    %1910 = vmatprep.subr.bf16.mxu0 %v1554
    %1911 = vmatpush1.bf16.msra.mxu0 %v1553
    %1912 = vmatprep.subr.bf16.mxu0 %v1546
    %1913 = vmatpush1.bf16.msra.mxu0 %v1545
    %1914 = vmatprep.subr.bf16.mxu0 %v1538
    %1915 = vmatpush1.bf16.msra.mxu0 %v1537
    %1916 = vmatprep.subr.bf16.mxu0 %v1530
    %1917 = vmatpush1.bf16.msra.mxu0 %v1529
    %1918 = vmatprep.subr.bf16.mxu0 %v1650
    %1919 = vmatpush2.bf16.msra.mxu0 %v1649
    %1920 = vmatprep.subr.bf16.mxu0 %v1642
    %1921 = vmatpush2.bf16.msra.mxu0 %v1641
    %1922 = vmatprep.subr.bf16.mxu0 %v1634
    %1923 = vmatpush2.bf16.msra.mxu0 %v1633
    %1924 = vmatprep.subr.bf16.mxu0 %v1626
    %1925 = vmatpush2.bf16.msra.mxu0 %v1625
    %1926 = vmatprep.subr.bf16.mxu0 %v1618
    %1927 = vmatpush2.bf16.msra.mxu0 %v1617
    %1928 = vmatprep.subr.bf16.mxu0 %v1610
    %1929 = vmatpush2.bf16.msra.mxu0 %v1609
    %1930 = vmatprep.subr.bf16.mxu0 %v1602
    %1931 = vmatpush2.bf16.msra.mxu0 %v1601
    %1932 = vmatprep.subr.bf16.mxu0 %v1594
    %1933 = vmatpush2.bf16.msra.mxu0 %v1593
    %1934 = vmatprep.mubr.bf16.mxu0 0
    %1935 = vmatmul.mubr.bf16.gmra.mxu0 0
    %v1936 = vpop.f32.mrf.mxu0
    %v1937 = vadd.f32 0.0, %v1936
    %v1938 = vpop.f32.mrf.mxu0
    %v1939 = vadd.f32 0.0, %v1938
    %v1940 = vpop.f32.mrf.mxu0
    %v1941 = vpop.f32.mrf.mxu0
    %1942 = vdwg.mxu0
    %v1943 = vadd.f32 %v1131, %v1814
    %v1944 = vadd.f32 %v1132, %v1816
    %v1945 = vadd.f32 %v1133, %v1855
    %v1946 = vadd.f32 %v1134, %v1857
    %v1947 = vadd.f32 %v1135, %v1896
    %v1948 = vadd.f32 %v1136, %v1898
    %v1949 = vadd.f32 %v1137, %v1937
    %v1950 = vadd.f32 %v1138, %v1939
    %v1951 = vxor.u32 %v1943, 2147483648
    %v1952 = vxor.u32 %v1944, 2147483648
    %v1953 = vmul.f32 %v1951, 1.442695
    %v1954 = vpow.pop %v1953
    %v1955 = vmul.f32 %v1952, 1.442695
    %v1956 = vpow.pop %v1955
    %v1957 = vadd.f32 %v1954, 1.0
    %v1958 = vadd.f32 %v1956, 1.0
    %v1959 = vrcp.pop %v1957
    %v1960 = vmul.f32 1.0, %v1959
    %v1961 = vrcp.pop %v1958
    %v1962 = vmul.f32 1.0, %v1961
    %v1963 = vxor.u32 %v1945, 2147483648
    %v1964 = vxor.u32 %v1946, 2147483648
    %v1965 = vmul.f32 %v1963, 1.442695
    %v1966 = vpow.pop %v1965
    %v1967 = vmul.f32 %v1964, 1.442695
    %v1968 = vpow.pop %v1967
    %v1969 = vadd.f32 %v1966, 1.0
    %v1970 = vadd.f32 %v1968, 1.0
    %v1971 = vrcp.pop %v1969
    %v1972 = vmul.f32 1.0, %v1971
    %v1973 = vrcp.pop %v1970
    %v1974 = vmul.f32 1.0, %v1973
    %v1975 = vtanh.pop %v1947
    %v1976 = vtanh.pop %v1948
    %v1977 = vxor.u32 %v1949, 2147483648
    %v1978 = vxor.u32 %v1950, 2147483648
    %v1979 = vmul.f32 %v1977, 1.442695
    %v1980 = vpow.pop %v1979
    %v1981 = vmul.f32 %v1978, 1.442695
    %v1982 = vpow.pop %v1981
    %v1983 = vadd.f32 %v1980, 1.0
    %v1984 = vadd.f32 %v1982, 1.0
    %v1985 = vrcp.pop %v1983
    %v1986 = vmul.f32 1.0, %v1985
    %v1987 = vrcp.pop %v1984
    %v1988 = vmul.f32 1.0, %v1987
    %v1989 = vmul.f32 %v1972, 0.0
    %v1990 = vmul.f32 %v1974, 0.0
    %v1991 = vmul.f32 %v1960, %v1975
    %v1992 = vmul.f32 %v1962, %v1976
    %v1993 = vadd.f32 %v1989, %v1991
    %v1994 = vadd.f32 %v1990, %v1992
    %v1995 = vtanh.pop %v1993
    %v1996 = vtanh.pop %v1994
    %v1997 = vmul.f32 %v1986, %v1995
    %v1998 = vmul.f32 %v1988, %v1996
    %v1999 = vpack.c.bf16 %v1997, %v1997
    %v2000 = vpack.c.bf16 %v1998, %v1998
    %v2033 = vunpack.c.l.b16 %v1095
    %v2034 = vunpack.c.h.b16 %v1095
    %v2035 = vunpack.c.l.b16 %v1096
    %v2036 = vunpack.c.h.b16 %v1096
    %v2037 = vunpack.c.l.b16 %v1097
    %v2038 = vunpack.c.h.b16 %v1097
    %v2039 = vunpack.c.l.b16 %v1098
    %v2040 = vunpack.c.h.b16 %v1098
    %v2041 = vunpack.c.l.b16 %v1099
    %v2042 = vunpack.c.h.b16 %v1099
    %v2043 = vunpack.c.l.b16 %v1100
    %v2044 = vunpack.c.h.b16 %v1100
    %v2045 = vunpack.c.l.b16 %v1101
    %v2046 = vunpack.c.h.b16 %v1101
    %v2047 = vunpack.c.l.b16 %v1102
    %v2048 = vunpack.c.h.b16 %v1102
    %v2049 = vunpack.c.l.b16 %v1103
    %v2050 = vunpack.c.h.b16 %v1103
    %v2051 = vunpack.c.l.b16 %v1104
    %v2052 = vunpack.c.h.b16 %v1104
    %v2053 = vunpack.c.l.b16 %v1105
    %v2054 = vunpack.c.h.b16 %v1105
    %v2055 = vunpack.c.l.b16 %v1106
    %v2056 = vunpack.c.h.b16 %v1106
    %v2057 = vunpack.c.l.b16 %v1107
    %v2058 = vunpack.c.h.b16 %v1107
    %v2059 = vunpack.c.l.b16 %v1108
    %v2060 = vunpack.c.h.b16 %v1108
    %v2061 = vunpack.c.l.b16 %v1109
    %v2062 = vunpack.c.h.b16 %v1109
    %v2063 = vunpack.c.l.b16 %v1110
    %v2064 = vunpack.c.h.b16 %v1110
    %v2065 = vunpack.c.l.b16 %v1111
    %v2066 = vunpack.c.h.b16 %v1111
    %v2067 = vunpack.c.l.b16 %v1112
    %v2068 = vunpack.c.h.b16 %v1112
    %v2069 = vunpack.c.l.b16 %v1113
    %v2070 = vunpack.c.h.b16 %v1113
    %v2071 = vunpack.c.l.b16 %v1114
    %v2072 = vunpack.c.h.b16 %v1114
    %v2073 = vunpack.c.l.b16 %v1115
    %v2074 = vunpack.c.h.b16 %v1115
    %v2075 = vunpack.c.l.b16 %v1116
    %v2076 = vunpack.c.h.b16 %v1116
    %v2077 = vunpack.c.l.b16 %v1117
    %v2078 = vunpack.c.h.b16 %v1117
    %v2079 = vunpack.c.l.b16 %v1118
    %v2080 = vunpack.c.h.b16 %v1118
    %v2081 = vunpack.c.l.b16 %v1119
    %v2082 = vunpack.c.h.b16 %v1119
    %v2083 = vunpack.c.l.b16 %v1120
    %v2084 = vunpack.c.h.b16 %v1120
    %v2085 = vunpack.c.l.b16 %v1121
    %v2086 = vunpack.c.h.b16 %v1121
    %v2087 = vunpack.c.l.b16 %v1122
    %v2088 = vunpack.c.h.b16 %v1122
    %v2089 = vunpack.c.l.b16 %v1123
    %v2090 = vunpack.c.h.b16 %v1123
    %v2091 = vunpack.c.l.b16 %v1124
    %v2092 = vunpack.c.h.b16 %v1124
    %v2093 = vunpack.c.l.b16 %v1125
    %v2094 = vunpack.c.h.b16 %v1125
    %v2095 = vunpack.c.l.b16 %v1126
    %v2096 = vunpack.c.h.b16 %v1126
    %v2097 = vpack.c.b16 %v2037, %v2033
    %v2098 = vpack.c.b16 %v2038, %v2034
    %v2099 = vpack.c.b16 %v2039, %v2035
    %v2100 = vpack.c.b16 %v2040, %v2036
    %v2101 = vpack.c.b16 %v2045, %v2041
    %v2102 = vpack.c.b16 %v2046, %v2042
    %v2103 = vpack.c.b16 %v2047, %v2043
    %v2104 = vpack.c.b16 %v2048, %v2044
    %v2105 = vpack.c.b16 %v2053, %v2049
    %v2106 = vpack.c.b16 %v2054, %v2050
    %v2107 = vpack.c.b16 %v2055, %v2051
    %v2108 = vpack.c.b16 %v2056, %v2052
    %v2109 = vpack.c.b16 %v2061, %v2057
    %v2110 = vpack.c.b16 %v2062, %v2058
    %v2111 = vpack.c.b16 %v2063, %v2059
    %v2112 = vpack.c.b16 %v2064, %v2060
    %v2113 = vpack.c.b16 %v2069, %v2065
    %v2114 = vpack.c.b16 %v2070, %v2066
    %v2115 = vpack.c.b16 %v2071, %v2067
    %v2116 = vpack.c.b16 %v2072, %v2068
    %v2117 = vpack.c.b16 %v2077, %v2073
    %v2118 = vpack.c.b16 %v2078, %v2074
    %v2119 = vpack.c.b16 %v2079, %v2075
    %v2120 = vpack.c.b16 %v2080, %v2076
    %v2121 = vpack.c.b16 %v2085, %v2081
    %v2122 = vpack.c.b16 %v2086, %v2082
    %v2123 = vpack.c.b16 %v2087, %v2083
    %v2124 = vpack.c.b16 %v2088, %v2084
    %v2125 = vpack.c.b16 %v2093, %v2089
    %v2126 = vpack.c.b16 %v2094, %v2090
    %v2127 = vpack.c.b16 %v2095, %v2091
    %v2128 = vpack.c.b16 %v2096, %v2092
    %2161 = vmatprep.subr.bf16.mxu0 %v2126
    %2162 = vmatpush1.bf16.msra.mxu0 %v2125
    %2163 = vmatprep.subr.bf16.mxu0 %v2122
    %2164 = vmatpush1.bf16.msra.mxu0 %v2121
    %2165 = vmatprep.subr.bf16.mxu0 %v2118
    %2166 = vmatpush1.bf16.msra.mxu0 %v2117
    %2167 = vmatprep.subr.bf16.mxu0 %v2114
    %2168 = vmatpush1.bf16.msra.mxu0 %v2113
    %2169 = vmatprep.subr.bf16.mxu0 %v2110
    %2170 = vmatpush1.bf16.msra.mxu0 %v2109
    %2171 = vmatprep.subr.bf16.mxu0 %v2106
    %2172 = vmatpush1.bf16.msra.mxu0 %v2105
    %2173 = vmatprep.subr.bf16.mxu0 %v2102
    %2174 = vmatpush1.bf16.msra.mxu0 %v2101
    %2175 = vmatprep.subr.bf16.mxu0 %v2098
    %2176 = vmatpush1.bf16.msra.mxu0 %v2097
    %2177 = vmatprep.subr.bf16.mxu0 0
    %2178 = vmatpush2.bf16.msra.mxu0 0
    %2179 = vmatprep.subr.bf16.mxu0 0
    %2180 = vmatpush2.bf16.msra.mxu0 0
    %2181 = vmatprep.subr.bf16.mxu0 0
    %2182 = vmatpush2.bf16.msra.mxu0 0
    %2183 = vmatprep.subr.bf16.mxu0 0
    %2184 = vmatpush2.bf16.msra.mxu0 0
    %2185 = vmatprep.subr.bf16.mxu0 0
    %2186 = vmatpush2.bf16.msra.mxu0 0
    %2187 = vmatprep.subr.bf16.mxu0 0
    %2188 = vmatpush2.bf16.msra.mxu0 0
    %2189 = vmatprep.subr.bf16.mxu0 0
    %2190 = vmatpush2.bf16.msra.mxu0 0
    %2191 = vmatprep.subr.bf16.mxu0 0
    %2192 = vmatpush2.bf16.msra.mxu0 0
    %2193 = vmatprep.mubr.bf16.mxu0 0
    %2194 = vmatmul.mubr.bf16.gmra.mxu0 0
    %v2195 = vpop.f32.mrf.mxu0
    %v2196 = vadd.f32 0.0, %v2195
    %v2197 = vpop.f32.mrf.mxu0
    %v2198 = vadd.f32 0.0, %v2197
    %v2199 = vpop.f32.mrf.mxu0
    %v2200 = vpop.f32.mrf.mxu0
    %2201 = vdwg.mxu0
    %2202 = vmatprep.subr.bf16.mxu0 %v2128
    %2203 = vmatpush1.bf16.msra.mxu0 %v2127
    %2204 = vmatprep.subr.bf16.mxu0 %v2124
    %2205 = vmatpush1.bf16.msra.mxu0 %v2123
    %2206 = vmatprep.subr.bf16.mxu0 %v2120
    %2207 = vmatpush1.bf16.msra.mxu0 %v2119
    %2208 = vmatprep.subr.bf16.mxu0 %v2116
    %2209 = vmatpush1.bf16.msra.mxu0 %v2115
    %2210 = vmatprep.subr.bf16.mxu0 %v2112
    %2211 = vmatpush1.bf16.msra.mxu0 %v2111
    %2212 = vmatprep.subr.bf16.mxu0 %v2108
    %2213 = vmatpush1.bf16.msra.mxu0 %v2107
    %2214 = vmatprep.subr.bf16.mxu0 %v2104
    %2215 = vmatpush1.bf16.msra.mxu0 %v2103
    %2216 = vmatprep.subr.bf16.mxu0 %v2100
    %2217 = vmatpush1.bf16.msra.mxu0 %v2099
    %2218 = vmatprep.subr.bf16.mxu0 0
    %2219 = vmatpush2.bf16.msra.mxu0 0
    %2220 = vmatprep.subr.bf16.mxu0 0
    %2221 = vmatpush2.bf16.msra.mxu0 0
    %2222 = vmatprep.subr.bf16.mxu0 0
    %2223 = vmatpush2.bf16.msra.mxu0 0
    %2224 = vmatprep.subr.bf16.mxu0 0
    %2225 = vmatpush2.bf16.msra.mxu0 0
    %2226 = vmatprep.subr.bf16.mxu0 0
    %2227 = vmatpush2.bf16.msra.mxu0 0
    %2228 = vmatprep.subr.bf16.mxu0 0
    %2229 = vmatpush2.bf16.msra.mxu0 0
    %2230 = vmatprep.subr.bf16.mxu0 0
    %2231 = vmatpush2.bf16.msra.mxu0 0
    %2232 = vmatprep.subr.bf16.mxu0 0
    %2233 = vmatpush2.bf16.msra.mxu0 0
    %2234 = vmatprep.mubr.bf16.mxu0 0
    %2235 = vmatmul.mubr.bf16.gmra.mxu0 0
    %v2236 = vpop.f32.mrf.mxu0
    %v2237 = vadd.f32 0.0, %v2236
    %v2238 = vpop.f32.mrf.mxu0
    %v2239 = vadd.f32 0.0, %v2238
    %v2240 = vpop.f32.mrf.mxu0
    %v2241 = vpop.f32.mrf.mxu0
    %2242 = vdwg.mxu0
    %v2307 = vunpack.c.l.b16 %v1031
    %v2308 = vunpack.c.h.b16 %v1031
    %v2309 = vunpack.c.l.b16 %v1032
    %v2310 = vunpack.c.h.b16 %v1032
    %v2311 = vunpack.c.l.b16 %v1033
    %v2312 = vunpack.c.h.b16 %v1033
    %v2313 = vunpack.c.l.b16 %v1034
    %v2314 = vunpack.c.h.b16 %v1034
    %v2315 = vunpack.c.l.b16 %v1035
    %v2316 = vunpack.c.h.b16 %v1035
    %v2317 = vunpack.c.l.b16 %v1036
    %v2318 = vunpack.c.h.b16 %v1036
    %v2319 = vunpack.c.l.b16 %v1037
    %v2320 = vunpack.c.h.b16 %v1037
    %v2321 = vunpack.c.l.b16 %v1038
    %v2322 = vunpack.c.h.b16 %v1038
    %v2323 = vunpack.c.l.b16 %v1039
    %v2324 = vunpack.c.h.b16 %v1039
    %v2325 = vunpack.c.l.b16 %v1040
    %v2326 = vunpack.c.h.b16 %v1040
    %v2327 = vunpack.c.l.b16 %v1041
    %v2328 = vunpack.c.h.b16 %v1041
    %v2329 = vunpack.c.l.b16 %v1042
    %v2330 = vunpack.c.h.b16 %v1042
    %v2331 = vunpack.c.l.b16 %v1043
    %v2332 = vunpack.c.h.b16 %v1043
    %v2333 = vunpack.c.l.b16 %v1044
    %v2334 = vunpack.c.h.b16 %v1044
    %v2335 = vunpack.c.l.b16 %v1045
    %v2336 = vunpack.c.h.b16 %v1045
    %v2337 = vunpack.c.l.b16 %v1046
    %v2338 = vunpack.c.h.b16 %v1046
    %v2339 = vunpack.c.l.b16 %v1047
    %v2340 = vunpack.c.h.b16 %v1047
    %v2341 = vunpack.c.l.b16 %v1048
    %v2342 = vunpack.c.h.b16 %v1048
    %v2343 = vunpack.c.l.b16 %v1049
    %v2344 = vunpack.c.h.b16 %v1049
    %v2345 = vunpack.c.l.b16 %v1050
    %v2346 = vunpack.c.h.b16 %v1050
    %v2347 = vunpack.c.l.b16 %v1051
    %v2348 = vunpack.c.h.b16 %v1051
    %v2349 = vunpack.c.l.b16 %v1052
    %v2350 = vunpack.c.h.b16 %v1052
    %v2351 = vunpack.c.l.b16 %v1053
    %v2352 = vunpack.c.h.b16 %v1053
    %v2353 = vunpack.c.l.b16 %v1054
    %v2354 = vunpack.c.h.b16 %v1054
    %v2355 = vunpack.c.l.b16 %v1055
    %v2356 = vunpack.c.h.b16 %v1055
    %v2357 = vunpack.c.l.b16 %v1056
    %v2358 = vunpack.c.h.b16 %v1056
    %v2359 = vunpack.c.l.b16 %v1057
    %v2360 = vunpack.c.h.b16 %v1057
    %v2361 = vunpack.c.l.b16 %v1058
    %v2362 = vunpack.c.h.b16 %v1058
    %v2363 = vunpack.c.l.b16 %v1059
    %v2364 = vunpack.c.h.b16 %v1059
    %v2365 = vunpack.c.l.b16 %v1060
    %v2366 = vunpack.c.h.b16 %v1060
    %v2367 = vunpack.c.l.b16 %v1061
    %v2368 = vunpack.c.h.b16 %v1061
    %v2369 = vunpack.c.l.b16 %v1062
    %v2370 = vunpack.c.h.b16 %v1062
    %v2371 = vunpack.c.l.b16 %v1063
    %v2372 = vunpack.c.h.b16 %v1063
    %v2373 = vunpack.c.l.b16 %v1064
    %v2374 = vunpack.c.h.b16 %v1064
    %v2375 = vunpack.c.l.b16 %v1065
    %v2376 = vunpack.c.h.b16 %v1065
    %v2377 = vunpack.c.l.b16 %v1066
    %v2378 = vunpack.c.h.b16 %v1066
    %v2379 = vunpack.c.l.b16 %v1067
    %v2380 = vunpack.c.h.b16 %v1067
    %v2381 = vunpack.c.l.b16 %v1068
    %v2382 = vunpack.c.h.b16 %v1068
    %v2383 = vunpack.c.l.b16 %v1069
    %v2384 = vunpack.c.h.b16 %v1069
    %v2385 = vunpack.c.l.b16 %v1070
    %v2386 = vunpack.c.h.b16 %v1070
    %v2387 = vunpack.c.l.b16 %v1071
    %v2388 = vunpack.c.h.b16 %v1071
    %v2389 = vunpack.c.l.b16 %v1072
    %v2390 = vunpack.c.h.b16 %v1072
    %v2391 = vunpack.c.l.b16 %v1073
    %v2392 = vunpack.c.h.b16 %v1073
    %v2393 = vunpack.c.l.b16 %v1074
    %v2394 = vunpack.c.h.b16 %v1074
    %v2395 = vunpack.c.l.b16 %v1075
    %v2396 = vunpack.c.h.b16 %v1075
    %v2397 = vunpack.c.l.b16 %v1076
    %v2398 = vunpack.c.h.b16 %v1076
    %v2399 = vunpack.c.l.b16 %v1077
    %v2400 = vunpack.c.h.b16 %v1077
    %v2401 = vunpack.c.l.b16 %v1078
    %v2402 = vunpack.c.h.b16 %v1078
    %v2403 = vunpack.c.l.b16 %v1079
    %v2404 = vunpack.c.h.b16 %v1079
    %v2405 = vunpack.c.l.b16 %v1080
    %v2406 = vunpack.c.h.b16 %v1080
    %v2407 = vunpack.c.l.b16 %v1081
    %v2408 = vunpack.c.h.b16 %v1081
    %v2409 = vunpack.c.l.b16 %v1082
    %v2410 = vunpack.c.h.b16 %v1082
    %v2411 = vunpack.c.l.b16 %v1083
    %v2412 = vunpack.c.h.b16 %v1083
    %v2413 = vunpack.c.l.b16 %v1084
    %v2414 = vunpack.c.h.b16 %v1084
    %v2415 = vunpack.c.l.b16 %v1085
    %v2416 = vunpack.c.h.b16 %v1085
    %v2417 = vunpack.c.l.b16 %v1086
    %v2418 = vunpack.c.h.b16 %v1086
    %v2419 = vunpack.c.l.b16 %v1087
    %v2420 = vunpack.c.h.b16 %v1087
    %v2421 = vunpack.c.l.b16 %v1088
    %v2422 = vunpack.c.h.b16 %v1088
    %v2423 = vunpack.c.l.b16 %v1089
    %v2424 = vunpack.c.h.b16 %v1089
    %v2425 = vunpack.c.l.b16 %v1090
    %v2426 = vunpack.c.h.b16 %v1090
    %v2427 = vunpack.c.l.b16 %v1091
    %v2428 = vunpack.c.h.b16 %v1091
    %v2429 = vunpack.c.l.b16 %v1092
    %v2430 = vunpack.c.h.b16 %v1092
    %v2431 = vunpack.c.l.b16 %v1093
    %v2432 = vunpack.c.h.b16 %v1093
    %v2433 = vunpack.c.l.b16 %v1094
    %v2434 = vunpack.c.h.b16 %v1094
    %v2435 = vpack.c.b16 %v2311, %v2307
    %v2436 = vpack.c.b16 %v2312, %v2308
    %v2437 = vpack.c.b16 %v2313, %v2309
    %v2438 = vpack.c.b16 %v2314, %v2310
    %v2439 = vpack.c.b16 %v2319, %v2315
    %v2440 = vpack.c.b16 %v2320, %v2316
    %v2441 = vpack.c.b16 %v2321, %v2317
    %v2442 = vpack.c.b16 %v2322, %v2318
    %v2443 = vpack.c.b16 %v2327, %v2323
    %v2444 = vpack.c.b16 %v2328, %v2324
    %v2445 = vpack.c.b16 %v2329, %v2325
    %v2446 = vpack.c.b16 %v2330, %v2326
    %v2447 = vpack.c.b16 %v2335, %v2331
    %v2448 = vpack.c.b16 %v2336, %v2332
    %v2449 = vpack.c.b16 %v2337, %v2333
    %v2450 = vpack.c.b16 %v2338, %v2334
    %v2451 = vpack.c.b16 %v2343, %v2339
    %v2452 = vpack.c.b16 %v2344, %v2340
    %v2453 = vpack.c.b16 %v2345, %v2341
    %v2454 = vpack.c.b16 %v2346, %v2342
    %v2455 = vpack.c.b16 %v2351, %v2347
    %v2456 = vpack.c.b16 %v2352, %v2348
    %v2457 = vpack.c.b16 %v2353, %v2349
    %v2458 = vpack.c.b16 %v2354, %v2350
    %v2459 = vpack.c.b16 %v2359, %v2355
    %v2460 = vpack.c.b16 %v2360, %v2356
    %v2461 = vpack.c.b16 %v2361, %v2357
    %v2462 = vpack.c.b16 %v2362, %v2358
    %v2463 = vpack.c.b16 %v2367, %v2363
    %v2464 = vpack.c.b16 %v2368, %v2364
    %v2465 = vpack.c.b16 %v2369, %v2365
    %v2466 = vpack.c.b16 %v2370, %v2366
    %v2467 = vpack.c.b16 %v2375, %v2371
    %v2468 = vpack.c.b16 %v2376, %v2372
    %v2469 = vpack.c.b16 %v2377, %v2373
    %v2470 = vpack.c.b16 %v2378, %v2374
    %v2471 = vpack.c.b16 %v2383, %v2379
    %v2472 = vpack.c.b16 %v2384, %v2380
    %v2473 = vpack.c.b16 %v2385, %v2381
    %v2474 = vpack.c.b16 %v2386, %v2382
    %v2475 = vpack.c.b16 %v2391, %v2387
    %v2476 = vpack.c.b16 %v2392, %v2388
    %v2477 = vpack.c.b16 %v2393, %v2389
    %v2478 = vpack.c.b16 %v2394, %v2390
    %v2479 = vpack.c.b16 %v2399, %v2395
    %v2480 = vpack.c.b16 %v2400, %v2396
    %v2481 = vpack.c.b16 %v2401, %v2397
    %v2482 = vpack.c.b16 %v2402, %v2398
    %v2483 = vpack.c.b16 %v2407, %v2403
    %v2484 = vpack.c.b16 %v2408, %v2404
    %v2485 = vpack.c.b16 %v2409, %v2405
    %v2486 = vpack.c.b16 %v2410, %v2406
    %v2487 = vpack.c.b16 %v2415, %v2411
    %v2488 = vpack.c.b16 %v2416, %v2412
    %v2489 = vpack.c.b16 %v2417, %v2413
    %v2490 = vpack.c.b16 %v2418, %v2414
    %v2491 = vpack.c.b16 %v2423, %v2419
    %v2492 = vpack.c.b16 %v2424, %v2420
    %v2493 = vpack.c.b16 %v2425, %v2421
    %v2494 = vpack.c.b16 %v2426, %v2422
    %v2495 = vpack.c.b16 %v2431, %v2427
    %v2496 = vpack.c.b16 %v2432, %v2428
    %v2497 = vpack.c.b16 %v2433, %v2429
    %v2498 = vpack.c.b16 %v2434, %v2430
    %2563 = vmatprep.subr.bf16.mxu0 %v2464
    %2564 = vmatpush1.bf16.msra.mxu0 %v2463
    %2565 = vmatprep.subr.bf16.mxu0 %v2460
    %2566 = vmatpush1.bf16.msra.mxu0 %v2459
    %2567 = vmatprep.subr.bf16.mxu0 %v2456
    %2568 = vmatpush1.bf16.msra.mxu0 %v2455
    %2569 = vmatprep.subr.bf16.mxu0 %v2452
    %2570 = vmatpush1.bf16.msra.mxu0 %v2451
    %2571 = vmatprep.subr.bf16.mxu0 %v2448
    %2572 = vmatpush1.bf16.msra.mxu0 %v2447
    %2573 = vmatprep.subr.bf16.mxu0 %v2444
    %2574 = vmatpush1.bf16.msra.mxu0 %v2443
    %2575 = vmatprep.subr.bf16.mxu0 %v2440
    %2576 = vmatpush1.bf16.msra.mxu0 %v2439
    %2577 = vmatprep.subr.bf16.mxu0 %v2436
    %2578 = vmatpush1.bf16.msra.mxu0 %v2435
    %2579 = vmatprep.subr.bf16.mxu0 %v2496
    %2580 = vmatpush2.bf16.msra.mxu0 %v2495
    %2581 = vmatprep.subr.bf16.mxu0 %v2492
    %2582 = vmatpush2.bf16.msra.mxu0 %v2491
    %2583 = vmatprep.subr.bf16.mxu0 %v2488
    %2584 = vmatpush2.bf16.msra.mxu0 %v2487
    %2585 = vmatprep.subr.bf16.mxu0 %v2484
    %2586 = vmatpush2.bf16.msra.mxu0 %v2483
    %2587 = vmatprep.subr.bf16.mxu0 %v2480
    %2588 = vmatpush2.bf16.msra.mxu0 %v2479
    %2589 = vmatprep.subr.bf16.mxu0 %v2476
    %2590 = vmatpush2.bf16.msra.mxu0 %v2475
    %2591 = vmatprep.subr.bf16.mxu0 %v2472
    %2592 = vmatpush2.bf16.msra.mxu0 %v2471
    %2593 = vmatprep.subr.bf16.mxu0 %v2468
    %2594 = vmatpush2.bf16.msra.mxu0 %v2467
    %2595 = vmatprep.mubr.bf16.mxu0 %v2000
    %2596 = vmatmul.mubr.bf16.gmra.mxu0 %v1999
    %v2597 = vpop.f32.mrf.mxu0
    %v2598 = vadd.f32 %v2196, %v2597
    %v2599 = vpop.f32.mrf.mxu0
    %v2600 = vadd.f32 %v2198, %v2599
    %v2601 = vpop.f32.mrf.mxu0
    %v2602 = vpop.f32.mrf.mxu0
    %2603 = vdwg.mxu0
    %2604 = vmatprep.subr.bf16.mxu0 %v2466
    %2605 = vmatpush1.bf16.msra.mxu0 %v2465
    %2606 = vmatprep.subr.bf16.mxu0 %v2462
    %2607 = vmatpush1.bf16.msra.mxu0 %v2461
    %2608 = vmatprep.subr.bf16.mxu0 %v2458
    %2609 = vmatpush1.bf16.msra.mxu0 %v2457
    %2610 = vmatprep.subr.bf16.mxu0 %v2454
    %2611 = vmatpush1.bf16.msra.mxu0 %v2453
    %2612 = vmatprep.subr.bf16.mxu0 %v2450
    %2613 = vmatpush1.bf16.msra.mxu0 %v2449
    %2614 = vmatprep.subr.bf16.mxu0 %v2446
    %2615 = vmatpush1.bf16.msra.mxu0 %v2445
    %2616 = vmatprep.subr.bf16.mxu0 %v2442
    %2617 = vmatpush1.bf16.msra.mxu0 %v2441
    %2618 = vmatprep.subr.bf16.mxu0 %v2438
    %2619 = vmatpush1.bf16.msra.mxu0 %v2437
    %2620 = vmatprep.subr.bf16.mxu0 %v2498
    %2621 = vmatpush2.bf16.msra.mxu0 %v2497
    %2622 = vmatprep.subr.bf16.mxu0 %v2494
    %2623 = vmatpush2.bf16.msra.mxu0 %v2493
    %2624 = vmatprep.subr.bf16.mxu0 %v2490
    %2625 = vmatpush2.bf16.msra.mxu0 %v2489
    %2626 = vmatprep.subr.bf16.mxu0 %v2486
    %2627 = vmatpush2.bf16.msra.mxu0 %v2485
    %2628 = vmatprep.subr.bf16.mxu0 %v2482
    %2629 = vmatpush2.bf16.msra.mxu0 %v2481
    %2630 = vmatprep.subr.bf16.mxu0 %v2478
    %2631 = vmatpush2.bf16.msra.mxu0 %v2477
    %2632 = vmatprep.subr.bf16.mxu0 %v2474
    %2633 = vmatpush2.bf16.msra.mxu0 %v2473
    %2634 = vmatprep.subr.bf16.mxu0 %v2470
    %2635 = vmatpush2.bf16.msra.mxu0 %v2469
    %2636 = vmatprep.mubr.bf16.mxu0 %v2000
    %2637 = vmatmul.mubr.bf16.gmra.mxu0 %v1999
    %v2638 = vpop.f32.mrf.mxu0
    %v2639 = vadd.f32 %v2237, %v2638
    %v2640 = vpop.f32.mrf.mxu0
    %v2641 = vadd.f32 %v2239, %v2640
    %v2642 = vpop.f32.mrf.mxu0
    %v2643 = vpop.f32.mrf.mxu0
    %2644 = vdwg.mxu0
    %v2646 = vlaneseq
    %v2647 = vshrl.u32 %v2646, 7
    %v2648 = vsub.s32 0, %v2647
    %v2649 = vrot.slane %v1127, %v2648
    %v2650 = vlaneseq
    %v2651 = vshrl.u32 %v2650, 7
    %v2652 = vsub.s32 1, %v2651
    %v2653 = vrot.slane %v1127, %v2652
    %v2654 = vlaneseq
    %v2655 = vshrl.u32 %v2654, 7
    %v2656 = vsub.s32 2, %v2655
    %v2657 = vrot.slane %v1127, %v2656
    %v2658 = vlaneseq
    %v2659 = vshrl.u32 %v2658, 7
    %v2660 = vsub.s32 3, %v2659
    %v2661 = vrot.slane %v1127, %v2660
    %v2666 = vadd.f32 %v2598, %v2649
    %v2667 = vadd.f32 %v2600, %v2653
    %v2668 = vadd.f32 %v2639, %v2657
    %v2669 = vadd.f32 %v2641, %v2661
    %v2670 = vxor.u32 %v2666, 2147483648
    %v2671 = vmul.f32 %v2670, 1.442695
    %v2672 = vpow.pop %v2671
    %v2673 = vadd.f32 %v2672, 1.0
    %v2674 = vrcp.pop %v2673
    %v2675 = vmul.f32 1.0, %v2674
    %v2676 = vxor.u32 %v2667, 2147483648
    %v2677 = vmul.f32 %v2676, 1.442695
    %v2678 = vpow.pop %v2677
    %v2679 = vadd.f32 %v2678, 1.0
    %v2680 = vrcp.pop %v2679
    %v2681 = vmul.f32 1.0, %v2680
    %v2682 = vtanh.pop %v2668
    %v2683 = vxor.u32 %v2669, 2147483648
    %v2684 = vmul.f32 %v2683, 1.442695
    %v2685 = vpow.pop %v2684
    %v2686 = vadd.f32 %v2685, 1.0
    %v2687 = vrcp.pop %v2686
    %v2688 = vmul.f32 1.0, %v2687
    %v2689 = vmul.f32 %v2681, 0.0
    %v2690 = vmul.f32 %v2675, %v2682
    %v2691 = vadd.f32 %v2689, %v2690
    %v2692 = vtanh.pop %v2691
    %v2693 = vmul.f32 %v2688, %v2692
    %s2694 = smul.u32 1, 8
    %s2695 = smul.addr %s2694, 8
    %s2696 = scalar_lea.vmem [#allocation2], %s2695
    %v2697 = vld [vmem:[%s2696] sm:$0xff]
    %v2698 = vld [vmem:[%s2696 + $0x8] sm:$0xff]
    %v2699 = vld [vmem:[%s2696 + $0x10] sm:$0xff]
    %v2700 = vld [vmem:[%s2696 + $0x18] sm:$0xff]
    %v2701 = vld [vmem:[%s2696 + $0x20] sm:$0xff]
    %v2702 = vld [vmem:[%s2696 + $0x28] sm:$0xff]
    %v2703 = vld [vmem:[%s2696 + $0x30] sm:$0xff]
    %v2704 = vld [vmem:[%s2696 + $0x38] sm:$0xff]
    %2705 = vmatprep.subr.bf16.mxu0 %v1580
    %2706 = vmatpush1.bf16.msra.mxu0 %v1579
    %2707 = vmatprep.subr.bf16.mxu0 %v1572
    %2708 = vmatpush1.bf16.msra.mxu0 %v1571
    %2709 = vmatprep.subr.bf16.mxu0 %v1564
    %2710 = vmatpush1.bf16.msra.mxu0 %v1563
    %2711 = vmatprep.subr.bf16.mxu0 %v1556
    %2712 = vmatpush1.bf16.msra.mxu0 %v1555
    %2713 = vmatprep.subr.bf16.mxu0 %v1548
    %2714 = vmatpush1.bf16.msra.mxu0 %v1547
    %2715 = vmatprep.subr.bf16.mxu0 %v1540
    %2716 = vmatpush1.bf16.msra.mxu0 %v1539
    %2717 = vmatprep.subr.bf16.mxu0 %v1532
    %2718 = vmatpush1.bf16.msra.mxu0 %v1531
    %2719 = vmatprep.subr.bf16.mxu0 %v1524
    %2720 = vmatpush1.bf16.msra.mxu0 %v1523
    %2721 = vmatprep.subr.bf16.mxu0 %v1644
    %2722 = vmatpush2.bf16.msra.mxu0 %v1643
    %2723 = vmatprep.subr.bf16.mxu0 %v1636
    %2724 = vmatpush2.bf16.msra.mxu0 %v1635
    %2725 = vmatprep.subr.bf16.mxu0 %v1628
    %2726 = vmatpush2.bf16.msra.mxu0 %v1627
    %2727 = vmatprep.subr.bf16.mxu0 %v1620
    %2728 = vmatpush2.bf16.msra.mxu0 %v1619
    %2729 = vmatprep.subr.bf16.mxu0 %v1612
    %2730 = vmatpush2.bf16.msra.mxu0 %v1611
    %2731 = vmatprep.subr.bf16.mxu0 %v1604
    %2732 = vmatpush2.bf16.msra.mxu0 %v1603
    %2733 = vmatprep.subr.bf16.mxu0 %v1596
    %2734 = vmatpush2.bf16.msra.mxu0 %v1595
    %2735 = vmatprep.subr.bf16.mxu0 %v1588
    %2736 = vmatpush2.bf16.msra.mxu0 %v1587
    %2737 = vmatprep.mubr.bf16.mxu0 %v2000
    %2738 = vmatmul.mubr.bf16.gmra.mxu0 %v1999
    %v2739 = vpop.f32.mrf.mxu0
    %v2740 = vadd.f32 0.0, %v2739
    %v2741 = vpop.f32.mrf.mxu0
    %v2742 = vadd.f32 0.0, %v2741
    %v2743 = vpop.f32.mrf.mxu0
    %v2744 = vpop.f32.mrf.mxu0
    %2745 = vdwg.mxu0
    %2746 = vmatprep.subr.bf16.mxu0 %v1582
    %2747 = vmatpush1.bf16.msra.mxu0 %v1581
    %2748 = vmatprep.subr.bf16.mxu0 %v1574
    %2749 = vmatpush1.bf16.msra.mxu0 %v1573
    %2750 = vmatprep.subr.bf16.mxu0 %v1566
    %2751 = vmatpush1.bf16.msra.mxu0 %v1565
    %2752 = vmatprep.subr.bf16.mxu0 %v1558
    %2753 = vmatpush1.bf16.msra.mxu0 %v1557
    %2754 = vmatprep.subr.bf16.mxu0 %v1550
    %2755 = vmatpush1.bf16.msra.mxu0 %v1549
    %2756 = vmatprep.subr.bf16.mxu0 %v1542
    %2757 = vmatpush1.bf16.msra.mxu0 %v1541
    %2758 = vmatprep.subr.bf16.mxu0 %v1534
    %2759 = vmatpush1.bf16.msra.mxu0 %v1533
    %2760 = vmatprep.subr.bf16.mxu0 %v1526
    %2761 = vmatpush1.bf16.msra.mxu0 %v1525
    %2762 = vmatprep.subr.bf16.mxu0 %v1646
    %2763 = vmatpush2.bf16.msra.mxu0 %v1645
    %2764 = vmatprep.subr.bf16.mxu0 %v1638
    %2765 = vmatpush2.bf16.msra.mxu0 %v1637
    %2766 = vmatprep.subr.bf16.mxu0 %v1630
    %2767 = vmatpush2.bf16.msra.mxu0 %v1629
    %2768 = vmatprep.subr.bf16.mxu0 %v1622
    %2769 = vmatpush2.bf16.msra.mxu0 %v1621
    %2770 = vmatprep.subr.bf16.mxu0 %v1614
    %2771 = vmatpush2.bf16.msra.mxu0 %v1613
    %2772 = vmatprep.subr.bf16.mxu0 %v1606
    %2773 = vmatpush2.bf16.msra.mxu0 %v1605
    %2774 = vmatprep.subr.bf16.mxu0 %v1598
    %2775 = vmatpush2.bf16.msra.mxu0 %v1597
    %2776 = vmatprep.subr.bf16.mxu0 %v1590
    %2777 = vmatpush2.bf16.msra.mxu0 %v1589
    %2778 = vmatprep.mubr.bf16.mxu0 %v2000
    %2779 = vmatmul.mubr.bf16.gmra.mxu0 %v1999
    %v2780 = vpop.f32.mrf.mxu0
    %v2781 = vadd.f32 0.0, %v2780
    %v2782 = vpop.f32.mrf.mxu0
    %v2783 = vadd.f32 0.0, %v2782
    %v2784 = vpop.f32.mrf.mxu0
    %v2785 = vpop.f32.mrf.mxu0
    %2786 = vdwg.mxu0
    %2787 = vmatprep.subr.bf16.mxu0 %v1584
    %2788 = vmatpush1.bf16.msra.mxu0 %v1583
    %2789 = vmatprep.subr.bf16.mxu0 %v1576
    %2790 = vmatpush1.bf16.msra.mxu0 %v1575
    %2791 = vmatprep.subr.bf16.mxu0 %v1568
    %2792 = vmatpush1.bf16.msra.mxu0 %v1567
    %2793 = vmatprep.subr.bf16.mxu0 %v1560
    %2794 = vmatpush1.bf16.msra.mxu0 %v1559
    %2795 = vmatprep.subr.bf16.mxu0 %v1552
    %2796 = vmatpush1.bf16.msra.mxu0 %v1551
    %2797 = vmatprep.subr.bf16.mxu0 %v1544
    %2798 = vmatpush1.bf16.msra.mxu0 %v1543
    %2799 = vmatprep.subr.bf16.mxu0 %v1536
    %2800 = vmatpush1.bf16.msra.mxu0 %v1535
    %2801 = vmatprep.subr.bf16.mxu0 %v1528
    %2802 = vmatpush1.bf16.msra.mxu0 %v1527
    %2803 = vmatprep.subr.bf16.mxu0 %v1648
    %2804 = vmatpush2.bf16.msra.mxu0 %v1647
    %2805 = vmatprep.subr.bf16.mxu0 %v1640
    %2806 = vmatpush2.bf16.msra.mxu0 %v1639
    %2807 = vmatprep.subr.bf16.mxu0 %v1632
    %2808 = vmatpush2.bf16.msra.mxu0 %v1631
    %2809 = vmatprep.subr.bf16.mxu0 %v1624
    %2810 = vmatpush2.bf16.msra.mxu0 %v1623
    %2811 = vmatprep.subr.bf16.mxu0 %v1616
    %2812 = vmatpush2.bf16.msra.mxu0 %v1615
    %2813 = vmatprep.subr.bf16.mxu0 %v1608
    %2814 = vmatpush2.bf16.msra.mxu0 %v1607
    %2815 = vmatprep.subr.bf16.mxu0 %v1600
    %2816 = vmatpush2.bf16.msra.mxu0 %v1599
    %2817 = vmatprep.subr.bf16.mxu0 %v1592
    %2818 = vmatpush2.bf16.msra.mxu0 %v1591
    %2819 = vmatprep.mubr.bf16.mxu0 %v2000
    %2820 = vmatmul.mubr.bf16.gmra.mxu0 %v1999
    %v2821 = vpop.f32.mrf.mxu0
    %v2822 = vadd.f32 0.0, %v2821
    %v2823 = vpop.f32.mrf.mxu0
    %v2824 = vadd.f32 0.0, %v2823
    %v2825 = vpop.f32.mrf.mxu0
    %v2826 = vpop.f32.mrf.mxu0
    %2827 = vdwg.mxu0
    %2828 = vmatprep.subr.bf16.mxu0 %v1586
    %2829 = vmatpush1.bf16.msra.mxu0 %v1585
    %2830 = vmatprep.subr.bf16.mxu0 %v1578
    %2831 = vmatpush1.bf16.msra.mxu0 %v1577
    %2832 = vmatprep.subr.bf16.mxu0 %v1570
    %2833 = vmatpush1.bf16.msra.mxu0 %v1569
    %2834 = vmatprep.subr.bf16.mxu0 %v1562
    %2835 = vmatpush1.bf16.msra.mxu0 %v1561
    %2836 = vmatprep.subr.bf16.mxu0 %v1554
    %2837 = vmatpush1.bf16.msra.mxu0 %v1553
    %2838 = vmatprep.subr.bf16.mxu0 %v1546
    %2839 = vmatpush1.bf16.msra.mxu0 %v1545
    %2840 = vmatprep.subr.bf16.mxu0 %v1538
    %2841 = vmatpush1.bf16.msra.mxu0 %v1537
    %2842 = vmatprep.subr.bf16.mxu0 %v1530
    %2843 = vmatpush1.bf16.msra.mxu0 %v1529
    %2844 = vmatprep.subr.bf16.mxu0 %v1650
    %2845 = vmatpush2.bf16.msra.mxu0 %v1649
    %2846 = vmatprep.subr.bf16.mxu0 %v1642
    %2847 = vmatpush2.bf16.msra.mxu0 %v1641
    %2848 = vmatprep.subr.bf16.mxu0 %v1634
    %2849 = vmatpush2.bf16.msra.mxu0 %v1633
    %2850 = vmatprep.subr.bf16.mxu0 %v1626
    %2851 = vmatpush2.bf16.msra.mxu0 %v1625
    %2852 = vmatprep.subr.bf16.mxu0 %v1618
    %2853 = vmatpush2.bf16.msra.mxu0 %v1617
    %2854 = vmatprep.subr.bf16.mxu0 %v1610
    %2855 = vmatpush2.bf16.msra.mxu0 %v1609
    %2856 = vmatprep.subr.bf16.mxu0 %v1602
    %2857 = vmatpush2.bf16.msra.mxu0 %v1601
    %2858 = vmatprep.subr.bf16.mxu0 %v1594
    %2859 = vmatpush2.bf16.msra.mxu0 %v1593
    %2860 = vmatprep.mubr.bf16.mxu0 %v2000
    %2861 = vmatmul.mubr.bf16.gmra.mxu0 %v1999
    %v2862 = vpop.f32.mrf.mxu0
    %v2863 = vadd.f32 0.0, %v2862
    %v2864 = vpop.f32.mrf.mxu0
    %v2865 = vadd.f32 0.0, %v2864
    %v2866 = vpop.f32.mrf.mxu0
    %v2867 = vpop.f32.mrf.mxu0
    %2868 = vdwg.mxu0
    %v2869 = vadd.f32 %v2697, %v2740
    %v2870 = vadd.f32 %v2698, %v2742
    %v2871 = vadd.f32 %v2699, %v2781
    %v2872 = vadd.f32 %v2700, %v2783
    %v2873 = vadd.f32 %v2701, %v2822
    %v2874 = vadd.f32 %v2702, %v2824
    %v2875 = vadd.f32 %v2703, %v2863
    %v2876 = vadd.f32 %v2704, %v2865
    %v2877 = vxor.u32 %v2869, 2147483648
    %v2878 = vxor.u32 %v2870, 2147483648
    %v2879 = vmul.f32 %v2877, 1.442695
    %v2880 = vpow.pop %v2879
    %v2881 = vmul.f32 %v2878, 1.442695
    %v2882 = vpow.pop %v2881
    %v2883 = vadd.f32 %v2880, 1.0
    %v2884 = vadd.f32 %v2882, 1.0
    %v2885 = vrcp.pop %v2883
    %v2886 = vmul.f32 1.0, %v2885
    %v2887 = vrcp.pop %v2884
    %v2888 = vmul.f32 1.0, %v2887
    %v2889 = vxor.u32 %v2871, 2147483648
    %v2890 = vxor.u32 %v2872, 2147483648
    %v2891 = vmul.f32 %v2889, 1.442695
    %v2892 = vpow.pop %v2891
    %v2893 = vmul.f32 %v2890, 1.442695
    %v2894 = vpow.pop %v2893
    %v2895 = vadd.f32 %v2892, 1.0
    %v2896 = vadd.f32 %v2894, 1.0
    %v2897 = vrcp.pop %v2895
    %v2898 = vmul.f32 1.0, %v2897
    %v2899 = vrcp.pop %v2896
    %v2900 = vmul.f32 1.0, %v2899
    %v2901 = vtanh.pop %v2873
    %v2902 = vtanh.pop %v2874
    %v2903 = vxor.u32 %v2875, 2147483648
    %v2904 = vxor.u32 %v2876, 2147483648
    %v2905 = vmul.f32 %v2903, 1.442695
    %v2906 = vpow.pop %v2905
    %v2907 = vmul.f32 %v2904, 1.442695
    %v2908 = vpow.pop %v2907
    %v2909 = vadd.f32 %v2906, 1.0
    %v2910 = vadd.f32 %v2908, 1.0
    %v2911 = vrcp.pop %v2909
    %v2912 = vmul.f32 1.0, %v2911
    %v2913 = vrcp.pop %v2910
    %v2914 = vmul.f32 1.0, %v2913
    %v2915 = vmul.f32 %v2898, %v1993
    %v2916 = vmul.f32 %v2900, %v1994
    %v2917 = vmul.f32 %v2886, %v2901
    %v2918 = vmul.f32 %v2888, %v2902
    %v2919 = vadd.f32 %v2915, %v2917
    %v2920 = vadd.f32 %v2916, %v2918
    %v2921 = vtanh.pop %v2919
    %v2922 = vtanh.pop %v2920
    %v2923 = vmul.f32 %v2912, %v2921
    %v2924 = vmul.f32 %v2914, %v2922
    %v2925 = vpack.c.bf16 %v2923, %v2923
    %v2926 = vpack.c.bf16 %v2924, %v2924
    %v2927 = vpack.c.bf16 %v2693, %v2693
    %2928 = vmatprep.subr.bf16.mxu0 %v2126
    %2929 = vmatpush1.bf16.msra.mxu0 %v2125
    %2930 = vmatprep.subr.bf16.mxu0 %v2122
    %2931 = vmatpush1.bf16.msra.mxu0 %v2121
    %2932 = vmatprep.subr.bf16.mxu0 %v2118
    %2933 = vmatpush1.bf16.msra.mxu0 %v2117
    %2934 = vmatprep.subr.bf16.mxu0 %v2114
    %2935 = vmatpush1.bf16.msra.mxu0 %v2113
    %2936 = vmatprep.subr.bf16.mxu0 %v2110
    %2937 = vmatpush1.bf16.msra.mxu0 %v2109
    %2938 = vmatprep.subr.bf16.mxu0 %v2106
    %2939 = vmatpush1.bf16.msra.mxu0 %v2105
    %2940 = vmatprep.subr.bf16.mxu0 %v2102
    %2941 = vmatpush1.bf16.msra.mxu0 %v2101
    %2942 = vmatprep.subr.bf16.mxu0 %v2098
    %2943 = vmatpush1.bf16.msra.mxu0 %v2097
    %2944 = vmatprep.subr.bf16.mxu0 0
    %2945 = vmatpush2.bf16.msra.mxu0 0
    %2946 = vmatprep.subr.bf16.mxu0 0
    %2947 = vmatpush2.bf16.msra.mxu0 0
    %2948 = vmatprep.subr.bf16.mxu0 0
    %2949 = vmatpush2.bf16.msra.mxu0 0
    %2950 = vmatprep.subr.bf16.mxu0 0
    %2951 = vmatpush2.bf16.msra.mxu0 0
    %2952 = vmatprep.subr.bf16.mxu0 0
    %2953 = vmatpush2.bf16.msra.mxu0 0
    %2954 = vmatprep.subr.bf16.mxu0 0
    %2955 = vmatpush2.bf16.msra.mxu0 0
    %2956 = vmatprep.subr.bf16.mxu0 0
    %2957 = vmatpush2.bf16.msra.mxu0 0
    %2958 = vmatprep.subr.bf16.mxu0 0
    %2959 = vmatpush2.bf16.msra.mxu0 0
    %2960 = vmatprep.mubr.bf16.mxu0 0
    %2961 = vmatmul.mubr.bf16.gmra.mxu0 %v2927
    %v2962 = vpop.f32.mrf.mxu0
    %v2963 = vadd.f32 0.0, %v2962
    %v2964 = vpop.f32.mrf.mxu0
    %v2965 = vadd.f32 0.0, %v2964
    %v2966 = vpop.f32.mrf.mxu0
    %v2967 = vpop.f32.mrf.mxu0
    %2968 = vdwg.mxu0
    %2969 = vmatprep.subr.bf16.mxu0 %v2128
    %2970 = vmatpush1.bf16.msra.mxu0 %v2127
    %2971 = vmatprep.subr.bf16.mxu0 %v2124
    %2972 = vmatpush1.bf16.msra.mxu0 %v2123
    %2973 = vmatprep.subr.bf16.mxu0 %v2120
    %2974 = vmatpush1.bf16.msra.mxu0 %v2119
    %2975 = vmatprep.subr.bf16.mxu0 %v2116
    %2976 = vmatpush1.bf16.msra.mxu0 %v2115
    %2977 = vmatprep.subr.bf16.mxu0 %v2112
    %2978 = vmatpush1.bf16.msra.mxu0 %v2111
    %2979 = vmatprep.subr.bf16.mxu0 %v2108
    %2980 = vmatpush1.bf16.msra.mxu0 %v2107
    %2981 = vmatprep.subr.bf16.mxu0 %v2104
    %2982 = vmatpush1.bf16.msra.mxu0 %v2103
    %2983 = vmatprep.subr.bf16.mxu0 %v2100
    %2984 = vmatpush1.bf16.msra.mxu0 %v2099
    %2985 = vmatprep.subr.bf16.mxu0 0
    %2986 = vmatpush2.bf16.msra.mxu0 0
    %2987 = vmatprep.subr.bf16.mxu0 0
    %2988 = vmatpush2.bf16.msra.mxu0 0
    %2989 = vmatprep.subr.bf16.mxu0 0
    %2990 = vmatpush2.bf16.msra.mxu0 0
    %2991 = vmatprep.subr.bf16.mxu0 0
    %2992 = vmatpush2.bf16.msra.mxu0 0
    %2993 = vmatprep.subr.bf16.mxu0 0
    %2994 = vmatpush2.bf16.msra.mxu0 0
    %2995 = vmatprep.subr.bf16.mxu0 0
    %2996 = vmatpush2.bf16.msra.mxu0 0
    %2997 = vmatprep.subr.bf16.mxu0 0
    %2998 = vmatpush2.bf16.msra.mxu0 0
    %2999 = vmatprep.subr.bf16.mxu0 0
    %3000 = vmatpush2.bf16.msra.mxu0 0
    %3001 = vmatprep.mubr.bf16.mxu0 0
    %3002 = vmatmul.mubr.bf16.gmra.mxu0 %v2927
    %v3003 = vpop.f32.mrf.mxu0
    %v3004 = vadd.f32 0.0, %v3003
    %v3005 = vpop.f32.mrf.mxu0
    %v3006 = vadd.f32 0.0, %v3005
    %v3007 = vpop.f32.mrf.mxu0
    %v3008 = vpop.f32.mrf.mxu0
    %3009 = vdwg.mxu0
    %3010 = vmatprep.subr.bf16.mxu0 %v2464
    %3011 = vmatpush1.bf16.msra.mxu0 %v2463
    %3012 = vmatprep.subr.bf16.mxu0 %v2460
    %3013 = vmatpush1.bf16.msra.mxu0 %v2459
    %3014 = vmatprep.subr.bf16.mxu0 %v2456
    %3015 = vmatpush1.bf16.msra.mxu0 %v2455
    %3016 = vmatprep.subr.bf16.mxu0 %v2452
    %3017 = vmatpush1.bf16.msra.mxu0 %v2451
    %3018 = vmatprep.subr.bf16.mxu0 %v2448
    %3019 = vmatpush1.bf16.msra.mxu0 %v2447
    %3020 = vmatprep.subr.bf16.mxu0 %v2444
    %3021 = vmatpush1.bf16.msra.mxu0 %v2443
    %3022 = vmatprep.subr.bf16.mxu0 %v2440
    %3023 = vmatpush1.bf16.msra.mxu0 %v2439
    %3024 = vmatprep.subr.bf16.mxu0 %v2436
    %3025 = vmatpush1.bf16.msra.mxu0 %v2435
    %3026 = vmatprep.subr.bf16.mxu0 %v2496
    %3027 = vmatpush2.bf16.msra.mxu0 %v2495
    %3028 = vmatprep.subr.bf16.mxu0 %v2492
    %3029 = vmatpush2.bf16.msra.mxu0 %v2491
    %3030 = vmatprep.subr.bf16.mxu0 %v2488
    %3031 = vmatpush2.bf16.msra.mxu0 %v2487
    %3032 = vmatprep.subr.bf16.mxu0 %v2484
    %3033 = vmatpush2.bf16.msra.mxu0 %v2483
    %3034 = vmatprep.subr.bf16.mxu0 %v2480
    %3035 = vmatpush2.bf16.msra.mxu0 %v2479
    %3036 = vmatprep.subr.bf16.mxu0 %v2476
    %3037 = vmatpush2.bf16.msra.mxu0 %v2475
    %3038 = vmatprep.subr.bf16.mxu0 %v2472
    %3039 = vmatpush2.bf16.msra.mxu0 %v2471
    %3040 = vmatprep.subr.bf16.mxu0 %v2468
    %3041 = vmatpush2.bf16.msra.mxu0 %v2467
    %3042 = vmatprep.mubr.bf16.mxu0 %v2926
    %3043 = vmatmul.mubr.bf16.gmra.mxu0 %v2925
    %v3044 = vpop.f32.mrf.mxu0
    %v3045 = vadd.f32 %v2963, %v3044
    %v3046 = vpop.f32.mrf.mxu0
    %v3047 = vadd.f32 %v2965, %v3046
    %v3048 = vpop.f32.mrf.mxu0
    %v3049 = vpop.f32.mrf.mxu0
    %3050 = vdwg.mxu0
    %3051 = vmatprep.subr.bf16.mxu0 %v2466
    %3052 = vmatpush1.bf16.msra.mxu0 %v2465
    %3053 = vmatprep.subr.bf16.mxu0 %v2462
    %3054 = vmatpush1.bf16.msra.mxu0 %v2461
    %3055 = vmatprep.subr.bf16.mxu0 %v2458
    %3056 = vmatpush1.bf16.msra.mxu0 %v2457
    %3057 = vmatprep.subr.bf16.mxu0 %v2454
    %3058 = vmatpush1.bf16.msra.mxu0 %v2453
    %3059 = vmatprep.subr.bf16.mxu0 %v2450
    %3060 = vmatpush1.bf16.msra.mxu0 %v2449
    %3061 = vmatprep.subr.bf16.mxu0 %v2446
    %3062 = vmatpush1.bf16.msra.mxu0 %v2445
    %3063 = vmatprep.subr.bf16.mxu0 %v2442
    %3064 = vmatpush1.bf16.msra.mxu0 %v2441
    %3065 = vmatprep.subr.bf16.mxu0 %v2438
    %3066 = vmatpush1.bf16.msra.mxu0 %v2437
    %3067 = vmatprep.subr.bf16.mxu0 %v2498
    %3068 = vmatpush2.bf16.msra.mxu0 %v2497
    %3069 = vmatprep.subr.bf16.mxu0 %v2494
    %3070 = vmatpush2.bf16.msra.mxu0 %v2493
    %3071 = vmatprep.subr.bf16.mxu0 %v2490
    %3072 = vmatpush2.bf16.msra.mxu0 %v2489
    %3073 = vmatprep.subr.bf16.mxu0 %v2486
    %3074 = vmatpush2.bf16.msra.mxu0 %v2485
    %3075 = vmatprep.subr.bf16.mxu0 %v2482
    %3076 = vmatpush2.bf16.msra.mxu0 %v2481
    %3077 = vmatprep.subr.bf16.mxu0 %v2478
    %3078 = vmatpush2.bf16.msra.mxu0 %v2477
    %3079 = vmatprep.subr.bf16.mxu0 %v2474
    %3080 = vmatpush2.bf16.msra.mxu0 %v2473
    %3081 = vmatprep.subr.bf16.mxu0 %v2470
    %3082 = vmatpush2.bf16.msra.mxu0 %v2469
    %3083 = vmatprep.mubr.bf16.mxu0 %v2926
    %3084 = vmatmul.mubr.bf16.gmra.mxu0 %v2925
    %v3085 = vpop.f32.mrf.mxu0
    %v3086 = vadd.f32 %v3004, %v3085
    %v3087 = vpop.f32.mrf.mxu0
    %v3088 = vadd.f32 %v3006, %v3087
    %v3089 = vpop.f32.mrf.mxu0
    %v3090 = vpop.f32.mrf.mxu0
    %3091 = vdwg.mxu0
    %v3092 = vadd.f32 %v3045, %v2649
    %v3093 = vadd.f32 %v3047, %v2653
    %v3094 = vadd.f32 %v3086, %v2657
    %v3095 = vadd.f32 %v3088, %v2661
    %v3096 = vxor.u32 %v3092, 2147483648
    %v3097 = vmul.f32 %v3096, 1.442695
    %v3098 = vpow.pop %v3097
    %v3099 = vadd.f32 %v3098, 1.0
    %v3100 = vrcp.pop %v3099
    %v3101 = vmul.f32 1.0, %v3100
    %v3102 = vxor.u32 %v3093, 2147483648
    %v3103 = vmul.f32 %v3102, 1.442695
    %v3104 = vpow.pop %v3103
    %v3105 = vadd.f32 %v3104, 1.0
    %v3106 = vrcp.pop %v3105
    %v3107 = vmul.f32 1.0, %v3106
    %v3108 = vtanh.pop %v3094
    %v3109 = vxor.u32 %v3095, 2147483648
    %v3110 = vmul.f32 %v3109, 1.442695
    %v3111 = vpow.pop %v3110
    %v3112 = vadd.f32 %v3111, 1.0
    %v3113 = vrcp.pop %v3112
    %v3114 = vmul.f32 1.0, %v3113
    %v3115 = vmul.f32 %v3107, %v2691
    %v3116 = vmul.f32 %v3101, %v3108
    %v3117 = vadd.f32 %v3115, %v3116
    %v3118 = vtanh.pop %v3117
    %v3119 = vmul.f32 %v3114, %v3118
    %s3120 = smul.u32 2, 8
    %s3121 = smul.addr %s3120, 8
    %s3122 = scalar_lea.vmem [#allocation2], %s3121
    %v3123 = vld [vmem:[%s3122] sm:$0xff]
    %v3124 = vld [vmem:[%s3122 + $0x8] sm:$0xff]
    %v3125 = vld [vmem:[%s3122 + $0x10] sm:$0xff]
    %v3126 = vld [vmem:[%s3122 + $0x18] sm:$0xff]
    %v3127 = vld [vmem:[%s3122 + $0x20] sm:$0xff]
    %v3128 = vld [vmem:[%s3122 + $0x28] sm:$0xff]
    %v3129 = vld [vmem:[%s3122 + $0x30] sm:$0xff]
    %v3130 = vld [vmem:[%s3122 + $0x38] sm:$0xff]
    %3131 = vmatprep.subr.bf16.mxu0 %v1580
    %3132 = vmatpush1.bf16.msra.mxu0 %v1579
    %3133 = vmatprep.subr.bf16.mxu0 %v1572
    %3134 = vmatpush1.bf16.msra.mxu0 %v1571
    %3135 = vmatprep.subr.bf16.mxu0 %v1564
    %3136 = vmatpush1.bf16.msra.mxu0 %v1563
    %3137 = vmatprep.subr.bf16.mxu0 %v1556
    %3138 = vmatpush1.bf16.msra.mxu0 %v1555
    %3139 = vmatprep.subr.bf16.mxu0 %v1548
    %3140 = vmatpush1.bf16.msra.mxu0 %v1547
    %3141 = vmatprep.subr.bf16.mxu0 %v1540
    %3142 = vmatpush1.bf16.msra.mxu0 %v1539
    %3143 = vmatprep.subr.bf16.mxu0 %v1532
    %3144 = vmatpush1.bf16.msra.mxu0 %v1531
    %3145 = vmatprep.subr.bf16.mxu0 %v1524
    %3146 = vmatpush1.bf16.msra.mxu0 %v1523
    %3147 = vmatprep.subr.bf16.mxu0 %v1644
    %3148 = vmatpush2.bf16.msra.mxu0 %v1643
    %3149 = vmatprep.subr.bf16.mxu0 %v1636
    %3150 = vmatpush2.bf16.msra.mxu0 %v1635
    %3151 = vmatprep.subr.bf16.mxu0 %v1628
    %3152 = vmatpush2.bf16.msra.mxu0 %v1627
    %3153 = vmatprep.subr.bf16.mxu0 %v1620
    %3154 = vmatpush2.bf16.msra.mxu0 %v1619
    %3155 = vmatprep.subr.bf16.mxu0 %v1612
    %3156 = vmatpush2.bf16.msra.mxu0 %v1611
    %3157 = vmatprep.subr.bf16.mxu0 %v1604
    %3158 = vmatpush2.bf16.msra.mxu0 %v1603
    %3159 = vmatprep.subr.bf16.mxu0 %v1596
    %3160 = vmatpush2.bf16.msra.mxu0 %v1595
    %3161 = vmatprep.subr.bf16.mxu0 %v1588
    %3162 = vmatpush2.bf16.msra.mxu0 %v1587
    %3163 = vmatprep.mubr.bf16.mxu0 %v2926
    %3164 = vmatmul.mubr.bf16.gmra.mxu0 %v2925
    %v3165 = vpop.f32.mrf.mxu0
    %v3166 = vadd.f32 0.0, %v3165
    %v3167 = vpop.f32.mrf.mxu0
    %v3168 = vadd.f32 0.0, %v3167
    %v3169 = vpop.f32.mrf.mxu0
    %v3170 = vpop.f32.mrf.mxu0
    %3171 = vdwg.mxu0
    %3172 = vmatprep.subr.bf16.mxu0 %v1582
    %3173 = vmatpush1.bf16.msra.mxu0 %v1581
    %3174 = vmatprep.subr.bf16.mxu0 %v1574
    %3175 = vmatpush1.bf16.msra.mxu0 %v1573
    %3176 = vmatprep.subr.bf16.mxu0 %v1566
    %3177 = vmatpush1.bf16.msra.mxu0 %v1565
    %3178 = vmatprep.subr.bf16.mxu0 %v1558
    %3179 = vmatpush1.bf16.msra.mxu0 %v1557
    %3180 = vmatprep.subr.bf16.mxu0 %v1550
    %3181 = vmatpush1.bf16.msra.mxu0 %v1549
    %3182 = vmatprep.subr.bf16.mxu0 %v1542
    %3183 = vmatpush1.bf16.msra.mxu0 %v1541
    %3184 = vmatprep.subr.bf16.mxu0 %v1534
    %3185 = vmatpush1.bf16.msra.mxu0 %v1533
    %3186 = vmatprep.subr.bf16.mxu0 %v1526
    %3187 = vmatpush1.bf16.msra.mxu0 %v1525
    %3188 = vmatprep.subr.bf16.mxu0 %v1646
    %3189 = vmatpush2.bf16.msra.mxu0 %v1645
    %3190 = vmatprep.subr.bf16.mxu0 %v1638
    %3191 = vmatpush2.bf16.msra.mxu0 %v1637
    %3192 = vmatprep.subr.bf16.mxu0 %v1630
    %3193 = vmatpush2.bf16.msra.mxu0 %v1629
    %3194 = vmatprep.subr.bf16.mxu0 %v1622
    %3195 = vmatpush2.bf16.msra.mxu0 %v1621
    %3196 = vmatprep.subr.bf16.mxu0 %v1614
    %3197 = vmatpush2.bf16.msra.mxu0 %v1613
    %3198 = vmatprep.subr.bf16.mxu0 %v1606
    %3199 = vmatpush2.bf16.msra.mxu0 %v1605
    %3200 = vmatprep.subr.bf16.mxu0 %v1598
    %3201 = vmatpush2.bf16.msra.mxu0 %v1597
    %3202 = vmatprep.subr.bf16.mxu0 %v1590
    %3203 = vmatpush2.bf16.msra.mxu0 %v1589
    %3204 = vmatprep.mubr.bf16.mxu0 %v2926
    %3205 = vmatmul.mubr.bf16.gmra.mxu0 %v2925
    %v3206 = vpop.f32.mrf.mxu0
    %v3207 = vadd.f32 0.0, %v3206
    %v3208 = vpop.f32.mrf.mxu0
    %v3209 = vadd.f32 0.0, %v3208
    %v3210 = vpop.f32.mrf.mxu0
    %v3211 = vpop.f32.mrf.mxu0
    %3212 = vdwg.mxu0
    %3213 = vmatprep.subr.bf16.mxu0 %v1584
    %3214 = vmatpush1.bf16.msra.mxu0 %v1583
    %3215 = vmatprep.subr.bf16.mxu0 %v1576
    %3216 = vmatpush1.bf16.msra.mxu0 %v1575
    %3217 = vmatprep.subr.bf16.mxu0 %v1568
    %3218 = vmatpush1.bf16.msra.mxu0 %v1567
    %3219 = vmatprep.subr.bf16.mxu0 %v1560
    %3220 = vmatpush1.bf16.msra.mxu0 %v1559
    %3221 = vmatprep.subr.bf16.mxu0 %v1552
    %3222 = vmatpush1.bf16.msra.mxu0 %v1551
    %3223 = vmatprep.subr.bf16.mxu0 %v1544
    %3224 = vmatpush1.bf16.msra.mxu0 %v1543
    %3225 = vmatprep.subr.bf16.mxu0 %v1536
    %3226 = vmatpush1.bf16.msra.mxu0 %v1535
    %3227 = vmatprep.subr.bf16.mxu0 %v1528
    %3228 = vmatpush1.bf16.msra.mxu0 %v1527
    %3229 = vmatprep.subr.bf16.mxu0 %v1648
    %3230 = vmatpush2.bf16.msra.mxu0 %v1647
    %3231 = vmatprep.subr.bf16.mxu0 %v1640
    %3232 = vmatpush2.bf16.msra.mxu0 %v1639
    %3233 = vmatprep.subr.bf16.mxu0 %v1632
    %3234 = vmatpush2.bf16.msra.mxu0 %v1631
    %3235 = vmatprep.subr.bf16.mxu0 %v1624
    %3236 = vmatpush2.bf16.msra.mxu0 %v1623
    %3237 = vmatprep.subr.bf16.mxu0 %v1616
    %3238 = vmatpush2.bf16.msra.mxu0 %v1615
    %3239 = vmatprep.subr.bf16.mxu0 %v1608
    %3240 = vmatpush2.bf16.msra.mxu0 %v1607
    %3241 = vmatprep.subr.bf16.mxu0 %v1600
    %3242 = vmatpush2.bf16.msra.mxu0 %v1599
    %3243 = vmatprep.subr.bf16.mxu0 %v1592
    %3244 = vmatpush2.bf16.msra.mxu0 %v1591
    %3245 = vmatprep.mubr.bf16.mxu0 %v2926
    %3246 = vmatmul.mubr.bf16.gmra.mxu0 %v2925
    %v3247 = vpop.f32.mrf.mxu0
    %v3248 = vadd.f32 0.0, %v3247
    %v3249 = vpop.f32.mrf.mxu0
    %v3250 = vadd.f32 0.0, %v3249
    %v3251 = vpop.f32.mrf.mxu0
    %v3252 = vpop.f32.mrf.mxu0
    %3253 = vdwg.mxu0
    %3254 = vmatprep.subr.bf16.mxu0 %v1586
    %3255 = vmatpush1.bf16.msra.mxu0 %v1585
    %3256 = vmatprep.subr.bf16.mxu0 %v1578
    %3257 = vmatpush1.bf16.msra.mxu0 %v1577
    %3258 = vmatprep.subr.bf16.mxu0 %v1570
    %3259 = vmatpush1.bf16.msra.mxu0 %v1569
    %3260 = vmatprep.subr.bf16.mxu0 %v1562
    %3261 = vmatpush1.bf16.msra.mxu0 %v1561
    %3262 = vmatprep.subr.bf16.mxu0 %v1554
    %3263 = vmatpush1.bf16.msra.mxu0 %v1553
    %3264 = vmatprep.subr.bf16.mxu0 %v1546
    %3265 = vmatpush1.bf16.msra.mxu0 %v1545
    %3266 = vmatprep.subr.bf16.mxu0 %v1538
    %3267 = vmatpush1.bf16.msra.mxu0 %v1537
    %3268 = vmatprep.subr.bf16.mxu0 %v1530
    %3269 = vmatpush1.bf16.msra.mxu0 %v1529
    %3270 = vmatprep.subr.bf16.mxu0 %v1650
    %3271 = vmatpush2.bf16.msra.mxu0 %v1649
    %3272 = vmatprep.subr.bf16.mxu0 %v1642
    %3273 = vmatpush2.bf16.msra.mxu0 %v1641
    %3274 = vmatprep.subr.bf16.mxu0 %v1634
    %3275 = vmatpush2.bf16.msra.mxu0 %v1633
    %3276 = vmatprep.subr.bf16.mxu0 %v1626
    %3277 = vmatpush2.bf16.msra.mxu0 %v1625
    %3278 = vmatprep.subr.bf16.mxu0 %v1618
    %3279 = vmatpush2.bf16.msra.mxu0 %v1617
    %3280 = vmatprep.subr.bf16.mxu0 %v1610
    %3281 = vmatpush2.bf16.msra.mxu0 %v1609
    %3282 = vmatprep.subr.bf16.mxu0 %v1602
    %3283 = vmatpush2.bf16.msra.mxu0 %v1601
    %3284 = vmatprep.subr.bf16.mxu0 %v1594
    %3285 = vmatpush2.bf16.msra.mxu0 %v1593
    %3286 = vmatprep.mubr.bf16.mxu0 %v2926
    %3287 = vmatmul.mubr.bf16.gmra.mxu0 %v2925
    %v3288 = vpop.f32.mrf.mxu0
    %v3289 = vadd.f32 0.0, %v3288
    %v3290 = vpop.f32.mrf.mxu0
    %v3291 = vadd.f32 0.0, %v3290
    %v3292 = vpop.f32.mrf.mxu0
    %v3293 = vpop.f32.mrf.mxu0
    %3294 = vdwg.mxu0
    %v3295 = vadd.f32 %v3123, %v3166
    %v3296 = vadd.f32 %v3124, %v3168
    %v3297 = vadd.f32 %v3125, %v3207
    %v3298 = vadd.f32 %v3126, %v3209
    %v3299 = vadd.f32 %v3127, %v3248
    %v3300 = vadd.f32 %v3128, %v3250
    %v3301 = vadd.f32 %v3129, %v3289
    %v3302 = vadd.f32 %v3130, %v3291
    %v3303 = vxor.u32 %v3295, 2147483648
    %v3304 = vxor.u32 %v3296, 2147483648
    %v3305 = vmul.f32 %v3303, 1.442695
    %v3306 = vpow.pop %v3305
    %v3307 = vmul.f32 %v3304, 1.442695
    %v3308 = vpow.pop %v3307
    %v3309 = vadd.f32 %v3306, 1.0
    %v3310 = vadd.f32 %v3308, 1.0
    %v3311 = vrcp.pop %v3309
    %v3312 = vmul.f32 1.0, %v3311
    %v3313 = vrcp.pop %v3310
    %v3314 = vmul.f32 1.0, %v3313
    %v3315 = vxor.u32 %v3297, 2147483648
    %v3316 = vxor.u32 %v3298, 2147483648
    %v3317 = vmul.f32 %v3315, 1.442695
    %v3318 = vpow.pop %v3317
    %v3319 = vmul.f32 %v3316, 1.442695
    %v3320 = vpow.pop %v3319
    %v3321 = vadd.f32 %v3318, 1.0
    %v3322 = vadd.f32 %v3320, 1.0
    %v3323 = vrcp.pop %v3321
    %v3324 = vmul.f32 1.0, %v3323
    %v3325 = vrcp.pop %v3322
    %v3326 = vmul.f32 1.0, %v3325
    %v3327 = vtanh.pop %v3299
    %v3328 = vtanh.pop %v3300
    %v3329 = vxor.u32 %v3301, 2147483648
    %v3330 = vxor.u32 %v3302, 2147483648
    %v3331 = vmul.f32 %v3329, 1.442695
    %v3332 = vpow.pop %v3331
    %v3333 = vmul.f32 %v3330, 1.442695
    %v3334 = vpow.pop %v3333
    %v3335 = vadd.f32 %v3332, 1.0
    %v3336 = vadd.f32 %v3334, 1.0
    %v3337 = vrcp.pop %v3335
    %v3338 = vmul.f32 1.0, %v3337
    %v3339 = vrcp.pop %v3336
    %v3340 = vmul.f32 1.0, %v3339
    %v3341 = vmul.f32 %v3324, %v2919
    %v3342 = vmul.f32 %v3326, %v2920
    %v3343 = vmul.f32 %v3312, %v3327
    %v3344 = vmul.f32 %v3314, %v3328
    %v3345 = vadd.f32 %v3341, %v3343
    %v3346 = vadd.f32 %v3342, %v3344
    %v3347 = vtanh.pop %v3345
    %v3348 = vtanh.pop %v3346
    %v3349 = vmul.f32 %v3338, %v3347
    %v3350 = vmul.f32 %v3340, %v3348
    %v3351 = vpack.c.bf16 %v3349, %v3349
    %v3352 = vpack.c.bf16 %v3350, %v3350
    %v3353 = vpack.c.bf16 %v3119, %v3119
    %3354 = vmatprep.subr.bf16.mxu0 %v2126
    %3355 = vmatpush1.bf16.msra.mxu0 %v2125
    %3356 = vmatprep.subr.bf16.mxu0 %v2122
    %3357 = vmatpush1.bf16.msra.mxu0 %v2121
    %3358 = vmatprep.subr.bf16.mxu0 %v2118
    %3359 = vmatpush1.bf16.msra.mxu0 %v2117
    %3360 = vmatprep.subr.bf16.mxu0 %v2114
    %3361 = vmatpush1.bf16.msra.mxu0 %v2113
    %3362 = vmatprep.subr.bf16.mxu0 %v2110
    %3363 = vmatpush1.bf16.msra.mxu0 %v2109
    %3364 = vmatprep.subr.bf16.mxu0 %v2106
    %3365 = vmatpush1.bf16.msra.mxu0 %v2105
    %3366 = vmatprep.subr.bf16.mxu0 %v2102
    %3367 = vmatpush1.bf16.msra.mxu0 %v2101
    %3368 = vmatprep.subr.bf16.mxu0 %v2098
    %3369 = vmatpush1.bf16.msra.mxu0 %v2097
    %3370 = vmatprep.subr.bf16.mxu0 0
    %3371 = vmatpush2.bf16.msra.mxu0 0
    %3372 = vmatprep.subr.bf16.mxu0 0
    %3373 = vmatpush2.bf16.msra.mxu0 0
    %3374 = vmatprep.subr.bf16.mxu0 0
    %3375 = vmatpush2.bf16.msra.mxu0 0
    %3376 = vmatprep.subr.bf16.mxu0 0
    %3377 = vmatpush2.bf16.msra.mxu0 0
    %3378 = vmatprep.subr.bf16.mxu0 0
    %3379 = vmatpush2.bf16.msra.mxu0 0
    %3380 = vmatprep.subr.bf16.mxu0 0
    %3381 = vmatpush2.bf16.msra.mxu0 0
    %3382 = vmatprep.subr.bf16.mxu0 0
    %3383 = vmatpush2.bf16.msra.mxu0 0
    %3384 = vmatprep.subr.bf16.mxu0 0
    %3385 = vmatpush2.bf16.msra.mxu0 0
    %3386 = vmatprep.mubr.bf16.mxu0 0
    %3387 = vmatmul.mubr.bf16.gmra.mxu0 %v3353
    %v3388 = vpop.f32.mrf.mxu0
    %v3389 = vadd.f32 0.0, %v3388
    %v3390 = vpop.f32.mrf.mxu0
    %v3391 = vadd.f32 0.0, %v3390
    %v3392 = vpop.f32.mrf.mxu0
    %v3393 = vpop.f32.mrf.mxu0
    %3394 = vdwg.mxu0
    %3395 = vmatprep.subr.bf16.mxu0 %v2128
    %3396 = vmatpush1.bf16.msra.mxu0 %v2127
    %3397 = vmatprep.subr.bf16.mxu0 %v2124
    %3398 = vmatpush1.bf16.msra.mxu0 %v2123
    %3399 = vmatprep.subr.bf16.mxu0 %v2120
    %3400 = vmatpush1.bf16.msra.mxu0 %v2119
    %3401 = vmatprep.subr.bf16.mxu0 %v2116
    %3402 = vmatpush1.bf16.msra.mxu0 %v2115
    %3403 = vmatprep.subr.bf16.mxu0 %v2112
    %3404 = vmatpush1.bf16.msra.mxu0 %v2111
    %3405 = vmatprep.subr.bf16.mxu0 %v2108
    %3406 = vmatpush1.bf16.msra.mxu0 %v2107
    %3407 = vmatprep.subr.bf16.mxu0 %v2104
    %3408 = vmatpush1.bf16.msra.mxu0 %v2103
    %3409 = vmatprep.subr.bf16.mxu0 %v2100
    %3410 = vmatpush1.bf16.msra.mxu0 %v2099
    %3411 = vmatprep.subr.bf16.mxu0 0
    %3412 = vmatpush2.bf16.msra.mxu0 0
    %3413 = vmatprep.subr.bf16.mxu0 0
    %3414 = vmatpush2.bf16.msra.mxu0 0
    %3415 = vmatprep.subr.bf16.mxu0 0
    %3416 = vmatpush2.bf16.msra.mxu0 0
    %3417 = vmatprep.subr.bf16.mxu0 0
    %3418 = vmatpush2.bf16.msra.mxu0 0
    %3419 = vmatprep.subr.bf16.mxu0 0
    %3420 = vmatpush2.bf16.msra.mxu0 0
    %3421 = vmatprep.subr.bf16.mxu0 0
    %3422 = vmatpush2.bf16.msra.mxu0 0
    %3423 = vmatprep.subr.bf16.mxu0 0
    %3424 = vmatpush2.bf16.msra.mxu0 0
    %3425 = vmatprep.subr.bf16.mxu0 0
    %3426 = vmatpush2.bf16.msra.mxu0 0
    %3427 = vmatprep.mubr.bf16.mxu0 0
    %3428 = vmatmul.mubr.bf16.gmra.mxu0 %v3353
    %v3429 = vpop.f32.mrf.mxu0
    %v3430 = vadd.f32 0.0, %v3429
    %v3431 = vpop.f32.mrf.mxu0
    %v3432 = vadd.f32 0.0, %v3431
    %v3433 = vpop.f32.mrf.mxu0
    %v3434 = vpop.f32.mrf.mxu0
    %3435 = vdwg.mxu0
    %3436 = vmatprep.subr.bf16.mxu0 %v2464
    %3437 = vmatpush1.bf16.msra.mxu0 %v2463
    %3438 = vmatprep.subr.bf16.mxu0 %v2460
    %3439 = vmatpush1.bf16.msra.mxu0 %v2459
    %3440 = vmatprep.subr.bf16.mxu0 %v2456
    %3441 = vmatpush1.bf16.msra.mxu0 %v2455
    %3442 = vmatprep.subr.bf16.mxu0 %v2452
    %3443 = vmatpush1.bf16.msra.mxu0 %v2451
    %3444 = vmatprep.subr.bf16.mxu0 %v2448
    %3445 = vmatpush1.bf16.msra.mxu0 %v2447
    %3446 = vmatprep.subr.bf16.mxu0 %v2444
    %3447 = vmatpush1.bf16.msra.mxu0 %v2443
    %3448 = vmatprep.subr.bf16.mxu0 %v2440
    %3449 = vmatpush1.bf16.msra.mxu0 %v2439
    %3450 = vmatprep.subr.bf16.mxu0 %v2436
    %3451 = vmatpush1.bf16.msra.mxu0 %v2435
    %3452 = vmatprep.subr.bf16.mxu0 %v2496
    %3453 = vmatpush2.bf16.msra.mxu0 %v2495
    %3454 = vmatprep.subr.bf16.mxu0 %v2492
    %3455 = vmatpush2.bf16.msra.mxu0 %v2491
    %3456 = vmatprep.subr.bf16.mxu0 %v2488
    %3457 = vmatpush2.bf16.msra.mxu0 %v2487
    %3458 = vmatprep.subr.bf16.mxu0 %v2484
    %3459 = vmatpush2.bf16.msra.mxu0 %v2483
    %3460 = vmatprep.subr.bf16.mxu0 %v2480
    %3461 = vmatpush2.bf16.msra.mxu0 %v2479
    %3462 = vmatprep.subr.bf16.mxu0 %v2476
    %3463 = vmatpush2.bf16.msra.mxu0 %v2475
    %3464 = vmatprep.subr.bf16.mxu0 %v2472
    %3465 = vmatpush2.bf16.msra.mxu0 %v2471
    %3466 = vmatprep.subr.bf16.mxu0 %v2468
    %3467 = vmatpush2.bf16.msra.mxu0 %v2467
    %3468 = vmatprep.mubr.bf16.mxu0 %v3352
    %3469 = vmatmul.mubr.bf16.gmra.mxu0 %v3351
    %v3470 = vpop.f32.mrf.mxu0
    %v3471 = vadd.f32 %v3389, %v3470
    %v3472 = vpop.f32.mrf.mxu0
    %v3473 = vadd.f32 %v3391, %v3472
    %v3474 = vpop.f32.mrf.mxu0
    %v3475 = vpop.f32.mrf.mxu0
    %3476 = vdwg.mxu0
    %3477 = vmatprep.subr.bf16.mxu0 %v2466
    %3478 = vmatpush1.bf16.msra.mxu0 %v2465
    %3479 = vmatprep.subr.bf16.mxu0 %v2462
    %3480 = vmatpush1.bf16.msra.mxu0 %v2461
    %3481 = vmatprep.subr.bf16.mxu0 %v2458
    %3482 = vmatpush1.bf16.msra.mxu0 %v2457
    %3483 = vmatprep.subr.bf16.mxu0 %v2454
    %3484 = vmatpush1.bf16.msra.mxu0 %v2453
    %3485 = vmatprep.subr.bf16.mxu0 %v2450
    %3486 = vmatpush1.bf16.msra.mxu0 %v2449
    %3487 = vmatprep.subr.bf16.mxu0 %v2446
    %3488 = vmatpush1.bf16.msra.mxu0 %v2445
    %3489 = vmatprep.subr.bf16.mxu0 %v2442
    %3490 = vmatpush1.bf16.msra.mxu0 %v2441
    %3491 = vmatprep.subr.bf16.mxu0 %v2438
    %3492 = vmatpush1.bf16.msra.mxu0 %v2437
    %3493 = vmatprep.subr.bf16.mxu0 %v2498
    %3494 = vmatpush2.bf16.msra.mxu0 %v2497
    %3495 = vmatprep.subr.bf16.mxu0 %v2494
    %3496 = vmatpush2.bf16.msra.mxu0 %v2493
    %3497 = vmatprep.subr.bf16.mxu0 %v2490
    %3498 = vmatpush2.bf16.msra.mxu0 %v2489
    %3499 = vmatprep.subr.bf16.mxu0 %v2486
    %3500 = vmatpush2.bf16.msra.mxu0 %v2485
    %3501 = vmatprep.subr.bf16.mxu0 %v2482
    %3502 = vmatpush2.bf16.msra.mxu0 %v2481
    %3503 = vmatprep.subr.bf16.mxu0 %v2478
    %3504 = vmatpush2.bf16.msra.mxu0 %v2477
    %3505 = vmatprep.subr.bf16.mxu0 %v2474
    %3506 = vmatpush2.bf16.msra.mxu0 %v2473
    %3507 = vmatprep.subr.bf16.mxu0 %v2470
    %3508 = vmatpush2.bf16.msra.mxu0 %v2469
    %3509 = vmatprep.mubr.bf16.mxu0 %v3352
    %3510 = vmatmul.mubr.bf16.gmra.mxu0 %v3351
    %v3511 = vpop.f32.mrf.mxu0
    %v3512 = vadd.f32 %v3430, %v3511
    %v3513 = vpop.f32.mrf.mxu0
    %v3514 = vadd.f32 %v3432, %v3513
    %v3515 = vpop.f32.mrf.mxu0
    %v3516 = vpop.f32.mrf.mxu0
    %3517 = vdwg.mxu0
    %v3518 = vadd.f32 %v3471, %v2649
    %v3519 = vadd.f32 %v3473, %v2653
    %v3520 = vadd.f32 %v3512, %v2657
    %v3521 = vadd.f32 %v3514, %v2661
    %v3522 = vxor.u32 %v3518, 2147483648
    %v3523 = vmul.f32 %v3522, 1.442695
    %v3524 = vpow.pop %v3523
    %v3525 = vadd.f32 %v3524, 1.0
    %v3526 = vrcp.pop %v3525
    %v3527 = vmul.f32 1.0, %v3526
    %v3528 = vxor.u32 %v3519, 2147483648
    %v3529 = vmul.f32 %v3528, 1.442695
    %v3530 = vpow.pop %v3529
    %v3531 = vadd.f32 %v3530, 1.0
    %v3532 = vrcp.pop %v3531
    %v3533 = vmul.f32 1.0, %v3532
    %v3534 = vtanh.pop %v3520
    %v3535 = vxor.u32 %v3521, 2147483648
    %v3536 = vmul.f32 %v3535, 1.442695
    %v3537 = vpow.pop %v3536
    %v3538 = vadd.f32 %v3537, 1.0
    %v3539 = vrcp.pop %v3538
    %v3540 = vmul.f32 1.0, %v3539
    %v3541 = vmul.f32 %v3533, %v3117
    %v3542 = vmul.f32 %v3527, %v3534
    %v3543 = vadd.f32 %v3541, %v3542
    %v3544 = vtanh.pop %v3543
    %v3545 = vmul.f32 %v3540, %v3544
    %s3546 = smul.u32 3, 8
    %s3547 = smul.addr %s3546, 8
    %s3548 = scalar_lea.vmem [#allocation2], %s3547
    %v3549 = vld [vmem:[%s3548] sm:$0xff]
    %v3550 = vld [vmem:[%s3548 + $0x8] sm:$0xff]
    %v3551 = vld [vmem:[%s3548 + $0x10] sm:$0xff]
    %v3552 = vld [vmem:[%s3548 + $0x18] sm:$0xff]
    %v3553 = vld [vmem:[%s3548 + $0x20] sm:$0xff]
    %v3554 = vld [vmem:[%s3548 + $0x28] sm:$0xff]
    %v3555 = vld [vmem:[%s3548 + $0x30] sm:$0xff]
    %v3556 = vld [vmem:[%s3548 + $0x38] sm:$0xff]
    %3557 = vmatprep.subr.bf16.mxu0 %v1580
    %3558 = vmatpush1.bf16.msra.mxu0 %v1579
    %3559 = vmatprep.subr.bf16.mxu0 %v1572
    %3560 = vmatpush1.bf16.msra.mxu0 %v1571
    %3561 = vmatprep.subr.bf16.mxu0 %v1564
    %3562 = vmatpush1.bf16.msra.mxu0 %v1563
    %3563 = vmatprep.subr.bf16.mxu0 %v1556
    %3564 = vmatpush1.bf16.msra.mxu0 %v1555
    %3565 = vmatprep.subr.bf16.mxu0 %v1548
    %3566 = vmatpush1.bf16.msra.mxu0 %v1547
    %3567 = vmatprep.subr.bf16.mxu0 %v1540
    %3568 = vmatpush1.bf16.msra.mxu0 %v1539
    %3569 = vmatprep.subr.bf16.mxu0 %v1532
    %3570 = vmatpush1.bf16.msra.mxu0 %v1531
    %3571 = vmatprep.subr.bf16.mxu0 %v1524
    %3572 = vmatpush1.bf16.msra.mxu0 %v1523
    %3573 = vmatprep.subr.bf16.mxu0 %v1644
    %3574 = vmatpush2.bf16.msra.mxu0 %v1643
    %3575 = vmatprep.subr.bf16.mxu0 %v1636
    %3576 = vmatpush2.bf16.msra.mxu0 %v1635
    %3577 = vmatprep.subr.bf16.mxu0 %v1628
    %3578 = vmatpush2.bf16.msra.mxu0 %v1627
    %3579 = vmatprep.subr.bf16.mxu0 %v1620
    %3580 = vmatpush2.bf16.msra.mxu0 %v1619
    %3581 = vmatprep.subr.bf16.mxu0 %v1612
    %3582 = vmatpush2.bf16.msra.mxu0 %v1611
    %3583 = vmatprep.subr.bf16.mxu0 %v1604
    %3584 = vmatpush2.bf16.msra.mxu0 %v1603
    %3585 = vmatprep.subr.bf16.mxu0 %v1596
    %3586 = vmatpush2.bf16.msra.mxu0 %v1595
    %3587 = vmatprep.subr.bf16.mxu0 %v1588
    %3588 = vmatpush2.bf16.msra.mxu0 %v1587
    %3589 = vmatprep.mubr.bf16.mxu0 %v3352
    %3590 = vmatmul.mubr.bf16.gmra.mxu0 %v3351
    %v3591 = vpop.f32.mrf.mxu0
    %v3592 = vadd.f32 0.0, %v3591
    %v3593 = vpop.f32.mrf.mxu0
    %v3594 = vadd.f32 0.0, %v3593
    %v3595 = vpop.f32.mrf.mxu0
    %v3596 = vpop.f32.mrf.mxu0
    %3597 = vdwg.mxu0
    %3598 = vmatprep.subr.bf16.mxu0 %v1582
    %3599 = vmatpush1.bf16.msra.mxu0 %v1581
    %3600 = vmatprep.subr.bf16.mxu0 %v1574
    %3601 = vmatpush1.bf16.msra.mxu0 %v1573
    %3602 = vmatprep.subr.bf16.mxu0 %v1566
    %3603 = vmatpush1.bf16.msra.mxu0 %v1565
    %3604 = vmatprep.subr.bf16.mxu0 %v1558
    %3605 = vmatpush1.bf16.msra.mxu0 %v1557
    %3606 = vmatprep.subr.bf16.mxu0 %v1550
    %3607 = vmatpush1.bf16.msra.mxu0 %v1549
    %3608 = vmatprep.subr.bf16.mxu0 %v1542
    %3609 = vmatpush1.bf16.msra.mxu0 %v1541
    %3610 = vmatprep.subr.bf16.mxu0 %v1534
    %3611 = vmatpush1.bf16.msra.mxu0 %v1533
    %3612 = vmatprep.subr.bf16.mxu0 %v1526
    %3613 = vmatpush1.bf16.msra.mxu0 %v1525
    %3614 = vmatprep.subr.bf16.mxu0 %v1646
    %3615 = vmatpush2.bf16.msra.mxu0 %v1645
    %3616 = vmatprep.subr.bf16.mxu0 %v1638
    %3617 = vmatpush2.bf16.msra.mxu0 %v1637
    %3618 = vmatprep.subr.bf16.mxu0 %v1630
    %3619 = vmatpush2.bf16.msra.mxu0 %v1629
    %3620 = vmatprep.subr.bf16.mxu0 %v1622
    %3621 = vmatpush2.bf16.msra.mxu0 %v1621
    %3622 = vmatprep.subr.bf16.mxu0 %v1614
    %3623 = vmatpush2.bf16.msra.mxu0 %v1613
    %3624 = vmatprep.subr.bf16.mxu0 %v1606
    %3625 = vmatpush2.bf16.msra.mxu0 %v1605
    %3626 = vmatprep.subr.bf16.mxu0 %v1598
    %3627 = vmatpush2.bf16.msra.mxu0 %v1597
    %3628 = vmatprep.subr.bf16.mxu0 %v1590
    %3629 = vmatpush2.bf16.msra.mxu0 %v1589
    %3630 = vmatprep.mubr.bf16.mxu0 %v3352
    %3631 = vmatmul.mubr.bf16.gmra.mxu0 %v3351
    %v3632 = vpop.f32.mrf.mxu0
    %v3633 = vadd.f32 0.0, %v3632
    %v3634 = vpop.f32.mrf.mxu0
    %v3635 = vadd.f32 0.0, %v3634
    %v3636 = vpop.f32.mrf.mxu0
    %v3637 = vpop.f32.mrf.mxu0
    %3638 = vdwg.mxu0
    %3639 = vmatprep.subr.bf16.mxu0 %v1584
    %3640 = vmatpush1.bf16.msra.mxu0 %v1583
    %3641 = vmatprep.subr.bf16.mxu0 %v1576
    %3642 = vmatpush1.bf16.msra.mxu0 %v1575
    %3643 = vmatprep.subr.bf16.mxu0 %v1568
    %3644 = vmatpush1.bf16.msra.mxu0 %v1567
    %3645 = vmatprep.subr.bf16.mxu0 %v1560
    %3646 = vmatpush1.bf16.msra.mxu0 %v1559
    %3647 = vmatprep.subr.bf16.mxu0 %v1552
    %3648 = vmatpush1.bf16.msra.mxu0 %v1551
    %3649 = vmatprep.subr.bf16.mxu0 %v1544
    %3650 = vmatpush1.bf16.msra.mxu0 %v1543
    %3651 = vmatprep.subr.bf16.mxu0 %v1536
    %3652 = vmatpush1.bf16.msra.mxu0 %v1535
    %3653 = vmatprep.subr.bf16.mxu0 %v1528
    %3654 = vmatpush1.bf16.msra.mxu0 %v1527
    %3655 = vmatprep.subr.bf16.mxu0 %v1648
    %3656 = vmatpush2.bf16.msra.mxu0 %v1647
    %3657 = vmatprep.subr.bf16.mxu0 %v1640
    %3658 = vmatpush2.bf16.msra.mxu0 %v1639
    %3659 = vmatprep.subr.bf16.mxu0 %v1632
    %3660 = vmatpush2.bf16.msra.mxu0 %v1631
    %3661 = vmatprep.subr.bf16.mxu0 %v1624
    %3662 = vmatpush2.bf16.msra.mxu0 %v1623
    %3663 = vmatprep.subr.bf16.mxu0 %v1616
    %3664 = vmatpush2.bf16.msra.mxu0 %v1615
    %3665 = vmatprep.subr.bf16.mxu0 %v1608
    %3666 = vmatpush2.bf16.msra.mxu0 %v1607
    %3667 = vmatprep.subr.bf16.mxu0 %v1600
    %3668 = vmatpush2.bf16.msra.mxu0 %v1599
    %3669 = vmatprep.subr.bf16.mxu0 %v1592
    %3670 = vmatpush2.bf16.msra.mxu0 %v1591
    %3671 = vmatprep.mubr.bf16.mxu0 %v3352
    %3672 = vmatmul.mubr.bf16.gmra.mxu0 %v3351
    %v3673 = vpop.f32.mrf.mxu0
    %v3674 = vadd.f32 0.0, %v3673
    %v3675 = vpop.f32.mrf.mxu0
    %v3676 = vadd.f32 0.0, %v3675
    %v3677 = vpop.f32.mrf.mxu0
    %v3678 = vpop.f32.mrf.mxu0
    %3679 = vdwg.mxu0
    %3680 = vmatprep.subr.bf16.mxu0 %v1586
    %3681 = vmatpush1.bf16.msra.mxu0 %v1585
    %3682 = vmatprep.subr.bf16.mxu0 %v1578
    %3683 = vmatpush1.bf16.msra.mxu0 %v1577
    %3684 = vmatprep.subr.bf16.mxu0 %v1570
    %3685 = vmatpush1.bf16.msra.mxu0 %v1569
    %3686 = vmatprep.subr.bf16.mxu0 %v1562
    %3687 = vmatpush1.bf16.msra.mxu0 %v1561
    %3688 = vmatprep.subr.bf16.mxu0 %v1554
    %3689 = vmatpush1.bf16.msra.mxu0 %v1553
    %3690 = vmatprep.subr.bf16.mxu0 %v1546
    %3691 = vmatpush1.bf16.msra.mxu0 %v1545
    %3692 = vmatprep.subr.bf16.mxu0 %v1538
    %3693 = vmatpush1.bf16.msra.mxu0 %v1537
    %3694 = vmatprep.subr.bf16.mxu0 %v1530
    %3695 = vmatpush1.bf16.msra.mxu0 %v1529
    %3696 = vmatprep.subr.bf16.mxu0 %v1650
    %3697 = vmatpush2.bf16.msra.mxu0 %v1649
    %3698 = vmatprep.subr.bf16.mxu0 %v1642
    %3699 = vmatpush2.bf16.msra.mxu0 %v1641
    %3700 = vmatprep.subr.bf16.mxu0 %v1634
    %3701 = vmatpush2.bf16.msra.mxu0 %v1633
    %3702 = vmatprep.subr.bf16.mxu0 %v1626
    %3703 = vmatpush2.bf16.msra.mxu0 %v1625
    %3704 = vmatprep.subr.bf16.mxu0 %v1618
    %3705 = vmatpush2.bf16.msra.mxu0 %v1617
    %3706 = vmatprep.subr.bf16.mxu0 %v1610
    %3707 = vmatpush2.bf16.msra.mxu0 %v1609
    %3708 = vmatprep.subr.bf16.mxu0 %v1602
    %3709 = vmatpush2.bf16.msra.mxu0 %v1601
    %3710 = vmatprep.subr.bf16.mxu0 %v1594
    %3711 = vmatpush2.bf16.msra.mxu0 %v1593
    %3712 = vmatprep.mubr.bf16.mxu0 %v3352
    %3713 = vmatmul.mubr.bf16.gmra.mxu0 %v3351
    %v3714 = vpop.f32.mrf.mxu0
    %v3715 = vadd.f32 0.0, %v3714
    %v3716 = vpop.f32.mrf.mxu0
    %v3717 = vadd.f32 0.0, %v3716
    %v3718 = vpop.f32.mrf.mxu0
    %v3719 = vpop.f32.mrf.mxu0
    %3720 = vdwg.mxu0
    %v3721 = vadd.f32 %v3549, %v3592
    %v3722 = vadd.f32 %v3550, %v3594
    %v3723 = vadd.f32 %v3551, %v3633
    %v3724 = vadd.f32 %v3552, %v3635
    %v3725 = vadd.f32 %v3553, %v3674
    %v3726 = vadd.f32 %v3554, %v3676
    %v3727 = vadd.f32 %v3555, %v3715
    %v3728 = vadd.f32 %v3556, %v3717
    %v3729 = vxor.u32 %v3721, 2147483648
    %v3730 = vxor.u32 %v3722, 2147483648
    %v3731 = vmul.f32 %v3729, 1.442695
    %v3732 = vpow.pop %v3731
    %v3733 = vmul.f32 %v3730, 1.442695
    %v3734 = vpow.pop %v3733
    %v3735 = vadd.f32 %v3732, 1.0
    %v3736 = vadd.f32 %v3734, 1.0
    %v3737 = vrcp.pop %v3735
    %v3738 = vmul.f32 1.0, %v3737
    %v3739 = vrcp.pop %v3736
    %v3740 = vmul.f32 1.0, %v3739
    %v3741 = vxor.u32 %v3723, 2147483648
    %v3742 = vxor.u32 %v3724, 2147483648
    %v3743 = vmul.f32 %v3741, 1.442695
    %v3744 = vpow.pop %v3743
    %v3745 = vmul.f32 %v3742, 1.442695
    %v3746 = vpow.pop %v3745
    %v3747 = vadd.f32 %v3744, 1.0
    %v3748 = vadd.f32 %v3746, 1.0
    %v3749 = vrcp.pop %v3747
    %v3750 = vmul.f32 1.0, %v3749
    %v3751 = vrcp.pop %v3748
    %v3752 = vmul.f32 1.0, %v3751
    %v3753 = vtanh.pop %v3725
    %v3754 = vtanh.pop %v3726
    %v3755 = vxor.u32 %v3727, 2147483648
    %v3756 = vxor.u32 %v3728, 2147483648
    %v3757 = vmul.f32 %v3755, 1.442695
    %v3758 = vpow.pop %v3757
    %v3759 = vmul.f32 %v3756, 1.442695
    %v3760 = vpow.pop %v3759
    %v3761 = vadd.f32 %v3758, 1.0
    %v3762 = vadd.f32 %v3760, 1.0
    %v3763 = vrcp.pop %v3761
    %v3764 = vmul.f32 1.0, %v3763
    %v3765 = vrcp.pop %v3762
    %v3766 = vmul.f32 1.0, %v3765
    %v3767 = vmul.f32 %v3750, %v3345
    %v3768 = vmul.f32 %v3752, %v3346
    %v3769 = vmul.f32 %v3738, %v3753
    %v3770 = vmul.f32 %v3740, %v3754
    %v3771 = vadd.f32 %v3767, %v3769
    %v3772 = vadd.f32 %v3768, %v3770
    %v3773 = vtanh.pop %v3771
    %v3774 = vtanh.pop %v3772
    %v3775 = vmul.f32 %v3764, %v3773
    %v3776 = vmul.f32 %v3766, %v3774
    %v3777 = vpack.c.bf16 %v3775, %v3775
    %v3778 = vpack.c.bf16 %v3776, %v3776
    %v3779 = vpack.c.bf16 %v3545, %v3545
    %3780 = vmatprep.subr.bf16.mxu0 %v2126
    %3781 = vmatpush1.bf16.msra.mxu0 %v2125
    %3782 = vmatprep.subr.bf16.mxu0 %v2122
    %3783 = vmatpush1.bf16.msra.mxu0 %v2121
    %3784 = vmatprep.subr.bf16.mxu0 %v2118
    %3785 = vmatpush1.bf16.msra.mxu0 %v2117
    %3786 = vmatprep.subr.bf16.mxu0 %v2114
    %3787 = vmatpush1.bf16.msra.mxu0 %v2113
    %3788 = vmatprep.subr.bf16.mxu0 %v2110
    %3789 = vmatpush1.bf16.msra.mxu0 %v2109
    %3790 = vmatprep.subr.bf16.mxu0 %v2106
    %3791 = vmatpush1.bf16.msra.mxu0 %v2105
    %3792 = vmatprep.subr.bf16.mxu0 %v2102
    %3793 = vmatpush1.bf16.msra.mxu0 %v2101
    %3794 = vmatprep.subr.bf16.mxu0 %v2098
    %3795 = vmatpush1.bf16.msra.mxu0 %v2097
    %3796 = vmatprep.subr.bf16.mxu0 0
    %3797 = vmatpush2.bf16.msra.mxu0 0
    %3798 = vmatprep.subr.bf16.mxu0 0
    %3799 = vmatpush2.bf16.msra.mxu0 0
    %3800 = vmatprep.subr.bf16.mxu0 0
    %3801 = vmatpush2.bf16.msra.mxu0 0
    %3802 = vmatprep.subr.bf16.mxu0 0
    %3803 = vmatpush2.bf16.msra.mxu0 0
    %3804 = vmatprep.subr.bf16.mxu0 0
    %3805 = vmatpush2.bf16.msra.mxu0 0
    %3806 = vmatprep.subr.bf16.mxu0 0
    %3807 = vmatpush2.bf16.msra.mxu0 0
    %3808 = vmatprep.subr.bf16.mxu0 0
    %3809 = vmatpush2.bf16.msra.mxu0 0
    %3810 = vmatprep.subr.bf16.mxu0 0
    %3811 = vmatpush2.bf16.msra.mxu0 0
    %3812 = vmatprep.mubr.bf16.mxu0 0
    %3813 = vmatmul.mubr.bf16.gmra.mxu0 %v3779
    %v3814 = vpop.f32.mrf.mxu0
    %v3815 = vadd.f32 0.0, %v3814
    %v3816 = vpop.f32.mrf.mxu0
    %v3817 = vadd.f32 0.0, %v3816
    %v3818 = vpop.f32.mrf.mxu0
    %v3819 = vpop.f32.mrf.mxu0
    %3820 = vdwg.mxu0
    %3821 = vmatprep.subr.bf16.mxu0 %v2128
    %3822 = vmatpush1.bf16.msra.mxu0 %v2127
    %3823 = vmatprep.subr.bf16.mxu0 %v2124
    %3824 = vmatpush1.bf16.msra.mxu0 %v2123
    %3825 = vmatprep.subr.bf16.mxu0 %v2120
    %3826 = vmatpush1.bf16.msra.mxu0 %v2119
    %3827 = vmatprep.subr.bf16.mxu0 %v2116
    %3828 = vmatpush1.bf16.msra.mxu0 %v2115
    %3829 = vmatprep.subr.bf16.mxu0 %v2112
    %3830 = vmatpush1.bf16.msra.mxu0 %v2111
    %3831 = vmatprep.subr.bf16.mxu0 %v2108
    %3832 = vmatpush1.bf16.msra.mxu0 %v2107
    %3833 = vmatprep.subr.bf16.mxu0 %v2104
    %3834 = vmatpush1.bf16.msra.mxu0 %v2103
    %3835 = vmatprep.subr.bf16.mxu0 %v2100
    %3836 = vmatpush1.bf16.msra.mxu0 %v2099
    %3837 = vmatprep.subr.bf16.mxu0 0
    %3838 = vmatpush2.bf16.msra.mxu0 0
    %3839 = vmatprep.subr.bf16.mxu0 0
    %3840 = vmatpush2.bf16.msra.mxu0 0
    %3841 = vmatprep.subr.bf16.mxu0 0
    %3842 = vmatpush2.bf16.msra.mxu0 0
    %3843 = vmatprep.subr.bf16.mxu0 0
    %3844 = vmatpush2.bf16.msra.mxu0 0
    %3845 = vmatprep.subr.bf16.mxu0 0
    %3846 = vmatpush2.bf16.msra.mxu0 0
    %3847 = vmatprep.subr.bf16.mxu0 0
    %3848 = vmatpush2.bf16.msra.mxu0 0
    %3849 = vmatprep.subr.bf16.mxu0 0
    %3850 = vmatpush2.bf16.msra.mxu0 0
    %3851 = vmatprep.subr.bf16.mxu0 0
    %3852 = vmatpush2.bf16.msra.mxu0 0
    %3853 = vmatprep.mubr.bf16.mxu0 0
    %3854 = vmatmul.mubr.bf16.gmra.mxu0 %v3779
    %v3855 = vpop.f32.mrf.mxu0
    %v3856 = vadd.f32 0.0, %v3855
    %v3857 = vpop.f32.mrf.mxu0
    %v3858 = vadd.f32 0.0, %v3857
    %v3859 = vpop.f32.mrf.mxu0
    %v3860 = vpop.f32.mrf.mxu0
    %3861 = vdwg.mxu0
    %3862 = vmatprep.subr.bf16.mxu0 %v2464
    %3863 = vmatpush1.bf16.msra.mxu0 %v2463
    %3864 = vmatprep.subr.bf16.mxu0 %v2460
    %3865 = vmatpush1.bf16.msra.mxu0 %v2459
    %3866 = vmatprep.subr.bf16.mxu0 %v2456
    %3867 = vmatpush1.bf16.msra.mxu0 %v2455
    %3868 = vmatprep.subr.bf16.mxu0 %v2452
    %3869 = vmatpush1.bf16.msra.mxu0 %v2451
    %3870 = vmatprep.subr.bf16.mxu0 %v2448
    %3871 = vmatpush1.bf16.msra.mxu0 %v2447
    %3872 = vmatprep.subr.bf16.mxu0 %v2444
    %3873 = vmatpush1.bf16.msra.mxu0 %v2443
    %3874 = vmatprep.subr.bf16.mxu0 %v2440
    %3875 = vmatpush1.bf16.msra.mxu0 %v2439
    %3876 = vmatprep.subr.bf16.mxu0 %v2436
    %3877 = vmatpush1.bf16.msra.mxu0 %v2435
    %3878 = vmatprep.subr.bf16.mxu0 %v2496
    %3879 = vmatpush2.bf16.msra.mxu0 %v2495
    %3880 = vmatprep.subr.bf16.mxu0 %v2492
    %3881 = vmatpush2.bf16.msra.mxu0 %v2491
    %3882 = vmatprep.subr.bf16.mxu0 %v2488
    %3883 = vmatpush2.bf16.msra.mxu0 %v2487
    %3884 = vmatprep.subr.bf16.mxu0 %v2484
    %3885 = vmatpush2.bf16.msra.mxu0 %v2483
    %3886 = vmatprep.subr.bf16.mxu0 %v2480
    %3887 = vmatpush2.bf16.msra.mxu0 %v2479
    %3888 = vmatprep.subr.bf16.mxu0 %v2476
    %3889 = vmatpush2.bf16.msra.mxu0 %v2475
    %3890 = vmatprep.subr.bf16.mxu0 %v2472
    %3891 = vmatpush2.bf16.msra.mxu0 %v2471
    %3892 = vmatprep.subr.bf16.mxu0 %v2468
    %3893 = vmatpush2.bf16.msra.mxu0 %v2467
    %3894 = vmatprep.mubr.bf16.mxu0 %v3778
    %3895 = vmatmul.mubr.bf16.gmra.mxu0 %v3777
    %v3896 = vpop.f32.mrf.mxu0
    %v3897 = vadd.f32 %v3815, %v3896
    %v3898 = vpop.f32.mrf.mxu0
    %v3899 = vadd.f32 %v3817, %v3898
    %v3900 = vpop.f32.mrf.mxu0
    %v3901 = vpop.f32.mrf.mxu0
    %3902 = vdwg.mxu0
    %3903 = vmatprep.subr.bf16.mxu0 %v2466
    %3904 = vmatpush1.bf16.msra.mxu0 %v2465
    %3905 = vmatprep.subr.bf16.mxu0 %v2462
    %3906 = vmatpush1.bf16.msra.mxu0 %v2461
    %3907 = vmatprep.subr.bf16.mxu0 %v2458
    %3908 = vmatpush1.bf16.msra.mxu0 %v2457
    %3909 = vmatprep.subr.bf16.mxu0 %v2454
    %3910 = vmatpush1.bf16.msra.mxu0 %v2453
    %3911 = vmatprep.subr.bf16.mxu0 %v2450
    %3912 = vmatpush1.bf16.msra.mxu0 %v2449
    %3913 = vmatprep.subr.bf16.mxu0 %v2446
    %3914 = vmatpush1.bf16.msra.mxu0 %v2445
    %3915 = vmatprep.subr.bf16.mxu0 %v2442
    %3916 = vmatpush1.bf16.msra.mxu0 %v2441
    %3917 = vmatprep.subr.bf16.mxu0 %v2438
    %3918 = vmatpush1.bf16.msra.mxu0 %v2437
    %3919 = vmatprep.subr.bf16.mxu0 %v2498
    %3920 = vmatpush2.bf16.msra.mxu0 %v2497
    %3921 = vmatprep.subr.bf16.mxu0 %v2494
    %3922 = vmatpush2.bf16.msra.mxu0 %v2493
    %3923 = vmatprep.subr.bf16.mxu0 %v2490
    %3924 = vmatpush2.bf16.msra.mxu0 %v2489
    %3925 = vmatprep.subr.bf16.mxu0 %v2486
    %3926 = vmatpush2.bf16.msra.mxu0 %v2485
    %3927 = vmatprep.subr.bf16.mxu0 %v2482
    %3928 = vmatpush2.bf16.msra.mxu0 %v2481
    %3929 = vmatprep.subr.bf16.mxu0 %v2478
    %3930 = vmatpush2.bf16.msra.mxu0 %v2477
    %3931 = vmatprep.subr.bf16.mxu0 %v2474
    %3932 = vmatpush2.bf16.msra.mxu0 %v2473
    %3933 = vmatprep.subr.bf16.mxu0 %v2470
    %3934 = vmatpush2.bf16.msra.mxu0 %v2469
    %3935 = vmatprep.mubr.bf16.mxu0 %v3778
    %3936 = vmatmul.mubr.bf16.gmra.mxu0 %v3777
    %v3937 = vpop.f32.mrf.mxu0
    %v3938 = vadd.f32 %v3856, %v3937
    %v3939 = vpop.f32.mrf.mxu0
    %v3940 = vadd.f32 %v3858, %v3939
    %v3941 = vpop.f32.mrf.mxu0
    %v3942 = vpop.f32.mrf.mxu0
    %3943 = vdwg.mxu0
    %v3944 = vadd.f32 %v3897, %v2649
    %v3945 = vadd.f32 %v3899, %v2653
    %v3946 = vadd.f32 %v3938, %v2657
    %v3947 = vadd.f32 %v3940, %v2661
    %v3948 = vxor.u32 %v3944, 2147483648
    %v3949 = vmul.f32 %v3948, 1.442695
    %v3950 = vpow.pop %v3949
    %v3951 = vadd.f32 %v3950, 1.0
    %v3952 = vrcp.pop %v3951
    %v3953 = vmul.f32 1.0, %v3952
    %v3954 = vxor.u32 %v3945, 2147483648
    %v3955 = vmul.f32 %v3954, 1.442695
    %v3956 = vpow.pop %v3955
    %v3957 = vadd.f32 %v3956, 1.0
    %v3958 = vrcp.pop %v3957
    %v3959 = vmul.f32 1.0, %v3958
    %v3960 = vtanh.pop %v3946
    %v3961 = vxor.u32 %v3947, 2147483648
    %v3962 = vmul.f32 %v3961, 1.442695
    %v3963 = vpow.pop %v3962
    %v3964 = vadd.f32 %v3963, 1.0
    %v3965 = vrcp.pop %v3964
    %v3966 = vmul.f32 1.0, %v3965
    %v3967 = vmul.f32 %v3959, %v3543
    %v3968 = vmul.f32 %v3953, %v3960
    %v3969 = vadd.f32 %v3967, %v3968
    %v3970 = vtanh.pop %v3969
    %v3971 = vmul.f32 %v3966, %v3970
    %s3972 = smul.u32 4, 8
    %s3973 = smul.addr %s3972, 8
    %s3974 = scalar_lea.vmem [#allocation2], %s3973
    %v3975 = vld [vmem:[%s3974] sm:$0xff]
    %v3976 = vld [vmem:[%s3974 + $0x8] sm:$0xff]
    %v3977 = vld [vmem:[%s3974 + $0x10] sm:$0xff]
    %v3978 = vld [vmem:[%s3974 + $0x18] sm:$0xff]
    %v3979 = vld [vmem:[%s3974 + $0x20] sm:$0xff]
    %v3980 = vld [vmem:[%s3974 + $0x28] sm:$0xff]
    %v3981 = vld [vmem:[%s3974 + $0x30] sm:$0xff]
    %v3982 = vld [vmem:[%s3974 + $0x38] sm:$0xff]
    %3983 = vmatprep.subr.bf16.mxu0 %v1580
    %3984 = vmatpush1.bf16.msra.mxu0 %v1579
    %3985 = vmatprep.subr.bf16.mxu0 %v1572
    %3986 = vmatpush1.bf16.msra.mxu0 %v1571
    %3987 = vmatprep.subr.bf16.mxu0 %v1564
    %3988 = vmatpush1.bf16.msra.mxu0 %v1563
    %3989 = vmatprep.subr.bf16.mxu0 %v1556
    %3990 = vmatpush1.bf16.msra.mxu0 %v1555
    %3991 = vmatprep.subr.bf16.mxu0 %v1548
    %3992 = vmatpush1.bf16.msra.mxu0 %v1547
    %3993 = vmatprep.subr.bf16.mxu0 %v1540
    %3994 = vmatpush1.bf16.msra.mxu0 %v1539
    %3995 = vmatprep.subr.bf16.mxu0 %v1532
    %3996 = vmatpush1.bf16.msra.mxu0 %v1531
    %3997 = vmatprep.subr.bf16.mxu0 %v1524
    %3998 = vmatpush1.bf16.msra.mxu0 %v1523
    %3999 = vmatprep.subr.bf16.mxu0 %v1644
    %4000 = vmatpush2.bf16.msra.mxu0 %v1643
    %4001 = vmatprep.subr.bf16.mxu0 %v1636
    %4002 = vmatpush2.bf16.msra.mxu0 %v1635
    %4003 = vmatprep.subr.bf16.mxu0 %v1628
    %4004 = vmatpush2.bf16.msra.mxu0 %v1627
    %4005 = vmatprep.subr.bf16.mxu0 %v1620
    %4006 = vmatpush2.bf16.msra.mxu0 %v1619
    %4007 = vmatprep.subr.bf16.mxu0 %v1612
    %4008 = vmatpush2.bf16.msra.mxu0 %v1611
    %4009 = vmatprep.subr.bf16.mxu0 %v1604
    %4010 = vmatpush2.bf16.msra.mxu0 %v1603
    %4011 = vmatprep.subr.bf16.mxu0 %v1596
    %4012 = vmatpush2.bf16.msra.mxu0 %v1595
    %4013 = vmatprep.subr.bf16.mxu0 %v1588
    %4014 = vmatpush2.bf16.msra.mxu0 %v1587
    %4015 = vmatprep.mubr.bf16.mxu0 %v3778
    %4016 = vmatmul.mubr.bf16.gmra.mxu0 %v3777
    %v4017 = vpop.f32.mrf.mxu0
    %v4018 = vadd.f32 0.0, %v4017
    %v4019 = vpop.f32.mrf.mxu0
    %v4020 = vadd.f32 0.0, %v4019
    %v4021 = vpop.f32.mrf.mxu0
    %v4022 = vpop.f32.mrf.mxu0
    %4023 = vdwg.mxu0
    %4024 = vmatprep.subr.bf16.mxu0 %v1582
    %4025 = vmatpush1.bf16.msra.mxu0 %v1581
    %4026 = vmatprep.subr.bf16.mxu0 %v1574
    %4027 = vmatpush1.bf16.msra.mxu0 %v1573
    %4028 = vmatprep.subr.bf16.mxu0 %v1566
    %4029 = vmatpush1.bf16.msra.mxu0 %v1565
    %4030 = vmatprep.subr.bf16.mxu0 %v1558
    %4031 = vmatpush1.bf16.msra.mxu0 %v1557
    %4032 = vmatprep.subr.bf16.mxu0 %v1550
    %4033 = vmatpush1.bf16.msra.mxu0 %v1549
    %4034 = vmatprep.subr.bf16.mxu0 %v1542
    %4035 = vmatpush1.bf16.msra.mxu0 %v1541
    %4036 = vmatprep.subr.bf16.mxu0 %v1534
    %4037 = vmatpush1.bf16.msra.mxu0 %v1533
    %4038 = vmatprep.subr.bf16.mxu0 %v1526
    %4039 = vmatpush1.bf16.msra.mxu0 %v1525
    %4040 = vmatprep.subr.bf16.mxu0 %v1646
    %4041 = vmatpush2.bf16.msra.mxu0 %v1645
    %4042 = vmatprep.subr.bf16.mxu0 %v1638
    %4043 = vmatpush2.bf16.msra.mxu0 %v1637
    %4044 = vmatprep.subr.bf16.mxu0 %v1630
    %4045 = vmatpush2.bf16.msra.mxu0 %v1629
    %4046 = vmatprep.subr.bf16.mxu0 %v1622
    %4047 = vmatpush2.bf16.msra.mxu0 %v1621
    %4048 = vmatprep.subr.bf16.mxu0 %v1614
    %4049 = vmatpush2.bf16.msra.mxu0 %v1613
    %4050 = vmatprep.subr.bf16.mxu0 %v1606
    %4051 = vmatpush2.bf16.msra.mxu0 %v1605
    %4052 = vmatprep.subr.bf16.mxu0 %v1598
    %4053 = vmatpush2.bf16.msra.mxu0 %v1597
    %4054 = vmatprep.subr.bf16.mxu0 %v1590
    %4055 = vmatpush2.bf16.msra.mxu0 %v1589
    %4056 = vmatprep.mubr.bf16.mxu0 %v3778
    %4057 = vmatmul.mubr.bf16.gmra.mxu0 %v3777
    %v4058 = vpop.f32.mrf.mxu0
    %v4059 = vadd.f32 0.0, %v4058
    %v4060 = vpop.f32.mrf.mxu0
    %v4061 = vadd.f32 0.0, %v4060
    %v4062 = vpop.f32.mrf.mxu0
    %v4063 = vpop.f32.mrf.mxu0
    %4064 = vdwg.mxu0
    %4065 = vmatprep.subr.bf16.mxu0 %v1584
    %4066 = vmatpush1.bf16.msra.mxu0 %v1583
    %4067 = vmatprep.subr.bf16.mxu0 %v1576
    %4068 = vmatpush1.bf16.msra.mxu0 %v1575
    %4069 = vmatprep.subr.bf16.mxu0 %v1568
    %4070 = vmatpush1.bf16.msra.mxu0 %v1567
    %4071 = vmatprep.subr.bf16.mxu0 %v1560
    %4072 = vmatpush1.bf16.msra.mxu0 %v1559
    %4073 = vmatprep.subr.bf16.mxu0 %v1552
    %4074 = vmatpush1.bf16.msra.mxu0 %v1551
    %4075 = vmatprep.subr.bf16.mxu0 %v1544
    %4076 = vmatpush1.bf16.msra.mxu0 %v1543
    %4077 = vmatprep.subr.bf16.mxu0 %v1536
    %4078 = vmatpush1.bf16.msra.mxu0 %v1535
    %4079 = vmatprep.subr.bf16.mxu0 %v1528
    %4080 = vmatpush1.bf16.msra.mxu0 %v1527
    %4081 = vmatprep.subr.bf16.mxu0 %v1648
    %4082 = vmatpush2.bf16.msra.mxu0 %v1647
    %4083 = vmatprep.subr.bf16.mxu0 %v1640
    %4084 = vmatpush2.bf16.msra.mxu0 %v1639
    %4085 = vmatprep.subr.bf16.mxu0 %v1632
    %4086 = vmatpush2.bf16.msra.mxu0 %v1631
    %4087 = vmatprep.subr.bf16.mxu0 %v1624
    %4088 = vmatpush2.bf16.msra.mxu0 %v1623
    %4089 = vmatprep.subr.bf16.mxu0 %v1616
    %4090 = vmatpush2.bf16.msra.mxu0 %v1615
    %4091 = vmatprep.subr.bf16.mxu0 %v1608
    %4092 = vmatpush2.bf16.msra.mxu0 %v1607
    %4093 = vmatprep.subr.bf16.mxu0 %v1600
    %4094 = vmatpush2.bf16.msra.mxu0 %v1599
    %4095 = vmatprep.subr.bf16.mxu0 %v1592
    %4096 = vmatpush2.bf16.msra.mxu0 %v1591
    %4097 = vmatprep.mubr.bf16.mxu0 %v3778
    %4098 = vmatmul.mubr.bf16.gmra.mxu0 %v3777
    %v4099 = vpop.f32.mrf.mxu0
    %v4100 = vadd.f32 0.0, %v4099
    %v4101 = vpop.f32.mrf.mxu0
    %v4102 = vadd.f32 0.0, %v4101
    %v4103 = vpop.f32.mrf.mxu0
    %v4104 = vpop.f32.mrf.mxu0
    %4105 = vdwg.mxu0
    %4106 = vmatprep.subr.bf16.mxu0 %v1586
    %4107 = vmatpush1.bf16.msra.mxu0 %v1585
    %4108 = vmatprep.subr.bf16.mxu0 %v1578
    %4109 = vmatpush1.bf16.msra.mxu0 %v1577
    %4110 = vmatprep.subr.bf16.mxu0 %v1570
    %4111 = vmatpush1.bf16.msra.mxu0 %v1569
    %4112 = vmatprep.subr.bf16.mxu0 %v1562
    %4113 = vmatpush1.bf16.msra.mxu0 %v1561
    %4114 = vmatprep.subr.bf16.mxu0 %v1554
    %4115 = vmatpush1.bf16.msra.mxu0 %v1553
    %4116 = vmatprep.subr.bf16.mxu0 %v1546
    %4117 = vmatpush1.bf16.msra.mxu0 %v1545
    %4118 = vmatprep.subr.bf16.mxu0 %v1538
    %4119 = vmatpush1.bf16.msra.mxu0 %v1537
    %4120 = vmatprep.subr.bf16.mxu0 %v1530
    %4121 = vmatpush1.bf16.msra.mxu0 %v1529
    %4122 = vmatprep.subr.bf16.mxu0 %v1650
    %4123 = vmatpush2.bf16.msra.mxu0 %v1649
    %4124 = vmatprep.subr.bf16.mxu0 %v1642
    %4125 = vmatpush2.bf16.msra.mxu0 %v1641
    %4126 = vmatprep.subr.bf16.mxu0 %v1634
    %4127 = vmatpush2.bf16.msra.mxu0 %v1633
    %4128 = vmatprep.subr.bf16.mxu0 %v1626
    %4129 = vmatpush2.bf16.msra.mxu0 %v1625
    %4130 = vmatprep.subr.bf16.mxu0 %v1618
    %4131 = vmatpush2.bf16.msra.mxu0 %v1617
    %4132 = vmatprep.subr.bf16.mxu0 %v1610
    %4133 = vmatpush2.bf16.msra.mxu0 %v1609
    %4134 = vmatprep.subr.bf16.mxu0 %v1602
    %4135 = vmatpush2.bf16.msra.mxu0 %v1601
    %4136 = vmatprep.subr.bf16.mxu0 %v1594
    %4137 = vmatpush2.bf16.msra.mxu0 %v1593
    %4138 = vmatprep.mubr.bf16.mxu0 %v3778
    %4139 = vmatmul.mubr.bf16.gmra.mxu0 %v3777
    %v4140 = vpop.f32.mrf.mxu0
    %v4141 = vadd.f32 0.0, %v4140
    %v4142 = vpop.f32.mrf.mxu0
    %v4143 = vadd.f32 0.0, %v4142
    %v4144 = vpop.f32.mrf.mxu0
    %v4145 = vpop.f32.mrf.mxu0
    %4146 = vdwg.mxu0
    %v4147 = vadd.f32 %v3975, %v4018
    %v4148 = vadd.f32 %v3976, %v4020
    %v4149 = vadd.f32 %v3977, %v4059
    %v4150 = vadd.f32 %v3978, %v4061
    %v4151 = vadd.f32 %v3979, %v4100
    %v4152 = vadd.f32 %v3980, %v4102
    %v4153 = vadd.f32 %v3981, %v4141
    %v4154 = vadd.f32 %v3982, %v4143
    %v4155 = vxor.u32 %v4147, 2147483648
    %v4156 = vxor.u32 %v4148, 2147483648
    %v4157 = vmul.f32 %v4155, 1.442695
    %v4158 = vpow.pop %v4157
    %v4159 = vmul.f32 %v4156, 1.442695
    %v4160 = vpow.pop %v4159
    %v4161 = vadd.f32 %v4158, 1.0
    %v4162 = vadd.f32 %v4160, 1.0
    %v4163 = vrcp.pop %v4161
    %v4164 = vmul.f32 1.0, %v4163
    %v4165 = vrcp.pop %v4162
    %v4166 = vmul.f32 1.0, %v4165
    %v4167 = vxor.u32 %v4149, 2147483648
    %v4168 = vxor.u32 %v4150, 2147483648
    %v4169 = vmul.f32 %v4167, 1.442695
    %v4170 = vpow.pop %v4169
    %v4171 = vmul.f32 %v4168, 1.442695
    %v4172 = vpow.pop %v4171
    %v4173 = vadd.f32 %v4170, 1.0
    %v4174 = vadd.f32 %v4172, 1.0
    %v4175 = vrcp.pop %v4173
    %v4176 = vmul.f32 1.0, %v4175
    %v4177 = vrcp.pop %v4174
    %v4178 = vmul.f32 1.0, %v4177
    %v4179 = vtanh.pop %v4151
    %v4180 = vtanh.pop %v4152
    %v4181 = vxor.u32 %v4153, 2147483648
    %v4182 = vxor.u32 %v4154, 2147483648
    %v4183 = vmul.f32 %v4181, 1.442695
    %v4184 = vpow.pop %v4183
    %v4185 = vmul.f32 %v4182, 1.442695
    %v4186 = vpow.pop %v4185
    %v4187 = vadd.f32 %v4184, 1.0
    %v4188 = vadd.f32 %v4186, 1.0
    %v4189 = vrcp.pop %v4187
    %v4190 = vmul.f32 1.0, %v4189
    %v4191 = vrcp.pop %v4188
    %v4192 = vmul.f32 1.0, %v4191
    %v4193 = vmul.f32 %v4176, %v3771
    %v4194 = vmul.f32 %v4178, %v3772
    %v4195 = vmul.f32 %v4164, %v4179
    %v4196 = vmul.f32 %v4166, %v4180
    %v4197 = vadd.f32 %v4193, %v4195
    %v4198 = vadd.f32 %v4194, %v4196
    %v4199 = vtanh.pop %v4197
    %v4200 = vtanh.pop %v4198
    %v4201 = vmul.f32 %v4190, %v4199
    %v4202 = vmul.f32 %v4192, %v4200
    %v4203 = vpack.c.bf16 %v4201, %v4201
    %v4204 = vpack.c.bf16 %v4202, %v4202
    %v4205 = vpack.c.bf16 %v3971, %v3971
    %4206 = vmatprep.subr.bf16.mxu0 %v2126
    %4207 = vmatpush1.bf16.msra.mxu0 %v2125
    %4208 = vmatprep.subr.bf16.mxu0 %v2122
    %4209 = vmatpush1.bf16.msra.mxu0 %v2121
    %4210 = vmatprep.subr.bf16.mxu0 %v2118
    %4211 = vmatpush1.bf16.msra.mxu0 %v2117
    %4212 = vmatprep.subr.bf16.mxu0 %v2114
    %4213 = vmatpush1.bf16.msra.mxu0 %v2113
    %4214 = vmatprep.subr.bf16.mxu0 %v2110
    %4215 = vmatpush1.bf16.msra.mxu0 %v2109
    %4216 = vmatprep.subr.bf16.mxu0 %v2106
    %4217 = vmatpush1.bf16.msra.mxu0 %v2105
    %4218 = vmatprep.subr.bf16.mxu0 %v2102
    %4219 = vmatpush1.bf16.msra.mxu0 %v2101
    %4220 = vmatprep.subr.bf16.mxu0 %v2098
    %4221 = vmatpush1.bf16.msra.mxu0 %v2097
    %4222 = vmatprep.subr.bf16.mxu0 0
    %4223 = vmatpush2.bf16.msra.mxu0 0
    %4224 = vmatprep.subr.bf16.mxu0 0
    %4225 = vmatpush2.bf16.msra.mxu0 0
    %4226 = vmatprep.subr.bf16.mxu0 0
    %4227 = vmatpush2.bf16.msra.mxu0 0
    %4228 = vmatprep.subr.bf16.mxu0 0
    %4229 = vmatpush2.bf16.msra.mxu0 0
    %4230 = vmatprep.subr.bf16.mxu0 0
    %4231 = vmatpush2.bf16.msra.mxu0 0
    %4232 = vmatprep.subr.bf16.mxu0 0
    %4233 = vmatpush2.bf16.msra.mxu0 0
    %4234 = vmatprep.subr.bf16.mxu0 0
    %4235 = vmatpush2.bf16.msra.mxu0 0
    %4236 = vmatprep.subr.bf16.mxu0 0
    %4237 = vmatpush2.bf16.msra.mxu0 0
    %4238 = vmatprep.mubr.bf16.mxu0 0
    %4239 = vmatmul.mubr.bf16.gmra.mxu0 %v4205
    %v4240 = vpop.f32.mrf.mxu0
    %v4241 = vadd.f32 0.0, %v4240
    %v4242 = vpop.f32.mrf.mxu0
    %v4243 = vadd.f32 0.0, %v4242
    %v4244 = vpop.f32.mrf.mxu0
    %v4245 = vpop.f32.mrf.mxu0
    %4246 = vdwg.mxu0
    %4247 = vmatprep.subr.bf16.mxu0 %v2128
    %4248 = vmatpush1.bf16.msra.mxu0 %v2127
    %4249 = vmatprep.subr.bf16.mxu0 %v2124
    %4250 = vmatpush1.bf16.msra.mxu0 %v2123
    %4251 = vmatprep.subr.bf16.mxu0 %v2120
    %4252 = vmatpush1.bf16.msra.mxu0 %v2119
    %4253 = vmatprep.subr.bf16.mxu0 %v2116
    %4254 = vmatpush1.bf16.msra.mxu0 %v2115
    %4255 = vmatprep.subr.bf16.mxu0 %v2112
    %4256 = vmatpush1.bf16.msra.mxu0 %v2111
    %4257 = vmatprep.subr.bf16.mxu0 %v2108
    %4258 = vmatpush1.bf16.msra.mxu0 %v2107
    %4259 = vmatprep.subr.bf16.mxu0 %v2104
    %4260 = vmatpush1.bf16.msra.mxu0 %v2103
    %4261 = vmatprep.subr.bf16.mxu0 %v2100
    %4262 = vmatpush1.bf16.msra.mxu0 %v2099
    %4263 = vmatprep.subr.bf16.mxu0 0
    %4264 = vmatpush2.bf16.msra.mxu0 0
    %4265 = vmatprep.subr.bf16.mxu0 0
    %4266 = vmatpush2.bf16.msra.mxu0 0
    %4267 = vmatprep.subr.bf16.mxu0 0
    %4268 = vmatpush2.bf16.msra.mxu0 0
    %4269 = vmatprep.subr.bf16.mxu0 0
    %4270 = vmatpush2.bf16.msra.mxu0 0
    %4271 = vmatprep.subr.bf16.mxu0 0
    %4272 = vmatpush2.bf16.msra.mxu0 0
    %4273 = vmatprep.subr.bf16.mxu0 0
    %4274 = vmatpush2.bf16.msra.mxu0 0
    %4275 = vmatprep.subr.bf16.mxu0 0
    %4276 = vmatpush2.bf16.msra.mxu0 0
    %4277 = vmatprep.subr.bf16.mxu0 0
    %4278 = vmatpush2.bf16.msra.mxu0 0
    %4279 = vmatprep.mubr.bf16.mxu0 0
    %4280 = vmatmul.mubr.bf16.gmra.mxu0 %v4205
    %v4281 = vpop.f32.mrf.mxu0
    %v4282 = vadd.f32 0.0, %v4281
    %v4283 = vpop.f32.mrf.mxu0
    %v4284 = vadd.f32 0.0, %v4283
    %v4285 = vpop.f32.mrf.mxu0
    %v4286 = vpop.f32.mrf.mxu0
    %4287 = vdwg.mxu0
    %4288 = vmatprep.subr.bf16.mxu0 %v2464
    %4289 = vmatpush1.bf16.msra.mxu0 %v2463
    %4290 = vmatprep.subr.bf16.mxu0 %v2460
    %4291 = vmatpush1.bf16.msra.mxu0 %v2459
    %4292 = vmatprep.subr.bf16.mxu0 %v2456
    %4293 = vmatpush1.bf16.msra.mxu0 %v2455
    %4294 = vmatprep.subr.bf16.mxu0 %v2452
    %4295 = vmatpush1.bf16.msra.mxu0 %v2451
    %4296 = vmatprep.subr.bf16.mxu0 %v2448
    %4297 = vmatpush1.bf16.msra.mxu0 %v2447
    %4298 = vmatprep.subr.bf16.mxu0 %v2444
    %4299 = vmatpush1.bf16.msra.mxu0 %v2443
    %4300 = vmatprep.subr.bf16.mxu0 %v2440
    %4301 = vmatpush1.bf16.msra.mxu0 %v2439
    %4302 = vmatprep.subr.bf16.mxu0 %v2436
    %4303 = vmatpush1.bf16.msra.mxu0 %v2435
    %4304 = vmatprep.subr.bf16.mxu0 %v2496
    %4305 = vmatpush2.bf16.msra.mxu0 %v2495
    %4306 = vmatprep.subr.bf16.mxu0 %v2492
    %4307 = vmatpush2.bf16.msra.mxu0 %v2491
    %4308 = vmatprep.subr.bf16.mxu0 %v2488
    %4309 = vmatpush2.bf16.msra.mxu0 %v2487
    %4310 = vmatprep.subr.bf16.mxu0 %v2484
    %4311 = vmatpush2.bf16.msra.mxu0 %v2483
    %4312 = vmatprep.subr.bf16.mxu0 %v2480
    %4313 = vmatpush2.bf16.msra.mxu0 %v2479
    %4314 = vmatprep.subr.bf16.mxu0 %v2476
    %4315 = vmatpush2.bf16.msra.mxu0 %v2475
    %4316 = vmatprep.subr.bf16.mxu0 %v2472
    %4317 = vmatpush2.bf16.msra.mxu0 %v2471
    %4318 = vmatprep.subr.bf16.mxu0 %v2468
    %4319 = vmatpush2.bf16.msra.mxu0 %v2467
    %4320 = vmatprep.mubr.bf16.mxu0 %v4204
    %4321 = vmatmul.mubr.bf16.gmra.mxu0 %v4203
    %v4322 = vpop.f32.mrf.mxu0
    %v4323 = vadd.f32 %v4241, %v4322
    %v4324 = vpop.f32.mrf.mxu0
    %v4325 = vadd.f32 %v4243, %v4324
    %v4326 = vpop.f32.mrf.mxu0
    %v4327 = vpop.f32.mrf.mxu0
    %4328 = vdwg.mxu0
    %4329 = vmatprep.subr.bf16.mxu0 %v2466
    %4330 = vmatpush1.bf16.msra.mxu0 %v2465
    %4331 = vmatprep.subr.bf16.mxu0 %v2462
    %4332 = vmatpush1.bf16.msra.mxu0 %v2461
    %4333 = vmatprep.subr.bf16.mxu0 %v2458
    %4334 = vmatpush1.bf16.msra.mxu0 %v2457
    %4335 = vmatprep.subr.bf16.mxu0 %v2454
    %4336 = vmatpush1.bf16.msra.mxu0 %v2453
    %4337 = vmatprep.subr.bf16.mxu0 %v2450
    %4338 = vmatpush1.bf16.msra.mxu0 %v2449
    %4339 = vmatprep.subr.bf16.mxu0 %v2446
    %4340 = vmatpush1.bf16.msra.mxu0 %v2445
    %4341 = vmatprep.subr.bf16.mxu0 %v2442
    %4342 = vmatpush1.bf16.msra.mxu0 %v2441
    %4343 = vmatprep.subr.bf16.mxu0 %v2438
    %4344 = vmatpush1.bf16.msra.mxu0 %v2437
    %4345 = vmatprep.subr.bf16.mxu0 %v2498
    %4346 = vmatpush2.bf16.msra.mxu0 %v2497
    %4347 = vmatprep.subr.bf16.mxu0 %v2494
    %4348 = vmatpush2.bf16.msra.mxu0 %v2493
    %4349 = vmatprep.subr.bf16.mxu0 %v2490
    %4350 = vmatpush2.bf16.msra.mxu0 %v2489
    %4351 = vmatprep.subr.bf16.mxu0 %v2486
    %4352 = vmatpush2.bf16.msra.mxu0 %v2485
    %4353 = vmatprep.subr.bf16.mxu0 %v2482
    %4354 = vmatpush2.bf16.msra.mxu0 %v2481
    %4355 = vmatprep.subr.bf16.mxu0 %v2478
    %4356 = vmatpush2.bf16.msra.mxu0 %v2477
    %4357 = vmatprep.subr.bf16.mxu0 %v2474
    %4358 = vmatpush2.bf16.msra.mxu0 %v2473
    %4359 = vmatprep.subr.bf16.mxu0 %v2470
    %4360 = vmatpush2.bf16.msra.mxu0 %v2469
    %4361 = vmatprep.mubr.bf16.mxu0 %v4204
    %4362 = vmatmul.mubr.bf16.gmra.mxu0 %v4203
    %v4363 = vpop.f32.mrf.mxu0
    %v4364 = vadd.f32 %v4282, %v4363
    %v4365 = vpop.f32.mrf.mxu0
    %v4366 = vadd.f32 %v4284, %v4365
    %v4367 = vpop.f32.mrf.mxu0
    %v4368 = vpop.f32.mrf.mxu0
    %4369 = vdwg.mxu0
    %v4370 = vadd.f32 %v4323, %v2649
    %v4371 = vadd.f32 %v4325, %v2653
    %v4372 = vadd.f32 %v4364, %v2657
    %v4373 = vadd.f32 %v4366, %v2661
    %v4374 = vxor.u32 %v4370, 2147483648
    %v4375 = vmul.f32 %v4374, 1.442695
    %v4376 = vpow.pop %v4375
    %v4377 = vadd.f32 %v4376, 1.0
    %v4378 = vrcp.pop %v4377
    %v4379 = vmul.f32 1.0, %v4378
    %v4380 = vxor.u32 %v4371, 2147483648
    %v4381 = vmul.f32 %v4380, 1.442695
    %v4382 = vpow.pop %v4381
    %v4383 = vadd.f32 %v4382, 1.0
    %v4384 = vrcp.pop %v4383
    %v4385 = vmul.f32 1.0, %v4384
    %v4386 = vtanh.pop %v4372
    %v4387 = vxor.u32 %v4373, 2147483648
    %v4388 = vmul.f32 %v4387, 1.442695
    %v4389 = vpow.pop %v4388
    %v4390 = vadd.f32 %v4389, 1.0
    %v4391 = vrcp.pop %v4390
    %v4392 = vmul.f32 1.0, %v4391
    %v4393 = vmul.f32 %v4385, %v3969
    %v4394 = vmul.f32 %v4379, %v4386
    %v4395 = vadd.f32 %v4393, %v4394
    %v4396 = vtanh.pop %v4395
    %v4397 = vmul.f32 %v4392, %v4396
    %s4398 = smul.u32 5, 8
    %s4399 = smul.addr %s4398, 8
    %s4400 = scalar_lea.vmem [#allocation2], %s4399
    %v4401 = vld [vmem:[%s4400] sm:$0xff]
    %v4402 = vld [vmem:[%s4400 + $0x8] sm:$0xff]
    %v4403 = vld [vmem:[%s4400 + $0x10] sm:$0xff]
    %v4404 = vld [vmem:[%s4400 + $0x18] sm:$0xff]
    %v4405 = vld [vmem:[%s4400 + $0x20] sm:$0xff]
    %v4406 = vld [vmem:[%s4400 + $0x28] sm:$0xff]
    %v4407 = vld [vmem:[%s4400 + $0x30] sm:$0xff]
    %v4408 = vld [vmem:[%s4400 + $0x38] sm:$0xff]
    %4409 = vmatprep.subr.bf16.mxu0 %v1580
    %4410 = vmatpush1.bf16.msra.mxu0 %v1579
    %4411 = vmatprep.subr.bf16.mxu0 %v1572
    %4412 = vmatpush1.bf16.msra.mxu0 %v1571
    %4413 = vmatprep.subr.bf16.mxu0 %v1564
    %4414 = vmatpush1.bf16.msra.mxu0 %v1563
    %4415 = vmatprep.subr.bf16.mxu0 %v1556
    %4416 = vmatpush1.bf16.msra.mxu0 %v1555
    %4417 = vmatprep.subr.bf16.mxu0 %v1548
    %4418 = vmatpush1.bf16.msra.mxu0 %v1547
    %4419 = vmatprep.subr.bf16.mxu0 %v1540
    %4420 = vmatpush1.bf16.msra.mxu0 %v1539
    %4421 = vmatprep.subr.bf16.mxu0 %v1532
    %4422 = vmatpush1.bf16.msra.mxu0 %v1531
    %4423 = vmatprep.subr.bf16.mxu0 %v1524
    %4424 = vmatpush1.bf16.msra.mxu0 %v1523
    %4425 = vmatprep.subr.bf16.mxu0 %v1644
    %4426 = vmatpush2.bf16.msra.mxu0 %v1643
    %4427 = vmatprep.subr.bf16.mxu0 %v1636
    %4428 = vmatpush2.bf16.msra.mxu0 %v1635
    %4429 = vmatprep.subr.bf16.mxu0 %v1628
    %4430 = vmatpush2.bf16.msra.mxu0 %v1627
    %4431 = vmatprep.subr.bf16.mxu0 %v1620
    %4432 = vmatpush2.bf16.msra.mxu0 %v1619
    %4433 = vmatprep.subr.bf16.mxu0 %v1612
    %4434 = vmatpush2.bf16.msra.mxu0 %v1611
    %4435 = vmatprep.subr.bf16.mxu0 %v1604
    %4436 = vmatpush2.bf16.msra.mxu0 %v1603
    %4437 = vmatprep.subr.bf16.mxu0 %v1596
    %4438 = vmatpush2.bf16.msra.mxu0 %v1595
    %4439 = vmatprep.subr.bf16.mxu0 %v1588
    %4440 = vmatpush2.bf16.msra.mxu0 %v1587
    %4441 = vmatprep.mubr.bf16.mxu0 %v4204
    %4442 = vmatmul.mubr.bf16.gmra.mxu0 %v4203
    %v4443 = vpop.f32.mrf.mxu0
    %v4444 = vadd.f32 0.0, %v4443
    %v4445 = vpop.f32.mrf.mxu0
    %v4446 = vadd.f32 0.0, %v4445
    %v4447 = vpop.f32.mrf.mxu0
    %v4448 = vpop.f32.mrf.mxu0
    %4449 = vdwg.mxu0
    %4450 = vmatprep.subr.bf16.mxu0 %v1582
    %4451 = vmatpush1.bf16.msra.mxu0 %v1581
    %4452 = vmatprep.subr.bf16.mxu0 %v1574
    %4453 = vmatpush1.bf16.msra.mxu0 %v1573
    %4454 = vmatprep.subr.bf16.mxu0 %v1566
    %4455 = vmatpush1.bf16.msra.mxu0 %v1565
    %4456 = vmatprep.subr.bf16.mxu0 %v1558
    %4457 = vmatpush1.bf16.msra.mxu0 %v1557
    %4458 = vmatprep.subr.bf16.mxu0 %v1550
    %4459 = vmatpush1.bf16.msra.mxu0 %v1549
    %4460 = vmatprep.subr.bf16.mxu0 %v1542
    %4461 = vmatpush1.bf16.msra.mxu0 %v1541
    %4462 = vmatprep.subr.bf16.mxu0 %v1534
    %4463 = vmatpush1.bf16.msra.mxu0 %v1533
    %4464 = vmatprep.subr.bf16.mxu0 %v1526
    %4465 = vmatpush1.bf16.msra.mxu0 %v1525
    %4466 = vmatprep.subr.bf16.mxu0 %v1646
    %4467 = vmatpush2.bf16.msra.mxu0 %v1645
    %4468 = vmatprep.subr.bf16.mxu0 %v1638
    %4469 = vmatpush2.bf16.msra.mxu0 %v1637
    %4470 = vmatprep.subr.bf16.mxu0 %v1630
    %4471 = vmatpush2.bf16.msra.mxu0 %v1629
    %4472 = vmatprep.subr.bf16.mxu0 %v1622
    %4473 = vmatpush2.bf16.msra.mxu0 %v1621
    %4474 = vmatprep.subr.bf16.mxu0 %v1614
    %4475 = vmatpush2.bf16.msra.mxu0 %v1613
    %4476 = vmatprep.subr.bf16.mxu0 %v1606
    %4477 = vmatpush2.bf16.msra.mxu0 %v1605
    %4478 = vmatprep.subr.bf16.mxu0 %v1598
    %4479 = vmatpush2.bf16.msra.mxu0 %v1597
    %4480 = vmatprep.subr.bf16.mxu0 %v1590
    %4481 = vmatpush2.bf16.msra.mxu0 %v1589
    %4482 = vmatprep.mubr.bf16.mxu0 %v4204
    %4483 = vmatmul.mubr.bf16.gmra.mxu0 %v4203
    %v4484 = vpop.f32.mrf.mxu0
    %v4485 = vadd.f32 0.0, %v4484
    %v4486 = vpop.f32.mrf.mxu0
    %v4487 = vadd.f32 0.0, %v4486
    %v4488 = vpop.f32.mrf.mxu0
    %v4489 = vpop.f32.mrf.mxu0
    %4490 = vdwg.mxu0
    %4491 = vmatprep.subr.bf16.mxu0 %v1584
    %4492 = vmatpush1.bf16.msra.mxu0 %v1583
    %4493 = vmatprep.subr.bf16.mxu0 %v1576
    %4494 = vmatpush1.bf16.msra.mxu0 %v1575
    %4495 = vmatprep.subr.bf16.mxu0 %v1568
    %4496 = vmatpush1.bf16.msra.mxu0 %v1567
    %4497 = vmatprep.subr.bf16.mxu0 %v1560
    %4498 = vmatpush1.bf16.msra.mxu0 %v1559
    %4499 = vmatprep.subr.bf16.mxu0 %v1552
    %4500 = vmatpush1.bf16.msra.mxu0 %v1551
    %4501 = vmatprep.subr.bf16.mxu0 %v1544
    %4502 = vmatpush1.bf16.msra.mxu0 %v1543
    %4503 = vmatprep.subr.bf16.mxu0 %v1536
    %4504 = vmatpush1.bf16.msra.mxu0 %v1535
    %4505 = vmatprep.subr.bf16.mxu0 %v1528
    %4506 = vmatpush1.bf16.msra.mxu0 %v1527
    %4507 = vmatprep.subr.bf16.mxu0 %v1648
    %4508 = vmatpush2.bf16.msra.mxu0 %v1647
    %4509 = vmatprep.subr.bf16.mxu0 %v1640
    %4510 = vmatpush2.bf16.msra.mxu0 %v1639
    %4511 = vmatprep.subr.bf16.mxu0 %v1632
    %4512 = vmatpush2.bf16.msra.mxu0 %v1631
    %4513 = vmatprep.subr.bf16.mxu0 %v1624
    %4514 = vmatpush2.bf16.msra.mxu0 %v1623
    %4515 = vmatprep.subr.bf16.mxu0 %v1616
    %4516 = vmatpush2.bf16.msra.mxu0 %v1615
    %4517 = vmatprep.subr.bf16.mxu0 %v1608
    %4518 = vmatpush2.bf16.msra.mxu0 %v1607
    %4519 = vmatprep.subr.bf16.mxu0 %v1600
    %4520 = vmatpush2.bf16.msra.mxu0 %v1599
    %4521 = vmatprep.subr.bf16.mxu0 %v1592
    %4522 = vmatpush2.bf16.msra.mxu0 %v1591
    %4523 = vmatprep.mubr.bf16.mxu0 %v4204
    %4524 = vmatmul.mubr.bf16.gmra.mxu0 %v4203
    %v4525 = vpop.f32.mrf.mxu0
    %v4526 = vadd.f32 0.0, %v4525
    %v4527 = vpop.f32.mrf.mxu0
    %v4528 = vadd.f32 0.0, %v4527
    %v4529 = vpop.f32.mrf.mxu0
    %v4530 = vpop.f32.mrf.mxu0
    %4531 = vdwg.mxu0
    %4532 = vmatprep.subr.bf16.mxu0 %v1586
    %4533 = vmatpush1.bf16.msra.mxu0 %v1585
    %4534 = vmatprep.subr.bf16.mxu0 %v1578
    %4535 = vmatpush1.bf16.msra.mxu0 %v1577
    %4536 = vmatprep.subr.bf16.mxu0 %v1570
    %4537 = vmatpush1.bf16.msra.mxu0 %v1569
    %4538 = vmatprep.subr.bf16.mxu0 %v1562
    %4539 = vmatpush1.bf16.msra.mxu0 %v1561
    %4540 = vmatprep.subr.bf16.mxu0 %v1554
    %4541 = vmatpush1.bf16.msra.mxu0 %v1553
    %4542 = vmatprep.subr.bf16.mxu0 %v1546
    %4543 = vmatpush1.bf16.msra.mxu0 %v1545
    %4544 = vmatprep.subr.bf16.mxu0 %v1538
    %4545 = vmatpush1.bf16.msra.mxu0 %v1537
    %4546 = vmatprep.subr.bf16.mxu0 %v1530
    %4547 = vmatpush1.bf16.msra.mxu0 %v1529
    %4548 = vmatprep.subr.bf16.mxu0 %v1650
    %4549 = vmatpush2.bf16.msra.mxu0 %v1649
    %4550 = vmatprep.subr.bf16.mxu0 %v1642
    %4551 = vmatpush2.bf16.msra.mxu0 %v1641
    %4552 = vmatprep.subr.bf16.mxu0 %v1634
    %4553 = vmatpush2.bf16.msra.mxu0 %v1633
    %4554 = vmatprep.subr.bf16.mxu0 %v1626
    %4555 = vmatpush2.bf16.msra.mxu0 %v1625
    %4556 = vmatprep.subr.bf16.mxu0 %v1618
    %4557 = vmatpush2.bf16.msra.mxu0 %v1617
    %4558 = vmatprep.subr.bf16.mxu0 %v1610
    %4559 = vmatpush2.bf16.msra.mxu0 %v1609
    %4560 = vmatprep.subr.bf16.mxu0 %v1602
    %4561 = vmatpush2.bf16.msra.mxu0 %v1601
    %4562 = vmatprep.subr.bf16.mxu0 %v1594
    %4563 = vmatpush2.bf16.msra.mxu0 %v1593
    %4564 = vmatprep.mubr.bf16.mxu0 %v4204
    %4565 = vmatmul.mubr.bf16.gmra.mxu0 %v4203
    %v4566 = vpop.f32.mrf.mxu0
    %v4567 = vadd.f32 0.0, %v4566
    %v4568 = vpop.f32.mrf.mxu0
    %v4569 = vadd.f32 0.0, %v4568
    %v4570 = vpop.f32.mrf.mxu0
    %v4571 = vpop.f32.mrf.mxu0
    %4572 = vdwg.mxu0
    %v4573 = vadd.f32 %v4401, %v4444
    %v4574 = vadd.f32 %v4402, %v4446
    %v4575 = vadd.f32 %v4403, %v4485
    %v4576 = vadd.f32 %v4404, %v4487
    %v4577 = vadd.f32 %v4405, %v4526
    %v4578 = vadd.f32 %v4406, %v4528
    %v4579 = vadd.f32 %v4407, %v4567
    %v4580 = vadd.f32 %v4408, %v4569
    %v4581 = vxor.u32 %v4573, 2147483648
    %v4582 = vxor.u32 %v4574, 2147483648
    %v4583 = vmul.f32 %v4581, 1.442695
    %v4584 = vpow.pop %v4583
    %v4585 = vmul.f32 %v4582, 1.442695
    %v4586 = vpow.pop %v4585
    %v4587 = vadd.f32 %v4584, 1.0
    %v4588 = vadd.f32 %v4586, 1.0
    %v4589 = vrcp.pop %v4587
    %v4590 = vmul.f32 1.0, %v4589
    %v4591 = vrcp.pop %v4588
    %v4592 = vmul.f32 1.0, %v4591
    %v4593 = vxor.u32 %v4575, 2147483648
    %v4594 = vxor.u32 %v4576, 2147483648
    %v4595 = vmul.f32 %v4593, 1.442695
    %v4596 = vpow.pop %v4595
    %v4597 = vmul.f32 %v4594, 1.442695
    %v4598 = vpow.pop %v4597
    %v4599 = vadd.f32 %v4596, 1.0
    %v4600 = vadd.f32 %v4598, 1.0
    %v4601 = vrcp.pop %v4599
    %v4602 = vmul.f32 1.0, %v4601
    %v4603 = vrcp.pop %v4600
    %v4604 = vmul.f32 1.0, %v4603
    %v4605 = vtanh.pop %v4577
    %v4606 = vtanh.pop %v4578
    %v4607 = vxor.u32 %v4579, 2147483648
    %v4608 = vxor.u32 %v4580, 2147483648
    %v4609 = vmul.f32 %v4607, 1.442695
    %v4610 = vpow.pop %v4609
    %v4611 = vmul.f32 %v4608, 1.442695
    %v4612 = vpow.pop %v4611
    %v4613 = vadd.f32 %v4610, 1.0
    %v4614 = vadd.f32 %v4612, 1.0
    %v4615 = vrcp.pop %v4613
    %v4616 = vmul.f32 1.0, %v4615
    %v4617 = vrcp.pop %v4614
    %v4618 = vmul.f32 1.0, %v4617
    %v4619 = vmul.f32 %v4602, %v4197
    %v4620 = vmul.f32 %v4604, %v4198
    %v4621 = vmul.f32 %v4590, %v4605
    %v4622 = vmul.f32 %v4592, %v4606
    %v4623 = vadd.f32 %v4619, %v4621
    %v4624 = vadd.f32 %v4620, %v4622
    %v4625 = vtanh.pop %v4623
    %v4626 = vtanh.pop %v4624
    %v4627 = vmul.f32 %v4616, %v4625
    %v4628 = vmul.f32 %v4618, %v4626
    %v4629 = vpack.c.bf16 %v4627, %v4627
    %v4630 = vpack.c.bf16 %v4628, %v4628
    %v4631 = vpack.c.bf16 %v4397, %v4397
    %4632 = vmatprep.subr.bf16.mxu0 %v2126
    %4633 = vmatpush1.bf16.msra.mxu0 %v2125
    %4634 = vmatprep.subr.bf16.mxu0 %v2122
    %4635 = vmatpush1.bf16.msra.mxu0 %v2121
    %4636 = vmatprep.subr.bf16.mxu0 %v2118
    %4637 = vmatpush1.bf16.msra.mxu0 %v2117
    %4638 = vmatprep.subr.bf16.mxu0 %v2114
    %4639 = vmatpush1.bf16.msra.mxu0 %v2113
    %4640 = vmatprep.subr.bf16.mxu0 %v2110
    %4641 = vmatpush1.bf16.msra.mxu0 %v2109
    %4642 = vmatprep.subr.bf16.mxu0 %v2106
    %4643 = vmatpush1.bf16.msra.mxu0 %v2105
    %4644 = vmatprep.subr.bf16.mxu0 %v2102
    %4645 = vmatpush1.bf16.msra.mxu0 %v2101
    %4646 = vmatprep.subr.bf16.mxu0 %v2098
    %4647 = vmatpush1.bf16.msra.mxu0 %v2097
    %4648 = vmatprep.subr.bf16.mxu0 0
    %4649 = vmatpush2.bf16.msra.mxu0 0
    %4650 = vmatprep.subr.bf16.mxu0 0
    %4651 = vmatpush2.bf16.msra.mxu0 0
    %4652 = vmatprep.subr.bf16.mxu0 0
    %4653 = vmatpush2.bf16.msra.mxu0 0
    %4654 = vmatprep.subr.bf16.mxu0 0
    %4655 = vmatpush2.bf16.msra.mxu0 0
    %4656 = vmatprep.subr.bf16.mxu0 0
    %4657 = vmatpush2.bf16.msra.mxu0 0
    %4658 = vmatprep.subr.bf16.mxu0 0
    %4659 = vmatpush2.bf16.msra.mxu0 0
    %4660 = vmatprep.subr.bf16.mxu0 0
    %4661 = vmatpush2.bf16.msra.mxu0 0
    %4662 = vmatprep.subr.bf16.mxu0 0
    %4663 = vmatpush2.bf16.msra.mxu0 0
    %4664 = vmatprep.mubr.bf16.mxu0 0
    %4665 = vmatmul.mubr.bf16.gmra.mxu0 %v4631
    %v4666 = vpop.f32.mrf.mxu0
    %v4667 = vadd.f32 0.0, %v4666
    %v4668 = vpop.f32.mrf.mxu0
    %v4669 = vadd.f32 0.0, %v4668
    %v4670 = vpop.f32.mrf.mxu0
    %v4671 = vpop.f32.mrf.mxu0
    %4672 = vdwg.mxu0
    %4673 = vmatprep.subr.bf16.mxu0 %v2128
    %4674 = vmatpush1.bf16.msra.mxu0 %v2127
    %4675 = vmatprep.subr.bf16.mxu0 %v2124
    %4676 = vmatpush1.bf16.msra.mxu0 %v2123
    %4677 = vmatprep.subr.bf16.mxu0 %v2120
    %4678 = vmatpush1.bf16.msra.mxu0 %v2119
    %4679 = vmatprep.subr.bf16.mxu0 %v2116
    %4680 = vmatpush1.bf16.msra.mxu0 %v2115
    %4681 = vmatprep.subr.bf16.mxu0 %v2112
    %4682 = vmatpush1.bf16.msra.mxu0 %v2111
    %4683 = vmatprep.subr.bf16.mxu0 %v2108
    %4684 = vmatpush1.bf16.msra.mxu0 %v2107
    %4685 = vmatprep.subr.bf16.mxu0 %v2104
    %4686 = vmatpush1.bf16.msra.mxu0 %v2103
    %4687 = vmatprep.subr.bf16.mxu0 %v2100
    %4688 = vmatpush1.bf16.msra.mxu0 %v2099
    %4689 = vmatprep.subr.bf16.mxu0 0
    %4690 = vmatpush2.bf16.msra.mxu0 0
    %4691 = vmatprep.subr.bf16.mxu0 0
    %4692 = vmatpush2.bf16.msra.mxu0 0
    %4693 = vmatprep.subr.bf16.mxu0 0
    %4694 = vmatpush2.bf16.msra.mxu0 0
    %4695 = vmatprep.subr.bf16.mxu0 0
    %4696 = vmatpush2.bf16.msra.mxu0 0
    %4697 = vmatprep.subr.bf16.mxu0 0
    %4698 = vmatpush2.bf16.msra.mxu0 0
    %4699 = vmatprep.subr.bf16.mxu0 0
    %4700 = vmatpush2.bf16.msra.mxu0 0
    %4701 = vmatprep.subr.bf16.mxu0 0
    %4702 = vmatpush2.bf16.msra.mxu0 0
    %4703 = vmatprep.subr.bf16.mxu0 0
    %4704 = vmatpush2.bf16.msra.mxu0 0
    %4705 = vmatprep.mubr.bf16.mxu0 0
    %4706 = vmatmul.mubr.bf16.gmra.mxu0 %v4631
    %v4707 = vpop.f32.mrf.mxu0
    %v4708 = vadd.f32 0.0, %v4707
    %v4709 = vpop.f32.mrf.mxu0
    %v4710 = vadd.f32 0.0, %v4709
    %v4711 = vpop.f32.mrf.mxu0
    %v4712 = vpop.f32.mrf.mxu0
    %4713 = vdwg.mxu0
    %4714 = vmatprep.subr.bf16.mxu0 %v2464
    %4715 = vmatpush1.bf16.msra.mxu0 %v2463
    %4716 = vmatprep.subr.bf16.mxu0 %v2460
    %4717 = vmatpush1.bf16.msra.mxu0 %v2459
    %4718 = vmatprep.subr.bf16.mxu0 %v2456
    %4719 = vmatpush1.bf16.msra.mxu0 %v2455
    %4720 = vmatprep.subr.bf16.mxu0 %v2452
    %4721 = vmatpush1.bf16.msra.mxu0 %v2451
    %4722 = vmatprep.subr.bf16.mxu0 %v2448
    %4723 = vmatpush1.bf16.msra.mxu0 %v2447
    %4724 = vmatprep.subr.bf16.mxu0 %v2444
    %4725 = vmatpush1.bf16.msra.mxu0 %v2443
    %4726 = vmatprep.subr.bf16.mxu0 %v2440
    %4727 = vmatpush1.bf16.msra.mxu0 %v2439
    %4728 = vmatprep.subr.bf16.mxu0 %v2436
    %4729 = vmatpush1.bf16.msra.mxu0 %v2435
    %4730 = vmatprep.subr.bf16.mxu0 %v2496
    %4731 = vmatpush2.bf16.msra.mxu0 %v2495
    %4732 = vmatprep.subr.bf16.mxu0 %v2492
    %4733 = vmatpush2.bf16.msra.mxu0 %v2491
    %4734 = vmatprep.subr.bf16.mxu0 %v2488
    %4735 = vmatpush2.bf16.msra.mxu0 %v2487
    %4736 = vmatprep.subr.bf16.mxu0 %v2484
    %4737 = vmatpush2.bf16.msra.mxu0 %v2483
    %4738 = vmatprep.subr.bf16.mxu0 %v2480
    %4739 = vmatpush2.bf16.msra.mxu0 %v2479
    %4740 = vmatprep.subr.bf16.mxu0 %v2476
    %4741 = vmatpush2.bf16.msra.mxu0 %v2475
    %4742 = vmatprep.subr.bf16.mxu0 %v2472
    %4743 = vmatpush2.bf16.msra.mxu0 %v2471
    %4744 = vmatprep.subr.bf16.mxu0 %v2468
    %4745 = vmatpush2.bf16.msra.mxu0 %v2467
    %4746 = vmatprep.mubr.bf16.mxu0 %v4630
    %4747 = vmatmul.mubr.bf16.gmra.mxu0 %v4629
    %v4748 = vpop.f32.mrf.mxu0
    %v4749 = vadd.f32 %v4667, %v4748
    %v4750 = vpop.f32.mrf.mxu0
    %v4751 = vadd.f32 %v4669, %v4750
    %v4752 = vpop.f32.mrf.mxu0
    %v4753 = vpop.f32.mrf.mxu0
    %4754 = vdwg.mxu0
    %4755 = vmatprep.subr.bf16.mxu0 %v2466
    %4756 = vmatpush1.bf16.msra.mxu0 %v2465
    %4757 = vmatprep.subr.bf16.mxu0 %v2462
    %4758 = vmatpush1.bf16.msra.mxu0 %v2461
    %4759 = vmatprep.subr.bf16.mxu0 %v2458
    %4760 = vmatpush1.bf16.msra.mxu0 %v2457
    %4761 = vmatprep.subr.bf16.mxu0 %v2454
    %4762 = vmatpush1.bf16.msra.mxu0 %v2453
    %4763 = vmatprep.subr.bf16.mxu0 %v2450
    %4764 = vmatpush1.bf16.msra.mxu0 %v2449
    %4765 = vmatprep.subr.bf16.mxu0 %v2446
    %4766 = vmatpush1.bf16.msra.mxu0 %v2445
    %4767 = vmatprep.subr.bf16.mxu0 %v2442
    %4768 = vmatpush1.bf16.msra.mxu0 %v2441
    %4769 = vmatprep.subr.bf16.mxu0 %v2438
    %4770 = vmatpush1.bf16.msra.mxu0 %v2437
    %4771 = vmatprep.subr.bf16.mxu0 %v2498
    %4772 = vmatpush2.bf16.msra.mxu0 %v2497
    %4773 = vmatprep.subr.bf16.mxu0 %v2494
    %4774 = vmatpush2.bf16.msra.mxu0 %v2493
    %4775 = vmatprep.subr.bf16.mxu0 %v2490
    %4776 = vmatpush2.bf16.msra.mxu0 %v2489
    %4777 = vmatprep.subr.bf16.mxu0 %v2486
    %4778 = vmatpush2.bf16.msra.mxu0 %v2485
    %4779 = vmatprep.subr.bf16.mxu0 %v2482
    %4780 = vmatpush2.bf16.msra.mxu0 %v2481
    %4781 = vmatprep.subr.bf16.mxu0 %v2478
    %4782 = vmatpush2.bf16.msra.mxu0 %v2477
    %4783 = vmatprep.subr.bf16.mxu0 %v2474
    %4784 = vmatpush2.bf16.msra.mxu0 %v2473
    %4785 = vmatprep.subr.bf16.mxu0 %v2470
    %4786 = vmatpush2.bf16.msra.mxu0 %v2469
    %4787 = vmatprep.mubr.bf16.mxu0 %v4630
    %4788 = vmatmul.mubr.bf16.gmra.mxu0 %v4629
    %v4789 = vpop.f32.mrf.mxu0
    %v4790 = vadd.f32 %v4708, %v4789
    %v4791 = vpop.f32.mrf.mxu0
    %v4792 = vadd.f32 %v4710, %v4791
    %v4793 = vpop.f32.mrf.mxu0
    %v4794 = vpop.f32.mrf.mxu0
    %4795 = vdwg.mxu0
    %v4796 = vadd.f32 %v4749, %v2649
    %v4797 = vadd.f32 %v4751, %v2653
    %v4798 = vadd.f32 %v4790, %v2657
    %v4799 = vadd.f32 %v4792, %v2661
    %v4800 = vxor.u32 %v4796, 2147483648
    %v4801 = vmul.f32 %v4800, 1.442695
    %v4802 = vpow.pop %v4801
    %v4803 = vadd.f32 %v4802, 1.0
    %v4804 = vrcp.pop %v4803
    %v4805 = vmul.f32 1.0, %v4804
    %v4806 = vxor.u32 %v4797, 2147483648
    %v4807 = vmul.f32 %v4806, 1.442695
    %v4808 = vpow.pop %v4807
    %v4809 = vadd.f32 %v4808, 1.0
    %v4810 = vrcp.pop %v4809
    %v4811 = vmul.f32 1.0, %v4810
    %v4812 = vtanh.pop %v4798
    %v4813 = vxor.u32 %v4799, 2147483648
    %v4814 = vmul.f32 %v4813, 1.442695
    %v4815 = vpow.pop %v4814
    %v4816 = vadd.f32 %v4815, 1.0
    %v4817 = vrcp.pop %v4816
    %v4818 = vmul.f32 1.0, %v4817
    %v4819 = vmul.f32 %v4811, %v4395
    %v4820 = vmul.f32 %v4805, %v4812
    %v4821 = vadd.f32 %v4819, %v4820
    %v4822 = vtanh.pop %v4821
    %v4823 = vmul.f32 %v4818, %v4822
    %s4824 = smul.u32 6, 8
    %s4825 = smul.addr %s4824, 8
    %s4826 = scalar_lea.vmem [#allocation2], %s4825
    %v4827 = vld [vmem:[%s4826] sm:$0xff]
    %v4828 = vld [vmem:[%s4826 + $0x8] sm:$0xff]
    %v4829 = vld [vmem:[%s4826 + $0x10] sm:$0xff]
    %v4830 = vld [vmem:[%s4826 + $0x18] sm:$0xff]
    %v4831 = vld [vmem:[%s4826 + $0x20] sm:$0xff]
    %v4832 = vld [vmem:[%s4826 + $0x28] sm:$0xff]
    %v4833 = vld [vmem:[%s4826 + $0x30] sm:$0xff]
    %v4834 = vld [vmem:[%s4826 + $0x38] sm:$0xff]
    %4835 = vmatprep.subr.bf16.mxu0 %v1580
    %4836 = vmatpush1.bf16.msra.mxu0 %v1579
    %4837 = vmatprep.subr.bf16.mxu0 %v1572
    %4838 = vmatpush1.bf16.msra.mxu0 %v1571
    %4839 = vmatprep.subr.bf16.mxu0 %v1564
    %4840 = vmatpush1.bf16.msra.mxu0 %v1563
    %4841 = vmatprep.subr.bf16.mxu0 %v1556
    %4842 = vmatpush1.bf16.msra.mxu0 %v1555
    %4843 = vmatprep.subr.bf16.mxu0 %v1548
    %4844 = vmatpush1.bf16.msra.mxu0 %v1547
    %4845 = vmatprep.subr.bf16.mxu0 %v1540
    %4846 = vmatpush1.bf16.msra.mxu0 %v1539
    %4847 = vmatprep.subr.bf16.mxu0 %v1532
    %4848 = vmatpush1.bf16.msra.mxu0 %v1531
    %4849 = vmatprep.subr.bf16.mxu0 %v1524
    %4850 = vmatpush1.bf16.msra.mxu0 %v1523
    %4851 = vmatprep.subr.bf16.mxu0 %v1644
    %4852 = vmatpush2.bf16.msra.mxu0 %v1643
    %4853 = vmatprep.subr.bf16.mxu0 %v1636
    %4854 = vmatpush2.bf16.msra.mxu0 %v1635
    %4855 = vmatprep.subr.bf16.mxu0 %v1628
    %4856 = vmatpush2.bf16.msra.mxu0 %v1627
    %4857 = vmatprep.subr.bf16.mxu0 %v1620
    %4858 = vmatpush2.bf16.msra.mxu0 %v1619
    %4859 = vmatprep.subr.bf16.mxu0 %v1612
    %4860 = vmatpush2.bf16.msra.mxu0 %v1611
    %4861 = vmatprep.subr.bf16.mxu0 %v1604
    %4862 = vmatpush2.bf16.msra.mxu0 %v1603
    %4863 = vmatprep.subr.bf16.mxu0 %v1596
    %4864 = vmatpush2.bf16.msra.mxu0 %v1595
    %4865 = vmatprep.subr.bf16.mxu0 %v1588
    %4866 = vmatpush2.bf16.msra.mxu0 %v1587
    %4867 = vmatprep.mubr.bf16.mxu0 %v4630
    %4868 = vmatmul.mubr.bf16.gmra.mxu0 %v4629
    %v4869 = vpop.f32.mrf.mxu0
    %v4870 = vadd.f32 0.0, %v4869
    %v4871 = vpop.f32.mrf.mxu0
    %v4872 = vadd.f32 0.0, %v4871
    %v4873 = vpop.f32.mrf.mxu0
    %v4874 = vpop.f32.mrf.mxu0
    %4875 = vdwg.mxu0
    %4876 = vmatprep.subr.bf16.mxu0 %v1582
    %4877 = vmatpush1.bf16.msra.mxu0 %v1581
    %4878 = vmatprep.subr.bf16.mxu0 %v1574
    %4879 = vmatpush1.bf16.msra.mxu0 %v1573
    %4880 = vmatprep.subr.bf16.mxu0 %v1566
    %4881 = vmatpush1.bf16.msra.mxu0 %v1565
    %4882 = vmatprep.subr.bf16.mxu0 %v1558
    %4883 = vmatpush1.bf16.msra.mxu0 %v1557
    %4884 = vmatprep.subr.bf16.mxu0 %v1550
    %4885 = vmatpush1.bf16.msra.mxu0 %v1549
    %4886 = vmatprep.subr.bf16.mxu0 %v1542
    %4887 = vmatpush1.bf16.msra.mxu0 %v1541
    %4888 = vmatprep.subr.bf16.mxu0 %v1534
    %4889 = vmatpush1.bf16.msra.mxu0 %v1533
    %4890 = vmatprep.subr.bf16.mxu0 %v1526
    %4891 = vmatpush1.bf16.msra.mxu0 %v1525
    %4892 = vmatprep.subr.bf16.mxu0 %v1646
    %4893 = vmatpush2.bf16.msra.mxu0 %v1645
    %4894 = vmatprep.subr.bf16.mxu0 %v1638
    %4895 = vmatpush2.bf16.msra.mxu0 %v1637
    %4896 = vmatprep.subr.bf16.mxu0 %v1630
    %4897 = vmatpush2.bf16.msra.mxu0 %v1629
    %4898 = vmatprep.subr.bf16.mxu0 %v1622
    %4899 = vmatpush2.bf16.msra.mxu0 %v1621
    %4900 = vmatprep.subr.bf16.mxu0 %v1614
    %4901 = vmatpush2.bf16.msra.mxu0 %v1613
    %4902 = vmatprep.subr.bf16.mxu0 %v1606
    %4903 = vmatpush2.bf16.msra.mxu0 %v1605
    %4904 = vmatprep.subr.bf16.mxu0 %v1598
    %4905 = vmatpush2.bf16.msra.mxu0 %v1597
    %4906 = vmatprep.subr.bf16.mxu0 %v1590
    %4907 = vmatpush2.bf16.msra.mxu0 %v1589
    %4908 = vmatprep.mubr.bf16.mxu0 %v4630
    %4909 = vmatmul.mubr.bf16.gmra.mxu0 %v4629
    %v4910 = vpop.f32.mrf.mxu0
    %v4911 = vadd.f32 0.0, %v4910
    %v4912 = vpop.f32.mrf.mxu0
    %v4913 = vadd.f32 0.0, %v4912
    %v4914 = vpop.f32.mrf.mxu0
    %v4915 = vpop.f32.mrf.mxu0
    %4916 = vdwg.mxu0
    %4917 = vmatprep.subr.bf16.mxu0 %v1584
    %4918 = vmatpush1.bf16.msra.mxu0 %v1583
    %4919 = vmatprep.subr.bf16.mxu0 %v1576
    %4920 = vmatpush1.bf16.msra.mxu0 %v1575
    %4921 = vmatprep.subr.bf16.mxu0 %v1568
    %4922 = vmatpush1.bf16.msra.mxu0 %v1567
    %4923 = vmatprep.subr.bf16.mxu0 %v1560
    %4924 = vmatpush1.bf16.msra.mxu0 %v1559
    %4925 = vmatprep.subr.bf16.mxu0 %v1552
    %4926 = vmatpush1.bf16.msra.mxu0 %v1551
    %4927 = vmatprep.subr.bf16.mxu0 %v1544
    %4928 = vmatpush1.bf16.msra.mxu0 %v1543
    %4929 = vmatprep.subr.bf16.mxu0 %v1536
    %4930 = vmatpush1.bf16.msra.mxu0 %v1535
    %4931 = vmatprep.subr.bf16.mxu0 %v1528
    %4932 = vmatpush1.bf16.msra.mxu0 %v1527
    %4933 = vmatprep.subr.bf16.mxu0 %v1648
    %4934 = vmatpush2.bf16.msra.mxu0 %v1647
    %4935 = vmatprep.subr.bf16.mxu0 %v1640
    %4936 = vmatpush2.bf16.msra.mxu0 %v1639
    %4937 = vmatprep.subr.bf16.mxu0 %v1632
    %4938 = vmatpush2.bf16.msra.mxu0 %v1631
    %4939 = vmatprep.subr.bf16.mxu0 %v1624
    %4940 = vmatpush2.bf16.msra.mxu0 %v1623
    %4941 = vmatprep.subr.bf16.mxu0 %v1616
    %4942 = vmatpush2.bf16.msra.mxu0 %v1615
    %4943 = vmatprep.subr.bf16.mxu0 %v1608
    %4944 = vmatpush2.bf16.msra.mxu0 %v1607
    %4945 = vmatprep.subr.bf16.mxu0 %v1600
    %4946 = vmatpush2.bf16.msra.mxu0 %v1599
    %4947 = vmatprep.subr.bf16.mxu0 %v1592
    %4948 = vmatpush2.bf16.msra.mxu0 %v1591
    %4949 = vmatprep.mubr.bf16.mxu0 %v4630
    %4950 = vmatmul.mubr.bf16.gmra.mxu0 %v4629
    %v4951 = vpop.f32.mrf.mxu0
    %v4952 = vadd.f32 0.0, %v4951
    %v4953 = vpop.f32.mrf.mxu0
    %v4954 = vadd.f32 0.0, %v4953
    %v4955 = vpop.f32.mrf.mxu0
    %v4956 = vpop.f32.mrf.mxu0
    %4957 = vdwg.mxu0
    %4958 = vmatprep.subr.bf16.mxu0 %v1586
    %4959 = vmatpush1.bf16.msra.mxu0 %v1585
    %4960 = vmatprep.subr.bf16.mxu0 %v1578
    %4961 = vmatpush1.bf16.msra.mxu0 %v1577
    %4962 = vmatprep.subr.bf16.mxu0 %v1570
    %4963 = vmatpush1.bf16.msra.mxu0 %v1569
    %4964 = vmatprep.subr.bf16.mxu0 %v1562
    %4965 = vmatpush1.bf16.msra.mxu0 %v1561
    %4966 = vmatprep.subr.bf16.mxu0 %v1554
    %4967 = vmatpush1.bf16.msra.mxu0 %v1553
    %4968 = vmatprep.subr.bf16.mxu0 %v1546
    %4969 = vmatpush1.bf16.msra.mxu0 %v1545
    %4970 = vmatprep.subr.bf16.mxu0 %v1538
    %4971 = vmatpush1.bf16.msra.mxu0 %v1537
    %4972 = vmatprep.subr.bf16.mxu0 %v1530
    %4973 = vmatpush1.bf16.msra.mxu0 %v1529
    %4974 = vmatprep.subr.bf16.mxu0 %v1650
    %4975 = vmatpush2.bf16.msra.mxu0 %v1649
    %4976 = vmatprep.subr.bf16.mxu0 %v1642
    %4977 = vmatpush2.bf16.msra.mxu0 %v1641
    %4978 = vmatprep.subr.bf16.mxu0 %v1634
    %4979 = vmatpush2.bf16.msra.mxu0 %v1633
    %4980 = vmatprep.subr.bf16.mxu0 %v1626
    %4981 = vmatpush2.bf16.msra.mxu0 %v1625
    %4982 = vmatprep.subr.bf16.mxu0 %v1618
    %4983 = vmatpush2.bf16.msra.mxu0 %v1617
    %4984 = vmatprep.subr.bf16.mxu0 %v1610
    %4985 = vmatpush2.bf16.msra.mxu0 %v1609
    %4986 = vmatprep.subr.bf16.mxu0 %v1602
    %4987 = vmatpush2.bf16.msra.mxu0 %v1601
    %4988 = vmatprep.subr.bf16.mxu0 %v1594
    %4989 = vmatpush2.bf16.msra.mxu0 %v1593
    %4990 = vmatprep.mubr.bf16.mxu0 %v4630
    %4991 = vmatmul.mubr.bf16.gmra.mxu0 %v4629
    %v4992 = vpop.f32.mrf.mxu0
    %v4993 = vadd.f32 0.0, %v4992
    %v4994 = vpop.f32.mrf.mxu0
    %v4995 = vadd.f32 0.0, %v4994
    %v4996 = vpop.f32.mrf.mxu0
    %v4997 = vpop.f32.mrf.mxu0
    %4998 = vdwg.mxu0
    %v4999 = vadd.f32 %v4827, %v4870
    %v5000 = vadd.f32 %v4828, %v4872
    %v5001 = vadd.f32 %v4829, %v4911
    %v5002 = vadd.f32 %v4830, %v4913
    %v5003 = vadd.f32 %v4831, %v4952
    %v5004 = vadd.f32 %v4832, %v4954
    %v5005 = vadd.f32 %v4833, %v4993
    %v5006 = vadd.f32 %v4834, %v4995
    %v5007 = vxor.u32 %v4999, 2147483648
    %v5008 = vxor.u32 %v5000, 2147483648
    %v5009 = vmul.f32 %v5007, 1.442695
    %v5010 = vpow.pop %v5009
    %v5011 = vmul.f32 %v5008, 1.442695
    %v5012 = vpow.pop %v5011
    %v5013 = vadd.f32 %v5010, 1.0
    %v5014 = vadd.f32 %v5012, 1.0
    %v5015 = vrcp.pop %v5013
    %v5016 = vmul.f32 1.0, %v5015
    %v5017 = vrcp.pop %v5014
    %v5018 = vmul.f32 1.0, %v5017
    %v5019 = vxor.u32 %v5001, 2147483648
    %v5020 = vxor.u32 %v5002, 2147483648
    %v5021 = vmul.f32 %v5019, 1.442695
    %v5022 = vpow.pop %v5021
    %v5023 = vmul.f32 %v5020, 1.442695
    %v5024 = vpow.pop %v5023
    %v5025 = vadd.f32 %v5022, 1.0
    %v5026 = vadd.f32 %v5024, 1.0
    %v5027 = vrcp.pop %v5025
    %v5028 = vmul.f32 1.0, %v5027
    %v5029 = vrcp.pop %v5026
    %v5030 = vmul.f32 1.0, %v5029
    %v5031 = vtanh.pop %v5003
    %v5032 = vtanh.pop %v5004
    %v5033 = vxor.u32 %v5005, 2147483648
    %v5034 = vxor.u32 %v5006, 2147483648
    %v5035 = vmul.f32 %v5033, 1.442695
    %v5036 = vpow.pop %v5035
    %v5037 = vmul.f32 %v5034, 1.442695
    %v5038 = vpow.pop %v5037
    %v5039 = vadd.f32 %v5036, 1.0
    %v5040 = vadd.f32 %v5038, 1.0
    %v5041 = vrcp.pop %v5039
    %v5042 = vmul.f32 1.0, %v5041
    %v5043 = vrcp.pop %v5040
    %v5044 = vmul.f32 1.0, %v5043
    %v5045 = vmul.f32 %v5028, %v4623
    %v5046 = vmul.f32 %v5030, %v4624
    %v5047 = vmul.f32 %v5016, %v5031
    %v5048 = vmul.f32 %v5018, %v5032
    %v5049 = vadd.f32 %v5045, %v5047
    %v5050 = vadd.f32 %v5046, %v5048
    %v5051 = vtanh.pop %v5049
    %v5052 = vtanh.pop %v5050
    %v5053 = vmul.f32 %v5042, %v5051
    %v5054 = vmul.f32 %v5044, %v5052
    %v5055 = vpack.c.bf16 %v5053, %v5053
    %v5056 = vpack.c.bf16 %v5054, %v5054
    %v5057 = vpack.c.bf16 %v4823, %v4823
    %5058 = vmatprep.subr.bf16.mxu0 %v2126
    %5059 = vmatpush1.bf16.msra.mxu0 %v2125
    %5060 = vmatprep.subr.bf16.mxu0 %v2122
    %5061 = vmatpush1.bf16.msra.mxu0 %v2121
    %5062 = vmatprep.subr.bf16.mxu0 %v2118
    %5063 = vmatpush1.bf16.msra.mxu0 %v2117
    %5064 = vmatprep.subr.bf16.mxu0 %v2114
    %5065 = vmatpush1.bf16.msra.mxu0 %v2113
    %5066 = vmatprep.subr.bf16.mxu0 %v2110
    %5067 = vmatpush1.bf16.msra.mxu0 %v2109
    %5068 = vmatprep.subr.bf16.mxu0 %v2106
    %5069 = vmatpush1.bf16.msra.mxu0 %v2105
    %5070 = vmatprep.subr.bf16.mxu0 %v2102
    %5071 = vmatpush1.bf16.msra.mxu0 %v2101
    %5072 = vmatprep.subr.bf16.mxu0 %v2098
    %5073 = vmatpush1.bf16.msra.mxu0 %v2097
    %5074 = vmatprep.subr.bf16.mxu0 0
    %5075 = vmatpush2.bf16.msra.mxu0 0
    %5076 = vmatprep.subr.bf16.mxu0 0
    %5077 = vmatpush2.bf16.msra.mxu0 0
    %5078 = vmatprep.subr.bf16.mxu0 0
    %5079 = vmatpush2.bf16.msra.mxu0 0
    %5080 = vmatprep.subr.bf16.mxu0 0
    %5081 = vmatpush2.bf16.msra.mxu0 0
    %5082 = vmatprep.subr.bf16.mxu0 0
    %5083 = vmatpush2.bf16.msra.mxu0 0
    %5084 = vmatprep.subr.bf16.mxu0 0
    %5085 = vmatpush2.bf16.msra.mxu0 0
    %5086 = vmatprep.subr.bf16.mxu0 0
    %5087 = vmatpush2.bf16.msra.mxu0 0
    %5088 = vmatprep.subr.bf16.mxu0 0
    %5089 = vmatpush2.bf16.msra.mxu0 0
    %5090 = vmatprep.mubr.bf16.mxu0 0
    %5091 = vmatmul.mubr.bf16.gmra.mxu0 %v5057
    %v5092 = vpop.f32.mrf.mxu0
    %v5093 = vadd.f32 0.0, %v5092
    %v5094 = vpop.f32.mrf.mxu0
    %v5095 = vadd.f32 0.0, %v5094
    %v5096 = vpop.f32.mrf.mxu0
    %v5097 = vpop.f32.mrf.mxu0
    %5098 = vdwg.mxu0
    %5099 = vmatprep.subr.bf16.mxu0 %v2128
    %5100 = vmatpush1.bf16.msra.mxu0 %v2127
    %5101 = vmatprep.subr.bf16.mxu0 %v2124
    %5102 = vmatpush1.bf16.msra.mxu0 %v2123
    %5103 = vmatprep.subr.bf16.mxu0 %v2120
    %5104 = vmatpush1.bf16.msra.mxu0 %v2119
    %5105 = vmatprep.subr.bf16.mxu0 %v2116
    %5106 = vmatpush1.bf16.msra.mxu0 %v2115
    %5107 = vmatprep.subr.bf16.mxu0 %v2112
    %5108 = vmatpush1.bf16.msra.mxu0 %v2111
    %5109 = vmatprep.subr.bf16.mxu0 %v2108
    %5110 = vmatpush1.bf16.msra.mxu0 %v2107
    %5111 = vmatprep.subr.bf16.mxu0 %v2104
    %5112 = vmatpush1.bf16.msra.mxu0 %v2103
    %5113 = vmatprep.subr.bf16.mxu0 %v2100
    %5114 = vmatpush1.bf16.msra.mxu0 %v2099
    %5115 = vmatprep.subr.bf16.mxu0 0
    %5116 = vmatpush2.bf16.msra.mxu0 0
    %5117 = vmatprep.subr.bf16.mxu0 0
    %5118 = vmatpush2.bf16.msra.mxu0 0
    %5119 = vmatprep.subr.bf16.mxu0 0
    %5120 = vmatpush2.bf16.msra.mxu0 0
    %5121 = vmatprep.subr.bf16.mxu0 0
    %5122 = vmatpush2.bf16.msra.mxu0 0
    %5123 = vmatprep.subr.bf16.mxu0 0
    %5124 = vmatpush2.bf16.msra.mxu0 0
    %5125 = vmatprep.subr.bf16.mxu0 0
    %5126 = vmatpush2.bf16.msra.mxu0 0
    %5127 = vmatprep.subr.bf16.mxu0 0
    %5128 = vmatpush2.bf16.msra.mxu0 0
    %5129 = vmatprep.subr.bf16.mxu0 0
    %5130 = vmatpush2.bf16.msra.mxu0 0
    %5131 = vmatprep.mubr.bf16.mxu0 0
    %5132 = vmatmul.mubr.bf16.gmra.mxu0 %v5057
    %v5133 = vpop.f32.mrf.mxu0
    %v5134 = vadd.f32 0.0, %v5133
    %v5135 = vpop.f32.mrf.mxu0
    %v5136 = vadd.f32 0.0, %v5135
    %v5137 = vpop.f32.mrf.mxu0
    %v5138 = vpop.f32.mrf.mxu0
    %5139 = vdwg.mxu0
    %5140 = vmatprep.subr.bf16.mxu0 %v2464
    %5141 = vmatpush1.bf16.msra.mxu0 %v2463
    %5142 = vmatprep.subr.bf16.mxu0 %v2460
    %5143 = vmatpush1.bf16.msra.mxu0 %v2459
    %5144 = vmatprep.subr.bf16.mxu0 %v2456
    %5145 = vmatpush1.bf16.msra.mxu0 %v2455
    %5146 = vmatprep.subr.bf16.mxu0 %v2452
    %5147 = vmatpush1.bf16.msra.mxu0 %v2451
    %5148 = vmatprep.subr.bf16.mxu0 %v2448
    %5149 = vmatpush1.bf16.msra.mxu0 %v2447
    %5150 = vmatprep.subr.bf16.mxu0 %v2444
    %5151 = vmatpush1.bf16.msra.mxu0 %v2443
    %5152 = vmatprep.subr.bf16.mxu0 %v2440
    %5153 = vmatpush1.bf16.msra.mxu0 %v2439
    %5154 = vmatprep.subr.bf16.mxu0 %v2436
    %5155 = vmatpush1.bf16.msra.mxu0 %v2435
    %5156 = vmatprep.subr.bf16.mxu0 %v2496
    %5157 = vmatpush2.bf16.msra.mxu0 %v2495
    %5158 = vmatprep.subr.bf16.mxu0 %v2492
    %5159 = vmatpush2.bf16.msra.mxu0 %v2491
    %5160 = vmatprep.subr.bf16.mxu0 %v2488
    %5161 = vmatpush2.bf16.msra.mxu0 %v2487
    %5162 = vmatprep.subr.bf16.mxu0 %v2484
    %5163 = vmatpush2.bf16.msra.mxu0 %v2483
    %5164 = vmatprep.subr.bf16.mxu0 %v2480
    %5165 = vmatpush2.bf16.msra.mxu0 %v2479
    %5166 = vmatprep.subr.bf16.mxu0 %v2476
    %5167 = vmatpush2.bf16.msra.mxu0 %v2475
    %5168 = vmatprep.subr.bf16.mxu0 %v2472
    %5169 = vmatpush2.bf16.msra.mxu0 %v2471
    %5170 = vmatprep.subr.bf16.mxu0 %v2468
    %5171 = vmatpush2.bf16.msra.mxu0 %v2467
    %5172 = vmatprep.mubr.bf16.mxu0 %v5056
    %5173 = vmatmul.mubr.bf16.gmra.mxu0 %v5055
    %v5174 = vpop.f32.mrf.mxu0
    %v5175 = vadd.f32 %v5093, %v5174
    %v5176 = vpop.f32.mrf.mxu0
    %v5177 = vadd.f32 %v5095, %v5176
    %v5178 = vpop.f32.mrf.mxu0
    %v5179 = vpop.f32.mrf.mxu0
    %5180 = vdwg.mxu0
    %5181 = vmatprep.subr.bf16.mxu0 %v2466
    %5182 = vmatpush1.bf16.msra.mxu0 %v2465
    %5183 = vmatprep.subr.bf16.mxu0 %v2462
    %5184 = vmatpush1.bf16.msra.mxu0 %v2461
    %5185 = vmatprep.subr.bf16.mxu0 %v2458
    %5186 = vmatpush1.bf16.msra.mxu0 %v2457
    %5187 = vmatprep.subr.bf16.mxu0 %v2454
    %5188 = vmatpush1.bf16.msra.mxu0 %v2453
    %5189 = vmatprep.subr.bf16.mxu0 %v2450
    %5190 = vmatpush1.bf16.msra.mxu0 %v2449
    %5191 = vmatprep.subr.bf16.mxu0 %v2446
    %5192 = vmatpush1.bf16.msra.mxu0 %v2445
    %5193 = vmatprep.subr.bf16.mxu0 %v2442
    %5194 = vmatpush1.bf16.msra.mxu0 %v2441
    %5195 = vmatprep.subr.bf16.mxu0 %v2438
    %5196 = vmatpush1.bf16.msra.mxu0 %v2437
    %5197 = vmatprep.subr.bf16.mxu0 %v2498
    %5198 = vmatpush2.bf16.msra.mxu0 %v2497
    %5199 = vmatprep.subr.bf16.mxu0 %v2494
    %5200 = vmatpush2.bf16.msra.mxu0 %v2493
    %5201 = vmatprep.subr.bf16.mxu0 %v2490
    %5202 = vmatpush2.bf16.msra.mxu0 %v2489
    %5203 = vmatprep.subr.bf16.mxu0 %v2486
    %5204 = vmatpush2.bf16.msra.mxu0 %v2485
    %5205 = vmatprep.subr.bf16.mxu0 %v2482
    %5206 = vmatpush2.bf16.msra.mxu0 %v2481
    %5207 = vmatprep.subr.bf16.mxu0 %v2478
    %5208 = vmatpush2.bf16.msra.mxu0 %v2477
    %5209 = vmatprep.subr.bf16.mxu0 %v2474
    %5210 = vmatpush2.bf16.msra.mxu0 %v2473
    %5211 = vmatprep.subr.bf16.mxu0 %v2470
    %5212 = vmatpush2.bf16.msra.mxu0 %v2469
    %5213 = vmatprep.mubr.bf16.mxu0 %v5056
    %5214 = vmatmul.mubr.bf16.gmra.mxu0 %v5055
    %v5215 = vpop.f32.mrf.mxu0
    %v5216 = vadd.f32 %v5134, %v5215
    %v5217 = vpop.f32.mrf.mxu0
    %v5218 = vadd.f32 %v5136, %v5217
    %v5219 = vpop.f32.mrf.mxu0
    %v5220 = vpop.f32.mrf.mxu0
    %5221 = vdwg.mxu0
    %v5222 = vadd.f32 %v5175, %v2649
    %v5223 = vadd.f32 %v5177, %v2653
    %v5224 = vadd.f32 %v5216, %v2657
    %v5225 = vadd.f32 %v5218, %v2661
    %v5226 = vxor.u32 %v5222, 2147483648
    %v5227 = vmul.f32 %v5226, 1.442695
    %v5228 = vpow.pop %v5227
    %v5229 = vadd.f32 %v5228, 1.0
    %v5230 = vrcp.pop %v5229
    %v5231 = vmul.f32 1.0, %v5230
    %v5232 = vxor.u32 %v5223, 2147483648
    %v5233 = vmul.f32 %v5232, 1.442695
    %v5234 = vpow.pop %v5233
    %v5235 = vadd.f32 %v5234, 1.0
    %v5236 = vrcp.pop %v5235
    %v5237 = vmul.f32 1.0, %v5236
    %v5238 = vtanh.pop %v5224
    %v5239 = vxor.u32 %v5225, 2147483648
    %v5240 = vmul.f32 %v5239, 1.442695
    %v5241 = vpow.pop %v5240
    %v5242 = vadd.f32 %v5241, 1.0
    %v5243 = vrcp.pop %v5242
    %v5244 = vmul.f32 1.0, %v5243
    %v5245 = vmul.f32 %v5237, %v4821
    %v5246 = vmul.f32 %v5231, %v5238
    %v5247 = vadd.f32 %v5245, %v5246
    %v5248 = vtanh.pop %v5247
    %v5249 = vmul.f32 %v5244, %v5248
    %s5250 = smul.u32 7, 8
    %s5251 = smul.addr %s5250, 8
    %s5252 = scalar_lea.vmem [#allocation2], %s5251
    %v5253 = vld [vmem:[%s5252] sm:$0xff]
    %v5254 = vld [vmem:[%s5252 + $0x8] sm:$0xff]
    %v5255 = vld [vmem:[%s5252 + $0x10] sm:$0xff]
    %v5256 = vld [vmem:[%s5252 + $0x18] sm:$0xff]
    %v5257 = vld [vmem:[%s5252 + $0x20] sm:$0xff]
    %v5258 = vld [vmem:[%s5252 + $0x28] sm:$0xff]
    %v5259 = vld [vmem:[%s5252 + $0x30] sm:$0xff]
    %v5260 = vld [vmem:[%s5252 + $0x38] sm:$0xff]
    %5261 = vmatprep.subr.bf16.mxu0 %v1580
    %5262 = vmatpush1.bf16.msra.mxu0 %v1579
    %5263 = vmatprep.subr.bf16.mxu0 %v1572
    %5264 = vmatpush1.bf16.msra.mxu0 %v1571
    %5265 = vmatprep.subr.bf16.mxu0 %v1564
    %5266 = vmatpush1.bf16.msra.mxu0 %v1563
    %5267 = vmatprep.subr.bf16.mxu0 %v1556
    %5268 = vmatpush1.bf16.msra.mxu0 %v1555
    %5269 = vmatprep.subr.bf16.mxu0 %v1548
    %5270 = vmatpush1.bf16.msra.mxu0 %v1547
    %5271 = vmatprep.subr.bf16.mxu0 %v1540
    %5272 = vmatpush1.bf16.msra.mxu0 %v1539
    %5273 = vmatprep.subr.bf16.mxu0 %v1532
    %5274 = vmatpush1.bf16.msra.mxu0 %v1531
    %5275 = vmatprep.subr.bf16.mxu0 %v1524
    %5276 = vmatpush1.bf16.msra.mxu0 %v1523
    %5277 = vmatprep.subr.bf16.mxu0 %v1644
    %5278 = vmatpush2.bf16.msra.mxu0 %v1643
    %5279 = vmatprep.subr.bf16.mxu0 %v1636
    %5280 = vmatpush2.bf16.msra.mxu0 %v1635
    %5281 = vmatprep.subr.bf16.mxu0 %v1628
    %5282 = vmatpush2.bf16.msra.mxu0 %v1627
    %5283 = vmatprep.subr.bf16.mxu0 %v1620
    %5284 = vmatpush2.bf16.msra.mxu0 %v1619
    %5285 = vmatprep.subr.bf16.mxu0 %v1612
    %5286 = vmatpush2.bf16.msra.mxu0 %v1611
    %5287 = vmatprep.subr.bf16.mxu0 %v1604
    %5288 = vmatpush2.bf16.msra.mxu0 %v1603
    %5289 = vmatprep.subr.bf16.mxu0 %v1596
    %5290 = vmatpush2.bf16.msra.mxu0 %v1595
    %5291 = vmatprep.subr.bf16.mxu0 %v1588
    %5292 = vmatpush2.bf16.msra.mxu0 %v1587
    %5293 = vmatprep.mubr.bf16.mxu0 %v5056
    %5294 = vmatmul.mubr.bf16.gmra.mxu0 %v5055
    %v5295 = vpop.f32.mrf.mxu0
    %v5296 = vadd.f32 0.0, %v5295
    %v5297 = vpop.f32.mrf.mxu0
    %v5298 = vadd.f32 0.0, %v5297
    %v5299 = vpop.f32.mrf.mxu0
    %v5300 = vpop.f32.mrf.mxu0
    %5301 = vdwg.mxu0
    %5302 = vmatprep.subr.bf16.mxu0 %v1582
    %5303 = vmatpush1.bf16.msra.mxu0 %v1581
    %5304 = vmatprep.subr.bf16.mxu0 %v1574
    %5305 = vmatpush1.bf16.msra.mxu0 %v1573
    %5306 = vmatprep.subr.bf16.mxu0 %v1566
    %5307 = vmatpush1.bf16.msra.mxu0 %v1565
    %5308 = vmatprep.subr.bf16.mxu0 %v1558
    %5309 = vmatpush1.bf16.msra.mxu0 %v1557
    %5310 = vmatprep.subr.bf16.mxu0 %v1550
    %5311 = vmatpush1.bf16.msra.mxu0 %v1549
    %5312 = vmatprep.subr.bf16.mxu0 %v1542
    %5313 = vmatpush1.bf16.msra.mxu0 %v1541
    %5314 = vmatprep.subr.bf16.mxu0 %v1534
    %5315 = vmatpush1.bf16.msra.mxu0 %v1533
    %5316 = vmatprep.subr.bf16.mxu0 %v1526
    %5317 = vmatpush1.bf16.msra.mxu0 %v1525
    %5318 = vmatprep.subr.bf16.mxu0 %v1646
    %5319 = vmatpush2.bf16.msra.mxu0 %v1645
    %5320 = vmatprep.subr.bf16.mxu0 %v1638
    %5321 = vmatpush2.bf16.msra.mxu0 %v1637
    %5322 = vmatprep.subr.bf16.mxu0 %v1630
    %5323 = vmatpush2.bf16.msra.mxu0 %v1629
    %5324 = vmatprep.subr.bf16.mxu0 %v1622
    %5325 = vmatpush2.bf16.msra.mxu0 %v1621
    %5326 = vmatprep.subr.bf16.mxu0 %v1614
    %5327 = vmatpush2.bf16.msra.mxu0 %v1613
    %5328 = vmatprep.subr.bf16.mxu0 %v1606
    %5329 = vmatpush2.bf16.msra.mxu0 %v1605
    %5330 = vmatprep.subr.bf16.mxu0 %v1598
    %5331 = vmatpush2.bf16.msra.mxu0 %v1597
    %5332 = vmatprep.subr.bf16.mxu0 %v1590
    %5333 = vmatpush2.bf16.msra.mxu0 %v1589
    %5334 = vmatprep.mubr.bf16.mxu0 %v5056
    %5335 = vmatmul.mubr.bf16.gmra.mxu0 %v5055
    %v5336 = vpop.f32.mrf.mxu0
    %v5337 = vadd.f32 0.0, %v5336
    %v5338 = vpop.f32.mrf.mxu0
    %v5339 = vadd.f32 0.0, %v5338
    %v5340 = vpop.f32.mrf.mxu0
    %v5341 = vpop.f32.mrf.mxu0
    %5342 = vdwg.mxu0
    %5343 = vmatprep.subr.bf16.mxu0 %v1584
    %5344 = vmatpush1.bf16.msra.mxu0 %v1583
    %5345 = vmatprep.subr.bf16.mxu0 %v1576
    %5346 = vmatpush1.bf16.msra.mxu0 %v1575
    %5347 = vmatprep.subr.bf16.mxu0 %v1568
    %5348 = vmatpush1.bf16.msra.mxu0 %v1567
    %5349 = vmatprep.subr.bf16.mxu0 %v1560
    %5350 = vmatpush1.bf16.msra.mxu0 %v1559
    %5351 = vmatprep.subr.bf16.mxu0 %v1552
    %5352 = vmatpush1.bf16.msra.mxu0 %v1551
    %5353 = vmatprep.subr.bf16.mxu0 %v1544
    %5354 = vmatpush1.bf16.msra.mxu0 %v1543
    %5355 = vmatprep.subr.bf16.mxu0 %v1536
    %5356 = vmatpush1.bf16.msra.mxu0 %v1535
    %5357 = vmatprep.subr.bf16.mxu0 %v1528
    %5358 = vmatpush1.bf16.msra.mxu0 %v1527
    %5359 = vmatprep.subr.bf16.mxu0 %v1648
    %5360 = vmatpush2.bf16.msra.mxu0 %v1647
    %5361 = vmatprep.subr.bf16.mxu0 %v1640
    %5362 = vmatpush2.bf16.msra.mxu0 %v1639
    %5363 = vmatprep.subr.bf16.mxu0 %v1632
    %5364 = vmatpush2.bf16.msra.mxu0 %v1631
    %5365 = vmatprep.subr.bf16.mxu0 %v1624
    %5366 = vmatpush2.bf16.msra.mxu0 %v1623
    %5367 = vmatprep.subr.bf16.mxu0 %v1616
    %5368 = vmatpush2.bf16.msra.mxu0 %v1615
    %5369 = vmatprep.subr.bf16.mxu0 %v1608
    %5370 = vmatpush2.bf16.msra.mxu0 %v1607
    %5371 = vmatprep.subr.bf16.mxu0 %v1600
    %5372 = vmatpush2.bf16.msra.mxu0 %v1599
    %5373 = vmatprep.subr.bf16.mxu0 %v1592
    %5374 = vmatpush2.bf16.msra.mxu0 %v1591
    %5375 = vmatprep.mubr.bf16.mxu0 %v5056
    %5376 = vmatmul.mubr.bf16.gmra.mxu0 %v5055
    %v5377 = vpop.f32.mrf.mxu0
    %v5378 = vadd.f32 0.0, %v5377
    %v5379 = vpop.f32.mrf.mxu0
    %v5380 = vadd.f32 0.0, %v5379
    %v5381 = vpop.f32.mrf.mxu0
    %v5382 = vpop.f32.mrf.mxu0
    %5383 = vdwg.mxu0
    %5384 = vmatprep.subr.bf16.mxu0 %v1586
    %5385 = vmatpush1.bf16.msra.mxu0 %v1585
    %5386 = vmatprep.subr.bf16.mxu0 %v1578
    %5387 = vmatpush1.bf16.msra.mxu0 %v1577
    %5388 = vmatprep.subr.bf16.mxu0 %v1570
    %5389 = vmatpush1.bf16.msra.mxu0 %v1569
    %5390 = vmatprep.subr.bf16.mxu0 %v1562
    %5391 = vmatpush1.bf16.msra.mxu0 %v1561
    %5392 = vmatprep.subr.bf16.mxu0 %v1554
    %5393 = vmatpush1.bf16.msra.mxu0 %v1553
    %5394 = vmatprep.subr.bf16.mxu0 %v1546
    %5395 = vmatpush1.bf16.msra.mxu0 %v1545
    %5396 = vmatprep.subr.bf16.mxu0 %v1538
    %5397 = vmatpush1.bf16.msra.mxu0 %v1537
    %5398 = vmatprep.subr.bf16.mxu0 %v1530
    %5399 = vmatpush1.bf16.msra.mxu0 %v1529
    %5400 = vmatprep.subr.bf16.mxu0 %v1650
    %5401 = vmatpush2.bf16.msra.mxu0 %v1649
    %5402 = vmatprep.subr.bf16.mxu0 %v1642
    %5403 = vmatpush2.bf16.msra.mxu0 %v1641
    %5404 = vmatprep.subr.bf16.mxu0 %v1634
    %5405 = vmatpush2.bf16.msra.mxu0 %v1633
    %5406 = vmatprep.subr.bf16.mxu0 %v1626
    %5407 = vmatpush2.bf16.msra.mxu0 %v1625
    %5408 = vmatprep.subr.bf16.mxu0 %v1618
    %5409 = vmatpush2.bf16.msra.mxu0 %v1617
    %5410 = vmatprep.subr.bf16.mxu0 %v1610
    %5411 = vmatpush2.bf16.msra.mxu0 %v1609
    %5412 = vmatprep.subr.bf16.mxu0 %v1602
    %5413 = vmatpush2.bf16.msra.mxu0 %v1601
    %5414 = vmatprep.subr.bf16.mxu0 %v1594
    %5415 = vmatpush2.bf16.msra.mxu0 %v1593
    %5416 = vmatprep.mubr.bf16.mxu0 %v5056
    %5417 = vmatmul.mubr.bf16.gmra.mxu0 %v5055
    %v5418 = vpop.f32.mrf.mxu0
    %v5419 = vadd.f32 0.0, %v5418
    %v5420 = vpop.f32.mrf.mxu0
    %v5421 = vadd.f32 0.0, %v5420
    %v5422 = vpop.f32.mrf.mxu0
    %v5423 = vpop.f32.mrf.mxu0
    %5424 = vdwg.mxu0
    %v5425 = vadd.f32 %v5253, %v5296
    %v5426 = vadd.f32 %v5254, %v5298
    %v5427 = vadd.f32 %v5255, %v5337
    %v5428 = vadd.f32 %v5256, %v5339
    %v5429 = vadd.f32 %v5257, %v5378
    %v5430 = vadd.f32 %v5258, %v5380
    %v5431 = vadd.f32 %v5259, %v5419
    %v5432 = vadd.f32 %v5260, %v5421
    %v5433 = vxor.u32 %v5425, 2147483648
    %v5434 = vxor.u32 %v5426, 2147483648
    %v5435 = vmul.f32 %v5433, 1.442695
    %v5436 = vpow.pop %v5435
    %v5437 = vmul.f32 %v5434, 1.442695
    %v5438 = vpow.pop %v5437
    %v5439 = vadd.f32 %v5436, 1.0
    %v5440 = vadd.f32 %v5438, 1.0
    %v5441 = vrcp.pop %v5439
    %v5442 = vmul.f32 1.0, %v5441
    %v5443 = vrcp.pop %v5440
    %v5444 = vmul.f32 1.0, %v5443
    %v5445 = vxor.u32 %v5427, 2147483648
    %v5446 = vxor.u32 %v5428, 2147483648
    %v5447 = vmul.f32 %v5445, 1.442695
    %v5448 = vpow.pop %v5447
    %v5449 = vmul.f32 %v5446, 1.442695
    %v5450 = vpow.pop %v5449
    %v5451 = vadd.f32 %v5448, 1.0
    %v5452 = vadd.f32 %v5450, 1.0
    %v5453 = vrcp.pop %v5451
    %v5454 = vmul.f32 1.0, %v5453
    %v5455 = vrcp.pop %v5452
    %v5456 = vmul.f32 1.0, %v5455
    %v5457 = vtanh.pop %v5429
    %v5458 = vtanh.pop %v5430
    %v5459 = vxor.u32 %v5431, 2147483648
    %v5460 = vxor.u32 %v5432, 2147483648
    %v5461 = vmul.f32 %v5459, 1.442695
    %v5462 = vpow.pop %v5461
    %v5463 = vmul.f32 %v5460, 1.442695
    %v5464 = vpow.pop %v5463
    %v5465 = vadd.f32 %v5462, 1.0
    %v5466 = vadd.f32 %v5464, 1.0
    %v5467 = vrcp.pop %v5465
    %v5468 = vmul.f32 1.0, %v5467
    %v5469 = vrcp.pop %v5466
    %v5470 = vmul.f32 1.0, %v5469
    %v5471 = vmul.f32 %v5454, %v5049
    %v5472 = vmul.f32 %v5456, %v5050
    %v5473 = vmul.f32 %v5442, %v5457
    %v5474 = vmul.f32 %v5444, %v5458
    %v5475 = vadd.f32 %v5471, %v5473
    %v5476 = vadd.f32 %v5472, %v5474
    %v5477 = vtanh.pop %v5475
    %v5478 = vtanh.pop %v5476
    %v5479 = vmul.f32 %v5468, %v5477
    %v5480 = vmul.f32 %v5470, %v5478
    %v5481 = vpack.c.bf16 %v5479, %v5479
    %v5482 = vpack.c.bf16 %v5480, %v5480
    %v5483 = vpack.c.bf16 %v5249, %v5249
    %5484 = vmatprep.subr.bf16.mxu0 %v2126
    %5485 = vmatpush1.bf16.msra.mxu0 %v2125
    %5486 = vmatprep.subr.bf16.mxu0 %v2122
    %5487 = vmatpush1.bf16.msra.mxu0 %v2121
    %5488 = vmatprep.subr.bf16.mxu0 %v2118
    %5489 = vmatpush1.bf16.msra.mxu0 %v2117
    %5490 = vmatprep.subr.bf16.mxu0 %v2114
    %5491 = vmatpush1.bf16.msra.mxu0 %v2113
    %5492 = vmatprep.subr.bf16.mxu0 %v2110
    %5493 = vmatpush1.bf16.msra.mxu0 %v2109
    %5494 = vmatprep.subr.bf16.mxu0 %v2106
    %5495 = vmatpush1.bf16.msra.mxu0 %v2105
    %5496 = vmatprep.subr.bf16.mxu0 %v2102
    %5497 = vmatpush1.bf16.msra.mxu0 %v2101
    %5498 = vmatprep.subr.bf16.mxu0 %v2098
    %5499 = vmatpush1.bf16.msra.mxu0 %v2097
    %5500 = vmatprep.subr.bf16.mxu0 0
    %5501 = vmatpush2.bf16.msra.mxu0 0
    %5502 = vmatprep.subr.bf16.mxu0 0
    %5503 = vmatpush2.bf16.msra.mxu0 0
    %5504 = vmatprep.subr.bf16.mxu0 0
    %5505 = vmatpush2.bf16.msra.mxu0 0
    %5506 = vmatprep.subr.bf16.mxu0 0
    %5507 = vmatpush2.bf16.msra.mxu0 0
    %5508 = vmatprep.subr.bf16.mxu0 0
    %5509 = vmatpush2.bf16.msra.mxu0 0
    %5510 = vmatprep.subr.bf16.mxu0 0
    %5511 = vmatpush2.bf16.msra.mxu0 0
    %5512 = vmatprep.subr.bf16.mxu0 0
    %5513 = vmatpush2.bf16.msra.mxu0 0
    %5514 = vmatprep.subr.bf16.mxu0 0
    %5515 = vmatpush2.bf16.msra.mxu0 0
    %5516 = vmatprep.mubr.bf16.mxu0 0
    %5517 = vmatmul.mubr.bf16.gmra.mxu0 %v5483
    %v5518 = vpop.f32.mrf.mxu0
    %v5519 = vadd.f32 0.0, %v5518
    %v5520 = vpop.f32.mrf.mxu0
    %v5521 = vadd.f32 0.0, %v5520
    %v5522 = vpop.f32.mrf.mxu0
    %v5523 = vpop.f32.mrf.mxu0
    %5524 = vdwg.mxu0
    %5525 = vmatprep.subr.bf16.mxu0 %v2128
    %5526 = vmatpush1.bf16.msra.mxu0 %v2127
    %5527 = vmatprep.subr.bf16.mxu0 %v2124
    %5528 = vmatpush1.bf16.msra.mxu0 %v2123
    %5529 = vmatprep.subr.bf16.mxu0 %v2120
    %5530 = vmatpush1.bf16.msra.mxu0 %v2119
    %5531 = vmatprep.subr.bf16.mxu0 %v2116
    %5532 = vmatpush1.bf16.msra.mxu0 %v2115
    %5533 = vmatprep.subr.bf16.mxu0 %v2112
    %5534 = vmatpush1.bf16.msra.mxu0 %v2111
    %5535 = vmatprep.subr.bf16.mxu0 %v2108
    %5536 = vmatpush1.bf16.msra.mxu0 %v2107
    %5537 = vmatprep.subr.bf16.mxu0 %v2104
    %5538 = vmatpush1.bf16.msra.mxu0 %v2103
    %5539 = vmatprep.subr.bf16.mxu0 %v2100
    %5540 = vmatpush1.bf16.msra.mxu0 %v2099
    %5541 = vmatprep.subr.bf16.mxu0 0
    %5542 = vmatpush2.bf16.msra.mxu0 0
    %5543 = vmatprep.subr.bf16.mxu0 0
    %5544 = vmatpush2.bf16.msra.mxu0 0
    %5545 = vmatprep.subr.bf16.mxu0 0
    %5546 = vmatpush2.bf16.msra.mxu0 0
    %5547 = vmatprep.subr.bf16.mxu0 0
    %5548 = vmatpush2.bf16.msra.mxu0 0
    %5549 = vmatprep.subr.bf16.mxu0 0
    %5550 = vmatpush2.bf16.msra.mxu0 0
    %5551 = vmatprep.subr.bf16.mxu0 0
    %5552 = vmatpush2.bf16.msra.mxu0 0
    %5553 = vmatprep.subr.bf16.mxu0 0
    %5554 = vmatpush2.bf16.msra.mxu0 0
    %5555 = vmatprep.subr.bf16.mxu0 0
    %5556 = vmatpush2.bf16.msra.mxu0 0
    %5557 = vmatprep.mubr.bf16.mxu0 0
    %5558 = vmatmul.mubr.bf16.gmra.mxu0 %v5483
    %v5559 = vpop.f32.mrf.mxu0
    %v5560 = vadd.f32 0.0, %v5559
    %v5561 = vpop.f32.mrf.mxu0
    %v5562 = vadd.f32 0.0, %v5561
    %v5563 = vpop.f32.mrf.mxu0
    %v5564 = vpop.f32.mrf.mxu0
    %5565 = vdwg.mxu0
    %5566 = vmatprep.subr.bf16.mxu0 %v2464
    %5567 = vmatpush1.bf16.msra.mxu0 %v2463
    %5568 = vmatprep.subr.bf16.mxu0 %v2460
    %5569 = vmatpush1.bf16.msra.mxu0 %v2459
    %5570 = vmatprep.subr.bf16.mxu0 %v2456
    %5571 = vmatpush1.bf16.msra.mxu0 %v2455
    %5572 = vmatprep.subr.bf16.mxu0 %v2452
    %5573 = vmatpush1.bf16.msra.mxu0 %v2451
    %5574 = vmatprep.subr.bf16.mxu0 %v2448
    %5575 = vmatpush1.bf16.msra.mxu0 %v2447
    %5576 = vmatprep.subr.bf16.mxu0 %v2444
    %5577 = vmatpush1.bf16.msra.mxu0 %v2443
    %5578 = vmatprep.subr.bf16.mxu0 %v2440
    %5579 = vmatpush1.bf16.msra.mxu0 %v2439
    %5580 = vmatprep.subr.bf16.mxu0 %v2436
    %5581 = vmatpush1.bf16.msra.mxu0 %v2435
    %5582 = vmatprep.subr.bf16.mxu0 %v2496
    %5583 = vmatpush2.bf16.msra.mxu0 %v2495
    %5584 = vmatprep.subr.bf16.mxu0 %v2492
    %5585 = vmatpush2.bf16.msra.mxu0 %v2491
    %5586 = vmatprep.subr.bf16.mxu0 %v2488
    %5587 = vmatpush2.bf16.msra.mxu0 %v2487
    %5588 = vmatprep.subr.bf16.mxu0 %v2484
    %5589 = vmatpush2.bf16.msra.mxu0 %v2483
    %5590 = vmatprep.subr.bf16.mxu0 %v2480
    %5591 = vmatpush2.bf16.msra.mxu0 %v2479
    %5592 = vmatprep.subr.bf16.mxu0 %v2476
    %5593 = vmatpush2.bf16.msra.mxu0 %v2475
    %5594 = vmatprep.subr.bf16.mxu0 %v2472
    %5595 = vmatpush2.bf16.msra.mxu0 %v2471
    %5596 = vmatprep.subr.bf16.mxu0 %v2468
    %5597 = vmatpush2.bf16.msra.mxu0 %v2467
    %5598 = vmatprep.mubr.bf16.mxu0 %v5482
    %5599 = vmatmul.mubr.bf16.gmra.mxu0 %v5481
    %v5600 = vpop.f32.mrf.mxu0
    %v5601 = vadd.f32 %v5519, %v5600
    %v5602 = vpop.f32.mrf.mxu0
    %v5603 = vadd.f32 %v5521, %v5602
    %v5604 = vpop.f32.mrf.mxu0
    %v5605 = vpop.f32.mrf.mxu0
    %5606 = vdwg.mxu0
    %5607 = vmatprep.subr.bf16.mxu0 %v2466
    %5608 = vmatpush1.bf16.msra.mxu0 %v2465
    %5609 = vmatprep.subr.bf16.mxu0 %v2462
    %5610 = vmatpush1.bf16.msra.mxu0 %v2461
    %5611 = vmatprep.subr.bf16.mxu0 %v2458
    %5612 = vmatpush1.bf16.msra.mxu0 %v2457
    %5613 = vmatprep.subr.bf16.mxu0 %v2454
    %5614 = vmatpush1.bf16.msra.mxu0 %v2453
    %5615 = vmatprep.subr.bf16.mxu0 %v2450
    %5616 = vmatpush1.bf16.msra.mxu0 %v2449
    %5617 = vmatprep.subr.bf16.mxu0 %v2446
    %5618 = vmatpush1.bf16.msra.mxu0 %v2445
    %5619 = vmatprep.subr.bf16.mxu0 %v2442
    %5620 = vmatpush1.bf16.msra.mxu0 %v2441
    %5621 = vmatprep.subr.bf16.mxu0 %v2438
    %5622 = vmatpush1.bf16.msra.mxu0 %v2437
    %5623 = vmatprep.subr.bf16.mxu0 %v2498
    %5624 = vmatpush2.bf16.msra.mxu0 %v2497
    %5625 = vmatprep.subr.bf16.mxu0 %v2494
    %5626 = vmatpush2.bf16.msra.mxu0 %v2493
    %5627 = vmatprep.subr.bf16.mxu0 %v2490
    %5628 = vmatpush2.bf16.msra.mxu0 %v2489
    %5629 = vmatprep.subr.bf16.mxu0 %v2486
    %5630 = vmatpush2.bf16.msra.mxu0 %v2485
    %5631 = vmatprep.subr.bf16.mxu0 %v2482
    %5632 = vmatpush2.bf16.msra.mxu0 %v2481
    %5633 = vmatprep.subr.bf16.mxu0 %v2478
    %5634 = vmatpush2.bf16.msra.mxu0 %v2477
    %5635 = vmatprep.subr.bf16.mxu0 %v2474
    %5636 = vmatpush2.bf16.msra.mxu0 %v2473
    %5637 = vmatprep.subr.bf16.mxu0 %v2470
    %5638 = vmatpush2.bf16.msra.mxu0 %v2469
    %5639 = vmatprep.mubr.bf16.mxu0 %v5482
    %5640 = vmatmul.mubr.bf16.gmra.mxu0 %v5481
    %v5641 = vpop.f32.mrf.mxu0
    %v5642 = vadd.f32 %v5560, %v5641
    %v5643 = vpop.f32.mrf.mxu0
    %v5644 = vadd.f32 %v5562, %v5643
    %v5645 = vpop.f32.mrf.mxu0
    %v5646 = vpop.f32.mrf.mxu0
    %5647 = vdwg.mxu0
    %v5648 = vadd.f32 %v5601, %v2649
    %v5649 = vadd.f32 %v5603, %v2653
    %v5650 = vadd.f32 %v5642, %v2657
    %v5651 = vadd.f32 %v5644, %v2661
    %v5652 = vxor.u32 %v5648, 2147483648
    %v5653 = vmul.f32 %v5652, 1.442695
    %v5654 = vpow.pop %v5653
    %v5655 = vadd.f32 %v5654, 1.0
    %v5656 = vrcp.pop %v5655
    %v5657 = vmul.f32 1.0, %v5656
    %v5658 = vxor.u32 %v5649, 2147483648
    %v5659 = vmul.f32 %v5658, 1.442695
    %v5660 = vpow.pop %v5659
    %v5661 = vadd.f32 %v5660, 1.0
    %v5662 = vrcp.pop %v5661
    %v5663 = vmul.f32 1.0, %v5662
    %v5664 = vtanh.pop %v5650
    %v5665 = vxor.u32 %v5651, 2147483648
    %v5666 = vmul.f32 %v5665, 1.442695
    %v5667 = vpow.pop %v5666
    %v5668 = vadd.f32 %v5667, 1.0
    %v5669 = vrcp.pop %v5668
    %v5670 = vmul.f32 1.0, %v5669
    %v5671 = vmul.f32 %v5663, %v5247
    %v5672 = vmul.f32 %v5657, %v5664
    %v5673 = vadd.f32 %v5671, %v5672
    %v5674 = vtanh.pop %v5673
    %v5675 = vmul.f32 %v5670, %v5674
    %v5676 = vpack.c.bf16 %v5675, %v5675
    %v5677 = vld [vmem:[%s7] sm:$0xf]
    %v5678 = vld [vmem:[%s7 + $0x4] sm:$0xf]
    %v5679 = vld [vmem:[%s7 + $0x8] sm:$0xf]
    %v5680 = vld [vmem:[%s7 + $0xc] sm:$0xf]
    %v5681 = vld [vmem:[%s7 + $0x10] sm:$0xf]
    %v5682 = vld [vmem:[%s7 + $0x14] sm:$0xf]
    %v5683 = vld [vmem:[%s7 + $0x18] sm:$0xf]
    %v5684 = vld [vmem:[%s7 + $0x1c] sm:$0xf]
    %v5685 = vld [vmem:[%s7 + $0x20] sm:$0xf]
    %v5686 = vld [vmem:[%s7 + $0x24] sm:$0xf]
    %v5687 = vld [vmem:[%s7 + $0x28] sm:$0xf]
    %v5688 = vld [vmem:[%s7 + $0x2c] sm:$0xf]
    %v5689 = vld [vmem:[%s7 + $0x30] sm:$0xf]
    %v5690 = vld [vmem:[%s7 + $0x34] sm:$0xf]
    %v5691 = vld [vmem:[%s7 + $0x38] sm:$0xf]
    %v5692 = vld [vmem:[%s7 + $0x3c] sm:$0xf]
    %v5693 = vld [vmem:[%s8] sm:$0x1]
    %v5695 = vlaneseq
    %v5696 = vshrl.u32 %v5695, 7
    %v5697 = vsub.s32 0, %v5696
    %v5698 = vrot.slane %v5693, %v5697
    %v5716 = vunpack.c.l.b16 %v5677
    %v5717 = vunpack.c.l.b16 %v5678
    %v5718 = vunpack.c.l.b16 %v5679
    %v5719 = vunpack.c.l.b16 %v5680
    %v5720 = vunpack.c.l.b16 %v5681
    %v5721 = vunpack.c.l.b16 %v5682
    %v5722 = vunpack.c.l.b16 %v5683
    %v5723 = vunpack.c.l.b16 %v5684
    %v5724 = vunpack.c.l.b16 %v5685
    %v5725 = vunpack.c.l.b16 %v5686
    %v5726 = vunpack.c.l.b16 %v5687
    %v5727 = vunpack.c.l.b16 %v5688
    %v5728 = vunpack.c.l.b16 %v5689
    %v5729 = vunpack.c.l.b16 %v5690
    %v5730 = vunpack.c.l.b16 %v5691
    %v5731 = vunpack.c.l.b16 %v5692
    %v5732 = vpack.c.b16 %v5717, %v5716
    %v5733 = vpack.c.b16 %v5719, %v5718
    %v5734 = vpack.c.b16 %v5721, %v5720
    %v5735 = vpack.c.b16 %v5723, %v5722
    %v5736 = vpack.c.b16 %v5725, %v5724
    %v5737 = vpack.c.b16 %v5727, %v5726
    %v5738 = vpack.c.b16 %v5729, %v5728
    %v5739 = vpack.c.b16 %v5731, %v5730
    %5748 = vmatprep.subr.bf16.mxu0 0
    %5749 = vmatpush1.bf16.msra.mxu0 %v5739
    %5750 = vmatprep.subr.bf16.mxu0 0
    %5751 = vmatpush1.bf16.msra.mxu0 %v5738
    %5752 = vmatprep.subr.bf16.mxu0 0
    %5753 = vmatpush1.bf16.msra.mxu0 %v5737
    %5754 = vmatprep.subr.bf16.mxu0 0
    %5755 = vmatpush1.bf16.msra.mxu0 %v5736
    %5756 = vmatprep.subr.bf16.mxu0 0
    %5757 = vmatpush1.bf16.msra.mxu0 %v5735
    %5758 = vmatprep.subr.bf16.mxu0 0
    %5759 = vmatpush1.bf16.msra.mxu0 %v5734
    %5760 = vmatprep.subr.bf16.mxu0 0
    %5761 = vmatpush1.bf16.msra.mxu0 %v5733
    %5762 = vmatprep.subr.bf16.mxu0 0
    %5763 = vmatpush1.bf16.msra.mxu0 %v5732
    %5764 = vmatprep.subr.bf16.mxu0 0
    %5765 = vmatpush2.bf16.msra.mxu0 0
    %5766 = vmatprep.subr.bf16.mxu0 0
    %5767 = vmatpush2.bf16.msra.mxu0 0
    %5768 = vmatprep.subr.bf16.mxu0 0
    %5769 = vmatpush2.bf16.msra.mxu0 0
    %5770 = vmatprep.subr.bf16.mxu0 0
    %5771 = vmatpush2.bf16.msra.mxu0 0
    %5772 = vmatprep.subr.bf16.mxu0 0
    %5773 = vmatpush2.bf16.msra.mxu0 0
    %5774 = vmatprep.subr.bf16.mxu0 0
    %5775 = vmatpush2.bf16.msra.mxu0 0
    %5776 = vmatprep.subr.bf16.mxu0 0
    %5777 = vmatpush2.bf16.msra.mxu0 0
    %5778 = vmatprep.subr.bf16.mxu0 0
    %5779 = vmatpush2.bf16.msra.mxu0 0
    %5780 = vmatprep.mubr.bf16.mxu0 0
    %5781 = vmatmul.mubr.bf16.gmra.mxu0 %v5676
    %v5782 = vpop.f32.mrf.mxu0
    %v5783 = vadd.f32 %v5698, %v5782
    %v5784 = vpop.f32.mrf.mxu0
    %v5785 = vpop.f32.mrf.mxu0
    %v5786 = vpop.f32.mrf.mxu0
    %5787 = vdwg.mxu0
    %5788 = vst [vmem:[#allocation11] sm:$0xff] %v5783
    // Predicated region
    $region54: #{_swing5_forward_packed.1} parent=1 // pred_check
      _
    $region55: #{_swing5_forward_packed.1} parent=1 // pred_check_branch
      %5790 = sbr.rel (0) target = $region57
    $region56: #{_swing5_forward_packed.1} parent=1 // pred_region
      %s5792 = ssub.s32 128, 128
      %5793 = vsyncadd [#allocation5], %s5792
      %s5795 = sshll.u32 [#allocation11], 4
      %s5796 = int_to_ptr.vmem [resolvable:$true] %s5795
      %5798 = dma.vmem_to_hbm [thread:$0]  %s5796, 128, %s9, [#allocation5]
    $region57: #{_swing5_forward_packed.1} parent=1 // pred_fallthru
      _
    // Predicated region
    $region58: #{_swing5_forward_packed.1} parent=1 // pred_check
      _
    $region59: #{_swing5_forward_packed.1} parent=1 // pred_check_branch
      %5800 = sbr.rel (0) target = $region61
    $region60: #{_swing5_forward_packed.1} parent=1 // pred_region
      %5801 = dma.done [#allocation5], 128
    $region61: #{_swing5_forward_packed.1} parent=1 // pred_fallthru
      _
    %5802 = vsyncpa [#allocation4], 1
    %5803 = vsyncpa [#allocation7], 1
    %5804 = vsyncpa [#allocation10], 1
    %5805 = vsyncpa [#allocation5], 1

</llo_original>
